<compile_context>
chip_gen: v7x
topology: tpu7x:2x2x1
jax: 0.10.0
libtpu: 0.0.40
codegen_flags: <defaults>
</compile_context>

<pallas_src>
import functools

import jax
import jax.numpy as jnp
from jax.experimental import pallas as pl
from jax.experimental.pallas import tpu as pltpu

_EPS = 1e-5
_LANES = 128
_VMEM_LIMIT = 48 * 1024 * 1024


# ---------------------------------------------------------------------------
# Kernels
# ---------------------------------------------------------------------------
def _conv_bn_stats_kernel(*refs, pre_affine, compute_dtype):
    """3x3 reflect-pad conv of one row tile as 9 MXU matmuls + BN partial stats.

    refs (pre_affine=False): x, top, bot, w, y, s, ss, acc
    refs (pre_affine=True):  x, top, bot, w, scale, shift, y, s, ss, acc
      x           : (1, TH, W, Cp)  row tile of the input activation
      top, bot    : (1, 1,  W, Cp)  halo rows (H-axis reflection done in index map)
      w           : (9, Cp, Cp)     tap weights, tap = dy*3 + dx (VMEM resident)
      scale,shift : (1, Cp) f32     folded BN affine of the previous conv
      y           : (1, TH, W, Cp)  pre-norm conv output tile
      s, ss       : (1,1,1,Cp) f32  per-tile sum / sum-of-squares of y
      acc         : (TH*W, Cp) f32  VMEM scratch accumulator
    """
    if pre_affine:
        (x_ref, top_ref, bot_ref, w_ref, sc_ref, sh_ref,
         y_ref, s_ref, ss_ref, acc_ref) = refs
    else:
        x_ref, top_ref, bot_ref, w_ref, y_ref, s_ref, ss_ref, acc_ref = refs

    _, th, wd, cp = x_ref.shape

    # Row-haloed tile (TH+2, W, Cp); the H-axis reflection already happened in
    # the halo BlockSpec index maps, so this is a plain concat.
    xh = jnp.concatenate([top_ref[0], x_ref[0], bot_ref[0]], axis=0)
    if pre_affine:
        # BN affine + ReLU of the previous conv.  It is pointwise per channel,
        # so it commutes with reflection / halo extraction.  Done in
        # compute_dtype (bf16 by default) to keep the prologue off the f32 VPU.
        sc = sc_ref[...].astype(compute_dtype)
        sh = sh_ref[...].astype(compute_dtype)
        xh = jnp.maximum(xh * sc + sh, 0).astype(compute_dtype)

    # Three dx-shifted slabs (reflect along W).  Each slab is reused by its 3
    # dy taps via contiguous leading-dim slices whose reshape is free, so the
    # 9 matmuls pay 3 window materializations instead of 9.
    left = jnp.concatenate([xh[:, 1:2], xh[:, :-1]], axis=1)    # input col j-1
    right = jnp.concatenate([xh[:, 1:], xh[:, -2:-1]], axis=1)  # input col j+1
    slabs = (left, xh, right)                                   # dx = 0, 1, 2

    # 9 shifted-window matmuls on the MXU, f32 accumulation in a VMEM scratch.
    for dx, slab in enumerate(slabs):
        for dy in range(3):
            win = slab[dy:dy + th].reshape(th * wd, cp)
            tap = jnp.dot(win, w_ref[dy * 3 + dx],
                          preferred_element_type=jnp.float32)
            if dx == 0 and dy == 0:
                acc_ref[...] = tap
            else:
                acc_ref[...] += tap

    acc = acc_ref[...]
    y_ref[0] = acc.reshape(th, wd, cp).astype(y_ref.dtype)
    # BN partial statistics fused into the conv epilogue (one pass over y).
    # NOTE: stats come from the f32 accumulator while y is stored in
    # compute_dtype; pass 2 therefore normalizes rounded values with unrounded
    # stats (tiny systematic mismatch, covered by the bf16 tolerance).
    s_ref[0, 0] = jnp.sum(acc, axis=0, keepdims=True)
    ss_ref[0, 0] = jnp.sum(acc * acc, axis=0, keepdims=True)


def _bn_residual_kernel(x_ref, y_ref, sc_ref, sh_ref, o_ref):
    """out = x + (y * scale + shift): folded BN2 affine + residual add (f32)."""
    hid = y_ref[0].astype(jnp.float32) * sc_ref[...] + sh_ref[...]
    o_ref[0] = (x_ref[0].astype(jnp.float32) + hid).astype(o_ref.dtype)


# ---------------------------------------------------------------------------
# Wrapper-side helpers (tiny XLA glue)
# ---------------------------------------------------------------------------
def _round_up(v, m):
    return (v + m - 1) // m * m


def _fold_bn(s, ss, gamma, beta, count):
    """Folded per-channel BN affine from f32 partial sums (training-mode stats).

    NOTE: uses E[x^2]-E[x]^2 on f32 partial sums.  Conv outputs (bias folded
    away) are near zero-mean, so the cancellation is benign at these sizes; a
    Welford-style combine would be safer for very large N*H*W.
    """
    s_tot = jnp.sum(s, axis=(0, 1, 2))
    ss_tot = jnp.sum(ss, axis=(0, 1, 2))
    mean = s_tot / count
    var = jnp.maximum(ss_tot / count - mean * mean, 0.0)
    scale = gamma * jax.lax.rsqrt(var + _EPS)          # rsqrt -> EUP
    shift = beta - mean * scale
    return (scale.reshape(1, -1).astype(jnp.float32),
            shift.reshape(1, -1).astype(jnp.float32))


def _pick_row_tile(n, h, w, cp, itemsize, *,
                   vmem_budget=40 * 1024 * 1024, target_m=1024):
    """Row-tile height: largest divisor of H fitting a per-step VMEM budget,
    stopping once the matmul M dim (TH*W) is MXU-friendly.  When N == 1, TH is
    capped at H//2 so the parallel grid keeps >= 2 steps (v7x has 2 cores)."""
    budget = max(vmem_budget - 2 * 9 * cp * cp * itemsize, 4 * 1024 * 1024)
    max_th = h if n >= 2 else max(h // 2, 1)
    best = 1
    for th in range(1, max_th + 1):
        if h % th:
            continue
        est = (2 * (th + 2) * w * cp * itemsize    # double-buffered x tile + halos
               + 2 * th * w * cp * itemsize        # double-buffered y tile
               + 3 * (th + 2) * w * cp * itemsize  # in-kernel dx-shifted slabs
               + th * w * cp * 4)                  # f32 accumulator scratch
        if est > budget:
            break
        best = th
        if th * w >= target_m and th >= 8:
            break
    return best


# ---------------------------------------------------------------------------
# Public forward
# ---------------------------------------------------------------------------
@functools.partial(jax.jit, static_argnames=("compute_dtype",))
def resnet_block_forward(x_nchw, params, *, compute_dtype=jnp.bfloat16):
    """ResnetBlock forward.  x_nchw: (N, C, H, W) f32 -> (N, C, H, W) f32.

    compute_dtype: dtype of the activations in HBM and of the MXU matmul
    operands.  Accumulation, BN statistics, normalization and the residual add
    are always f32.
    """
    n, c, h, w = x_nchw.shape
    if h < 2 or w < 2:
        raise ValueError("ReflectionPad2d(1) requires H >= 2 and W >= 2")
    cp = max(_LANES, _round_up(c, _LANES))            # lane-dense channel axis
    itemsize = jnp.dtype(compute_dtype).itemsize
    th = _pick_row_tile(n, h, w, cp, itemsize)
    nt = h // th
    count = jnp.float32(n * h * w)

    # NCHW -> NHWC, zero-pad channels to Cp, cast once to compute_dtype.  This
    # is the only HBM copy of the activation; pass 1 and pass 3 both read it.
    # TODO(synk): when many ResnetBlocks run back-to-back, keep the stack in
    # NHWC / channel-padded layout and hoist this conversion (and the final
    # unpad / transpose) to the stack boundary.
    x = jnp.transpose(x_nchw, (0, 2, 3, 1))
    x = jnp.pad(x, ((0, 0), (0, 0), (0, 0), (0, cp - c))).astype(compute_dtype)

    def prep_w(w_oihw):
        # (O, I, 3, 3) -> (3, 3, I, O) -> zero-pad channels -> (9, Cp, Cp).
        wt = jnp.transpose(w_oihw, (2, 3, 1, 0))
        wt = jnp.pad(wt, ((0, 0), (0, 0), (0, cp - c), (0, cp - c)))
        return wt.reshape(9, cp, cp).astype(compute_dtype)

    def prep_v(v):
        return jnp.pad(v.astype(jnp.float32), (0, cp - c))

    w1, w2 = prep_w(params["w1"]), prep_w(params["w2"])
    g1, be1 = prep_v(params["g1"]), prep_v(params["be1"])
    g2, be2 = prep_v(params["g2"]), prep_v(params["be2"])
    # NOTE: conv biases params["b1"]/params["b2"] cancel exactly under
    # training-mode BatchNorm (the batch mean absorbs them, the variance is
    # unchanged), so they are folded away instead of paying a full-tensor add.

    cparams = pltpu.CompilerParams(
        dimension_semantics=("parallel", "parallel"),
        vmem_limit_bytes=_VMEM_LIMIT)

    # Halo-row index maps implement the H-axis reflection, so no padded copy of
    # the activation is ever materialized in HBM.
    #   top row of tile r    = reflect(r*TH - 1)  = |r*TH - 1|
    #   bottom row of tile r = reflect(r*TH + TH) = (H-1) - |(r+1)*TH - (H-1)|
    def top_map(b, r):
        q = r * th - 1
        return (b, jnp.maximum(q, -q), 0, 0)

    def bot_map(b, r):
        q = (r + 1) * th - (h - 1)
        return (b, (h - 1) - jnp.maximum(q, -q), 0, 0)

    tile_spec = pl.BlockSpec((1, th, w, cp), lambda b, r: (b, r, 0, 0))
    top_spec = pl.BlockSpec((1, 1, w, cp), top_map)
    bot_spec = pl.BlockSpec((1, 1, w, cp), bot_map)
    w_spec = pl.BlockSpec((9, cp, cp), lambda b, r: (0, 0, 0))   # VMEM resident
    vec_spec = pl.BlockSpec((1, cp), lambda b, r: (0, 0))        # per-channel affine
    stat_spec = pl.BlockSpec((1, 1, 1, cp), lambda b, r: (b, r, 0, 0))

    grid = (n, nt)
    conv_out_shape = (
        jax.ShapeDtypeStruct((n, h, w, cp), compute_dtype),      # pre-norm conv out
        jax.ShapeDtypeStruct((n, nt, 1, cp), jnp.float32),       # per-tile sum
        jax.ShapeDtypeStruct((n, nt, 1, cp), jnp.float32),       # per-tile sum of sq
    )

    # ---- pass 1: conv1 + per-tile BN1 partial stats -------------------------
    y1, s1, ss1 = pl.pallas_call(
        functools.partial(_conv_bn_stats_kernel, pre_affine=False,
                          compute_dtype=compute_dtype),
        grid=grid,
        in_specs=[tile_spec, top_spec, bot_spec, w_spec],
        out_specs=(tile_spec, stat_spec, stat_spec),
        out_shape=conv_out_shape,
        scratch_shapes=[pltpu.VMEM((th * w, cp), jnp.float32)],
        compiler_params=cparams,
    )(x, x, x, w1)
    scale1, shift1 = _fold_bn(s1, ss1, g1, be1, count)

    # ---- pass 2: BN1 affine + ReLU + conv2 + per-tile BN2 partial stats -----
    y2, s2, ss2 = pl.pallas_call(
        functools.partial(_conv_bn_stats_kernel, pre_affine=True,
                          compute_dtype=compute_dtype),
        grid=grid,
        in_specs=[tile_spec, top_spec, bot_spec, w_spec, vec_spec, vec_spec],
        out_specs=(tile_spec, stat_spec, stat_spec),
        out_shape=conv_out_shape,
        scratch_shapes=[pltpu.VMEM((th * w, cp), jnp.float32)],
        compiler_params=cparams,
    )(y1, y1, y1, w2, scale1, shift1)
    scale2, shift2 = _fold_bn(s2, ss2, g2, be2, count)

    # ---- pass 3: BN2 affine + residual add ----------------------------------
    out = pl.pallas_call(
        _bn_residual_kernel,
        grid=grid,
        in_specs=[tile_spec, tile_spec, vec_spec, vec_spec],
        out_specs=pl.BlockSpec((1, th, w, cp), lambda b, r: (b, r, 0, 0)),
        out_shape=jax.ShapeDtypeStruct((n, h, w, cp), jnp.float32),
        compiler_params=cparams,
    )(x, y2, scale2, shift2)

    # TODO(synk): hoist the channel unpad + NHWC->NCHW transpose to the
    # ResnetBlock-stack boundary when blocks are chained.
    out = out[..., :c]
    return jnp.transpose(out, (0, 3, 1, 2)).astype(x_nchw.dtype)


# ---------------------------------------------------------------------------
# Pure-JAX reference (NCHW, mirrors the PyTorch forward; true-f32 precision)
# ---------------------------------------------------------------------------
def _reference_forward(x, params):
    def conv_bn(t, wgt, b, g, be, relu):
        tp = jnp.pad(t, ((0, 0), (0, 0), (1, 1), (1, 1)), mode="reflect")
        y = jax.lax.conv_general_dilated(
            tp, wgt, window_strides=(1, 1), padding="VALID",
            dimension_numbers=("NCHW", "OIHW", "NCHW"),
            precision=jax.lax.Precision.HIGHEST)
        y = y + b.reshape(1, -1, 1, 1)
        mean = jnp.mean(y, axis=(0, 2, 3), keepdims=True)
        var = jnp.mean((y - mean) ** 2, axis=(0, 2, 3), keepdims=True)
        y = (g.reshape(1, -1, 1, 1) * (y - mean) / jnp.sqrt(var + _EPS)
             + be.reshape(1, -1, 1, 1))
        return jnp.maximum(y, 0.0) if relu else y

    h = conv_bn(x, params["w1"], params["b1"], params["g1"], params["be1"], True)
    h = conv_bn(h, params["w2"], params["b2"], params["g2"], params["be2"], False)
    return x + h


if __name__ == "__main__":
    N, dim, H, W = 2, 4, 16, 16
    key = jax.random.PRNGKey(0)
    ks = jax.random.split(key, 9)

    x = jax.random.normal(ks[0], (N, dim, H, W), jnp.float32)
    params = {
        "w1": 0.2 * jax.random.normal(ks[1], (dim, dim, 3, 3), jnp.float32),
        "b1": 0.1 * jax.random.normal(ks[2], (dim,), jnp.float32),
        "g1": 1.0 + 0.1 * jax.random.normal(ks[3], (dim,), jnp.float32),
        "be1": 0.1 * jax.random.normal(ks[4], (dim,), jnp.float32),
        "w2": 0.2 * jax.random.normal(ks[5], (dim, dim, 3, 3), jnp.float32),
        "b2": 0.1 * jax.random.normal(ks[6], (dim,), jnp.float32),
        "g2": 1.0 + 0.1 * jax.random.normal(ks[7], (dim,), jnp.float32),
        "be2": 0.1 * jax.random.normal(ks[8], (dim,), jnp.float32),
    }

    y_ref = jax.block_until_ready(_reference_forward(x, params))

    # Structural correctness: f32 MXU operands / activations -> tight tolerance.
    y_f32 = jax.block_until_ready(
        resnet_block_forward(x, params, compute_dtype=jnp.float32))
    assert y_f32.shape == x.shape and y_f32.dtype == x.dtype
    err_f32 = float(jnp.max(jnp.abs(y_f32 - y_ref)))
    assert err_f32 < 1e-3, f"f32 path mismatch vs reference, max abs err = {err_f32}"

    # Default mixed-precision path: bf16 MXU operands / activations with f32
    # accumulation, BN stats, normalization and residual.  Two chained bf16
    # convs re-normalized to unit variance by BN -> a few e-3..1e-2 abs error
    # is the expected scale, so use a correspondingly looser bound.
    y_bf16 = jax.block_until_ready(resnet_block_forward(x, params))
    assert y_bf16.shape == x.shape and y_bf16.dtype == x.dtype
    err_bf16 = float(jnp.max(jnp.abs(y_bf16 - y_ref)))
    assert err_bf16 < 5e-2, f"bf16 path mismatch vs reference, max abs err = {err_bf16}"

    print("KERNEL_OK")
</pallas_src>

<mosaic_0001>
module attributes {stable_mosaic.version = 11 : i64} {
  func.func @_bn_residual_kernel(%arg0: i32, %arg1: i32, %arg2: memref<1x16x16x128xf32, #tpu.memory_space<vmem>>, %arg3: memref<1x16x16x128xf32, #tpu.memory_space<vmem>>, %arg4: memref<1x128xf32, #tpu.memory_space<vmem>>, %arg5: memref<1x128xf32, #tpu.memory_space<vmem>>, %arg6: memref<1x16x16x128xf32, #tpu.memory_space<vmem>>) attributes {dimension_semantics = [#tpu.dimension_semantics<parallel>, #tpu.dimension_semantics<parallel>], iteration_bounds = array<i64: 2, 1>, scalar_prefetch = 0 : i64, scratch_operands = 0 : i64, tpu.core_type = #tpu.core_type<tc>, window_params = [{transform_indices = @transform_0, window_bounds = array<i64: 1, 16, 16, 128>}, {transform_indices = @transform_1, window_bounds = array<i64: 1, 16, 16, 128>}, {pipeline_mode = #tpu.pipeline_mode<synchronous>, transform_indices = @transform_2, window_bounds = array<i64: 1, 128>}, {pipeline_mode = #tpu.pipeline_mode<synchronous>, transform_indices = @transform_3, window_bounds = array<i64: 1, 128>}, {transform_indices = @transform_4, window_bounds = array<i64: 1, 16, 16, 128>}]} {
    %c0 = arith.constant 0 : index
    %c0_0 = arith.constant 0 : index
    %c0_1 = arith.constant 0 : index
    %c0_2 = arith.constant 0 : index
    %0 = vector.load %arg3[%c0, %c0_0, %c0_1, %c0_2] : memref<1x16x16x128xf32, #tpu.memory_space<vmem>>, vector<1x16x16x128xf32>
    %1 = vector.shape_cast %0 : vector<1x16x16x128xf32> to vector<16x16x128xf32>
    %c0_3 = arith.constant 0 : index
    %c0_4 = arith.constant 0 : index
    %2 = vector.load %arg4[%c0_3, %c0_4] : memref<1x128xf32, #tpu.memory_space<vmem>>, vector<1x128xf32>
    %3 = vector.shape_cast %2 : vector<1x128xf32> to vector<1x1x128xf32>
    %4 = vector.broadcast %3 : vector<1x1x128xf32> to vector<16x16x128xf32>
    %5 = arith.mulf %1, %4 : vector<16x16x128xf32>
    %c0_5 = arith.constant 0 : index
    %c0_6 = arith.constant 0 : index
    %6 = vector.load %arg5[%c0_5, %c0_6] : memref<1x128xf32, #tpu.memory_space<vmem>>, vector<1x128xf32>
    %7 = vector.shape_cast %6 : vector<1x128xf32> to vector<1x1x128xf32>
    %8 = vector.broadcast %7 : vector<1x1x128xf32> to vector<16x16x128xf32>
    %9 = arith.addf %5, %8 : vector<16x16x128xf32>
    %c0_7 = arith.constant 0 : index
    %c0_8 = arith.constant 0 : index
    %c0_9 = arith.constant 0 : index
    %c0_10 = arith.constant 0 : index
    %10 = vector.load %arg2[%c0_7, %c0_8, %c0_9, %c0_10] : memref<1x16x16x128xf32, #tpu.memory_space<vmem>>, vector<1x16x16x128xf32>
    %11 = vector.shape_cast %10 : vector<1x16x16x128xf32> to vector<16x16x128xf32>
    %12 = arith.addf %11, %9 : vector<16x16x128xf32>
    %c0_11 = arith.constant 0 : index
    %c0_12 = arith.constant 0 : index
    %c0_13 = arith.constant 0 : index
    %c0_14 = arith.constant 0 : index
    %13 = vector.load %arg6[%c0_11, %c0_12, %c0_13, %c0_14] : memref<1x16x16x128xf32, #tpu.memory_space<vmem>>, vector<1x16x16x128xf32>
    %14 = vector.shape_cast %13 : vector<1x16x16x128xf32> to vector<16x16x128xf32>
    %15 = vector.shape_cast %12 : vector<16x16x128xf32> to vector<1x16x16x128xf32>
    tpu.vector_store %arg6[%c0_11, %c0_12, %c0_13, %c0_14], %15 {strides = array<i32>} : memref<1x16x16x128xf32, #tpu.memory_space<vmem>>, vector<1x16x16x128xf32>,
    return
  }
  func.func @transform_0(%arg0: i32, %arg1: i32) -> (i32, i32, i32, i32) {
    %c0_i32 = arith.constant 0 : i32
    %c0_i32_0 = arith.constant 0 : i32
    %c0_i32_1 = arith.constant 0 : i32
    return %arg0, %arg1, %c0_i32, %c0_i32_0 : i32, i32, i32, i32
  }
  func.func @transform_1(%arg0: i32, %arg1: i32) -> (i32, i32, i32, i32) {
    %c0_i32 = arith.constant 0 : i32
    %c0_i32_0 = arith.constant 0 : i32
    %c0_i32_1 = arith.constant 0 : i32
    return %arg0, %arg1, %c0_i32, %c0_i32_0 : i32, i32, i32, i32
  }
  func.func @transform_2(%arg0: i32, %arg1: i32) -> (i32, i32) {
    %c0_i32 = arith.constant 0 : i32
    %c0_i32_0 = arith.constant 0 : i32
    %c0_i32_1 = arith.constant 0 : i32
    return %c0_i32, %c0_i32_0 : i32, i32
  }
  func.func @transform_3(%arg0: i32, %arg1: i32) -> (i32, i32) {
    %c0_i32 = arith.constant 0 : i32
    %c0_i32_0 = arith.constant 0 : i32
    %c0_i32_1 = arith.constant 0 : i32
    return %c0_i32, %c0_i32_0 : i32, i32
  }
  func.func @transform_4(%arg0: i32, %arg1: i32) -> (i32, i32, i32, i32) {
    %c0_i32 = arith.constant 0 : i32
    %c0_i32_0 = arith.constant 0 : i32
    %c0_i32_1 = arith.constant 0 : i32
    return %arg0, %arg1, %c0_i32, %c0_i32_0 : i32, i32, i32, i32
  }
}

module attributes {stable_mosaic.version = 11 : i64} {
  func.func @_conv_bn_stats_kernel(%arg0: i32, %arg1: i32, %arg2: memref<1x16x16x128xf32, #tpu.memory_space<vmem>>, %arg3: memref<1x1x16x128xf32, #tpu.memory_space<vmem>>, %arg4: memref<1x1x16x128xf32, #tpu.memory_space<vmem>>, %arg5: memref<9x128x128xf32, #tpu.memory_space<vmem>>, %arg6: memref<1x16x16x128xf32, #tpu.memory_space<vmem>>, %arg7: memref<1x1x1x128xf32, #tpu.memory_space<vmem>>, %arg8: memref<1x1x1x128xf32, #tpu.memory_space<vmem>>, %arg9: memref<256x128xf32, #tpu.memory_space<vmem>>) attributes {dimension_semantics = [#tpu.dimension_semantics<parallel>, #tpu.dimension_semantics<parallel>], iteration_bounds = array<i64: 2, 1>, scalar_prefetch = 0 : i64, scratch_operands = 1 : i64, tpu.core_type = #tpu.core_type<tc>, window_params = [{transform_indices = @transform_0, window_bounds = array<i64: 1, 16, 16, 128>}, {transform_indices = @transform_1, window_bounds = array<i64: 1, 1, 16, 128>}, {transform_indices = @transform_2, window_bounds = array<i64: 1, 1, 16, 128>}, {pipeline_mode = #tpu.pipeline_mode<synchronous>, transform_indices = @transform_3, window_bounds = array<i64: 9, 128, 128>}, {transform_indices = @transform_4, window_bounds = array<i64: 1, 16, 16, 128>}, {transform_indices = @transform_5, window_bounds = array<i64: 1, 1, 1, 128>}, {transform_indices = @transform_6, window_bounds = array<i64: 1, 1, 1, 128>}]} {
    %c0 = arith.constant 0 : index
    %c0_0 = arith.constant 0 : index
    %c0_1 = arith.constant 0 : index
    %c0_2 = arith.constant 0 : index
    %0 = vector.load %arg3[%c0, %c0_0, %c0_1, %c0_2] : memref<1x1x16x128xf32, #tpu.memory_space<vmem>>, vector<1x1x16x128xf32>
    %1 = vector.shape_cast %0 : vector<1x1x16x128xf32> to vector<1x16x128xf32>
    %c0_3 = arith.constant 0 : index
    %c0_4 = arith.constant 0 : index
    %c0_5 = arith.constant 0 : index
    %c0_6 = arith.constant 0 : index
    %2 = vector.load %arg2[%c0_3, %c0_4, %c0_5, %c0_6] : memref<1x16x16x128xf32, #tpu.memory_space<vmem>>, vector<1x16x16x128xf32>
    %3 = vector.shape_cast %2 : vector<1x16x16x128xf32> to vector<16x16x128xf32>
    %c0_7 = arith.constant 0 : index
    %c0_8 = arith.constant 0 : index
    %c0_9 = arith.constant 0 : index
    %c0_10 = arith.constant 0 : index
    %4 = vector.load %arg4[%c0_7, %c0_8, %c0_9, %c0_10] : memref<1x1x16x128xf32, #tpu.memory_space<vmem>>, vector<1x1x16x128xf32>
    %5 = vector.shape_cast %4 : vector<1x1x16x128xf32> to vector<1x16x128xf32>
    %6 = tpu.concatenate %1, %3, %5 in 0 : vector<1x16x128xf32>, vector<16x16x128xf32>, vector<1x16x128xf32> -> vector<18x16x128xf32>
    %7 = vector.extract_strided_slice %6 {offsets = [0, 1, 0], sizes = [18, 1, 128], strides = [1, 1, 1]} : vector<18x16x128xf32> to vector<18x1x128xf32>
    %8 = vector.extract_strided_slice %6 {offsets = [0, 0, 0], sizes = [18, 15, 128], strides = [1, 1, 1]} : vector<18x16x128xf32> to vector<18x15x128xf32>
    %9 = tpu.concatenate %7, %8 in 1 : vector<18x1x128xf32>, vector<18x15x128xf32> -> vector<18x16x128xf32>
    %10 = vector.extract_strided_slice %6 {offsets = [0, 1, 0], sizes = [18, 15, 128], strides = [1, 1, 1]} : vector<18x16x128xf32> to vector<18x15x128xf32>
    %11 = vector.extract_strided_slice %6 {offsets = [0, 14, 0], sizes = [18, 1, 128], strides = [1, 1, 1]} : vector<18x16x128xf32> to vector<18x1x128xf32>
    %12 = tpu.concatenate %10, %11 in 1 : vector<18x15x128xf32>, vector<18x1x128xf32> -> vector<18x16x128xf32>
    %13 = vector.extract_strided_slice %9 {offsets = [0, 0, 0], sizes = [16, 16, 128], strides = [1, 1, 1]} : vector<18x16x128xf32> to vector<16x16x128xf32>
    %14 = vector.shape_cast %13 : vector<16x16x128xf32> to vector<256x128xf32>
    %c0_11 = arith.constant 0 : index
    %c0_12 = arith.constant 0 : index
    %c0_13 = arith.constant 0 : index
    %15 = vector.load %arg5[%c0_11, %c0_12, %c0_13] : memref<9x128x128xf32, #tpu.memory_space<vmem>>, vector<1x128x128xf32>
    %16 = vector.shape_cast %15 : vector<1x128x128xf32> to vector<128x128xf32>
    %cst = arith.constant dense<0.000000e+00> : vector<256x128xf32>
    %17 = tpu.matmul %14, %16, %cst {dimension_numbers = #tpu.dot_dimension_numbers<[1], [0], [0], [1], [0, 0, 1, 1], [], []>} : vector<256x128xf32>, vector<128x128xf32>, vector<256x128xf32> -> vector<256x128xf32>
    %c0_14 = arith.constant 0 : index
    %c0_15 = arith.constant 0 : index
    %18 = vector.load %arg9[%c0_14, %c0_15] : memref<256x128xf32, #tpu.memory_space<vmem>>, vector<256x128xf32>
    tpu.vector_store %arg9[%c0_14, %c0_15], %17 {strides = array<i32>} : memref<256x128xf32, #tpu.memory_space<vmem>>, vector<256x128xf32>,
    %19 = vector.extract_strided_slice %9 {offsets = [1, 0, 0], sizes = [16, 16, 128], strides = [1, 1, 1]} : vector<18x16x128xf32> to vector<16x16x128xf32>
    %20 = vector.shape_cast %19 : vector<16x16x128xf32> to vector<256x128xf32>
    %c3 = arith.constant 3 : index
    %c0_16 = arith.constant 0 : index
    %c0_17 = arith.constant 0 : index
    %21 = vector.load %arg5[%c3, %c0_16, %c0_17] : memref<9x128x128xf32, #tpu.memory_space<vmem>>, vector<1x128x128xf32>
    %22 = vector.shape_cast %21 : vector<1x128x128xf32> to vector<128x128xf32>
    %cst_18 = arith.constant dense<0.000000e+00> : vector<256x128xf32>
    %23 = tpu.matmul %20, %22, %cst_18 {dimension_numbers = #tpu.dot_dimension_numbers<[1], [0], [0], [1], [0, 0, 1, 1], [], []>} : vector<256x128xf32>, vector<128x128xf32>, vector<256x128xf32> -> vector<256x128xf32>
    %c0_19 = arith.constant 0 : index
    %c0_20 = arith.constant 0 : index
    %24 = vector.load %arg9[%c0_19, %c0_20] : memref<256x128xf32, #tpu.memory_space<vmem>>, vector<256x128xf32>
    %25 = arith.addf %24, %23 : vector<256x128xf32>
    %c0_21 = arith.constant 0 : index
    %c0_22 = arith.constant 0 : index
    %26 = vector.load %arg9[%c0_21, %c0_22] : memref<256x128xf32, #tpu.memory_space<vmem>>, vector<256x128xf32>
    tpu.vector_store %arg9[%c0_21, %c0_22], %25 {strides = array<i32>} : memref<256x128xf32, #tpu.memory_space<vmem>>, vector<256x128xf32>,
    %27 = vector.extract_strided_slice %9 {offsets = [2, 0, 0], sizes = [16, 16, 128], strides = [1, 1, 1]} : vector<18x16x128xf32> to vector<16x16x128xf32>
    %28 = vector.shape_cast %27 : vector<16x16x128xf32> to vector<256x128xf32>
    %c6 = arith.constant 6 : index
    %c0_23 = arith.constant 0 : index
    %c0_24 = arith.constant 0 : index
    %29 = vector.load %arg5[%c6, %c0_23, %c0_24] : memref<9x128x128xf32, #tpu.memory_space<vmem>>, vector<1x128x128xf32>
    %30 = vector.shape_cast %29 : vector<1x128x128xf32> to vector<128x128xf32>
    %cst_25 = arith.constant dense<0.000000e+00> : vector<256x128xf32>
    %31 = tpu.matmul %28, %30, %cst_25 {dimension_numbers = #tpu.dot_dimension_numbers<[1], [0], [0], [1], [0, 0, 1, 1], [], []>} : vector<256x128xf32>, vector<128x128xf32>, vector<256x128xf32> -> vector<256x128xf32>
    %c0_26 = arith.constant 0 : index
    %c0_27 = arith.constant 0 : index
    %32 = vector.load %arg9[%c0_26, %c0_27] : memref<256x128xf32, #tpu.memory_space<vmem>>, vector<256x128xf32>
    %33 = arith.addf %32, %31 : vector<256x128xf32>
    %c0_28 = arith.constant 0 : index
    %c0_29 = arith.constant 0 : index
    %34 = vector.load %arg9[%c0_28, %c0_29] : memref<256x128xf32, #tpu.memory_space<vmem>>, vector<256x128xf32>
    tpu.vector_store %arg9[%c0_28, %c0_29], %33 {strides = array<i32>} : memref<256x128xf32, #tpu.memory_space<vmem>>, vector<256x128xf32>,
    %35 = vector.extract_strided_slice %6 {offsets = [0, 0, 0], sizes = [16, 16, 128], strides = [1, 1, 1]} : vector<18x16x128xf32> to vector<16x16x128xf32>
    %36 = vector.shape_cast %35 : vector<16x16x128xf32> to vector<256x128xf32>
    %c1 = arith.constant 1 : index
    %c0_30 = arith.constant 0 : index
    %c0_31 = arith.constant 0 : index
    %37 = vector.load %arg5[%c1, %c0_30, %c0_31] : memref<9x128x128xf32, #tpu.memory_space<vmem>>, vector<1x128x128xf32>
    %38 = vector.shape_cast %37 : vector<1x128x128xf32> to vector<128x128xf32>
    %cst_32 = arith.constant dense<0.000000e+00> : vector<256x128xf32>
    %39 = tpu.matmul %36, %38, %cst_32 {dimension_numbers = #tpu.dot_dimension_numbers<[1], [0], [0], [1], [0, 0, 1, 1], [], []>} : vector<256x128xf32>, vector<128x128xf32>, vector<256x128xf32> -> vector<256x128xf32>
    %c0_33 = arith.constant 0 : index
    %c0_34 = arith.constant 0 : index
    %40 = vector.load %arg9[%c0_33, %c0_34] : memref<256x128xf32, #tpu.memory_space<vmem>>, vector<256x128xf32>
    %41 = arith.addf %40, %39 : vector<256x128xf32>
    %c0_35 = arith.constant 0 : index
    %c0_36 = arith.constant 0 : index
    %42 = vector.load %arg9[%c0_35, %c0_36] : memref<256x128xf32, #tpu.memory_space<vmem>>, vector<256x128xf32>
    tpu.vector_store %arg9[%c0_35, %c0_36], %41 {strides = array<i32>} : memref<256x128xf32, #tpu.memory_space<vmem>>, vector<256x128xf32>,
    %43 = vector.extract_strided_slice %6 {offsets = [1, 0, 0], sizes = [16, 16, 128], strides = [1, 1, 1]} : vector<18x16x128xf32> to vector<16x16x128xf32>
    %44 = vector.shape_cast %43 : vector<16x16x128xf32> to vector<256x128xf32>
    %c4 = arith.constant 4 : index
    %c0_37 = arith.constant 0 : index
    %c0_38 = arith.constant 0 : index
    %45 = vector.load %arg5[%c4, %c0_37, %c0_38] : memref<9x128x128xf32, #tpu.memory_space<vmem>>, vector<1x128x128xf32>
    %46 = vector.shape_cast %45 : vector<1x128x128xf32> to vector<128x128xf32>
    %cst_39 = arith.constant dense<0.000000e+00> : vector<256x128xf32>
    %47 = tpu.matmul %44, %46, %cst_39 {dimension_numbers = #tpu.dot_dimension_numbers<[1], [0], [0], [1], [0, 0, 1, 1], [], []>} : vector<256x128xf32>, vector<128x128xf32>, vector<256x128xf32> -> vector<256x128xf32>
    %c0_40 = arith.constant 0 : index
    %c0_41 = arith.constant 0 : index
    %48 = vector.load %arg9[%c0_40, %c0_41] : memref<256x128xf32, #tpu.memory_space<vmem>>, vector<256x128xf32>
    %49 = arith.addf %48, %47 : vector<256x128xf32>
    %c0_42 = arith.constant 0 : index
    %c0_43 = arith.constant 0 : index
    %50 = vector.load %arg9[%c0_42, %c0_43] : memref<256x128xf32, #tpu.memory_space<vmem>>, vector<256x128xf32>
    tpu.vector_store %arg9[%c0_42, %c0_43], %49 {strides = array<i32>} : memref<256x128xf32, #tpu.memory_space<vmem>>, vector<256x128xf32>,
    %51 = vector.extract_strided_slice %6 {offsets = [2, 0, 0], sizes = [16, 16, 128], strides = [1, 1, 1]} : vector<18x16x128xf32> to vector<16x16x128xf32>
    %52 = vector.shape_cast %51 : vector<16x16x128xf32> to vector<256x128xf32>
    %c7 = arith.constant 7 : index
    %c0_44 = arith.constant 0 : index
    %c0_45 = arith.constant 0 : index
    %53 = vector.load %arg5[%c7, %c0_44, %c0_45] : memref<9x128x128xf32, #tpu.memory_space<vmem>>, vector<1x128x128xf32>
    %54 = vector.shape_cast %53 : vector<1x128x128xf32> to vector<128x128xf32>
    %cst_46 = arith.constant dense<0.000000e+00> : vector<256x128xf32>
    %55 = tpu.matmul %52, %54, %cst_46 {dimension_numbers = #tpu.dot_dimension_numbers<[1], [0], [0], [1], [0, 0, 1, 1], [], []>} : vector<256x128xf32>, vector<128x128xf32>, vector<256x128xf32> -> vector<256x128xf32>
    %c0_47 = arith.constant 0 : index
    %c0_48 = arith.constant 0 : index
    %56 = vector.load %arg9[%c0_47, %c0_48] : memref<256x128xf32, #tpu.memory_space<vmem>>, vector<256x128xf32>
    %57 = arith.addf %56, %55 : vector<256x128xf32>
    %c0_49 = arith.constant 0 : index
    %c0_50 = arith.constant 0 : index
    %58 = vector.load %arg9[%c0_49, %c0_50] : memref<256x128xf32, #tpu.memory_space<vmem>>, vector<256x128xf32>
    tpu.vector_store %arg9[%c0_49, %c0_50], %57 {strides = array<i32>} : memref<256x128xf32, #tpu.memory_space<vmem>>, vector<256x128xf32>,
    %59 = vector.extract_strided_slice %12 {offsets = [0, 0, 0], sizes = [16, 16, 128], strides = [1, 1, 1]} : vector<18x16x128xf32> to vector<16x16x128xf32>
    %60 = vector.shape_cast %59 : vector<16x16x128xf32> to vector<256x128xf32>
    %c2 = arith.constant 2 : index
    %c0_51 = arith.constant 0 : index
    %c0_52 = arith.constant 0 : index
    %61 = vector.load %arg5[%c2, %c0_51, %c0_52] : memref<9x128x128xf32, #tpu.memory_space<vmem>>, vector<1x128x128xf32>
    %62 = vector.shape_cast %61 : vector<1x128x128xf32> to vector<128x128xf32>
    %cst_53 = arith.constant dense<0.000000e+00> : vector<256x128xf32>
    %63 = tpu.matmul %60, %62, %cst_53 {dimension_numbers = #tpu.dot_dimension_numbers<[1], [0], [0], [1], [0, 0, 1, 1], [], []>} : vector<256x128xf32>, vector<128x128xf32>, vector<256x128xf32> -> vector<256x128xf32>
    %c0_54 = arith.constant 0 : index
    %c0_55 = arith.constant 0 : index
    %64 = vector.load %arg9[%c0_54, %c0_55] : memref<256x128xf32, #tpu.memory_space<vmem>>, vector<256x128xf32>
    %65 = arith.addf %64, %63 : vector<256x128xf32>
    %c0_56 = arith.constant 0 : index
    %c0_57 = arith.constant 0 : index
    %66 = vector.load %arg9[%c0_56, %c0_57] : memref<256x128xf32, #tpu.memory_space<vmem>>, vector<256x128xf32>
    tpu.vector_store %arg9[%c0_56, %c0_57], %65 {strides = array<i32>} : memref<256x128xf32, #tpu.memory_space<vmem>>, vector<256x128xf32>,
    %67 = vector.extract_strided_slice %12 {offsets = [1, 0, 0], sizes = [16, 16, 128], strides = [1, 1, 1]} : vector<18x16x128xf32> to vector<16x16x128xf32>
    %68 = vector.shape_cast %67 : vector<16x16x128xf32> to vector<256x128xf32>
    %c5 = arith.constant 5 : index
    %c0_58 = arith.constant 0 : index
    %c0_59 = arith.constant 0 : index
    %69 = vector.load %arg5[%c5, %c0_58, %c0_59] : memref<9x128x128xf32, #tpu.memory_space<vmem>>, vector<1x128x128xf32>
    %70 = vector.shape_cast %69 : vector<1x128x128xf32> to vector<128x128xf32>
    %cst_60 = arith.constant dense<0.000000e+00> : vector<256x128xf32>
    %71 = tpu.matmul %68, %70, %cst_60 {dimension_numbers = #tpu.dot_dimension_numbers<[1], [0], [0], [1], [0, 0, 1, 1], [], []>} : vector<256x128xf32>, vector<128x128xf32>, vector<256x128xf32> -> vector<256x128xf32>
    %c0_61 = arith.constant 0 : index
    %c0_62 = arith.constant 0 : index
    %72 = vector.load %arg9[%c0_61, %c0_62] : memref<256x128xf32, #tpu.memory_space<vmem>>, vector<256x128xf32>
    %73 = arith.addf %72, %71 : vector<256x128xf32>
    %c0_63 = arith.constant 0 : index
    %c0_64 = arith.constant 0 : index
    %74 = vector.load %arg9[%c0_63, %c0_64] : memref<256x128xf32, #tpu.memory_space<vmem>>, vector<256x128xf32>
    tpu.vector_store %arg9[%c0_63, %c0_64], %73 {strides = array<i32>} : memref<256x128xf32, #tpu.memory_space<vmem>>, vector<256x128xf32>,
    %75 = vector.extract_strided_slice %12 {offsets = [2, 0, 0], sizes = [16, 16, 128], strides = [1, 1, 1]} : vector<18x16x128xf32> to vector<16x16x128xf32>
    %76 = vector.shape_cast %75 : vector<16x16x128xf32> to vector<256x128xf32>
    %c8 = arith.constant 8 : index
    %c0_65 = arith.constant 0 : index
    %c0_66 = arith.constant 0 : index
    %77 = vector.load %arg5[%c8, %c0_65, %c0_66] : memref<9x128x128xf32, #tpu.memory_space<vmem>>, vector<1x128x128xf32>
    %78 = vector.shape_cast %77 : vector<1x128x128xf32> to vector<128x128xf32>
    %cst_67 = arith.constant dense<0.000000e+00> : vector<256x128xf32>
    %79 = tpu.matmul %76, %78, %cst_67 {dimension_numbers = #tpu.dot_dimension_numbers<[1], [0], [0], [1], [0, 0, 1, 1], [], []>} : vector<256x128xf32>, vector<128x128xf32>, vector<256x128xf32> -> vector<256x128xf32>
    %c0_68 = arith.constant 0 : index
    %c0_69 = arith.constant 0 : index
    %80 = vector.load %arg9[%c0_68, %c0_69] : memref<256x128xf32, #tpu.memory_space<vmem>>, vector<256x128xf32>
    %81 = arith.addf %80, %79 : vector<256x128xf32>
    %c0_70 = arith.constant 0 : index
    %c0_71 = arith.constant 0 : index
    %82 = vector.load %arg9[%c0_70, %c0_71] : memref<256x128xf32, #tpu.memory_space<vmem>>, vector<256x128xf32>
    tpu.vector_store %arg9[%c0_70, %c0_71], %81 {strides = array<i32>} : memref<256x128xf32, #tpu.memory_space<vmem>>, vector<256x128xf32>,
    %c0_72 = arith.constant 0 : index
    %c0_73 = arith.constant 0 : index
    %83 = vector.load %arg9[%c0_72, %c0_73] : memref<256x128xf32, #tpu.memory_space<vmem>>, vector<256x128xf32>
    %84 = vector.shape_cast %83 : vector<256x128xf32> to vector<16x16x128xf32>
    %c0_74 = arith.constant 0 : index
    %c0_75 = arith.constant 0 : index
    %c0_76 = arith.constant 0 : index
    %c0_77 = arith.constant 0 : index
    %85 = vector.load %arg6[%c0_74, %c0_75, %c0_76, %c0_77] : memref<1x16x16x128xf32, #tpu.memory_space<vmem>>, vector<1x16x16x128xf32>
    %86 = vector.shape_cast %85 : vector<1x16x16x128xf32> to vector<16x16x128xf32>
    %87 = vector.shape_cast %84 : vector<16x16x128xf32> to vector<1x16x16x128xf32>
    tpu.vector_store %arg6[%c0_74, %c0_75, %c0_76, %c0_77], %87 {strides = array<i32>} : memref<1x16x16x128xf32, #tpu.memory_space<vmem>>, vector<1x16x16x128xf32>,
    %cst_78 = arith.constant dense<0.000000e+00> : vector<128xf32>
    %88 = vector.multi_reduction <add>, %83, %cst_78 [0] : vector<256x128xf32> to vector<128xf32>
    %89 = vector.shape_cast %88 : vector<128xf32> to vector<1x128xf32>
    %c0_79 = arith.constant 0 : index
    %c0_80 = arith.constant 0 : index
    %c0_81 = arith.constant 0 : index
    %c0_82 = arith.constant 0 : index
    %90 = vector.load %arg7[%c0_79, %c0_80, %c0_81, %c0_82] : memref<1x1x1x128xf32, #tpu.memory_space<vmem>>, vector<1x1x1x128xf32>
    %91 = vector.shape_cast %90 : vector<1x1x1x128xf32> to vector<1x128xf32>
    %92 = vector.shape_cast %89 : vector<1x128xf32> to vector<1x1x1x128xf32>
    tpu.vector_store %arg7[%c0_79, %c0_80, %c0_81, %c0_82], %92 {strides = array<i32>} : memref<1x1x1x128xf32, #tpu.memory_space<vmem>>, vector<1x1x1x128xf32>,
    %93 = arith.mulf %83, %83 : vector<256x128xf32>
    %cst_83 = arith.constant dense<0.000000e+00> : vector<128xf32>
    %94 = vector.multi_reduction <add>, %93, %cst_83 [0] : vector<256x128xf32> to vector<128xf32>
    %95 = vector.shape_cast %94 : vector<128xf32> to vector<1x128xf32>
    %c0_84 = arith.constant 0 : index
    %c0_85 = arith.constant 0 : index
    %c0_86 = arith.constant 0 : index
    %c0_87 = arith.constant 0 : index
    %96 = vector.load %arg8[%c0_84, %c0_85, %c0_86, %c0_87] : memref<1x1x1x128xf32, #tpu.memory_space<vmem>>, vector<1x1x1x128xf32>
    %97 = vector.shape_cast %96 : vector<1x1x1x128xf32> to vector<1x128xf32>
    %98 = vector.shape_cast %95 : vector<1x128xf32> to vector<1x1x1x128xf32>
    tpu.vector_store %arg8[%c0_84, %c0_85, %c0_86, %c0_87], %98 {strides = array<i32>} : memref<1x1x1x128xf32, #tpu.memory_space<vmem>>, vector<1x1x1x128xf32>,
    return
  }
  func.func @transform_0(%arg0: i32, %arg1: i32) -> (i32, i32, i32, i32) {
    %c0_i32 = arith.constant 0 : i32
    %c0_i32_0 = arith.constant 0 : i32
    %c0_i32_1 = arith.constant 0 : i32
    return %arg0, %arg1, %c0_i32, %c0_i32_0 : i32, i32, i32, i32
  }
  func.func @transform_1(%arg0: i32, %arg1: i32) -> (i32, i32, i32, i32) {
    %c16_i32 = arith.constant 16 : i32
    %0 = arith.muli %arg1, %c16_i32 : i32
    %c1_i32 = arith.constant 1 : i32
    %1 = arith.subi %0, %c1_i32 : i32
    %c0_i32 = arith.constant 0 : i32
    %2 = arith.subi %c0_i32, %1 : i32
    %3 = arith.maxsi %1, %2 : i32
    %c0_i32_0 = arith.constant 0 : i32
    %c0_i32_1 = arith.constant 0 : i32
    %c0_i32_2 = arith.constant 0 : i32
    return %arg0, %3, %c0_i32_0, %c0_i32_1 : i32, i32, i32, i32
  }
  func.func @transform_2(%arg0: i32, %arg1: i32) -> (i32, i32, i32, i32) {
    %c1_i32 = arith.constant 1 : i32
    %0 = arith.addi %arg1, %c1_i32 : i32
    %c16_i32 = arith.constant 16 : i32
    %1 = arith.muli %0, %c16_i32 : i32
    %c15_i32 = arith.constant 15 : i32
    %2 = arith.subi %1, %c15_i32 : i32
    %c0_i32 = arith.constant 0 : i32
    %3 = arith.subi %c0_i32, %2 : i32
    %4 = arith.maxsi %2, %3 : i32
    %c15_i32_0 = arith.constant 15 : i32
    %5 = arith.subi %c15_i32_0, %4 : i32
    %c0_i32_1 = arith.constant 0 : i32
    %c0_i32_2 = arith.constant 0 : i32
    %c0_i32_3 = arith.constant 0 : i32
    return %arg0, %5, %c0_i32_1, %c0_i32_2 : i32, i32, i32, i32
  }
  func.func @transform_3(%arg0: i32, %arg1: i32) -> (i32, i32, i32) {
    %c0_i32 = arith.constant 0 : i32
    %c0_i32_0 = arith.constant 0 : i32
    %c0_i32_1 = arith.constant 0 : i32
    %c0_i32_2 = arith.constant 0 : i32
    return %c0_i32, %c0_i32_0, %c0_i32_1 : i32, i32, i32
  }
  func.func @transform_4(%arg0: i32, %arg1: i32) -> (i32, i32, i32, i32) {
    %c0_i32 = arith.constant 0 : i32
    %c0_i32_0 = arith.constant 0 : i32
    %c0_i32_1 = arith.constant 0 : i32
    return %arg0, %arg1, %c0_i32, %c0_i32_0 : i32, i32, i32, i32
  }
  func.func @transform_5(%arg0: i32, %arg1: i32) -> (i32, i32, i32, i32) {
    %c0_i32 = arith.constant 0 : i32
    %c0_i32_0 = arith.constant 0 : i32
    %c0_i32_1 = arith.constant 0 : i32
    return %arg0, %arg1, %c0_i32, %c0_i32_0 : i32, i32, i32, i32
  }
  func.func @transform_6(%arg0: i32, %arg1: i32) -> (i32, i32, i32, i32) {
    %c0_i32 = arith.constant 0 : i32
    %c0_i32_0 = arith.constant 0 : i32
    %c0_i32_1 = arith.constant 0 : i32
    return %arg0, %arg1, %c0_i32, %c0_i32_0 : i32, i32, i32, i32
  }
}

module attributes {stable_mosaic.version = 11 : i64} {
  func.func @_conv_bn_stats_kernel(%arg0: i32, %arg1: i32, %arg2: memref<1x16x16x128xf32, #tpu.memory_space<vmem>>, %arg3: memref<1x1x16x128xf32, #tpu.memory_space<vmem>>, %arg4: memref<1x1x16x128xf32, #tpu.memory_space<vmem>>, %arg5: memref<9x128x128xf32, #tpu.memory_space<vmem>>, %arg6: memref<1x128xf32, #tpu.memory_space<vmem>>, %arg7: memref<1x128xf32, #tpu.memory_space<vmem>>, %arg8: memref<1x16x16x128xf32, #tpu.memory_space<vmem>>, %arg9: memref<1x1x1x128xf32, #tpu.memory_space<vmem>>, %arg10: memref<1x1x1x128xf32, #tpu.memory_space<vmem>>, %arg11: memref<256x128xf32, #tpu.memory_space<vmem>>) attributes {dimension_semantics = [#tpu.dimension_semantics<parallel>, #tpu.dimension_semantics<parallel>], iteration_bounds = array<i64: 2, 1>, scalar_prefetch = 0 : i64, scratch_operands = 1 : i64, tpu.core_type = #tpu.core_type<tc>, window_params = [{transform_indices = @transform_0, window_bounds = array<i64: 1, 16, 16, 128>}, {transform_indices = @transform_1, window_bounds = array<i64: 1, 1, 16, 128>}, {transform_indices = @transform_2, window_bounds = array<i64: 1, 1, 16, 128>}, {pipeline_mode = #tpu.pipeline_mode<synchronous>, transform_indices = @transform_3, window_bounds = array<i64: 9, 128, 128>}, {pipeline_mode = #tpu.pipeline_mode<synchronous>, transform_indices = @transform_4, window_bounds = array<i64: 1, 128>}, {pipeline_mode = #tpu.pipeline_mode<synchronous>, transform_indices = @transform_5, window_bounds = array<i64: 1, 128>}, {transform_indices = @transform_6, window_bounds = array<i64: 1, 16, 16, 128>}, {transform_indices = @transform_7, window_bounds = array<i64: 1, 1, 1, 128>}, {transform_indices = @transform_8, window_bounds = array<i64: 1, 1, 1, 128>}]} {
    %c0 = arith.constant 0 : index
    %c0_0 = arith.constant 0 : index
    %c0_1 = arith.constant 0 : index
    %c0_2 = arith.constant 0 : index
    %0 = vector.load %arg3[%c0, %c0_0, %c0_1, %c0_2] : memref<1x1x16x128xf32, #tpu.memory_space<vmem>>, vector<1x1x16x128xf32>
    %1 = vector.shape_cast %0 : vector<1x1x16x128xf32> to vector<1x16x128xf32>
    %c0_3 = arith.constant 0 : index
    %c0_4 = arith.constant 0 : index
    %c0_5 = arith.constant 0 : index
    %c0_6 = arith.constant 0 : index
    %2 = vector.load %arg2[%c0_3, %c0_4, %c0_5, %c0_6] : memref<1x16x16x128xf32, #tpu.memory_space<vmem>>, vector<1x16x16x128xf32>
    %3 = vector.shape_cast %2 : vector<1x16x16x128xf32> to vector<16x16x128xf32>
    %c0_7 = arith.constant 0 : index
    %c0_8 = arith.constant 0 : index
    %c0_9 = arith.constant 0 : index
    %c0_10 = arith.constant 0 : index
    %4 = vector.load %arg4[%c0_7, %c0_8, %c0_9, %c0_10] : memref<1x1x16x128xf32, #tpu.memory_space<vmem>>, vector<1x1x16x128xf32>
    %5 = vector.shape_cast %4 : vector<1x1x16x128xf32> to vector<1x16x128xf32>
    %6 = tpu.concatenate %1, %3, %5 in 0 : vector<1x16x128xf32>, vector<16x16x128xf32>, vector<1x16x128xf32> -> vector<18x16x128xf32>
    %c0_11 = arith.constant 0 : index
    %c0_12 = arith.constant 0 : index
    %7 = vector.load %arg6[%c0_11, %c0_12] : memref<1x128xf32, #tpu.memory_space<vmem>>, vector<1x128xf32>
    %c0_13 = arith.constant 0 : index
    %c0_14 = arith.constant 0 : index
    %8 = vector.load %arg7[%c0_13, %c0_14] : memref<1x128xf32, #tpu.memory_space<vmem>>, vector<1x128xf32>
    %9 = vector.shape_cast %7 : vector<1x128xf32> to vector<1x1x128xf32>
    %10 = vector.broadcast %9 : vector<1x1x128xf32> to vector<18x16x128xf32>
    %11 = arith.mulf %6, %10 : vector<18x16x128xf32>
    %12 = vector.shape_cast %8 : vector<1x128xf32> to vector<1x1x128xf32>
    %13 = vector.broadcast %12 : vector<1x1x128xf32> to vector<18x16x128xf32>
    %14 = arith.addf %11, %13 : vector<18x16x128xf32>
    %cst = arith.constant 0.000000e+00 : f32
    %15 = vector.broadcast %cst : f32 to vector<18x16x128xf32>
    %16 = arith.maximumf %14, %15 : vector<18x16x128xf32>
    %17 = vector.extract_strided_slice %16 {offsets = [0, 1, 0], sizes = [18, 1, 128], strides = [1, 1, 1]} : vector<18x16x128xf32> to vector<18x1x128xf32>
    %18 = vector.extract_strided_slice %16 {offsets = [0, 0, 0], sizes = [18, 15, 128], strides = [1, 1, 1]} : vector<18x16x128xf32> to vector<18x15x128xf32>
    %19 = tpu.concatenate %17, %18 in 1 : vector<18x1x128xf32>, vector<18x15x128xf32> -> vector<18x16x128xf32>
    %20 = vector.extract_strided_slice %16 {offsets = [0, 1, 0], sizes = [18, 15, 128], strides = [1, 1, 1]} : vector<18x16x128xf32> to vector<18x15x128xf32>
    %21 = vector.extract_strided_slice %16 {offsets = [0, 14, 0], sizes = [18, 1, 128], strides = [1, 1, 1]} : vector<18x16x128xf32> to vector<18x1x128xf32>
    %22 = tpu.concatenate %20, %21 in 1 : vector<18x15x128xf32>, vector<18x1x128xf32> -> vector<18x16x128xf32>
    %23 = vector.extract_strided_slice %19 {offsets = [0, 0, 0], sizes = [16, 16, 128], strides = [1, 1, 1]} : vector<18x16x128xf32> to vector<16x16x128xf32>
    %24 = vector.shape_cast %23 : vector<16x16x128xf32> to vector<256x128xf32>
    %c0_15 = arith.constant 0 : index
    %c0_16 = arith.constant 0 : index
    %c0_17 = arith.constant 0 : index
    %25 = vector.load %arg5[%c0_15, %c0_16, %c0_17] : memref<9x128x128xf32, #tpu.memory_space<vmem>>, vector<1x128x128xf32>
    %26 = vector.shape_cast %25 : vector<1x128x128xf32> to vector<128x128xf32>
    %cst_18 = arith.constant dense<0.000000e+00> : vector<256x128xf32>
    %27 = tpu.matmul %24, %26, %cst_18 {dimension_numbers = #tpu.dot_dimension_numbers<[1], [0], [0], [1], [0, 0, 1, 1], [], []>} : vector<256x128xf32>, vector<128x128xf32>, vector<256x128xf32> -> vector<256x128xf32>
    %c0_19 = arith.constant 0 : index
    %c0_20 = arith.constant 0 : index
    %28 = vector.load %arg11[%c0_19, %c0_20] : memref<256x128xf32, #tpu.memory_space<vmem>>, vector<256x128xf32>
    tpu.vector_store %arg11[%c0_19, %c0_20], %27 {strides = array<i32>} : memref<256x128xf32, #tpu.memory_space<vmem>>, vector<256x128xf32>,
    %29 = vector.extract_strided_slice %19 {offsets = [1, 0, 0], sizes = [16, 16, 128], strides = [1, 1, 1]} : vector<18x16x128xf32> to vector<16x16x128xf32>
    %30 = vector.shape_cast %29 : vector<16x16x128xf32> to vector<256x128xf32>
    %c3 = arith.constant 3 : index
    %c0_21 = arith.constant 0 : index
    %c0_22 = arith.constant 0 : index
    %31 = vector.load %arg5[%c3, %c0_21, %c0_22] : memref<9x128x128xf32, #tpu.memory_space<vmem>>, vector<1x128x128xf32>
    %32 = vector.shape_cast %31 : vector<1x128x128xf32> to vector<128x128xf32>
    %cst_23 = arith.constant dense<0.000000e+00> : vector<256x128xf32>
    %33 = tpu.matmul %30, %32, %cst_23 {dimension_numbers = #tpu.dot_dimension_numbers<[1], [0], [0], [1], [0, 0, 1, 1], [], []>} : vector<256x128xf32>, vector<128x128xf32>, vector<256x128xf32> -> vector<256x128xf32>
    %c0_24 = arith.constant 0 : index
    %c0_25 = arith.constant 0 : index
    %34 = vector.load %arg11[%c0_24, %c0_25] : memref<256x128xf32, #tpu.memory_space<vmem>>, vector<256x128xf32>
    %35 = arith.addf %34, %33 : vector<256x128xf32>
    %c0_26 = arith.constant 0 : index
    %c0_27 = arith.constant 0 : index
    %36 = vector.load %arg11[%c0_26, %c0_27] : memref<256x128xf32, #tpu.memory_space<vmem>>, vector<256x128xf32>
    tpu.vector_store %arg11[%c0_26, %c0_27], %35 {strides = array<i32>} : memref<256x128xf32, #tpu.memory_space<vmem>>, vector<256x128xf32>,
    %37 = vector.extract_strided_slice %19 {offsets = [2, 0, 0], sizes = [16, 16, 128], strides = [1, 1, 1]} : vector<18x16x128xf32> to vector<16x16x128xf32>
    %38 = vector.shape_cast %37 : vector<16x16x128xf32> to vector<256x128xf32>
    %c6 = arith.constant 6 : index
    %c0_28 = arith.constant 0 : index
    %c0_29 = arith.constant 0 : index
    %39 = vector.load %arg5[%c6, %c0_28, %c0_29] : memref<9x128x128xf32, #tpu.memory_space<vmem>>, vector<1x128x128xf32>
    %40 = vector.shape_cast %39 : vector<1x128x128xf32> to vector<128x128xf32>
    %cst_30 = arith.constant dense<0.000000e+00> : vector<256x128xf32>
    %41 = tpu.matmul %38, %40, %cst_30 {dimension_numbers = #tpu.dot_dimension_numbers<[1], [0], [0], [1], [0, 0, 1, 1], [], []>} : vector<256x128xf32>, vector<128x128xf32>, vector<256x128xf32> -> vector<256x128xf32>
    %c0_31 = arith.constant 0 : index
    %c0_32 = arith.constant 0 : index
    %42 = vector.load %arg11[%c0_31, %c0_32] : memref<256x128xf32, #tpu.memory_space<vmem>>, vector<256x128xf32>
    %43 = arith.addf %42, %41 : vector<256x128xf32>
    %c0_33 = arith.constant 0 : index
    %c0_34 = arith.constant 0 : index
    %44 = vector.load %arg11[%c0_33, %c0_34] : memref<256x128xf32, #tpu.memory_space<vmem>>, vector<256x128xf32>
    tpu.vector_store %arg11[%c0_33, %c0_34], %43 {strides = array<i32>} : memref<256x128xf32, #tpu.memory_space<vmem>>, vector<256x128xf32>,
    %45 = vector.extract_strided_slice %16 {offsets = [0, 0, 0], sizes = [16, 16, 128], strides = [1, 1, 1]} : vector<18x16x128xf32> to vector<16x16x128xf32>
    %46 = vector.shape_cast %45 : vector<16x16x128xf32> to vector<256x128xf32>
    %c1 = arith.constant 1 : index
    %c0_35 = arith.constant 0 : index
    %c0_36 = arith.constant 0 : index
    %47 = vector.load %arg5[%c1, %c0_35, %c0_36] : memref<9x128x128xf32, #tpu.memory_space<vmem>>, vector<1x128x128xf32>
    %48 = vector.shape_cast %47 : vector<1x128x128xf32> to vector<128x128xf32>
    %cst_37 = arith.constant dense<0.000000e+00> : vector<256x128xf32>
    %49 = tpu.matmul %46, %48, %cst_37 {dimension_numbers = #tpu.dot_dimension_numbers<[1], [0], [0], [1], [0, 0, 1, 1], [], []>} : vector<256x128xf32>, vector<128x128xf32>, vector<256x128xf32> -> vector<256x128xf32>
    %c0_38 = arith.constant 0 : index
    %c0_39 = arith.constant 0 : index
    %50 = vector.load %arg11[%c0_38, %c0_39] : memref<256x128xf32, #tpu.memory_space<vmem>>, vector<256x128xf32>
    %51 = arith.addf %50, %49 : vector<256x128xf32>
    %c0_40 = arith.constant 0 : index
    %c0_41 = arith.constant 0 : index
    %52 = vector.load %arg11[%c0_40, %c0_41] : memref<256x128xf32, #tpu.memory_space<vmem>>, vector<256x128xf32>
    tpu.vector_store %arg11[%c0_40, %c0_41], %51 {strides = array<i32>} : memref<256x128xf32, #tpu.memory_space<vmem>>, vector<256x128xf32>,
    %53 = vector.extract_strided_slice %16 {offsets = [1, 0, 0], sizes = [16, 16, 128], strides = [1, 1, 1]} : vector<18x16x128xf32> to vector<16x16x128xf32>
    %54 = vector.shape_cast %53 : vector<16x16x128xf32> to vector<256x128xf32>
    %c4 = arith.constant 4 : index
    %c0_42 = arith.constant 0 : index
    %c0_43 = arith.constant 0 : index
    %55 = vector.load %arg5[%c4, %c0_42, %c0_43] : memref<9x128x128xf32, #tpu.memory_space<vmem>>, vector<1x128x128xf32>
    %56 = vector.shape_cast %55 : vector<1x128x128xf32> to vector<128x128xf32>
    %cst_44 = arith.constant dense<0.000000e+00> : vector<256x128xf32>
    %57 = tpu.matmul %54, %56, %cst_44 {dimension_numbers = #tpu.dot_dimension_numbers<[1], [0], [0], [1], [0, 0, 1, 1], [], []>} : vector<256x128xf32>, vector<128x128xf32>, vector<256x128xf32> -> vector<256x128xf32>
    %c0_45 = arith.constant 0 : index
    %c0_46 = arith.constant 0 : index
    %58 = vector.load %arg11[%c0_45, %c0_46] : memref<256x128xf32, #tpu.memory_space<vmem>>, vector<256x128xf32>
    %59 = arith.addf %58, %57 : vector<256x128xf32>
    %c0_47 = arith.constant 0 : index
    %c0_48 = arith.constant 0 : index
    %60 = vector.load %arg11[%c0_47, %c0_48] : memref<256x128xf32, #tpu.memory_space<vmem>>, vector<256x128xf32>
    tpu.vector_store %arg11[%c0_47, %c0_48], %59 {strides = array<i32>} : memref<256x128xf32, #tpu.memory_space<vmem>>, vector<256x128xf32>,
    %61 = vector.extract_strided_slice %16 {offsets = [2, 0, 0], sizes = [16, 16, 128], strides = [1, 1, 1]} : vector<18x16x128xf32> to vector<16x16x128xf32>
    %62 = vector.shape_cast %61 : vector<16x16x128xf32> to vector<256x128xf32>
    %c7 = arith.constant 7 : index
    %c0_49 = arith.constant 0 : index
    %c0_50 = arith.constant 0 : index
    %63 = vector.load %arg5[%c7, %c0_49, %c0_50] : memref<9x128x128xf32, #tpu.memory_space<vmem>>, vector<1x128x128xf32>
    %64 = vector.shape_cast %63 : vector<1x128x128xf32> to vector<128x128xf32>
    %cst_51 = arith.constant dense<0.000000e+00> : vector<256x128xf32>
    %65 = tpu.matmul %62, %64, %cst_51 {dimension_numbers = #tpu.dot_dimension_numbers<[1], [0], [0], [1], [0, 0, 1, 1], [], []>} : vector<256x128xf32>, vector<128x128xf32>, vector<256x128xf32> -> vector<256x128xf32>
    %c0_52 = arith.constant 0 : index
    %c0_53 = arith.constant 0 : index
    %66 = vector.load %arg11[%c0_52, %c0_53] : memref<256x128xf32, #tpu.memory_space<vmem>>, vector<256x128xf32>
    %67 = arith.addf %66, %65 : vector<256x128xf32>
    %c0_54 = arith.constant 0 : index
    %c0_55 = arith.constant 0 : index
    %68 = vector.load %arg11[%c0_54, %c0_55] : memref<256x128xf32, #tpu.memory_space<vmem>>, vector<256x128xf32>
    tpu.vector_store %arg11[%c0_54, %c0_55], %67 {strides = array<i32>} : memref<256x128xf32, #tpu.memory_space<vmem>>, vector<256x128xf32>,
    %69 = vector.extract_strided_slice %22 {offsets = [0, 0, 0], sizes = [16, 16, 128], strides = [1, 1, 1]} : vector<18x16x128xf32> to vector<16x16x128xf32>
    %70 = vector.shape_cast %69 : vector<16x16x128xf32> to vector<256x128xf32>
    %c2 = arith.constant 2 : index
    %c0_56 = arith.constant 0 : index
    %c0_57 = arith.constant 0 : index
    %71 = vector.load %arg5[%c2, %c0_56, %c0_57] : memref<9x128x128xf32, #tpu.memory_space<vmem>>, vector<1x128x128xf32>
    %72 = vector.shape_cast %71 : vector<1x128x128xf32> to vector<128x128xf32>
    %cst_58 = arith.constant dense<0.000000e+00> : vector<256x128xf32>
    %73 = tpu.matmul %70, %72, %cst_58 {dimension_numbers = #tpu.dot_dimension_numbers<[1], [0], [0], [1], [0, 0, 1, 1], [], []>} : vector<256x128xf32>, vector<128x128xf32>, vector<256x128xf32> -> vector<256x128xf32>
    %c0_59 = arith.constant 0 : index
    %c0_60 = arith.constant 0 : index
    %74 = vector.load %arg11[%c0_59, %c0_60] : memref<256x128xf32, #tpu.memory_space<vmem>>, vector<256x128xf32>
    %75 = arith.addf %74, %73 : vector<256x128xf32>
    %c0_61 = arith.constant 0 : index
    %c0_62 = arith.constant 0 : index
    %76 = vector.load %arg11[%c0_61, %c0_62] : memref<256x128xf32, #tpu.memory_space<vmem>>, vector<256x128xf32>
    tpu.vector_store %arg11[%c0_61, %c0_62], %75 {strides = array<i32>} : memref<256x128xf32, #tpu.memory_space<vmem>>, vector<256x128xf32>,
    %77 = vector.extract_strided_slice %22 {offsets = [1, 0, 0], sizes = [16, 16, 128], strides = [1, 1, 1]} : vector<18x16x128xf32> to vector<16x16x128xf32>
    %78 = vector.shape_cast %77 : vector<16x16x128xf32> to vector<256x128xf32>
    %c5 = arith.constant 5 : index
    %c0_63 = arith.constant 0 : index
    %c0_64 = arith.constant 0 : index
    %79 = vector.load %arg5[%c5, %c0_63, %c0_64] : memref<9x128x128xf32, #tpu.memory_space<vmem>>, vector<1x128x128xf32>
    %80 = vector.shape_cast %79 : vector<1x128x128xf32> to vector<128x128xf32>
    %cst_65 = arith.constant dense<0.000000e+00> : vector<256x128xf32>
    %81 = tpu.matmul %78, %80, %cst_65 {dimension_numbers = #tpu.dot_dimension_numbers<[1], [0], [0], [1], [0, 0, 1, 1], [], []>} : vector<256x128xf32>, vector<128x128xf32>, vector<256x128xf32> -> vector<256x128xf32>
    %c0_66 = arith.constant 0 : index
    %c0_67 = arith.constant 0 : index
    %82 = vector.load %arg11[%c0_66, %c0_67] : memref<256x128xf32, #tpu.memory_space<vmem>>, vector<256x128xf32>
    %83 = arith.addf %82, %81 : vector<256x128xf32>
    %c0_68 = arith.constant 0 : index
    %c0_69 = arith.constant 0 : index
    %84 = vector.load %arg11[%c0_68, %c0_69] : memref<256x128xf32, #tpu.memory_space<vmem>>, vector<256x128xf32>
    tpu.vector_store %arg11[%c0_68, %c0_69], %83 {strides = array<i32>} : memref<256x128xf32, #tpu.memory_space<vmem>>, vector<256x128xf32>,
    %85 = vector.extract_strided_slice %22 {offsets = [2, 0, 0], sizes = [16, 16, 128], strides = [1, 1, 1]} : vector<18x16x128xf32> to vector<16x16x128xf32>
    %86 = vector.shape_cast %85 : vector<16x16x128xf32> to vector<256x128xf32>
    %c8 = arith.constant 8 : index
    %c0_70 = arith.constant 0 : index
    %c0_71 = arith.constant 0 : index
    %87 = vector.load %arg5[%c8, %c0_70, %c0_71] : memref<9x128x128xf32, #tpu.memory_space<vmem>>, vector<1x128x128xf32>
    %88 = vector.shape_cast %87 : vector<1x128x128xf32> to vector<128x128xf32>
    %cst_72 = arith.constant dense<0.000000e+00> : vector<256x128xf32>
    %89 = tpu.matmul %86, %88, %cst_72 {dimension_numbers = #tpu.dot_dimension_numbers<[1], [0], [0], [1], [0, 0, 1, 1], [], []>} : vector<256x128xf32>, vector<128x128xf32>, vector<256x128xf32> -> vector<256x128xf32>
    %c0_73 = arith.constant 0 : index
    %c0_74 = arith.constant 0 : index
    %90 = vector.load %arg11[%c0_73, %c0_74] : memref<256x128xf32, #tpu.memory_space<vmem>>, vector<256x128xf32>
    %91 = arith.addf %90, %89 : vector<256x128xf32>
    %c0_75 = arith.constant 0 : index
    %c0_76 = arith.constant 0 : index
    %92 = vector.load %arg11[%c0_75, %c0_76] : memref<256x128xf32, #tpu.memory_space<vmem>>, vector<256x128xf32>
    tpu.vector_store %arg11[%c0_75, %c0_76], %91 {strides = array<i32>} : memref<256x128xf32, #tpu.memory_space<vmem>>, vector<256x128xf32>,
    %c0_77 = arith.constant 0 : index
    %c0_78 = arith.constant 0 : index
    %93 = vector.load %arg11[%c0_77, %c0_78] : memref<256x128xf32, #tpu.memory_space<vmem>>, vector<256x128xf32>
    %94 = vector.shape_cast %93 : vector<256x128xf32> to vector<16x16x128xf32>
    %c0_79 = arith.constant 0 : index
    %c0_80 = arith.constant 0 : index
    %c0_81 = arith.constant 0 : index
    %c0_82 = arith.constant 0 : index
    %95 = vector.load %arg8[%c0_79, %c0_80, %c0_81, %c0_82] : memref<1x16x16x128xf32, #tpu.memory_space<vmem>>, vector<1x16x16x128xf32>
    %96 = vector.shape_cast %95 : vector<1x16x16x128xf32> to vector<16x16x128xf32>
    %97 = vector.shape_cast %94 : vector<16x16x128xf32> to vector<1x16x16x128xf32>
    tpu.vector_store %arg8[%c0_79, %c0_80, %c0_81, %c0_82], %97 {strides = array<i32>} : memref<1x16x16x128xf32, #tpu.memory_space<vmem>>, vector<1x16x16x128xf32>,
    %cst_83 = arith.constant dense<0.000000e+00> : vector<128xf32>
    %98 = vector.multi_reduction <add>, %93, %cst_83 [0] : vector<256x128xf32> to vector<128xf32>
    %99 = vector.shape_cast %98 : vector<128xf32> to vector<1x128xf32>
    %c0_84 = arith.constant 0 : index
    %c0_85 = arith.constant 0 : index
    %c0_86 = arith.constant 0 : index
    %c0_87 = arith.constant 0 : index
    %100 = vector.load %arg9[%c0_84, %c0_85, %c0_86, %c0_87] : memref<1x1x1x128xf32, #tpu.memory_space<vmem>>, vector<1x1x1x128xf32>
    %101 = vector.shape_cast %100 : vector<1x1x1x128xf32> to vector<1x128xf32>
    %102 = vector.shape_cast %99 : vector<1x128xf32> to vector<1x1x1x128xf32>
    tpu.vector_store %arg9[%c0_84, %c0_85, %c0_86, %c0_87], %102 {strides = array<i32>} : memref<1x1x1x128xf32, #tpu.memory_space<vmem>>, vector<1x1x1x128xf32>,
    %103 = arith.mulf %93, %93 : vector<256x128xf32>
    %cst_88 = arith.constant dense<0.000000e+00> : vector<128xf32>
    %104 = vector.multi_reduction <add>, %103, %cst_88 [0] : vector<256x128xf32> to vector<128xf32>
    %105 = vector.shape_cast %104 : vector<128xf32> to vector<1x128xf32>
    %c0_89 = arith.constant 0 : index
    %c0_90 = arith.constant 0 : index
    %c0_91 = arith.constant 0 : index
    %c0_92 = arith.constant 0 : index
    %106 = vector.load %arg10[%c0_89, %c0_90, %c0_91, %c0_92] : memref<1x1x1x128xf32, #tpu.memory_space<vmem>>, vector<1x1x1x128xf32>
    %107 = vector.shape_cast %106 : vector<1x1x1x128xf32> to vector<1x128xf32>
    %108 = vector.shape_cast %105 : vector<1x128xf32> to vector<1x1x1x128xf32>
    tpu.vector_store %arg10[%c0_89, %c0_90, %c0_91, %c0_92], %108 {strides = array<i32>} : memref<1x1x1x128xf32, #tpu.memory_space<vmem>>, vector<1x1x1x128xf32>,
    return
  }
  func.func @transform_0(%arg0: i32, %arg1: i32) -> (i32, i32, i32, i32) {
    %c0_i32 = arith.constant 0 : i32
    %c0_i32_0 = arith.constant 0 : i32
    %c0_i32_1 = arith.constant 0 : i32
    return %arg0, %arg1, %c0_i32, %c0_i32_0 : i32, i32, i32, i32
  }
  func.func @transform_1(%arg0: i32, %arg1: i32) -> (i32, i32, i32, i32) {
    %c16_i32 = arith.constant 16 : i32
    %0 = arith.muli %arg1, %c16_i32 : i32
    %c1_i32 = arith.constant 1 : i32
    %1 = arith.subi %0, %c1_i32 : i32
    %c0_i32 = arith.constant 0 : i32
    %2 = arith.subi %c0_i32, %1 : i32
    %3 = arith.maxsi %1, %2 : i32
    %c0_i32_0 = arith.constant 0 : i32
    %c0_i32_1 = arith.constant 0 : i32
    %c0_i32_2 = arith.constant 0 : i32
    return %arg0, %3, %c0_i32_0, %c0_i32_1 : i32, i32, i32, i32
  }
  func.func @transform_2(%arg0: i32, %arg1: i32) -> (i32, i32, i32, i32) {
    %c1_i32 = arith.constant 1 : i32
    %0 = arith.addi %arg1, %c1_i32 : i32
    %c16_i32 = arith.constant 16 : i32
    %1 = arith.muli %0, %c16_i32 : i32
    %c15_i32 = arith.constant 15 : i32
    %2 = arith.subi %1, %c15_i32 : i32
    %c0_i32 = arith.constant 0 : i32
    %3 = arith.subi %c0_i32, %2 : i32
    %4 = arith.maxsi %2, %3 : i32
    %c15_i32_0 = arith.constant 15 : i32
    %5 = arith.subi %c15_i32_0, %4 : i32
    %c0_i32_1 = arith.constant 0 : i32
    %c0_i32_2 = arith.constant 0 : i32
    %c0_i32_3 = arith.constant 0 : i32
    return %arg0, %5, %c0_i32_1, %c0_i32_2 : i32, i32, i32, i32
  }
  func.func @transform_3(%arg0: i32, %arg1: i32) -> (i32, i32, i32) {
    %c0_i32 = arith.constant 0 : i32
    %c0_i32_0 = arith.constant 0 : i32
    %c0_i32_1 = arith.constant 0 : i32
    %c0_i32_2 = arith.constant 0 : i32
    return %c0_i32, %c0_i32_0, %c0_i32_1 : i32, i32, i32
  }
  func.func @transform_4(%arg0: i32, %arg1: i32) -> (i32, i32) {
    %c0_i32 = arith.constant 0 : i32
    %c0_i32_0 = arith.constant 0 : i32
    %c0_i32_1 = arith.constant 0 : i32
    return %c0_i32, %c0_i32_0 : i32, i32
  }
  func.func @transform_5(%arg0: i32, %arg1: i32) -> (i32, i32) {
    %c0_i32 = arith.constant 0 : i32
    %c0_i32_0 = arith.constant 0 : i32
    %c0_i32_1 = arith.constant 0 : i32
    return %c0_i32, %c0_i32_0 : i32, i32
  }
  func.func @transform_6(%arg0: i32, %arg1: i32) -> (i32, i32, i32, i32) {
    %c0_i32 = arith.constant 0 : i32
    %c0_i32_0 = arith.constant 0 : i32
    %c0_i32_1 = arith.constant 0 : i32
    return %arg0, %arg1, %c0_i32, %c0_i32_0 : i32, i32, i32, i32
  }
  func.func @transform_7(%arg0: i32, %arg1: i32) -> (i32, i32, i32, i32) {
    %c0_i32 = arith.constant 0 : i32
    %c0_i32_0 = arith.constant 0 : i32
    %c0_i32_1 = arith.constant 0 : i32
    return %arg0, %arg1, %c0_i32, %c0_i32_0 : i32, i32, i32, i32
  }
  func.func @transform_8(%arg0: i32, %arg1: i32) -> (i32, i32, i32, i32) {
    %c0_i32 = arith.constant 0 : i32
    %c0_i32_0 = arith.constant 0 : i32
    %c0_i32_1 = arith.constant 0 : i32
    return %arg0, %arg1, %c0_i32, %c0_i32_0 : i32, i32, i32, i32
  }
}

</mosaic_0001>

<llo_original>
// kernel: resnet_block_forward.5
$region0: #{resnet_block_forward.5}
  #allocation0 [shape = 'u32[]', space=smem, size = 0x4, offset = 0x4, fixed_abs, tag = 'smem constant byte address 0x4 - core index']
  #allocation1 [shape = 'u32[144,128]{1,0:T(1,128)}', space=vmem, size = 0x12000, scoped, tag = 'internal scratch']
  %s0 = inlined_call_operand.vmem [shape: f32[2,16,16,128], index: 0, kind: input, shape index: {}]
  %s1 = inlined_call_operand.vmem [shape: f32[2,16,16,128], index: 1, kind: input, shape index: {}]
  %s2 = inlined_call_operand.vmem [shape: f32[1,128], index: 2, kind: input, shape index: {}]
  %s3 = inlined_call_operand.vmem [shape: f32[1,128], index: 3, kind: input, shape index: {}]
  %s4 = inlined_call_operand.vmem [shape: f32[2,16,16,128], index: 4, kind: output, shape index: {}]
  %s5 = sld [smem:[#allocation0]]
  $region49: #{resnet_block_forward.5} parent=0
    _
  %s7 = ssub.s32 1, %s5
  %s8 = scalar_select 0, %s7, %s5
  loop: start=0, step=1, limit=4
  $region2: #{resnet_block_forward.5} parent=0 // loop_pre_header
    _
  $region3: #{resnet_block_forward.5} parent=0 // loop_header
    %s10 = sphi 0, %s14
    %p11 = scmp.ge.s32.totalorder %s10, 4
    %s17 = sphi 0, %s29
    %s18 = sphi 0, %s25
    %s19 = sphi 0, %s17
    %s20 = sphi 0, %s18
    %s21 = sphi 0, %s19
    %s22 = sphi 0, %s20
    %s34 = sphi 0, %s36
    %s37 = sphi 0, %s34
    %s38 = sphi 0, %s37
    %s54 = sphi 0, %s38
    %s62 = sphi 0, %s64
    %s65 = sphi 0, %s62
    %s66 = sphi 0, %s65
    %s82 = sphi 0, %s66
    %s86 = sphi 0, %s86
    %s88 = sphi 0, %s86
    %s89 = sphi 0, %s88
    %s103 = sphi 0, %s89
    %s107 = sphi 0, %s107
    %s109 = sphi 0, %s107
    %s110 = sphi 0, %s109
    %s124 = sphi 0, %s110
    %s132 = sphi 0, %s134
    %s135 = sphi 0, %s132
    %s136 = sphi 0, %s135
    %s152 = sphi 0, %s136
  $region4: #{resnet_block_forward.5} parent=0 // loop_header_branch
    %13 = sbr.rel (%p11) target = $region8
  $region5: #{resnet_block_forward.5} parent=0 // loop_body
    %s15 = ssub.s32 %s10, 1
    %s16 = ssub.s32 %s10, 2
    %s23 = sadd.s32 1, %s18
    %p24 = scmp.ge.s32.totalorder %s23, 1
    %s25 = scalar_select %p24, 0, %s23
    %s26 = sadd.s32 1, %s17
    %s27 = scalar_select %p24, %s26, %s17
    %p28 = scmp.ge.s32.totalorder %s27, 2
    %s29 = scalar_select %p28, 0, %s27
    %s30 = ssub.s32 %s17, %s29
    %s31 = ssub.s32 %s18, %s25
    %s32 = sor.u32 %s30, %s31
    %p33 = scmp.eq.s32.totalorder %s32, 0
    %s35 = sadd.s32 %s34, 1
    %s36 = scalar_select %p33, %s34, %s35
    %p39 = pneg %p33
    %p40 = scmp.eq.s32.totalorder %s10, 1
    %p41 = por %p39, %p40
    %p42 = scmp.ne.s32.totalorder %s34, %s37
    %p43 = scmp.eq.s32.totalorder %s10, 0
    %p44 = por %p42, %p43
    %p45 = scmp.ne.s32.totalorder %s34, %s37
    %p46 = scmp.eq.s32.totalorder %s15, 1
    %p47 = por %p45, %p46
    %p48 = scmp.ne.s32.totalorder %s37, %s38
    %p49 = scmp.eq.s32.totalorder %s15, 0
    %p50 = por %p48, %p49
    %p51 = scmp.ne.s32.totalorder %s37, %s38
    %p52 = scmp.eq.s32.totalorder %s16, 1
    %p53 = por %p51, %p52
    %p55 = scmp.ne.s32.totalorder %s38, %s54
    %p56 = scmp.eq.s32.totalorder %s16, 0
    %p57 = por %p55, %p56
    %s58 = ssub.s32 %s17, %s29
    %s59 = ssub.s32 %s18, %s25
    %s60 = sor.u32 %s58, %s59
    %p61 = scmp.eq.s32.totalorder %s60, 0
    %s63 = sadd.s32 %s62, 1
    %s64 = scalar_select %p61, %s62, %s63
    %p67 = pneg %p61
    %p68 = scmp.eq.s32.totalorder %s10, 1
    %p69 = por %p67, %p68
    %p70 = scmp.ne.s32.totalorder %s62, %s65
    %p71 = scmp.eq.s32.totalorder %s10, 0
    %p72 = por %p70, %p71
    %p73 = scmp.ne.s32.totalorder %s62, %s65
    %p74 = scmp.eq.s32.totalorder %s15, 1
    %p75 = por %p73, %p74
    %p76 = scmp.ne.s32.totalorder %s65, %s66
    %p77 = scmp.eq.s32.totalorder %s15, 0
    %p78 = por %p76, %p77
    %p79 = scmp.ne.s32.totalorder %s65, %s66
    %p80 = scmp.eq.s32.totalorder %s16, 1
    %p81 = por %p79, %p80
    %p83 = scmp.ne.s32.totalorder %s66, %s82
    %p84 = scmp.eq.s32.totalorder %s16, 0
    %p85 = por %p83, %p84
    %s87 = sadd.s32 %s86, 1
    %p90 = scmp.eq.s32.totalorder %s10, 1
    %p91 = scmp.ne.s32.totalorder %s86, %s88
    %p92 = scmp.eq.s32.totalorder %s10, 0
    %p93 = por %p91, %p92
    %p94 = scmp.ne.s32.totalorder %s86, %s88
    %p95 = scmp.eq.s32.totalorder %s15, 1
    %p96 = por %p94, %p95
    %p97 = scmp.ne.s32.totalorder %s88, %s89
    %p98 = scmp.eq.s32.totalorder %s15, 0
    %p99 = por %p97, %p98
    %p100 = scmp.ne.s32.totalorder %s88, %s89
    %p101 = scmp.eq.s32.totalorder %s16, 1
    %p102 = por %p100, %p101
    %p104 = scmp.ne.s32.totalorder %s89, %s103
    %p105 = scmp.eq.s32.totalorder %s16, 0
    %p106 = por %p104, %p105
    %s108 = sadd.s32 %s107, 1
    %p111 = scmp.eq.s32.totalorder %s10, 1
    %p112 = scmp.ne.s32.totalorder %s107, %s109
    %p113 = scmp.eq.s32.totalorder %s10, 0
    %p114 = por %p112, %p113
    %p115 = scmp.ne.s32.totalorder %s107, %s109
    %p116 = scmp.eq.s32.totalorder %s15, 1
    %p117 = por %p115, %p116
    %p118 = scmp.ne.s32.totalorder %s109, %s110
    %p119 = scmp.eq.s32.totalorder %s15, 0
    %p120 = por %p118, %p119
    %p121 = scmp.ne.s32.totalorder %s109, %s110
    %p122 = scmp.eq.s32.totalorder %s16, 1
    %p123 = por %p121, %p122
    %p125 = scmp.ne.s32.totalorder %s110, %s124
    %p126 = scmp.eq.s32.totalorder %s16, 0
    %p127 = por %p125, %p126
    %s128 = ssub.s32 %s17, %s29
    %s129 = ssub.s32 %s18, %s25
    %s130 = sor.u32 %s128, %s129
    %p131 = scmp.eq.s32.totalorder %s130, 0
    %s133 = sadd.s32 %s132, 1
    %s134 = scalar_select %p131, %s132, %s133
    %p137 = pneg %p131
    %p138 = scmp.eq.s32.totalorder %s10, 1
    %p139 = por %p137, %p138
    %p140 = scmp.ne.s32.totalorder %s132, %s135
    %p141 = scmp.eq.s32.totalorder %s10, 0
    %p142 = por %p140, %p141
    %p143 = scmp.ne.s32.totalorder %s132, %s135
    %p144 = scmp.eq.s32.totalorder %s15, 1
    %p145 = por %p143, %p144
    %p146 = scmp.ne.s32.totalorder %s135, %s136
    %p147 = scmp.eq.s32.totalorder %s15, 0
    %p148 = por %p146, %p147
    %p149 = scmp.ne.s32.totalorder %s135, %s136
    %p150 = scmp.eq.s32.totalorder %s16, 1
    %p151 = por %p149, %p150
    %p153 = scmp.ne.s32.totalorder %s136, %s152
    %p154 = scmp.eq.s32.totalorder %s16, 0
    %p155 = por %p153, %p154
    %p156 = scmp.le.s32.totalorder 1, %s10
    %p157 = scmp.lt.s32.totalorder %s10, 3
    %p158 = pnand %p156, %p157
    %p159 = pneg %p158
    // Predicated region
    $region9: #{resnet_block_forward.5} parent=5 // pred_check
      _
    $region10: #{resnet_block_forward.5} parent=5 // pred_check_branch
      %161 = sbr.rel (%p158) target = $region12
    $region11: #{resnet_block_forward.5} parent=5 // pred_region
      %s162 = ssub.s32 %s10, 1
      // Predicated region
      $region13: #{resnet_block_forward.5} parent=11 // pred_check
        %p163 = pneg %p99
      $region14: #{resnet_block_forward.5} parent=11 // pred_check_branch
        %165 = sbr.rel (%p163) target = $region16
      $region15: #{resnet_block_forward.5} parent=11 // pred_region
        _
      $region16: #{resnet_block_forward.5} parent=11 // pred_fallthru
        _
      // Predicated region
      $region17: #{resnet_block_forward.5} parent=11 // pred_check
        %p166 = pneg %p120
      $region18: #{resnet_block_forward.5} parent=11 // pred_check_branch
        %168 = sbr.rel (%p166) target = $region20
      $region19: #{resnet_block_forward.5} parent=11 // pred_region
        _
      $region20: #{resnet_block_forward.5} parent=11 // pred_fallthru
        _
    $region12: #{resnet_block_forward.5} parent=5 // pred_fallthru
      _
    %p169 = scmp.lt.s32.totalorder %s10, 2
    // Predicated region
    $region21: #{resnet_block_forward.5} parent=5 // pred_check
      %p170 = pneg %p169
    $region22: #{resnet_block_forward.5} parent=5 // pred_check_branch
      %172 = sbr.rel (%p170) target = $region24
    $region23: #{resnet_block_forward.5} parent=5 // pred_region
      // Predicated region
      $region25: #{resnet_block_forward.5} parent=23 // pred_check
        %p173 = pneg %p44
      $region26: #{resnet_block_forward.5} parent=23 // pred_check_branch
        %175 = sbr.rel (%p173) target = $region28
      $region27: #{resnet_block_forward.5} parent=23 // pred_region
        %s176 = smul.u32 16, %s18
        %p177 = scmp.lt.s32.totalorder %s17, 1
        %s178 = scalar_select %p177, %s17, 1
        %p179 = scmp.lt.s32.totalorder %s176, 15
        %s180 = scalar_select %p179, %s176, 15
        %s181 = smul.addr %s180, 2
        %s182 = smul.addr %s178, 32
        %s183 = sadd.s32 %s181, %s182
        %s184 = smul.addr %s183, 8
        %s185 = scalar_lea.vmem %s0, %s184
        %s186 = smul.u32 16, %s18
      $region28: #{resnet_block_forward.5} parent=23 // pred_fallthru
        _
      // Predicated region
      $region29: #{resnet_block_forward.5} parent=23 // pred_check
        %p187 = pneg %p72
      $region30: #{resnet_block_forward.5} parent=23 // pred_check_branch
        %189 = sbr.rel (%p187) target = $region32
      $region31: #{resnet_block_forward.5} parent=23 // pred_region
        %s190 = smul.u32 16, %s18
        %p191 = scmp.lt.s32.totalorder %s17, 1
        %s192 = scalar_select %p191, %s17, 1
        %p193 = scmp.lt.s32.totalorder %s190, 15
        %s194 = scalar_select %p193, %s190, 15
        %s195 = smul.addr %s194, 2
        %s196 = smul.addr %s192, 32
        %s197 = sadd.s32 %s195, %s196
        %s198 = smul.addr %s197, 8
        %s199 = scalar_lea.vmem %s1, %s198
        %s200 = smul.u32 16, %s18
      $region32: #{resnet_block_forward.5} parent=23 // pred_fallthru
        _
    $region24: #{resnet_block_forward.5} parent=5 // pred_fallthru
      _
    %p201 = scmp.le.s32.totalorder 1, %s10
    %p202 = scmp.lt.s32.totalorder %s10, 3
    %p203 = pnand %p201, %p202
    %p204 = pneg %p203
    // Predicated region
    $region33: #{resnet_block_forward.5} parent=5 // pred_check
      _
    $region34: #{resnet_block_forward.5} parent=5 // pred_check_branch
      %206 = sbr.rel (%p203) target = $region36
    $region35: #{resnet_block_forward.5} parent=5 // pred_region
      %s207 = ssub.s32 %s10, 1
      %s208 = smul.u32 16, %s20
      %p209 = scmp.lt.s32.totalorder %s19, 1
      %s210 = scalar_select %p209, %s19, 1
      %p211 = scmp.lt.s32.totalorder %s208, 15
      %s212 = scalar_select %p211, %s208, 15
      %s213 = smul.addr %s212, 2
      %s214 = smul.addr %s210, 32
      %s215 = sadd.s32 %s213, %s214
      %s216 = smul.addr %s215, 8
      %s217 = scalar_lea.vmem %s0, %s216
      %p218 = pneg %p50
      %p219 = pneg %p47
      %s220 = smul.u32 16, %s20
      %p221 = scmp.lt.s32.totalorder %s19, 1
      %s222 = scalar_select %p221, %s19, 1
      %p223 = scmp.lt.s32.totalorder %s220, 15
      %s224 = scalar_select %p223, %s220, 15
      %s225 = smul.addr %s224, 2
      %s226 = smul.addr %s222, 32
      %s227 = sadd.s32 %s225, %s226
      %s228 = smul.addr %s227, 8
      %s229 = scalar_lea.vmem %s1, %s228
      %p230 = pneg %p78
      %p231 = pneg %p75
      %p232 = pneg %p99
      %p233 = pneg %p96
      %p234 = pneg %p120
      %p235 = pneg %p117
      %p236 = pneg %p148
      %p237 = pneg %p145
      %s238 = smul.u32 16, %s20
      %p239 = scmp.lt.s32.totalorder %s19, 1
      %s240 = scalar_select %p239, %s19, 1
      %p241 = scmp.lt.s32.totalorder %s238, 15
      %s242 = scalar_select %p241, %s238, 15
      %s243 = smul.addr %s242, 2
      %s244 = smul.addr %s240, 32
      %s245 = sadd.s32 %s243, %s244
      %s246 = smul.addr %s245, 8
      %s247 = scalar_lea.vmem %s4, %s246
      %s248 = smul.u32 16, %s20
      %p249 = scmp.lt.s32.totalorder %s19, 1
      %s250 = scalar_select %p249, %s19, 1
      %p251 = scmp.lt.s32.totalorder %s248, 15
      %s252 = scalar_select %p251, %s248, 15
      %s253 = smul.addr %s252, 2
      %s254 = smul.addr %s250, 32
      %s255 = sadd.s32 %s253, %s254
      %s256 = smul.addr %s255, 8
      %s257 = scalar_lea.vmem %s0, %s256
      %s258 = smul.u32 16, %s20
      %s259 = smul.u32 16, %s20
      %p260 = scmp.lt.s32.totalorder %s19, 1
      %s261 = scalar_select %p260, %s19, 1
      %p262 = scmp.lt.s32.totalorder %s259, 15
      %s263 = scalar_select %p262, %s259, 15
      %s264 = smul.addr %s263, 2
      %s265 = smul.addr %s261, 32
      %s266 = sadd.s32 %s264, %s265
      %s267 = smul.addr %s266, 8
      %s268 = scalar_lea.vmem %s1, %s267
      %s269 = smul.u32 16, %s20
      %s270 = smul.u32 16, %s20
      %p271 = scmp.lt.s32.totalorder %s19, 1
      %s272 = scalar_select %p271, %s19, 1
      %p273 = scmp.lt.s32.totalorder %s270, 15
      %s274 = scalar_select %p273, %s270, 15
      %s275 = smul.addr %s274, 2
      %s276 = smul.addr %s272, 32
      %s277 = sadd.s32 %s275, %s276
      %s278 = smul.addr %s277, 8
      %s279 = scalar_lea.vmem %s4, %s278
      %s280 = smul.u32 16, %s20
      %v281 = vld [vmem:[%s268] sm:$0xff]
      %v282 = vld [vmem:[%s268 + $0x8] sm:$0xff]
      %v283 = vld [vmem:[%s268 + $0x10] sm:$0xff]
      %v284 = vld [vmem:[%s268 + $0x18] sm:$0xff]
      %v285 = vld [vmem:[%s268 + $0x20] sm:$0xff]
      %v286 = vld [vmem:[%s268 + $0x28] sm:$0xff]
      %v287 = vld [vmem:[%s268 + $0x30] sm:$0xff]
      %v288 = vld [vmem:[%s268 + $0x38] sm:$0xff]
      %v289 = vld [vmem:[%s268 + $0x40] sm:$0xff]
      %v290 = vld [vmem:[%s268 + $0x48] sm:$0xff]
      %v291 = vld [vmem:[%s268 + $0x50] sm:$0xff]
      %v292 = vld [vmem:[%s268 + $0x58] sm:$0xff]
      %v293 = vld [vmem:[%s268 + $0x60] sm:$0xff]
      %v294 = vld [vmem:[%s268 + $0x68] sm:$0xff]
      %v295 = vld [vmem:[%s268 + $0x70] sm:$0xff]
      %v296 = vld [vmem:[%s268 + $0x78] sm:$0xff]
      %v297 = vld [vmem:[%s268 + $0x80] sm:$0xff]
      %v298 = vld [vmem:[%s268 + $0x88] sm:$0xff]
      %v299 = vld [vmem:[%s268 + $0x90] sm:$0xff]
      %v300 = vld [vmem:[%s268 + $0x98] sm:$0xff]
      %v301 = vld [vmem:[%s268 + $0xa0] sm:$0xff]
      %v302 = vld [vmem:[%s268 + $0xa8] sm:$0xff]
      %v303 = vld [vmem:[%s268 + $0xb0] sm:$0xff]
      %v304 = vld [vmem:[%s268 + $0xb8] sm:$0xff]
      %v305 = vld [vmem:[%s268 + $0xc0] sm:$0xff]
      %v306 = vld [vmem:[%s268 + $0xc8] sm:$0xff]
      %v307 = vld [vmem:[%s268 + $0xd0] sm:$0xff]
      %v308 = vld [vmem:[%s268 + $0xd8] sm:$0xff]
      %v309 = vld [vmem:[%s268 + $0xe0] sm:$0xff]
      %v310 = vld [vmem:[%s268 + $0xe8] sm:$0xff]
      %v311 = vld [vmem:[%s268 + $0xf0] sm:$0xff]
      %v312 = vld [vmem:[%s268 + $0xf8] sm:$0xff]
      %v313 = vld [vmem:[%s2] sm:$0x1]
      %v315 = vlaneseq
      %v316 = vshrl.u32 %v315, 7
      %v317 = vsub.s32 0, %v316
      %v318 = vrot.slane %v313, %v317
      %v320 = vmul.f32 %v281, %v318
      %v321 = vmul.f32 %v282, %v318
      %v322 = vmul.f32 %v283, %v318
      %v323 = vmul.f32 %v284, %v318
      %v324 = vmul.f32 %v285, %v318
      %v325 = vmul.f32 %v286, %v318
      %v326 = vmul.f32 %v287, %v318
      %v327 = vmul.f32 %v288, %v318
      %v328 = vmul.f32 %v289, %v318
      %v329 = vmul.f32 %v290, %v318
      %v330 = vmul.f32 %v291, %v318
      %v331 = vmul.f32 %v292, %v318
      %v332 = vmul.f32 %v293, %v318
      %v333 = vmul.f32 %v294, %v318
      %v334 = vmul.f32 %v295, %v318
      %v335 = vmul.f32 %v296, %v318
      %v336 = vmul.f32 %v297, %v318
      %v337 = vmul.f32 %v298, %v318
      %v338 = vmul.f32 %v299, %v318
      %v339 = vmul.f32 %v300, %v318
      %v340 = vmul.f32 %v301, %v318
      %v341 = vmul.f32 %v302, %v318
      %v342 = vmul.f32 %v303, %v318
      %v343 = vmul.f32 %v304, %v318
      %v344 = vmul.f32 %v305, %v318
      %v345 = vmul.f32 %v306, %v318
      %v346 = vmul.f32 %v307, %v318
      %v347 = vmul.f32 %v308, %v318
      %v348 = vmul.f32 %v309, %v318
      %v349 = vmul.f32 %v310, %v318
      %v350 = vmul.f32 %v311, %v318
      %v351 = vmul.f32 %v312, %v318
      %v352 = vld [vmem:[%s3] sm:$0x1]
      %v354 = vlaneseq
      %v355 = vshrl.u32 %v354, 7
      %v356 = vsub.s32 0, %v355
      %v357 = vrot.slane %v352, %v356
      %v359 = vadd.f32 %v320, %v357
      %v360 = vadd.f32 %v321, %v357
      %v361 = vadd.f32 %v322, %v357
      %v362 = vadd.f32 %v323, %v357
      %v363 = vadd.f32 %v324, %v357
      %v364 = vadd.f32 %v325, %v357
      %v365 = vadd.f32 %v326, %v357
      %v366 = vadd.f32 %v327, %v357
      %v367 = vadd.f32 %v328, %v357
      %v368 = vadd.f32 %v329, %v357
      %v369 = vadd.f32 %v330, %v357
      %v370 = vadd.f32 %v331, %v357
      %v371 = vadd.f32 %v332, %v357
      %v372 = vadd.f32 %v333, %v357
      %v373 = vadd.f32 %v334, %v357
      %v374 = vadd.f32 %v335, %v357
      %v375 = vadd.f32 %v336, %v357
      %v376 = vadd.f32 %v337, %v357
      %v377 = vadd.f32 %v338, %v357
      %v378 = vadd.f32 %v339, %v357
      %v379 = vadd.f32 %v340, %v357
      %v380 = vadd.f32 %v341, %v357
      %v381 = vadd.f32 %v342, %v357
      %v382 = vadd.f32 %v343, %v357
      %v383 = vadd.f32 %v344, %v357
      %v384 = vadd.f32 %v345, %v357
      %v385 = vadd.f32 %v346, %v357
      %v386 = vadd.f32 %v347, %v357
      %v387 = vadd.f32 %v348, %v357
      %v388 = vadd.f32 %v349, %v357
      %v389 = vadd.f32 %v350, %v357
      %v390 = vadd.f32 %v351, %v357
      %v391 = vld [vmem:[%s257] sm:$0xff]
      %v392 = vld [vmem:[%s257 + $0x8] sm:$0xff]
      %v393 = vld [vmem:[%s257 + $0x10] sm:$0xff]
      %v394 = vld [vmem:[%s257 + $0x18] sm:$0xff]
      %v395 = vld [vmem:[%s257 + $0x20] sm:$0xff]
      %v396 = vld [vmem:[%s257 + $0x28] sm:$0xff]
      %v397 = vld [vmem:[%s257 + $0x30] sm:$0xff]
      %v398 = vld [vmem:[%s257 + $0x38] sm:$0xff]
      %v399 = vld [vmem:[%s257 + $0x40] sm:$0xff]
      %v400 = vld [vmem:[%s257 + $0x48] sm:$0xff]
      %v401 = vld [vmem:[%s257 + $0x50] sm:$0xff]
      %v402 = vld [vmem:[%s257 + $0x58] sm:$0xff]
      %v403 = vld [vmem:[%s257 + $0x60] sm:$0xff]
      %v404 = vld [vmem:[%s257 + $0x68] sm:$0xff]
      %v405 = vld [vmem:[%s257 + $0x70] sm:$0xff]
      %v406 = vld [vmem:[%s257 + $0x78] sm:$0xff]
      %v407 = vld [vmem:[%s257 + $0x80] sm:$0xff]
      %v408 = vld [vmem:[%s257 + $0x88] sm:$0xff]
      %v409 = vld [vmem:[%s257 + $0x90] sm:$0xff]
      %v410 = vld [vmem:[%s257 + $0x98] sm:$0xff]
      %v411 = vld [vmem:[%s257 + $0xa0] sm:$0xff]
      %v412 = vld [vmem:[%s257 + $0xa8] sm:$0xff]
      %v413 = vld [vmem:[%s257 + $0xb0] sm:$0xff]
      %v414 = vld [vmem:[%s257 + $0xb8] sm:$0xff]
      %v415 = vld [vmem:[%s257 + $0xc0] sm:$0xff]
      %v416 = vld [vmem:[%s257 + $0xc8] sm:$0xff]
      %v417 = vld [vmem:[%s257 + $0xd0] sm:$0xff]
      %v418 = vld [vmem:[%s257 + $0xd8] sm:$0xff]
      %v419 = vld [vmem:[%s257 + $0xe0] sm:$0xff]
      %v420 = vld [vmem:[%s257 + $0xe8] sm:$0xff]
      %v421 = vld [vmem:[%s257 + $0xf0] sm:$0xff]
      %v422 = vld [vmem:[%s257 + $0xf8] sm:$0xff]
      %v423 = vadd.f32 %v391, %v359
      %v424 = vadd.f32 %v392, %v360
      %v425 = vadd.f32 %v393, %v361
      %v426 = vadd.f32 %v394, %v362
      %v427 = vadd.f32 %v395, %v363
      %v428 = vadd.f32 %v396, %v364
      %v429 = vadd.f32 %v397, %v365
      %v430 = vadd.f32 %v398, %v366
      %v431 = vadd.f32 %v399, %v367
      %v432 = vadd.f32 %v400, %v368
      %v433 = vadd.f32 %v401, %v369
      %v434 = vadd.f32 %v402, %v370
      %v435 = vadd.f32 %v403, %v371
      %v436 = vadd.f32 %v404, %v372
      %v437 = vadd.f32 %v405, %v373
      %v438 = vadd.f32 %v406, %v374
      %v439 = vadd.f32 %v407, %v375
      %v440 = vadd.f32 %v408, %v376
      %v441 = vadd.f32 %v409, %v377
      %v442 = vadd.f32 %v410, %v378
      %v443 = vadd.f32 %v411, %v379
      %v444 = vadd.f32 %v412, %v380
      %v445 = vadd.f32 %v413, %v381
      %v446 = vadd.f32 %v414, %v382
      %v447 = vadd.f32 %v415, %v383
      %v448 = vadd.f32 %v416, %v384
      %v449 = vadd.f32 %v417, %v385
      %v450 = vadd.f32 %v418, %v386
      %v451 = vadd.f32 %v419, %v387
      %v452 = vadd.f32 %v420, %v388
      %v453 = vadd.f32 %v421, %v389
      %v454 = vadd.f32 %v422, %v390
      %455 = vst [vmem:[%s279] sm:$0xff] %v423
      %456 = vst [vmem:[%s279 + $0x8] sm:$0xff] %v424
      %457 = vst [vmem:[%s279 + $0x10] sm:$0xff] %v425
      %458 = vst [vmem:[%s279 + $0x18] sm:$0xff] %v426
      %459 = vst [vmem:[%s279 + $0x20] sm:$0xff] %v427
      %460 = vst [vmem:[%s279 + $0x28] sm:$0xff] %v428
      %461 = vst [vmem:[%s279 + $0x30] sm:$0xff] %v429
      %462 = vst [vmem:[%s279 + $0x38] sm:$0xff] %v430
      %463 = vst [vmem:[%s279 + $0x40] sm:$0xff] %v431
      %464 = vst [vmem:[%s279 + $0x48] sm:$0xff] %v432
      %465 = vst [vmem:[%s279 + $0x50] sm:$0xff] %v433
      %466 = vst [vmem:[%s279 + $0x58] sm:$0xff] %v434
      %467 = vst [vmem:[%s279 + $0x60] sm:$0xff] %v435
      %468 = vst [vmem:[%s279 + $0x68] sm:$0xff] %v436
      %469 = vst [vmem:[%s279 + $0x70] sm:$0xff] %v437
      %470 = vst [vmem:[%s279 + $0x78] sm:$0xff] %v438
      %471 = vst [vmem:[%s279 + $0x80] sm:$0xff] %v439
      %472 = vst [vmem:[%s279 + $0x88] sm:$0xff] %v440
      %473 = vst [vmem:[%s279 + $0x90] sm:$0xff] %v441
      %474 = vst [vmem:[%s279 + $0x98] sm:$0xff] %v442
      %475 = vst [vmem:[%s279 + $0xa0] sm:$0xff] %v443
      %476 = vst [vmem:[%s279 + $0xa8] sm:$0xff] %v444
      %477 = vst [vmem:[%s279 + $0xb0] sm:$0xff] %v445
      %478 = vst [vmem:[%s279 + $0xb8] sm:$0xff] %v446
      %479 = vst [vmem:[%s279 + $0xc0] sm:$0xff] %v447
      %480 = vst [vmem:[%s279 + $0xc8] sm:$0xff] %v448
      %481 = vst [vmem:[%s279 + $0xd0] sm:$0xff] %v449
      %482 = vst [vmem:[%s279 + $0xd8] sm:$0xff] %v450
      %483 = vst [vmem:[%s279 + $0xe0] sm:$0xff] %v451
      %484 = vst [vmem:[%s279 + $0xe8] sm:$0xff] %v452
      %485 = vst [vmem:[%s279 + $0xf0] sm:$0xff] %v453
      %486 = vst [vmem:[%s279 + $0xf8] sm:$0xff] %v454
      %s487 = smul.u32 16, %s20
      %p488 = scmp.lt.s32.totalorder %s19, 1
      %s489 = scalar_select %p488, %s19, 1
      %p490 = scmp.lt.s32.totalorder %s487, 15
      %s491 = scalar_select %p490, %s487, 15
      %s492 = smul.addr %s491, 2
      %s493 = smul.addr %s489, 32
      %s494 = sadd.s32 %s492, %s493
      %s495 = smul.addr %s494, 8
      %s496 = scalar_lea.vmem %s4, %s495
      // Predicated region
      $region37: #{resnet_block_forward.5} parent=35 // pred_check
        %p497 = pneg %p145
      $region38: #{resnet_block_forward.5} parent=35 // pred_check_branch
        %499 = sbr.rel (%p497) target = $region40
      $region39: #{resnet_block_forward.5} parent=35 // pred_region
        %s500 = smul.u32 16, %s20
      $region40: #{resnet_block_forward.5} parent=35 // pred_fallthru
        _
    $region36: #{resnet_block_forward.5} parent=5 // pred_fallthru
      _
    %p501 = scmp.le.s32.totalorder 2, %s10
    // Predicated region
    $region41: #{resnet_block_forward.5} parent=5 // pred_check
      %p502 = pneg %p501
    $region42: #{resnet_block_forward.5} parent=5 // pred_check_branch
      %504 = sbr.rel (%p502) target = $region44
    $region43: #{resnet_block_forward.5} parent=5 // pred_region
      %s505 = ssub.s32 %s10, 2
      // Predicated region
      $region45: #{resnet_block_forward.5} parent=43 // pred_check
        %p506 = pneg %p151
      $region46: #{resnet_block_forward.5} parent=43 // pred_check_branch
        %508 = sbr.rel (%p506) target = $region48
      $region47: #{resnet_block_forward.5} parent=43 // pred_region
        %s509 = smul.u32 16, %s22
        %p510 = scmp.lt.s32.totalorder %s21, 1
        %s511 = scalar_select %p510, %s21, 1
        %p512 = scmp.lt.s32.totalorder %s509, 15
        %s513 = scalar_select %p512, %s509, 15
        %s514 = smul.addr %s513, 2
        %s515 = smul.addr %s511, 32
        %s516 = sadd.s32 %s514, %s515
        %s517 = smul.addr %s516, 8
        %s518 = scalar_lea.vmem %s4, %s517
      $region48: #{resnet_block_forward.5} parent=43 // pred_fallthru
        _
    $region44: #{resnet_block_forward.5} parent=5 // pred_fallthru
      _
  $region6: #{resnet_block_forward.5} parent=0 // loop_footer
    %s14 = sadd.s32 1, %s10
  $region7: #{resnet_block_forward.5} parent=0 // loop_footer_branch
    %9 = sbr.rel target = $region3
  $region8: #{resnet_block_forward.5} parent=0 // loop_exit
    _

// kernel: resnet_block_forward.3
$region0: #{resnet_block_forward.3}
  #allocation0 [shape = 'u32[]', space=smem, size = 0x4, offset = 0x4, fixed_abs, tag = 'smem constant byte address 0x4 - core index']
  #allocation1 [shape = 'u32[144,128]{1,0:T(1,128)}', space=vmem, size = 0x12000, scoped, tag = 'internal scratch']
  #allocation2 [shape = 'f32[256,128]{1,0:T(8,128)}', space=vmem, size = 0x20000, scoped, tag = 'scratch operand']
  %s0 = inlined_call_operand.vmem [shape: f32[2,16,16,128], index: 0, kind: input, shape index: {}, may-alias: {0,1,2}]
  %s1 = inlined_call_operand.vmem [shape: f32[2,16,16,128], index: 1, kind: input, shape index: {}, may-alias: {0,1,2}]
  %s2 = inlined_call_operand.vmem [shape: f32[2,16,16,128], index: 2, kind: input, shape index: {}, may-alias: {0,1,2}]
  %s3 = inlined_call_operand.vmem [shape: f32[9,128,128], index: 3, kind: input, shape index: {}]
  %s4 = inlined_call_operand.vmem [shape: f32[2,16,16,128], index: 4, kind: output, shape index: {0}]
  %s5 = inlined_call_operand.vmem [shape: f32[2,1,1,128], index: 5, kind: output, shape index: {1}]
  %s6 = inlined_call_operand.vmem [shape: f32[2,1,1,128], index: 6, kind: output, shape index: {2}]
  %7 = xla_tuple %s4, %s5, %s6
  %s8 = sld [smem:[#allocation0]]
  $region65: #{resnet_block_forward.3} parent=0
    _
  %s10 = ssub.s32 1, %s8
  %s11 = scalar_select 0, %s10, %s8
  loop: start=0, step=1, limit=4
  $region2: #{resnet_block_forward.3} parent=0 // loop_pre_header
    _
  $region3: #{resnet_block_forward.3} parent=0 // loop_header
    %s13 = sphi 0, %s17
    %p14 = scmp.ge.s32.totalorder %s13, 4
    %s20 = sphi 0, %s32
    %s21 = sphi 0, %s28
    %s22 = sphi 0, %s20
    %s23 = sphi 0, %s21
    %s24 = sphi 0, %s22
    %s25 = sphi 0, %s23
    %s37 = sphi 0, %s39
    %s40 = sphi 0, %s37
    %s41 = sphi 0, %s40
    %s57 = sphi 0, %s41
    %s75 = sphi 0, %s77
    %s78 = sphi 0, %s75
    %s79 = sphi 0, %s78
    %s95 = sphi 0, %s79
    %s117 = sphi 0, %s119
    %s120 = sphi 0, %s117
    %s121 = sphi 0, %s120
    %s137 = sphi 0, %s121
    %s141 = sphi 0, %s141
    %s143 = sphi 0, %s141
    %s144 = sphi 0, %s143
    %s158 = sphi 0, %s144
    %s166 = sphi 0, %s168
    %s169 = sphi 0, %s166
    %s170 = sphi 0, %s169
    %s186 = sphi 0, %s170
    %s194 = sphi 0, %s196
    %s197 = sphi 0, %s194
    %s198 = sphi 0, %s197
    %s214 = sphi 0, %s198
    %s222 = sphi 0, %s224
    %s225 = sphi 0, %s222
    %s226 = sphi 0, %s225
    %s242 = sphi 0, %s226
  $region4: #{resnet_block_forward.3} parent=0 // loop_header_branch
    %16 = sbr.rel (%p14) target = $region8
  $region5: #{resnet_block_forward.3} parent=0 // loop_body
    %s18 = ssub.s32 %s13, 1
    %s19 = ssub.s32 %s13, 2
    %s26 = sadd.s32 1, %s21
    %p27 = scmp.ge.s32.totalorder %s26, 1
    %s28 = scalar_select %p27, 0, %s26
    %s29 = sadd.s32 1, %s20
    %s30 = scalar_select %p27, %s29, %s20
    %p31 = scmp.ge.s32.totalorder %s30, 2
    %s32 = scalar_select %p31, 0, %s30
    %s33 = ssub.s32 %s20, %s32
    %s34 = ssub.s32 %s21, %s28
    %s35 = sor.u32 %s33, %s34
    %p36 = scmp.eq.s32.totalorder %s35, 0
    %s38 = sadd.s32 %s37, 1
    %s39 = scalar_select %p36, %s37, %s38
    %p42 = pneg %p36
    %p43 = scmp.eq.s32.totalorder %s13, 1
    %p44 = por %p42, %p43
    %p45 = scmp.ne.s32.totalorder %s37, %s40
    %p46 = scmp.eq.s32.totalorder %s13, 0
    %p47 = por %p45, %p46
    %p48 = scmp.ne.s32.totalorder %s37, %s40
    %p49 = scmp.eq.s32.totalorder %s18, 1
    %p50 = por %p48, %p49
    %p51 = scmp.ne.s32.totalorder %s40, %s41
    %p52 = scmp.eq.s32.totalorder %s18, 0
    %p53 = por %p51, %p52
    %p54 = scmp.ne.s32.totalorder %s40, %s41
    %p55 = scmp.eq.s32.totalorder %s19, 1
    %p56 = por %p54, %p55
    %p58 = scmp.ne.s32.totalorder %s41, %s57
    %p59 = scmp.eq.s32.totalorder %s19, 0
    %p60 = por %p58, %p59
    %s61 = smul.u32 %s21, 16
    %s62 = ssub.s32 %s61, 1
    %s63 = ssub.s32 1, %s61
    %p64 = scmp.gt.s32.totalorder %s62, %s63
    %s65 = scalar_select %p64, %s62, %s63
    %s66 = smul.u32 %s28, 16
    %s67 = ssub.s32 %s66, 1
    %s68 = ssub.s32 1, %s66
    %p69 = scmp.gt.s32.totalorder %s67, %s68
    %s70 = scalar_select %p69, %s67, %s68
    %s71 = ssub.s32 %s20, %s32
    %s72 = ssub.s32 %s65, %s70
    %s73 = sor.u32 %s71, %s72
    %p74 = scmp.eq.s32.totalorder %s73, 0
    %s76 = sadd.s32 %s75, 1
    %s77 = scalar_select %p74, %s75, %s76
    %p80 = pneg %p74
    %p81 = scmp.eq.s32.totalorder %s13, 1
    %p82 = por %p80, %p81
    %p83 = scmp.ne.s32.totalorder %s75, %s78
    %p84 = scmp.eq.s32.totalorder %s13, 0
    %p85 = por %p83, %p84
    %p86 = scmp.ne.s32.totalorder %s75, %s78
    %p87 = scmp.eq.s32.totalorder %s18, 1
    %p88 = por %p86, %p87
    %p89 = scmp.ne.s32.totalorder %s78, %s79
    %p90 = scmp.eq.s32.totalorder %s18, 0
    %p91 = por %p89, %p90
    %p92 = scmp.ne.s32.totalorder %s78, %s79
    %p93 = scmp.eq.s32.totalorder %s19, 1
    %p94 = por %p92, %p93
    %p96 = scmp.ne.s32.totalorder %s79, %s95
    %p97 = scmp.eq.s32.totalorder %s19, 0
    %p98 = por %p96, %p97
    %s99 = sadd.s32 %s21, 1
    %s100 = smul.u32 %s99, 16
    %s101 = ssub.s32 %s100, 15
    %s102 = ssub.s32 15, %s100
    %p103 = scmp.gt.s32.totalorder %s101, %s102
    %s104 = scalar_select %p103, %s101, %s102
    %s105 = ssub.s32 15, %s104
    %s106 = sadd.s32 %s28, 1
    %s107 = smul.u32 %s106, 16
    %s108 = ssub.s32 %s107, 15
    %s109 = ssub.s32 15, %s107
    %p110 = scmp.gt.s32.totalorder %s108, %s109
    %s111 = scalar_select %p110, %s108, %s109
    %s112 = ssub.s32 15, %s111
    %s113 = ssub.s32 %s20, %s32
    %s114 = ssub.s32 %s105, %s112
    %s115 = sor.u32 %s113, %s114
    %p116 = scmp.eq.s32.totalorder %s115, 0
    %s118 = sadd.s32 %s117, 1
    %s119 = scalar_select %p116, %s117, %s118
    %p122 = pneg %p116
    %p123 = scmp.eq.s32.totalorder %s13, 1
    %p124 = por %p122, %p123
    %p125 = scmp.ne.s32.totalorder %s117, %s120
    %p126 = scmp.eq.s32.totalorder %s13, 0
    %p127 = por %p125, %p126
    %p128 = scmp.ne.s32.totalorder %s117, %s120
    %p129 = scmp.eq.s32.totalorder %s18, 1
    %p130 = por %p128, %p129
    %p131 = scmp.ne.s32.totalorder %s120, %s121
    %p132 = scmp.eq.s32.totalorder %s18, 0
    %p133 = por %p131, %p132
    %p134 = scmp.ne.s32.totalorder %s120, %s121
    %p135 = scmp.eq.s32.totalorder %s19, 1
    %p136 = por %p134, %p135
    %p138 = scmp.ne.s32.totalorder %s121, %s137
    %p139 = scmp.eq.s32.totalorder %s19, 0
    %p140 = por %p138, %p139
    %s142 = sadd.s32 %s141, 1
    %p145 = scmp.eq.s32.totalorder %s13, 1
    %p146 = scmp.ne.s32.totalorder %s141, %s143
    %p147 = scmp.eq.s32.totalorder %s13, 0
    %p148 = por %p146, %p147
    %p149 = scmp.ne.s32.totalorder %s141, %s143
    %p150 = scmp.eq.s32.totalorder %s18, 1
    %p151 = por %p149, %p150
    %p152 = scmp.ne.s32.totalorder %s143, %s144
    %p153 = scmp.eq.s32.totalorder %s18, 0
    %p154 = por %p152, %p153
    %p155 = scmp.ne.s32.totalorder %s143, %s144
    %p156 = scmp.eq.s32.totalorder %s19, 1
    %p157 = por %p155, %p156
    %p159 = scmp.ne.s32.totalorder %s144, %s158
    %p160 = scmp.eq.s32.totalorder %s19, 0
    %p161 = por %p159, %p160
    %s162 = ssub.s32 %s20, %s32
    %s163 = ssub.s32 %s21, %s28
    %s164 = sor.u32 %s162, %s163
    %p165 = scmp.eq.s32.totalorder %s164, 0
    %s167 = sadd.s32 %s166, 1
    %s168 = scalar_select %p165, %s166, %s167
    %p171 = pneg %p165
    %p172 = scmp.eq.s32.totalorder %s13, 1
    %p173 = por %p171, %p172
    %p174 = scmp.ne.s32.totalorder %s166, %s169
    %p175 = scmp.eq.s32.totalorder %s13, 0
    %p176 = por %p174, %p175
    %p177 = scmp.ne.s32.totalorder %s166, %s169
    %p178 = scmp.eq.s32.totalorder %s18, 1
    %p179 = por %p177, %p178
    %p180 = scmp.ne.s32.totalorder %s169, %s170
    %p181 = scmp.eq.s32.totalorder %s18, 0
    %p182 = por %p180, %p181
    %p183 = scmp.ne.s32.totalorder %s169, %s170
    %p184 = scmp.eq.s32.totalorder %s19, 1
    %p185 = por %p183, %p184
    %p187 = scmp.ne.s32.totalorder %s170, %s186
    %p188 = scmp.eq.s32.totalorder %s19, 0
    %p189 = por %p187, %p188
    %s190 = ssub.s32 %s20, %s32
    %s191 = ssub.s32 %s21, %s28
    %s192 = sor.u32 %s190, %s191
    %p193 = scmp.eq.s32.totalorder %s192, 0
    %s195 = sadd.s32 %s194, 1
    %s196 = scalar_select %p193, %s194, %s195
    %p199 = pneg %p193
    %p200 = scmp.eq.s32.totalorder %s13, 1
    %p201 = por %p199, %p200
    %p202 = scmp.ne.s32.totalorder %s194, %s197
    %p203 = scmp.eq.s32.totalorder %s13, 0
    %p204 = por %p202, %p203
    %p205 = scmp.ne.s32.totalorder %s194, %s197
    %p206 = scmp.eq.s32.totalorder %s18, 1
    %p207 = por %p205, %p206
    %p208 = scmp.ne.s32.totalorder %s197, %s198
    %p209 = scmp.eq.s32.totalorder %s18, 0
    %p210 = por %p208, %p209
    %p211 = scmp.ne.s32.totalorder %s197, %s198
    %p212 = scmp.eq.s32.totalorder %s19, 1
    %p213 = por %p211, %p212
    %p215 = scmp.ne.s32.totalorder %s198, %s214
    %p216 = scmp.eq.s32.totalorder %s19, 0
    %p217 = por %p215, %p216
    %s218 = ssub.s32 %s20, %s32
    %s219 = ssub.s32 %s21, %s28
    %s220 = sor.u32 %s218, %s219
    %p221 = scmp.eq.s32.totalorder %s220, 0
    %s223 = sadd.s32 %s222, 1
    %s224 = scalar_select %p221, %s222, %s223
    %p227 = pneg %p221
    %p228 = scmp.eq.s32.totalorder %s13, 1
    %p229 = por %p227, %p228
    %p230 = scmp.ne.s32.totalorder %s222, %s225
    %p231 = scmp.eq.s32.totalorder %s13, 0
    %p232 = por %p230, %p231
    %p233 = scmp.ne.s32.totalorder %s222, %s225
    %p234 = scmp.eq.s32.totalorder %s18, 1
    %p235 = por %p233, %p234
    %p236 = scmp.ne.s32.totalorder %s225, %s226
    %p237 = scmp.eq.s32.totalorder %s18, 0
    %p238 = por %p236, %p237
    %p239 = scmp.ne.s32.totalorder %s225, %s226
    %p240 = scmp.eq.s32.totalorder %s19, 1
    %p241 = por %p239, %p240
    %p243 = scmp.ne.s32.totalorder %s226, %s242
    %p244 = scmp.eq.s32.totalorder %s19, 0
    %p245 = por %p243, %p244
    %p246 = scmp.le.s32.totalorder 1, %s13
    %p247 = scmp.lt.s32.totalorder %s13, 3
    %p248 = pnand %p246, %p247
    %p249 = pneg %p248
    // Predicated region
    $region9: #{resnet_block_forward.3} parent=5 // pred_check
      _
    $region10: #{resnet_block_forward.3} parent=5 // pred_check_branch
      %251 = sbr.rel (%p248) target = $region12
    $region11: #{resnet_block_forward.3} parent=5 // pred_region
      %s252 = ssub.s32 %s13, 1
      // Predicated region
      $region13: #{resnet_block_forward.3} parent=11 // pred_check
        %p253 = pneg %p154
      $region14: #{resnet_block_forward.3} parent=11 // pred_check_branch
        %255 = sbr.rel (%p253) target = $region16
      $region15: #{resnet_block_forward.3} parent=11 // pred_region
        _
      $region16: #{resnet_block_forward.3} parent=11 // pred_fallthru
        _
    $region12: #{resnet_block_forward.3} parent=5 // pred_fallthru
      _
    %p256 = scmp.lt.s32.totalorder %s13, 2
    // Predicated region
    $region17: #{resnet_block_forward.3} parent=5 // pred_check
      %p257 = pneg %p256
    $region18: #{resnet_block_forward.3} parent=5 // pred_check_branch
      %259 = sbr.rel (%p257) target = $region20
    $region19: #{resnet_block_forward.3} parent=5 // pred_region
      // Predicated region
      $region21: #{resnet_block_forward.3} parent=19 // pred_check
        %p260 = pneg %p47
      $region22: #{resnet_block_forward.3} parent=19 // pred_check_branch
        %262 = sbr.rel (%p260) target = $region24
      $region23: #{resnet_block_forward.3} parent=19 // pred_region
        %s263 = smul.u32 16, %s21
        %p264 = scmp.lt.s32.totalorder %s20, 1
        %s265 = scalar_select %p264, %s20, 1
        %p266 = scmp.lt.s32.totalorder %s263, 15
        %s267 = scalar_select %p266, %s263, 15
        %s268 = smul.addr %s267, 2
        %s269 = smul.addr %s265, 32
        %s270 = sadd.s32 %s268, %s269
        %s271 = smul.addr %s270, 8
        %s272 = scalar_lea.vmem %s0, %s271
        %s273 = smul.u32 16, %s21
      $region24: #{resnet_block_forward.3} parent=19 // pred_fallthru
        _
      // Predicated region
      $region25: #{resnet_block_forward.3} parent=19 // pred_check
        %p274 = pneg %p85
      $region26: #{resnet_block_forward.3} parent=19 // pred_check_branch
        %276 = sbr.rel (%p274) target = $region28
      $region27: #{resnet_block_forward.3} parent=19 // pred_region
        %s277 = smul.u32 %s21, 16
        %s278 = ssub.s32 %s277, 1
        %s279 = ssub.s32 1, %s277
        %p280 = scmp.gt.s32.totalorder %s278, %s279
        %s281 = scalar_select %p280, %s278, %s279
        %p282 = scmp.lt.s32.totalorder %s20, 1
        %s283 = scalar_select %p282, %s20, 1
        %p284 = scmp.lt.s32.totalorder %s281, 15
        %s285 = scalar_select %p284, %s281, 15
        %s286 = smul.addr %s285, 2
        %s287 = smul.addr %s283, 32
        %s288 = sadd.s32 %s286, %s287
        %s289 = smul.addr %s288, 8
        %s290 = scalar_lea.vmem %s1, %s289
        %s291 = smul.u32 %s21, 16
        %s292 = ssub.s32 %s291, 1
        %s293 = ssub.s32 1, %s291
        %p294 = scmp.gt.s32.totalorder %s292, %s293
        %s295 = scalar_select %p294, %s292, %s293
      $region28: #{resnet_block_forward.3} parent=19 // pred_fallthru
        _
      // Predicated region
      $region29: #{resnet_block_forward.3} parent=19 // pred_check
        %p296 = pneg %p127
      $region30: #{resnet_block_forward.3} parent=19 // pred_check_branch
        %298 = sbr.rel (%p296) target = $region32
      $region31: #{resnet_block_forward.3} parent=19 // pred_region
        %s299 = sadd.s32 %s21, 1
        %s300 = smul.u32 %s299, 16
        %s301 = ssub.s32 %s300, 15
        %s302 = ssub.s32 15, %s300
        %p303 = scmp.gt.s32.totalorder %s301, %s302
        %s304 = scalar_select %p303, %s301, %s302
        %s305 = ssub.s32 15, %s304
        %p306 = scmp.lt.s32.totalorder %s20, 1
        %s307 = scalar_select %p306, %s20, 1
        %p308 = scmp.lt.s32.totalorder %s305, 15
        %s309 = scalar_select %p308, %s305, 15
        %s310 = smul.addr %s309, 2
        %s311 = smul.addr %s307, 32
        %s312 = sadd.s32 %s310, %s311
        %s313 = smul.addr %s312, 8
        %s314 = scalar_lea.vmem %s2, %s313
        %s315 = sadd.s32 %s21, 1
        %s316 = smul.u32 %s315, 16
        %s317 = ssub.s32 %s316, 15
        %s318 = ssub.s32 15, %s316
        %p319 = scmp.gt.s32.totalorder %s317, %s318
        %s320 = scalar_select %p319, %s317, %s318
        %s321 = ssub.s32 15, %s320
      $region32: #{resnet_block_forward.3} parent=19 // pred_fallthru
        _
    $region20: #{resnet_block_forward.3} parent=5 // pred_fallthru
      _
    %p322 = scmp.le.s32.totalorder 1, %s13
    %p323 = scmp.lt.s32.totalorder %s13, 3
    %p324 = pnand %p322, %p323
    %p325 = pneg %p324
    // Predicated region
    $region33: #{resnet_block_forward.3} parent=5 // pred_check
      _
    $region34: #{resnet_block_forward.3} parent=5 // pred_check_branch
      %327 = sbr.rel (%p324) target = $region36
    $region35: #{resnet_block_forward.3} parent=5 // pred_region
      %s328 = ssub.s32 %s13, 1
      %s329 = smul.u32 16, %s23
      %p330 = scmp.lt.s32.totalorder %s22, 1
      %s331 = scalar_select %p330, %s22, 1
      %p332 = scmp.lt.s32.totalorder %s329, 15
      %s333 = scalar_select %p332, %s329, 15
      %s334 = smul.addr %s333, 2
      %s335 = smul.addr %s331, 32
      %s336 = sadd.s32 %s334, %s335
      %s337 = smul.addr %s336, 8
      %s338 = scalar_lea.vmem %s0, %s337
      %p339 = pneg %p53
      %p340 = pneg %p50
      %s341 = smul.u32 %s23, 16
      %s342 = ssub.s32 %s341, 1
      %s343 = ssub.s32 1, %s341
      %p344 = scmp.gt.s32.totalorder %s342, %s343
      %s345 = scalar_select %p344, %s342, %s343
      %p346 = scmp.lt.s32.totalorder %s22, 1
      %s347 = scalar_select %p346, %s22, 1
      %p348 = scmp.lt.s32.totalorder %s345, 15
      %s349 = scalar_select %p348, %s345, 15
      %s350 = smul.addr %s349, 2
      %s351 = smul.addr %s347, 32
      %s352 = sadd.s32 %s350, %s351
      %s353 = smul.addr %s352, 8
      %s354 = scalar_lea.vmem %s1, %s353
      %p355 = pneg %p91
      %p356 = pneg %p88
      %s357 = sadd.s32 %s23, 1
      %s358 = smul.u32 %s357, 16
      %s359 = ssub.s32 %s358, 15
      %s360 = ssub.s32 15, %s358
      %p361 = scmp.gt.s32.totalorder %s359, %s360
      %s362 = scalar_select %p361, %s359, %s360
      %s363 = ssub.s32 15, %s362
      %p364 = scmp.lt.s32.totalorder %s22, 1
      %s365 = scalar_select %p364, %s22, 1
      %p366 = scmp.lt.s32.totalorder %s363, 15
      %s367 = scalar_select %p366, %s363, 15
      %s368 = smul.addr %s367, 2
      %s369 = smul.addr %s365, 32
      %s370 = sadd.s32 %s368, %s369
      %s371 = smul.addr %s370, 8
      %s372 = scalar_lea.vmem %s2, %s371
      %p373 = pneg %p133
      %p374 = pneg %p130
      %p375 = pneg %p154
      %p376 = pneg %p151
      %p377 = pneg %p182
      %p378 = pneg %p179
      %s379 = smul.u32 16, %s23
      %p380 = scmp.lt.s32.totalorder %s22, 1
      %s381 = scalar_select %p380, %s22, 1
      %p382 = scmp.lt.s32.totalorder %s379, 15
      %s383 = scalar_select %p382, %s379, 15
      %s384 = smul.addr %s383, 2
      %s385 = smul.addr %s381, 32
      %s386 = sadd.s32 %s384, %s385
      %s387 = smul.addr %s386, 8
      %s388 = scalar_lea.vmem %s4, %s387
      %p389 = pneg %p210
      %p390 = pneg %p207
      %p391 = scmp.lt.s32.totalorder %s22, 1
      %s392 = scalar_select %p391, %s22, 1
      %p393 = scmp.lt.s32.totalorder %s23, 0
      %s394 = scalar_select %p393, %s23, 0
      %s395 = sadd.s32 %s394, %s392
      %s396 = scalar_lea.vmem %s5, %s395
      %p397 = pneg %p238
      %p398 = pneg %p235
      %p399 = scmp.lt.s32.totalorder %s22, 1
      %s400 = scalar_select %p399, %s22, 1
      %p401 = scmp.lt.s32.totalorder %s23, 0
      %s402 = scalar_select %p401, %s23, 0
      %s403 = sadd.s32 %s402, %s400
      %s404 = scalar_lea.vmem %s6, %s403
      %s405 = smul.u32 16, %s23
      %p406 = scmp.lt.s32.totalorder %s22, 1
      %s407 = scalar_select %p406, %s22, 1
      %p408 = scmp.lt.s32.totalorder %s405, 15
      %s409 = scalar_select %p408, %s405, 15
      %s410 = smul.addr %s409, 2
      %s411 = smul.addr %s407, 32
      %s412 = sadd.s32 %s410, %s411
      %s413 = smul.addr %s412, 8
      %s414 = scalar_lea.vmem %s0, %s413
      %s415 = smul.u32 16, %s23
      %s416 = smul.u32 %s23, 16
      %s417 = ssub.s32 %s416, 1
      %s418 = ssub.s32 1, %s416
      %p419 = scmp.gt.s32.totalorder %s417, %s418
      %s420 = scalar_select %p419, %s417, %s418
      %p421 = scmp.lt.s32.totalorder %s22, 1
      %s422 = scalar_select %p421, %s22, 1
      %p423 = scmp.lt.s32.totalorder %s420, 15
      %s424 = scalar_select %p423, %s420, 15
      %s425 = smul.addr %s424, 2
      %s426 = smul.addr %s422, 32
      %s427 = sadd.s32 %s425, %s426
      %s428 = smul.addr %s427, 8
      %s429 = scalar_lea.vmem %s1, %s428
      %s430 = smul.u32 %s23, 16
      %s431 = ssub.s32 %s430, 1
      %s432 = ssub.s32 1, %s430
      %p433 = scmp.gt.s32.totalorder %s431, %s432
      %s434 = scalar_select %p433, %s431, %s432
      %s435 = sadd.s32 %s23, 1
      %s436 = smul.u32 %s435, 16
      %s437 = ssub.s32 %s436, 15
      %s438 = ssub.s32 15, %s436
      %p439 = scmp.gt.s32.totalorder %s437, %s438
      %s440 = scalar_select %p439, %s437, %s438
      %s441 = ssub.s32 15, %s440
      %p442 = scmp.lt.s32.totalorder %s22, 1
      %s443 = scalar_select %p442, %s22, 1
      %p444 = scmp.lt.s32.totalorder %s441, 15
      %s445 = scalar_select %p444, %s441, 15
      %s446 = smul.addr %s445, 2
      %s447 = smul.addr %s443, 32
      %s448 = sadd.s32 %s446, %s447
      %s449 = smul.addr %s448, 8
      %s450 = scalar_lea.vmem %s2, %s449
      %s451 = sadd.s32 %s23, 1
      %s452 = smul.u32 %s451, 16
      %s453 = ssub.s32 %s452, 15
      %s454 = ssub.s32 15, %s452
      %p455 = scmp.gt.s32.totalorder %s453, %s454
      %s456 = scalar_select %p455, %s453, %s454
      %s457 = ssub.s32 15, %s456
      %s458 = smul.u32 16, %s23
      %p459 = scmp.lt.s32.totalorder %s22, 1
      %s460 = scalar_select %p459, %s22, 1
      %p461 = scmp.lt.s32.totalorder %s458, 15
      %s462 = scalar_select %p461, %s458, 15
      %s463 = smul.addr %s462, 2
      %s464 = smul.addr %s460, 32
      %s465 = sadd.s32 %s463, %s464
      %s466 = smul.addr %s465, 8
      %s467 = scalar_lea.vmem %s4, %s466
      %s468 = smul.u32 16, %s23
      %p469 = scmp.lt.s32.totalorder %s22, 1
      %s470 = scalar_select %p469, %s22, 1
      %p471 = scmp.lt.s32.totalorder %s23, 0
      %s472 = scalar_select %p471, %s23, 0
      %s473 = sadd.s32 %s472, %s470
      %s474 = scalar_lea.vmem %s5, %s473
      %p475 = scmp.lt.s32.totalorder %s22, 1
      %s476 = scalar_select %p475, %s22, 1
      %p477 = scmp.lt.s32.totalorder %s23, 0
      %s478 = scalar_select %p477, %s23, 0
      %s479 = sadd.s32 %s478, %s476
      %s480 = scalar_lea.vmem %s6, %s479
      %v481 = vld [vmem:[%s429] sm:$0xff]
      %v482 = vld [vmem:[%s429 + $0x8] sm:$0xff]
      %v483 = vld [vmem:[%s414] sm:$0xff]
      %v484 = vld [vmem:[%s414 + $0x8] sm:$0xff]
      %v485 = vld [vmem:[%s414 + $0x10] sm:$0xff]
      %v486 = vld [vmem:[%s414 + $0x18] sm:$0xff]
      %v487 = vld [vmem:[%s414 + $0x20] sm:$0xff]
      %v488 = vld [vmem:[%s414 + $0x28] sm:$0xff]
      %v489 = vld [vmem:[%s414 + $0x30] sm:$0xff]
      %v490 = vld [vmem:[%s414 + $0x38] sm:$0xff]
      %v491 = vld [vmem:[%s414 + $0x40] sm:$0xff]
      %v492 = vld [vmem:[%s414 + $0x48] sm:$0xff]
      %v493 = vld [vmem:[%s414 + $0x50] sm:$0xff]
      %v494 = vld [vmem:[%s414 + $0x58] sm:$0xff]
      %v495 = vld [vmem:[%s414 + $0x60] sm:$0xff]
      %v496 = vld [vmem:[%s414 + $0x68] sm:$0xff]
      %v497 = vld [vmem:[%s414 + $0x70] sm:$0xff]
      %v498 = vld [vmem:[%s414 + $0x78] sm:$0xff]
      %v499 = vld [vmem:[%s414 + $0x80] sm:$0xff]
      %v500 = vld [vmem:[%s414 + $0x88] sm:$0xff]
      %v501 = vld [vmem:[%s414 + $0x90] sm:$0xff]
      %v502 = vld [vmem:[%s414 + $0x98] sm:$0xff]
      %v503 = vld [vmem:[%s414 + $0xa0] sm:$0xff]
      %v504 = vld [vmem:[%s414 + $0xa8] sm:$0xff]
      %v505 = vld [vmem:[%s414 + $0xb0] sm:$0xff]
      %v506 = vld [vmem:[%s414 + $0xb8] sm:$0xff]
      %v507 = vld [vmem:[%s414 + $0xc0] sm:$0xff]
      %v508 = vld [vmem:[%s414 + $0xc8] sm:$0xff]
      %v509 = vld [vmem:[%s414 + $0xd0] sm:$0xff]
      %v510 = vld [vmem:[%s414 + $0xd8] sm:$0xff]
      %v511 = vld [vmem:[%s414 + $0xe0] sm:$0xff]
      %v512 = vld [vmem:[%s414 + $0xe8] sm:$0xff]
      %v513 = vld [vmem:[%s414 + $0xf0] sm:$0xff]
      %v514 = vld [vmem:[%s414 + $0xf8] sm:$0xff]
      %v515 = vld [vmem:[%s450] sm:$0xff]
      %v516 = vld [vmem:[%s450 + $0x8] sm:$0xff]
      %v535 = vrot.slane %v481, 1
      %v536 = vrot.slane %v483, 1
      %v537 = vrot.slane %v485, 1
      %v538 = vrot.slane %v487, 1
      %v539 = vrot.slane %v489, 1
      %v540 = vrot.slane %v491, 1
      %v541 = vrot.slane %v493, 1
      %v542 = vrot.slane %v495, 1
      %v543 = vrot.slane %v497, 1
      %v544 = vrot.slane %v499, 1
      %v545 = vrot.slane %v501, 1
      %v546 = vrot.slane %v503, 1
      %v547 = vrot.slane %v505, 1
      %v548 = vrot.slane %v507, 1
      %v549 = vrot.slane %v509, 1
      %v550 = vrot.slane %v511, 1
      %v551 = vrot.slane %v513, 1
      %v552 = vrot.slane %v515, 1
      %vm589 = vcmask 1040384
      %v590 = vrot.slane %v481, 7
      %v591 = vrot.slane %v482, 7
      %v592 = vsel %vm589, %v590, %v591
      %v593 = vrot.slane %v483, 7
      %v594 = vrot.slane %v484, 7
      %v595 = vsel %vm589, %v593, %v594
      %v596 = vrot.slane %v485, 7
      %v597 = vrot.slane %v486, 7
      %v598 = vsel %vm589, %v596, %v597
      %v599 = vrot.slane %v487, 7
      %v600 = vrot.slane %v488, 7
      %v601 = vsel %vm589, %v599, %v600
      %v602 = vrot.slane %v489, 7
      %v603 = vrot.slane %v490, 7
      %v604 = vsel %vm589, %v602, %v603
      %v605 = vrot.slane %v491, 7
      %v606 = vrot.slane %v492, 7
      %v607 = vsel %vm589, %v605, %v606
      %v608 = vrot.slane %v493, 7
      %v609 = vrot.slane %v494, 7
      %v610 = vsel %vm589, %v608, %v609
      %v611 = vrot.slane %v495, 7
      %v612 = vrot.slane %v496, 7
      %v613 = vsel %vm589, %v611, %v612
      %v614 = vrot.slane %v497, 7
      %v615 = vrot.slane %v498, 7
      %v616 = vsel %vm589, %v614, %v615
      %v617 = vrot.slane %v499, 7
      %v618 = vrot.slane %v500, 7
      %v619 = vsel %vm589, %v617, %v618
      %v620 = vrot.slane %v501, 7
      %v621 = vrot.slane %v502, 7
      %v622 = vsel %vm589, %v620, %v621
      %v623 = vrot.slane %v503, 7
      %v624 = vrot.slane %v504, 7
      %v625 = vsel %vm589, %v623, %v624
      %v626 = vrot.slane %v505, 7
      %v627 = vrot.slane %v506, 7
      %v628 = vsel %vm589, %v626, %v627
      %v629 = vrot.slane %v507, 7
      %v630 = vrot.slane %v508, 7
      %v631 = vsel %vm589, %v629, %v630
      %v632 = vrot.slane %v509, 7
      %v633 = vrot.slane %v510, 7
      %v634 = vsel %vm589, %v632, %v633
      %v635 = vrot.slane %v511, 7
      %v636 = vrot.slane %v512, 7
      %v637 = vsel %vm589, %v635, %v636
      %v638 = vrot.slane %v513, 7
      %v639 = vrot.slane %v514, 7
      %v640 = vsel %vm589, %v638, %v639
      %v641 = vrot.slane %v515, 7
      %v642 = vrot.slane %v516, 7
      %v643 = vsel %vm589, %v641, %v642
      %v680 = vsel %vm589, %v535, %v590
      %v681 = vsel %vm589, %v536, %v593
      %v682 = vsel %vm589, %v537, %v596
      %v683 = vsel %vm589, %v538, %v599
      %v684 = vsel %vm589, %v539, %v602
      %v685 = vsel %vm589, %v540, %v605
      %v686 = vsel %vm589, %v541, %v608
      %v687 = vsel %vm589, %v542, %v611
      %v688 = vsel %vm589, %v543, %v614
      %v689 = vsel %vm589, %v544, %v617
      %v690 = vsel %vm589, %v545, %v620
      %v691 = vsel %vm589, %v546, %v623
      %v692 = vsel %vm589, %v547, %v626
      %v693 = vsel %vm589, %v548, %v629
      %v694 = vsel %vm589, %v549, %v632
      %v695 = vsel %vm589, %v550, %v635
      %v696 = vsel %vm589, %v551, %v638
      %v697 = vsel %vm589, %v552, %v641
      %vm698 = vcmask 1046528
      %v699 = vrot.slane %v482, 1
      %v700 = vsel %vm698, %v535, %v699
      %v701 = vrot.slane %v484, 1
      %v702 = vsel %vm698, %v536, %v701
      %v703 = vrot.slane %v486, 1
      %v704 = vsel %vm698, %v537, %v703
      %v705 = vrot.slane %v488, 1
      %v706 = vsel %vm698, %v538, %v705
      %v707 = vrot.slane %v490, 1
      %v708 = vsel %vm698, %v539, %v707
      %v709 = vrot.slane %v492, 1
      %v710 = vsel %vm698, %v540, %v709
      %v711 = vrot.slane %v494, 1
      %v712 = vsel %vm698, %v541, %v711
      %v713 = vrot.slane %v496, 1
      %v714 = vsel %vm698, %v542, %v713
      %v715 = vrot.slane %v498, 1
      %v716 = vsel %vm698, %v543, %v715
      %v717 = vrot.slane %v500, 1
      %v718 = vsel %vm698, %v544, %v717
      %v719 = vrot.slane %v502, 1
      %v720 = vsel %vm698, %v545, %v719
      %v721 = vrot.slane %v504, 1
      %v722 = vsel %vm698, %v546, %v721
      %v723 = vrot.slane %v506, 1
      %v724 = vsel %vm698, %v547, %v723
      %v725 = vrot.slane %v508, 1
      %v726 = vsel %vm698, %v548, %v725
      %v727 = vrot.slane %v510, 1
      %v728 = vsel %vm698, %v549, %v727
      %v729 = vrot.slane %v512, 1
      %v730 = vsel %vm698, %v550, %v729
      %v731 = vrot.slane %v514, 1
      %v732 = vsel %vm698, %v551, %v731
      %v733 = vrot.slane %v516, 1
      %v734 = vsel %vm698, %v552, %v733
      %v789 = vsel %vm698, %v699, %v591
      %v790 = vsel %vm698, %v701, %v594
      %v791 = vsel %vm698, %v703, %v597
      %v792 = vsel %vm698, %v705, %v600
      %v793 = vsel %vm698, %v707, %v603
      %v794 = vsel %vm698, %v709, %v606
      %v795 = vsel %vm698, %v711, %v609
      %v796 = vsel %vm698, %v713, %v612
      %v797 = vsel %vm698, %v715, %v615
      %v798 = vsel %vm698, %v717, %v618
      %v799 = vsel %vm698, %v719, %v621
      %v800 = vsel %vm698, %v721, %v624
      %v801 = vsel %vm698, %v723, %v627
      %v802 = vsel %vm698, %v725, %v630
      %v803 = vsel %vm698, %v727, %v633
      %v804 = vsel %vm698, %v729, %v636
      %v805 = vsel %vm698, %v731, %v639
      %v806 = vsel %vm698, %v733, %v642
      %v807 = vld [vmem:[%s3] sm:$0xff]
      %v808 = vld [vmem:[%s3 + $0x8] sm:$0xff]
      %v809 = vld [vmem:[%s3 + $0x10] sm:$0xff]
      %v810 = vld [vmem:[%s3 + $0x18] sm:$0xff]
      %v811 = vld [vmem:[%s3 + $0x20] sm:$0xff]
      %v812 = vld [vmem:[%s3 + $0x28] sm:$0xff]
      %v813 = vld [vmem:[%s3 + $0x30] sm:$0xff]
      %v814 = vld [vmem:[%s3 + $0x38] sm:$0xff]
      %v815 = vld [vmem:[%s3 + $0x40] sm:$0xff]
      %v816 = vld [vmem:[%s3 + $0x48] sm:$0xff]
      %v817 = vld [vmem:[%s3 + $0x50] sm:$0xff]
      %v818 = vld [vmem:[%s3 + $0x58] sm:$0xff]
      %v819 = vld [vmem:[%s3 + $0x60] sm:$0xff]
      %v820 = vld [vmem:[%s3 + $0x68] sm:$0xff]
      %v821 = vld [vmem:[%s3 + $0x70] sm:$0xff]
      %v822 = vld [vmem:[%s3 + $0x78] sm:$0xff]
      %823 = vmatprep.subr.mxu0 0.0
      %824 = vmatpush1.msra.mxu0 %v807
      %825 = vmatprep.subr.mxu0 0.0
      %826 = vmatpush1.msra.mxu0 %v808
      %827 = vmatprep.subr.mxu0 0.0
      %828 = vmatpush1.msra.mxu0 %v809
      %829 = vmatprep.subr.mxu0 0.0
      %830 = vmatpush1.msra.mxu0 %v810
      %831 = vmatprep.subr.mxu0 0.0
      %832 = vmatpush1.msra.mxu0 %v811
      %833 = vmatprep.subr.mxu0 0.0
      %834 = vmatpush1.msra.mxu0 %v812
      %835 = vmatprep.subr.mxu0 0.0
      %836 = vmatpush1.msra.mxu0 %v813
      %837 = vmatprep.subr.mxu0 0.0
      %838 = vmatpush1.msra.mxu0 %v814
      %839 = vmatprep.subr.mxu0 0.0
      %840 = vmatpush1.msra.mxu0 %v815
      %841 = vmatprep.subr.mxu0 0.0
      %842 = vmatpush1.msra.mxu0 %v816
      %843 = vmatprep.subr.mxu0 0.0
      %844 = vmatpush1.msra.mxu0 %v817
      %845 = vmatprep.subr.mxu0 0.0
      %846 = vmatpush1.msra.mxu0 %v818
      %847 = vmatprep.subr.mxu0 0.0
      %848 = vmatpush1.msra.mxu0 %v819
      %849 = vmatprep.subr.mxu0 0.0
      %850 = vmatpush1.msra.mxu0 %v820
      %851 = vmatprep.subr.mxu0 0.0
      %852 = vmatpush1.msra.mxu0 %v821
      %853 = vmatprep.subr.mxu0 0.0
      %854 = vmatpush1.msra.mxu0 %v822
      %855 = vmatprep.subr.mxu0 0.0
      %856 = vmatpush1.msra.mxu0 0.0
      %857 = vmatprep.subr.mxu0 0.0
      %858 = vmatpush1.msra.mxu0 0.0
      %859 = vmatprep.subr.mxu0 0.0
      %860 = vmatpush1.msra.mxu0 0.0
      %861 = vmatprep.subr.mxu0 0.0
      %862 = vmatpush1.msra.mxu0 0.0
      %863 = vmatprep.subr.mxu0 0.0
      %864 = vmatpush1.msra.mxu0 0.0
      %865 = vmatprep.subr.mxu0 0.0
      %866 = vmatpush1.msra.mxu0 0.0
      %867 = vmatprep.subr.mxu0 0.0
      %868 = vmatpush1.msra.mxu0 0.0
      %869 = vmatprep.subr.mxu0 0.0
      %870 = vmatpush1.msra.mxu0 0.0
      %871 = vmatprep.subr.mxu0 0.0
      %872 = vmatpush1.msra.mxu0 0.0
      %873 = vmatprep.subr.mxu0 0.0
      %874 = vmatpush1.msra.mxu0 0.0
      %875 = vmatprep.subr.mxu0 0.0
      %876 = vmatpush1.msra.mxu0 0.0
      %877 = vmatprep.subr.mxu0 0.0
      %878 = vmatpush1.msra.mxu0 0.0
      %879 = vmatprep.subr.mxu0 0.0
      %880 = vmatpush1.msra.mxu0 0.0
      %881 = vmatprep.subr.mxu0 0.0
      %882 = vmatpush1.msra.mxu0 0.0
      %883 = vmatprep.subr.mxu0 0.0
      %884 = vmatpush1.msra.mxu0 0.0
      %885 = vmatprep.subr.mxu0 0.0
      %886 = vmatpush1.msra.mxu0 0.0
      %887 = vmatprep.mubr.f32.mxu0 0.0
      %888 = vmatmul.mubr.f32.gmra.mrb[0].mxu0 %v680
      %v889 = vpop.f32.mrb[0].mxu0
      %v890 = vadd.f32 0.0, %v889
      %v891 = vpop.f32.mrb[0].mxu0
      %892 = vmatprep.mubr.f32.mxu0 0.0
      %893 = vmatmul.mubr.f32.gmra.mrb[0].mxu0 %v592
      %v894 = vpop.f32.mrb[0].mxu0
      %v895 = vadd.f32 0.0, %v894
      %v896 = vpop.f32.mrb[0].mxu0
      %897 = vmatprep.mubr.f32.mxu0 0.0
      %898 = vmatmul.mubr.f32.gmra.mrb[0].mxu0 %v681
      %v899 = vpop.f32.mrb[0].mxu0
      %v900 = vadd.f32 0.0, %v899
      %v901 = vpop.f32.mrb[0].mxu0
      %902 = vmatprep.mubr.f32.mxu0 0.0
      %903 = vmatmul.mubr.f32.gmra.mrb[0].mxu0 %v595
      %v904 = vpop.f32.mrb[0].mxu0
      %v905 = vadd.f32 0.0, %v904
      %v906 = vpop.f32.mrb[0].mxu0
      %907 = vmatprep.mubr.f32.mxu0 0.0
      %908 = vmatmul.mubr.f32.gmra.mrb[0].mxu0 %v682
      %v909 = vpop.f32.mrb[0].mxu0
      %v910 = vadd.f32 0.0, %v909
      %v911 = vpop.f32.mrb[0].mxu0
      %912 = vmatprep.mubr.f32.mxu0 0.0
      %913 = vmatmul.mubr.f32.gmra.mrb[0].mxu0 %v598
      %v914 = vpop.f32.mrb[0].mxu0
      %v915 = vadd.f32 0.0, %v914
      %v916 = vpop.f32.mrb[0].mxu0
      %917 = vmatprep.mubr.f32.mxu0 0.0
      %918 = vmatmul.mubr.f32.gmra.mrb[0].mxu0 %v683
      %v919 = vpop.f32.mrb[0].mxu0
      %v920 = vadd.f32 0.0, %v919
      %v921 = vpop.f32.mrb[0].mxu0
      %922 = vmatprep.mubr.f32.mxu0 0.0
      %923 = vmatmul.mubr.f32.gmra.mrb[0].mxu0 %v601
      %v924 = vpop.f32.mrb[0].mxu0
      %v925 = vadd.f32 0.0, %v924
      %v926 = vpop.f32.mrb[0].mxu0
      %927 = vmatprep.mubr.f32.mxu0 0.0
      %928 = vmatmul.mubr.f32.gmra.mrb[0].mxu0 %v684
      %v929 = vpop.f32.mrb[0].mxu0
      %v930 = vadd.f32 0.0, %v929
      %v931 = vpop.f32.mrb[0].mxu0
      %932 = vmatprep.mubr.f32.mxu0 0.0
      %933 = vmatmul.mubr.f32.gmra.mrb[0].mxu0 %v604
      %v934 = vpop.f32.mrb[0].mxu0
      %v935 = vadd.f32 0.0, %v934
      %v936 = vpop.f32.mrb[0].mxu0
      %937 = vmatprep.mubr.f32.mxu0 0.0
      %938 = vmatmul.mubr.f32.gmra.mrb[0].mxu0 %v685
      %v939 = vpop.f32.mrb[0].mxu0
      %v940 = vadd.f32 0.0, %v939
      %v941 = vpop.f32.mrb[0].mxu0
      %942 = vmatprep.mubr.f32.mxu0 0.0
      %943 = vmatmul.mubr.f32.gmra.mrb[0].mxu0 %v607
      %v944 = vpop.f32.mrb[0].mxu0
      %v945 = vadd.f32 0.0, %v944
      %v946 = vpop.f32.mrb[0].mxu0
      %947 = vmatprep.mubr.f32.mxu0 0.0
      %948 = vmatmul.mubr.f32.gmra.mrb[0].mxu0 %v686
      %v949 = vpop.f32.mrb[0].mxu0
      %v950 = vadd.f32 0.0, %v949
      %v951 = vpop.f32.mrb[0].mxu0
      %952 = vmatprep.mubr.f32.mxu0 0.0
      %953 = vmatmul.mubr.f32.gmra.mrb[0].mxu0 %v610
      %v954 = vpop.f32.mrb[0].mxu0
      %v955 = vadd.f32 0.0, %v954
      %v956 = vpop.f32.mrb[0].mxu0
      %957 = vmatprep.mubr.f32.mxu0 0.0
      %958 = vmatmul.mubr.f32.gmra.mrb[0].mxu0 %v687
      %v959 = vpop.f32.mrb[0].mxu0
      %v960 = vadd.f32 0.0, %v959
      %v961 = vpop.f32.mrb[0].mxu0
      %962 = vmatprep.mubr.f32.mxu0 0.0
      %963 = vmatmul.mubr.f32.gmra.mrb[0].mxu0 %v613
      %v964 = vpop.f32.mrb[0].mxu0
      %v965 = vadd.f32 0.0, %v964
      %v966 = vpop.f32.mrb[0].mxu0
      %967 = vmatprep.mubr.f32.mxu0 0.0
      %968 = vmatmul.mubr.f32.gmra.mrb[0].mxu0 %v688
      %v969 = vpop.f32.mrb[0].mxu0
      %v970 = vadd.f32 0.0, %v969
      %v971 = vpop.f32.mrb[0].mxu0
      %972 = vmatprep.mubr.f32.mxu0 0.0
      %973 = vmatmul.mubr.f32.gmra.mrb[0].mxu0 %v616
      %v974 = vpop.f32.mrb[0].mxu0
      %v975 = vadd.f32 0.0, %v974
      %v976 = vpop.f32.mrb[0].mxu0
      %977 = vmatprep.mubr.f32.mxu0 0.0
      %978 = vmatmul.mubr.f32.gmra.mrb[0].mxu0 %v689
      %v979 = vpop.f32.mrb[0].mxu0
      %v980 = vadd.f32 0.0, %v979
      %v981 = vpop.f32.mrb[0].mxu0
      %982 = vmatprep.mubr.f32.mxu0 0.0
      %983 = vmatmul.mubr.f32.gmra.mrb[0].mxu0 %v619
      %v984 = vpop.f32.mrb[0].mxu0
      %v985 = vadd.f32 0.0, %v984
      %v986 = vpop.f32.mrb[0].mxu0
      %987 = vmatprep.mubr.f32.mxu0 0.0
      %988 = vmatmul.mubr.f32.gmra.mrb[0].mxu0 %v690
      %v989 = vpop.f32.mrb[0].mxu0
      %v990 = vadd.f32 0.0, %v989
      %v991 = vpop.f32.mrb[0].mxu0
      %992 = vmatprep.mubr.f32.mxu0 0.0
      %993 = vmatmul.mubr.f32.gmra.mrb[0].mxu0 %v622
      %v994 = vpop.f32.mrb[0].mxu0
      %v995 = vadd.f32 0.0, %v994
      %v996 = vpop.f32.mrb[0].mxu0
      %997 = vmatprep.mubr.f32.mxu0 0.0
      %998 = vmatmul.mubr.f32.gmra.mrb[0].mxu0 %v691
      %v999 = vpop.f32.mrb[0].mxu0
      %v1000 = vadd.f32 0.0, %v999
      %v1001 = vpop.f32.mrb[0].mxu0
      %1002 = vmatprep.mubr.f32.mxu0 0.0
      %1003 = vmatmul.mubr.f32.gmra.mrb[0].mxu0 %v625
      %v1004 = vpop.f32.mrb[0].mxu0
      %v1005 = vadd.f32 0.0, %v1004
      %v1006 = vpop.f32.mrb[0].mxu0
      %1007 = vmatprep.mubr.f32.mxu0 0.0
      %1008 = vmatmul.mubr.f32.gmra.mrb[0].mxu0 %v692
      %v1009 = vpop.f32.mrb[0].mxu0
      %v1010 = vadd.f32 0.0, %v1009
      %v1011 = vpop.f32.mrb[0].mxu0
      %1012 = vmatprep.mubr.f32.mxu0 0.0
      %1013 = vmatmul.mubr.f32.gmra.mrb[0].mxu0 %v628
      %v1014 = vpop.f32.mrb[0].mxu0
      %v1015 = vadd.f32 0.0, %v1014
      %v1016 = vpop.f32.mrb[0].mxu0
      %1017 = vmatprep.mubr.f32.mxu0 0.0
      %1018 = vmatmul.mubr.f32.gmra.mrb[0].mxu0 %v693
      %v1019 = vpop.f32.mrb[0].mxu0
      %v1020 = vadd.f32 0.0, %v1019
      %v1021 = vpop.f32.mrb[0].mxu0
      %1022 = vmatprep.mubr.f32.mxu0 0.0
      %1023 = vmatmul.mubr.f32.gmra.mrb[0].mxu0 %v631
      %v1024 = vpop.f32.mrb[0].mxu0
      %v1025 = vadd.f32 0.0, %v1024
      %v1026 = vpop.f32.mrb[0].mxu0
      %1027 = vmatprep.mubr.f32.mxu0 0.0
      %1028 = vmatmul.mubr.f32.gmra.mrb[0].mxu0 %v694
      %v1029 = vpop.f32.mrb[0].mxu0
      %v1030 = vadd.f32 0.0, %v1029
      %v1031 = vpop.f32.mrb[0].mxu0
      %1032 = vmatprep.mubr.f32.mxu0 0.0
      %1033 = vmatmul.mubr.f32.gmra.mrb[0].mxu0 %v634
      %v1034 = vpop.f32.mrb[0].mxu0
      %v1035 = vadd.f32 0.0, %v1034
      %v1036 = vpop.f32.mrb[0].mxu0
      %1037 = vmatprep.mubr.f32.mxu0 0.0
      %1038 = vmatmul.mubr.f32.gmra.mrb[0].mxu0 %v695
      %v1039 = vpop.f32.mrb[0].mxu0
      %v1040 = vadd.f32 0.0, %v1039
      %v1041 = vpop.f32.mrb[0].mxu0
      %1042 = vmatprep.mubr.f32.mxu0 0.0
      %1043 = vmatmul.mubr.f32.gmra.mrb[0].mxu0 %v637
      %v1044 = vpop.f32.mrb[0].mxu0
      %v1045 = vadd.f32 0.0, %v1044
      %v1046 = vpop.f32.mrb[0].mxu0
      %1047 = vdwg.mxu0
      %1048 = vst [vmem:[#allocation2] sm:$0xff] %v890
      %1049 = vst [vmem:[#allocation2 + $0x8] sm:$0xff] %v895
      %1050 = vst [vmem:[#allocation2 + $0x10] sm:$0xff] %v900
      %1051 = vst [vmem:[#allocation2 + $0x18] sm:$0xff] %v905
      %1052 = vst [vmem:[#allocation2 + $0x20] sm:$0xff] %v910
      %1053 = vst [vmem:[#allocation2 + $0x28] sm:$0xff] %v915
      %1054 = vst [vmem:[#allocation2 + $0x30] sm:$0xff] %v920
      %1055 = vst [vmem:[#allocation2 + $0x38] sm:$0xff] %v925
      %1056 = vst [vmem:[#allocation2 + $0x40] sm:$0xff] %v930
      %1057 = vst [vmem:[#allocation2 + $0x48] sm:$0xff] %v935
      %1058 = vst [vmem:[#allocation2 + $0x50] sm:$0xff] %v940
      %1059 = vst [vmem:[#allocation2 + $0x58] sm:$0xff] %v945
      %1060 = vst [vmem:[#allocation2 + $0x60] sm:$0xff] %v950
      %1061 = vst [vmem:[#allocation2 + $0x68] sm:$0xff] %v955
      %1062 = vst [vmem:[#allocation2 + $0x70] sm:$0xff] %v960
      %1063 = vst [vmem:[#allocation2 + $0x78] sm:$0xff] %v965
      %1064 = vst [vmem:[#allocation2 + $0x80] sm:$0xff] %v970
      %1065 = vst [vmem:[#allocation2 + $0x88] sm:$0xff] %v975
      %1066 = vst [vmem:[#allocation2 + $0x90] sm:$0xff] %v980
      %1067 = vst [vmem:[#allocation2 + $0x98] sm:$0xff] %v985
      %1068 = vst [vmem:[#allocation2 + $0xa0] sm:$0xff] %v990
      %1069 = vst [vmem:[#allocation2 + $0xa8] sm:$0xff] %v995
      %1070 = vst [vmem:[#allocation2 + $0xb0] sm:$0xff] %v1000
      %1071 = vst [vmem:[#allocation2 + $0xb8] sm:$0xff] %v1005
      %1072 = vst [vmem:[#allocation2 + $0xc0] sm:$0xff] %v1010
      %1073 = vst [vmem:[#allocation2 + $0xc8] sm:$0xff] %v1015
      %1074 = vst [vmem:[#allocation2 + $0xd0] sm:$0xff] %v1020
      %1075 = vst [vmem:[#allocation2 + $0xd8] sm:$0xff] %v1025
      %1076 = vst [vmem:[#allocation2 + $0xe0] sm:$0xff] %v1030
      %1077 = vst [vmem:[#allocation2 + $0xe8] sm:$0xff] %v1035
      %1078 = vst [vmem:[#allocation2 + $0xf0] sm:$0xff] %v1040
      %1079 = vst [vmem:[#allocation2 + $0xf8] sm:$0xff] %v1045
      %s1080 = scalar_lea.vmem %s3, 384
      %v1081 = vld [vmem:[%s1080] sm:$0xff]
      %v1082 = vld [vmem:[%s1080 + $0x8] sm:$0xff]
      %v1083 = vld [vmem:[%s1080 + $0x10] sm:$0xff]
      %v1084 = vld [vmem:[%s1080 + $0x18] sm:$0xff]
      %v1085 = vld [vmem:[%s1080 + $0x20] sm:$0xff]
      %v1086 = vld [vmem:[%s1080 + $0x28] sm:$0xff]
      %v1087 = vld [vmem:[%s1080 + $0x30] sm:$0xff]
      %v1088 = vld [vmem:[%s1080 + $0x38] sm:$0xff]
      %v1089 = vld [vmem:[%s1080 + $0x40] sm:$0xff]
      %v1090 = vld [vmem:[%s1080 + $0x48] sm:$0xff]
      %v1091 = vld [vmem:[%s1080 + $0x50] sm:$0xff]
      %v1092 = vld [vmem:[%s1080 + $0x58] sm:$0xff]
      %v1093 = vld [vmem:[%s1080 + $0x60] sm:$0xff]
      %v1094 = vld [vmem:[%s1080 + $0x68] sm:$0xff]
      %v1095 = vld [vmem:[%s1080 + $0x70] sm:$0xff]
      %v1096 = vld [vmem:[%s1080 + $0x78] sm:$0xff]
      %1097 = vmatprep.subr.mxu0 0.0
      %1098 = vmatpush1.msra.mxu0 %v1081
      %1099 = vmatprep.subr.mxu0 0.0
      %1100 = vmatpush1.msra.mxu0 %v1082
      %1101 = vmatprep.subr.mxu0 0.0
      %1102 = vmatpush1.msra.mxu0 %v1083
      %1103 = vmatprep.subr.mxu0 0.0
      %1104 = vmatpush1.msra.mxu0 %v1084
      %1105 = vmatprep.subr.mxu0 0.0
      %1106 = vmatpush1.msra.mxu0 %v1085
      %1107 = vmatprep.subr.mxu0 0.0
      %1108 = vmatpush1.msra.mxu0 %v1086
      %1109 = vmatprep.subr.mxu0 0.0
      %1110 = vmatpush1.msra.mxu0 %v1087
      %1111 = vmatprep.subr.mxu0 0.0
      %1112 = vmatpush1.msra.mxu0 %v1088
      %1113 = vmatprep.subr.mxu0 0.0
      %1114 = vmatpush1.msra.mxu0 %v1089
      %1115 = vmatprep.subr.mxu0 0.0
      %1116 = vmatpush1.msra.mxu0 %v1090
      %1117 = vmatprep.subr.mxu0 0.0
      %1118 = vmatpush1.msra.mxu0 %v1091
      %1119 = vmatprep.subr.mxu0 0.0
      %1120 = vmatpush1.msra.mxu0 %v1092
      %1121 = vmatprep.subr.mxu0 0.0
      %1122 = vmatpush1.msra.mxu0 %v1093
      %1123 = vmatprep.subr.mxu0 0.0
      %1124 = vmatpush1.msra.mxu0 %v1094
      %1125 = vmatprep.subr.mxu0 0.0
      %1126 = vmatpush1.msra.mxu0 %v1095
      %1127 = vmatprep.subr.mxu0 0.0
      %1128 = vmatpush1.msra.mxu0 %v1096
      %1129 = vmatprep.subr.mxu0 0.0
      %1130 = vmatpush1.msra.mxu0 0.0
      %1131 = vmatprep.subr.mxu0 0.0
      %1132 = vmatpush1.msra.mxu0 0.0
      %1133 = vmatprep.subr.mxu0 0.0
      %1134 = vmatpush1.msra.mxu0 0.0
      %1135 = vmatprep.subr.mxu0 0.0
      %1136 = vmatpush1.msra.mxu0 0.0
      %1137 = vmatprep.subr.mxu0 0.0
      %1138 = vmatpush1.msra.mxu0 0.0
      %1139 = vmatprep.subr.mxu0 0.0
      %1140 = vmatpush1.msra.mxu0 0.0
      %1141 = vmatprep.subr.mxu0 0.0
      %1142 = vmatpush1.msra.mxu0 0.0
      %1143 = vmatprep.subr.mxu0 0.0
      %1144 = vmatpush1.msra.mxu0 0.0
      %1145 = vmatprep.subr.mxu0 0.0
      %1146 = vmatpush1.msra.mxu0 0.0
      %1147 = vmatprep.subr.mxu0 0.0
      %1148 = vmatpush1.msra.mxu0 0.0
      %1149 = vmatprep.subr.mxu0 0.0
      %1150 = vmatpush1.msra.mxu0 0.0
      %1151 = vmatprep.subr.mxu0 0.0
      %1152 = vmatpush1.msra.mxu0 0.0
      %1153 = vmatprep.subr.mxu0 0.0
      %1154 = vmatpush1.msra.mxu0 0.0
      %1155 = vmatprep.subr.mxu0 0.0
      %1156 = vmatpush1.msra.mxu0 0.0
      %1157 = vmatprep.subr.mxu0 0.0
      %1158 = vmatpush1.msra.mxu0 0.0
      %1159 = vmatprep.subr.mxu0 0.0
      %1160 = vmatpush1.msra.mxu0 0.0
      %1161 = vmatprep.mubr.f32.mxu0 0.0
      %1162 = vmatmul.mubr.f32.gmra.mrb[0].mxu0 %v681
      %v1163 = vpop.f32.mrb[0].mxu0
      %v1164 = vadd.f32 0.0, %v1163
      %v1165 = vpop.f32.mrb[0].mxu0
      %1166 = vmatprep.mubr.f32.mxu0 0.0
      %1167 = vmatmul.mubr.f32.gmra.mrb[0].mxu0 %v595
      %v1168 = vpop.f32.mrb[0].mxu0
      %v1169 = vadd.f32 0.0, %v1168
      %v1170 = vpop.f32.mrb[0].mxu0
      %1171 = vmatprep.mubr.f32.mxu0 0.0
      %1172 = vmatmul.mubr.f32.gmra.mrb[0].mxu0 %v682
      %v1173 = vpop.f32.mrb[0].mxu0
      %v1174 = vadd.f32 0.0, %v1173
      %v1175 = vpop.f32.mrb[0].mxu0
      %1176 = vmatprep.mubr.f32.mxu0 0.0
      %1177 = vmatmul.mubr.f32.gmra.mrb[0].mxu0 %v598
      %v1178 = vpop.f32.mrb[0].mxu0
      %v1179 = vadd.f32 0.0, %v1178
      %v1180 = vpop.f32.mrb[0].mxu0
      %1181 = vmatprep.mubr.f32.mxu0 0.0
      %1182 = vmatmul.mubr.f32.gmra.mrb[0].mxu0 %v683
      %v1183 = vpop.f32.mrb[0].mxu0
      %v1184 = vadd.f32 0.0, %v1183
      %v1185 = vpop.f32.mrb[0].mxu0
      %1186 = vmatprep.mubr.f32.mxu0 0.0
      %1187 = vmatmul.mubr.f32.gmra.mrb[0].mxu0 %v601
      %v1188 = vpop.f32.mrb[0].mxu0
      %v1189 = vadd.f32 0.0, %v1188
      %v1190 = vpop.f32.mrb[0].mxu0
      %1191 = vmatprep.mubr.f32.mxu0 0.0
      %1192 = vmatmul.mubr.f32.gmra.mrb[0].mxu0 %v684
      %v1193 = vpop.f32.mrb[0].mxu0
      %v1194 = vadd.f32 0.0, %v1193
      %v1195 = vpop.f32.mrb[0].mxu0
      %1196 = vmatprep.mubr.f32.mxu0 0.0
      %1197 = vmatmul.mubr.f32.gmra.mrb[0].mxu0 %v604
      %v1198 = vpop.f32.mrb[0].mxu0
      %v1199 = vadd.f32 0.0, %v1198
      %v1200 = vpop.f32.mrb[0].mxu0
      %1201 = vmatprep.mubr.f32.mxu0 0.0
      %1202 = vmatmul.mubr.f32.gmra.mrb[0].mxu0 %v685
      %v1203 = vpop.f32.mrb[0].mxu0
      %v1204 = vadd.f32 0.0, %v1203
      %v1205 = vpop.f32.mrb[0].mxu0
      %1206 = vmatprep.mubr.f32.mxu0 0.0
      %1207 = vmatmul.mubr.f32.gmra.mrb[0].mxu0 %v607
      %v1208 = vpop.f32.mrb[0].mxu0
      %v1209 = vadd.f32 0.0, %v1208
      %v1210 = vpop.f32.mrb[0].mxu0
      %1211 = vmatprep.mubr.f32.mxu0 0.0
      %1212 = vmatmul.mubr.f32.gmra.mrb[0].mxu0 %v686
      %v1213 = vpop.f32.mrb[0].mxu0
      %v1214 = vadd.f32 0.0, %v1213
      %v1215 = vpop.f32.mrb[0].mxu0
      %1216 = vmatprep.mubr.f32.mxu0 0.0
      %1217 = vmatmul.mubr.f32.gmra.mrb[0].mxu0 %v610
      %v1218 = vpop.f32.mrb[0].mxu0
      %v1219 = vadd.f32 0.0, %v1218
      %v1220 = vpop.f32.mrb[0].mxu0
      %1221 = vmatprep.mubr.f32.mxu0 0.0
      %1222 = vmatmul.mubr.f32.gmra.mrb[0].mxu0 %v687
      %v1223 = vpop.f32.mrb[0].mxu0
      %v1224 = vadd.f32 0.0, %v1223
      %v1225 = vpop.f32.mrb[0].mxu0
      %1226 = vmatprep.mubr.f32.mxu0 0.0
      %1227 = vmatmul.mubr.f32.gmra.mrb[0].mxu0 %v613
      %v1228 = vpop.f32.mrb[0].mxu0
      %v1229 = vadd.f32 0.0, %v1228
      %v1230 = vpop.f32.mrb[0].mxu0
      %1231 = vmatprep.mubr.f32.mxu0 0.0
      %1232 = vmatmul.mubr.f32.gmra.mrb[0].mxu0 %v688
      %v1233 = vpop.f32.mrb[0].mxu0
      %v1234 = vadd.f32 0.0, %v1233
      %v1235 = vpop.f32.mrb[0].mxu0
      %1236 = vmatprep.mubr.f32.mxu0 0.0
      %1237 = vmatmul.mubr.f32.gmra.mrb[0].mxu0 %v616
      %v1238 = vpop.f32.mrb[0].mxu0
      %v1239 = vadd.f32 0.0, %v1238
      %v1240 = vpop.f32.mrb[0].mxu0
      %1241 = vmatprep.mubr.f32.mxu0 0.0
      %1242 = vmatmul.mubr.f32.gmra.mrb[0].mxu0 %v689
      %v1243 = vpop.f32.mrb[0].mxu0
      %v1244 = vadd.f32 0.0, %v1243
      %v1245 = vpop.f32.mrb[0].mxu0
      %1246 = vmatprep.mubr.f32.mxu0 0.0
      %1247 = vmatmul.mubr.f32.gmra.mrb[0].mxu0 %v619
      %v1248 = vpop.f32.mrb[0].mxu0
      %v1249 = vadd.f32 0.0, %v1248
      %v1250 = vpop.f32.mrb[0].mxu0
      %1251 = vmatprep.mubr.f32.mxu0 0.0
      %1252 = vmatmul.mubr.f32.gmra.mrb[0].mxu0 %v690
      %v1253 = vpop.f32.mrb[0].mxu0
      %v1254 = vadd.f32 0.0, %v1253
      %v1255 = vpop.f32.mrb[0].mxu0
      %1256 = vmatprep.mubr.f32.mxu0 0.0
      %1257 = vmatmul.mubr.f32.gmra.mrb[0].mxu0 %v622
      %v1258 = vpop.f32.mrb[0].mxu0
      %v1259 = vadd.f32 0.0, %v1258
      %v1260 = vpop.f32.mrb[0].mxu0
      %1261 = vmatprep.mubr.f32.mxu0 0.0
      %1262 = vmatmul.mubr.f32.gmra.mrb[0].mxu0 %v691
      %v1263 = vpop.f32.mrb[0].mxu0
      %v1264 = vadd.f32 0.0, %v1263
      %v1265 = vpop.f32.mrb[0].mxu0
      %1266 = vmatprep.mubr.f32.mxu0 0.0
      %1267 = vmatmul.mubr.f32.gmra.mrb[0].mxu0 %v625
      %v1268 = vpop.f32.mrb[0].mxu0
      %v1269 = vadd.f32 0.0, %v1268
      %v1270 = vpop.f32.mrb[0].mxu0
      %1271 = vmatprep.mubr.f32.mxu0 0.0
      %1272 = vmatmul.mubr.f32.gmra.mrb[0].mxu0 %v692
      %v1273 = vpop.f32.mrb[0].mxu0
      %v1274 = vadd.f32 0.0, %v1273
      %v1275 = vpop.f32.mrb[0].mxu0
      %1276 = vmatprep.mubr.f32.mxu0 0.0
      %1277 = vmatmul.mubr.f32.gmra.mrb[0].mxu0 %v628
      %v1278 = vpop.f32.mrb[0].mxu0
      %v1279 = vadd.f32 0.0, %v1278
      %v1280 = vpop.f32.mrb[0].mxu0
      %1281 = vmatprep.mubr.f32.mxu0 0.0
      %1282 = vmatmul.mubr.f32.gmra.mrb[0].mxu0 %v693
      %v1283 = vpop.f32.mrb[0].mxu0
      %v1284 = vadd.f32 0.0, %v1283
      %v1285 = vpop.f32.mrb[0].mxu0
      %1286 = vmatprep.mubr.f32.mxu0 0.0
      %1287 = vmatmul.mubr.f32.gmra.mrb[0].mxu0 %v631
      %v1288 = vpop.f32.mrb[0].mxu0
      %v1289 = vadd.f32 0.0, %v1288
      %v1290 = vpop.f32.mrb[0].mxu0
      %1291 = vmatprep.mubr.f32.mxu0 0.0
      %1292 = vmatmul.mubr.f32.gmra.mrb[0].mxu0 %v694
      %v1293 = vpop.f32.mrb[0].mxu0
      %v1294 = vadd.f32 0.0, %v1293
      %v1295 = vpop.f32.mrb[0].mxu0
      %1296 = vmatprep.mubr.f32.mxu0 0.0
      %1297 = vmatmul.mubr.f32.gmra.mrb[0].mxu0 %v634
      %v1298 = vpop.f32.mrb[0].mxu0
      %v1299 = vadd.f32 0.0, %v1298
      %v1300 = vpop.f32.mrb[0].mxu0
      %1301 = vmatprep.mubr.f32.mxu0 0.0
      %1302 = vmatmul.mubr.f32.gmra.mrb[0].mxu0 %v695
      %v1303 = vpop.f32.mrb[0].mxu0
      %v1304 = vadd.f32 0.0, %v1303
      %v1305 = vpop.f32.mrb[0].mxu0
      %1306 = vmatprep.mubr.f32.mxu0 0.0
      %1307 = vmatmul.mubr.f32.gmra.mrb[0].mxu0 %v637
      %v1308 = vpop.f32.mrb[0].mxu0
      %v1309 = vadd.f32 0.0, %v1308
      %v1310 = vpop.f32.mrb[0].mxu0
      %1311 = vmatprep.mubr.f32.mxu0 0.0
      %1312 = vmatmul.mubr.f32.gmra.mrb[0].mxu0 %v696
      %v1313 = vpop.f32.mrb[0].mxu0
      %v1314 = vadd.f32 0.0, %v1313
      %v1315 = vpop.f32.mrb[0].mxu0
      %1316 = vmatprep.mubr.f32.mxu0 0.0
      %1317 = vmatmul.mubr.f32.gmra.mrb[0].mxu0 %v640
      %v1318 = vpop.f32.mrb[0].mxu0
      %v1319 = vadd.f32 0.0, %v1318
      %v1320 = vpop.f32.mrb[0].mxu0
      %1321 = vdwg.mxu0
      %v1322 = vld [vmem:[#allocation2] sm:$0xff]
      %v1323 = vld [vmem:[#allocation2 + $0x8] sm:$0xff]
      %v1324 = vld [vmem:[#allocation2 + $0x10] sm:$0xff]
      %v1325 = vld [vmem:[#allocation2 + $0x18] sm:$0xff]
      %v1326 = vld [vmem:[#allocation2 + $0x20] sm:$0xff]
      %v1327 = vld [vmem:[#allocation2 + $0x28] sm:$0xff]
      %v1328 = vld [vmem:[#allocation2 + $0x30] sm:$0xff]
      %v1329 = vld [vmem:[#allocation2 + $0x38] sm:$0xff]
      %v1330 = vld [vmem:[#allocation2 + $0x40] sm:$0xff]
      %v1331 = vld [vmem:[#allocation2 + $0x48] sm:$0xff]
      %v1332 = vld [vmem:[#allocation2 + $0x50] sm:$0xff]
      %v1333 = vld [vmem:[#allocation2 + $0x58] sm:$0xff]
      %v1334 = vld [vmem:[#allocation2 + $0x60] sm:$0xff]
      %v1335 = vld [vmem:[#allocation2 + $0x68] sm:$0xff]
      %v1336 = vld [vmem:[#allocation2 + $0x70] sm:$0xff]
      %v1337 = vld [vmem:[#allocation2 + $0x78] sm:$0xff]
      %v1338 = vld [vmem:[#allocation2 + $0x80] sm:$0xff]
      %v1339 = vld [vmem:[#allocation2 + $0x88] sm:$0xff]
      %v1340 = vld [vmem:[#allocation2 + $0x90] sm:$0xff]
      %v1341 = vld [vmem:[#allocation2 + $0x98] sm:$0xff]
      %v1342 = vld [vmem:[#allocation2 + $0xa0] sm:$0xff]
      %v1343 = vld [vmem:[#allocation2 + $0xa8] sm:$0xff]
      %v1344 = vld [vmem:[#allocation2 + $0xb0] sm:$0xff]
      %v1345 = vld [vmem:[#allocation2 + $0xb8] sm:$0xff]
      %v1346 = vld [vmem:[#allocation2 + $0xc0] sm:$0xff]
      %v1347 = vld [vmem:[#allocation2 + $0xc8] sm:$0xff]
      %v1348 = vld [vmem:[#allocation2 + $0xd0] sm:$0xff]
      %v1349 = vld [vmem:[#allocation2 + $0xd8] sm:$0xff]
      %v1350 = vld [vmem:[#allocation2 + $0xe0] sm:$0xff]
      %v1351 = vld [vmem:[#allocation2 + $0xe8] sm:$0xff]
      %v1352 = vld [vmem:[#allocation2 + $0xf0] sm:$0xff]
      %v1353 = vld [vmem:[#allocation2 + $0xf8] sm:$0xff]
      %v1354 = vadd.f32 %v1322, %v1164
      %v1355 = vadd.f32 %v1323, %v1169
      %v1356 = vadd.f32 %v1324, %v1174
      %v1357 = vadd.f32 %v1325, %v1179
      %v1358 = vadd.f32 %v1326, %v1184
      %v1359 = vadd.f32 %v1327, %v1189
      %v1360 = vadd.f32 %v1328, %v1194
      %v1361 = vadd.f32 %v1329, %v1199
      %v1362 = vadd.f32 %v1330, %v1204
      %v1363 = vadd.f32 %v1331, %v1209
      %v1364 = vadd.f32 %v1332, %v1214
      %v1365 = vadd.f32 %v1333, %v1219
      %v1366 = vadd.f32 %v1334, %v1224
      %v1367 = vadd.f32 %v1335, %v1229
      %v1368 = vadd.f32 %v1336, %v1234
      %v1369 = vadd.f32 %v1337, %v1239
      %v1370 = vadd.f32 %v1338, %v1244
      %v1371 = vadd.f32 %v1339, %v1249
      %v1372 = vadd.f32 %v1340, %v1254
      %v1373 = vadd.f32 %v1341, %v1259
      %v1374 = vadd.f32 %v1342, %v1264
      %v1375 = vadd.f32 %v1343, %v1269
      %v1376 = vadd.f32 %v1344, %v1274
      %v1377 = vadd.f32 %v1345, %v1279
      %v1378 = vadd.f32 %v1346, %v1284
      %v1379 = vadd.f32 %v1347, %v1289
      %v1380 = vadd.f32 %v1348, %v1294
      %v1381 = vadd.f32 %v1349, %v1299
      %v1382 = vadd.f32 %v1350, %v1304
      %v1383 = vadd.f32 %v1351, %v1309
      %v1384 = vadd.f32 %v1352, %v1314
      %v1385 = vadd.f32 %v1353, %v1319
      %1386 = vst [vmem:[#allocation2] sm:$0xff] %v1354
      %1387 = vst [vmem:[#allocation2 + $0x8] sm:$0xff] %v1355
      %1388 = vst [vmem:[#allocation2 + $0x10] sm:$0xff] %v1356
      %1389 = vst [vmem:[#allocation2 + $0x18] sm:$0xff] %v1357
      %1390 = vst [vmem:[#allocation2 + $0x20] sm:$0xff] %v1358
      %1391 = vst [vmem:[#allocation2 + $0x28] sm:$0xff] %v1359
      %1392 = vst [vmem:[#allocation2 + $0x30] sm:$0xff] %v1360
      %1393 = vst [vmem:[#allocation2 + $0x38] sm:$0xff] %v1361
      %1394 = vst [vmem:[#allocation2 + $0x40] sm:$0xff] %v1362
      %1395 = vst [vmem:[#allocation2 + $0x48] sm:$0xff] %v1363
      %1396 = vst [vmem:[#allocation2 + $0x50] sm:$0xff] %v1364
      %1397 = vst [vmem:[#allocation2 + $0x58] sm:$0xff] %v1365
      %1398 = vst [vmem:[#allocation2 + $0x60] sm:$0xff] %v1366
      %1399 = vst [vmem:[#allocation2 + $0x68] sm:$0xff] %v1367
      %1400 = vst [vmem:[#allocation2 + $0x70] sm:$0xff] %v1368
      %1401 = vst [vmem:[#allocation2 + $0x78] sm:$0xff] %v1369
      %1402 = vst [vmem:[#allocation2 + $0x80] sm:$0xff] %v1370
      %1403 = vst [vmem:[#allocation2 + $0x88] sm:$0xff] %v1371
      %1404 = vst [vmem:[#allocation2 + $0x90] sm:$0xff] %v1372
      %1405 = vst [vmem:[#allocation2 + $0x98] sm:$0xff] %v1373
      %1406 = vst [vmem:[#allocation2 + $0xa0] sm:$0xff] %v1374
      %1407 = vst [vmem:[#allocation2 + $0xa8] sm:$0xff] %v1375
      %1408 = vst [vmem:[#allocation2 + $0xb0] sm:$0xff] %v1376
      %1409 = vst [vmem:[#allocation2 + $0xb8] sm:$0xff] %v1377
      %1410 = vst [vmem:[#allocation2 + $0xc0] sm:$0xff] %v1378
      %1411 = vst [vmem:[#allocation2 + $0xc8] sm:$0xff] %v1379
      %1412 = vst [vmem:[#allocation2 + $0xd0] sm:$0xff] %v1380
      %1413 = vst [vmem:[#allocation2 + $0xd8] sm:$0xff] %v1381
      %1414 = vst [vmem:[#allocation2 + $0xe0] sm:$0xff] %v1382
      %1415 = vst [vmem:[#allocation2 + $0xe8] sm:$0xff] %v1383
      %1416 = vst [vmem:[#allocation2 + $0xf0] sm:$0xff] %v1384
      %1417 = vst [vmem:[#allocation2 + $0xf8] sm:$0xff] %v1385
      %s1418 = scalar_lea.vmem %s3, 768
      %v1419 = vld [vmem:[%s1418] sm:$0xff]
      %v1420 = vld [vmem:[%s1418 + $0x8] sm:$0xff]
      %v1421 = vld [vmem:[%s1418 + $0x10] sm:$0xff]
      %v1422 = vld [vmem:[%s1418 + $0x18] sm:$0xff]
      %v1423 = vld [vmem:[%s1418 + $0x20] sm:$0xff]
      %v1424 = vld [vmem:[%s1418 + $0x28] sm:$0xff]
      %v1425 = vld [vmem:[%s1418 + $0x30] sm:$0xff]
      %v1426 = vld [vmem:[%s1418 + $0x38] sm:$0xff]
      %v1427 = vld [vmem:[%s1418 + $0x40] sm:$0xff]
      %v1428 = vld [vmem:[%s1418 + $0x48] sm:$0xff]
      %v1429 = vld [vmem:[%s1418 + $0x50] sm:$0xff]
      %v1430 = vld [vmem:[%s1418 + $0x58] sm:$0xff]
      %v1431 = vld [vmem:[%s1418 + $0x60] sm:$0xff]
      %v1432 = vld [vmem:[%s1418 + $0x68] sm:$0xff]
      %v1433 = vld [vmem:[%s1418 + $0x70] sm:$0xff]
      %v1434 = vld [vmem:[%s1418 + $0x78] sm:$0xff]
      %1435 = vmatprep.subr.mxu0 0.0
      %1436 = vmatpush1.msra.mxu0 %v1419
      %1437 = vmatprep.subr.mxu0 0.0
      %1438 = vmatpush1.msra.mxu0 %v1420
      %1439 = vmatprep.subr.mxu0 0.0
      %1440 = vmatpush1.msra.mxu0 %v1421
      %1441 = vmatprep.subr.mxu0 0.0
      %1442 = vmatpush1.msra.mxu0 %v1422
      %1443 = vmatprep.subr.mxu0 0.0
      %1444 = vmatpush1.msra.mxu0 %v1423
      %1445 = vmatprep.subr.mxu0 0.0
      %1446 = vmatpush1.msra.mxu0 %v1424
      %1447 = vmatprep.subr.mxu0 0.0
      %1448 = vmatpush1.msra.mxu0 %v1425
      %1449 = vmatprep.subr.mxu0 0.0
      %1450 = vmatpush1.msra.mxu0 %v1426
      %1451 = vmatprep.subr.mxu0 0.0
      %1452 = vmatpush1.msra.mxu0 %v1427
      %1453 = vmatprep.subr.mxu0 0.0
      %1454 = vmatpush1.msra.mxu0 %v1428
      %1455 = vmatprep.subr.mxu0 0.0
      %1456 = vmatpush1.msra.mxu0 %v1429
      %1457 = vmatprep.subr.mxu0 0.0
      %1458 = vmatpush1.msra.mxu0 %v1430
      %1459 = vmatprep.subr.mxu0 0.0
      %1460 = vmatpush1.msra.mxu0 %v1431
      %1461 = vmatprep.subr.mxu0 0.0
      %1462 = vmatpush1.msra.mxu0 %v1432
      %1463 = vmatprep.subr.mxu0 0.0
      %1464 = vmatpush1.msra.mxu0 %v1433
      %1465 = vmatprep.subr.mxu0 0.0
      %1466 = vmatpush1.msra.mxu0 %v1434
      %1467 = vmatprep.subr.mxu0 0.0
      %1468 = vmatpush1.msra.mxu0 0.0
      %1469 = vmatprep.subr.mxu0 0.0
      %1470 = vmatpush1.msra.mxu0 0.0
      %1471 = vmatprep.subr.mxu0 0.0
      %1472 = vmatpush1.msra.mxu0 0.0
      %1473 = vmatprep.subr.mxu0 0.0
      %1474 = vmatpush1.msra.mxu0 0.0
      %1475 = vmatprep.subr.mxu0 0.0
      %1476 = vmatpush1.msra.mxu0 0.0
      %1477 = vmatprep.subr.mxu0 0.0
      %1478 = vmatpush1.msra.mxu0 0.0
      %1479 = vmatprep.subr.mxu0 0.0
      %1480 = vmatpush1.msra.mxu0 0.0
      %1481 = vmatprep.subr.mxu0 0.0
      %1482 = vmatpush1.msra.mxu0 0.0
      %1483 = vmatprep.subr.mxu0 0.0
      %1484 = vmatpush1.msra.mxu0 0.0
      %1485 = vmatprep.subr.mxu0 0.0
      %1486 = vmatpush1.msra.mxu0 0.0
      %1487 = vmatprep.subr.mxu0 0.0
      %1488 = vmatpush1.msra.mxu0 0.0
      %1489 = vmatprep.subr.mxu0 0.0
      %1490 = vmatpush1.msra.mxu0 0.0
      %1491 = vmatprep.subr.mxu0 0.0
      %1492 = vmatpush1.msra.mxu0 0.0
      %1493 = vmatprep.subr.mxu0 0.0
      %1494 = vmatpush1.msra.mxu0 0.0
      %1495 = vmatprep.subr.mxu0 0.0
      %1496 = vmatpush1.msra.mxu0 0.0
      %1497 = vmatprep.subr.mxu0 0.0
      %1498 = vmatpush1.msra.mxu0 0.0
      %1499 = vmatprep.mubr.f32.mxu0 0.0
      %1500 = vmatmul.mubr.f32.gmra.mrb[0].mxu0 %v682
      %v1501 = vpop.f32.mrb[0].mxu0
      %v1502 = vadd.f32 0.0, %v1501
      %v1503 = vpop.f32.mrb[0].mxu0
      %1504 = vmatprep.mubr.f32.mxu0 0.0
      %1505 = vmatmul.mubr.f32.gmra.mrb[0].mxu0 %v598
      %v1506 = vpop.f32.mrb[0].mxu0
      %v1507 = vadd.f32 0.0, %v1506
      %v1508 = vpop.f32.mrb[0].mxu0
      %1509 = vmatprep.mubr.f32.mxu0 0.0
      %1510 = vmatmul.mubr.f32.gmra.mrb[0].mxu0 %v683
      %v1511 = vpop.f32.mrb[0].mxu0
      %v1512 = vadd.f32 0.0, %v1511
      %v1513 = vpop.f32.mrb[0].mxu0
      %1514 = vmatprep.mubr.f32.mxu0 0.0
      %1515 = vmatmul.mubr.f32.gmra.mrb[0].mxu0 %v601
      %v1516 = vpop.f32.mrb[0].mxu0
      %v1517 = vadd.f32 0.0, %v1516
      %v1518 = vpop.f32.mrb[0].mxu0
      %1519 = vmatprep.mubr.f32.mxu0 0.0
      %1520 = vmatmul.mubr.f32.gmra.mrb[0].mxu0 %v684
      %v1521 = vpop.f32.mrb[0].mxu0
      %v1522 = vadd.f32 0.0, %v1521
      %v1523 = vpop.f32.mrb[0].mxu0
      %1524 = vmatprep.mubr.f32.mxu0 0.0
      %1525 = vmatmul.mubr.f32.gmra.mrb[0].mxu0 %v604
      %v1526 = vpop.f32.mrb[0].mxu0
      %v1527 = vadd.f32 0.0, %v1526
      %v1528 = vpop.f32.mrb[0].mxu0
      %1529 = vmatprep.mubr.f32.mxu0 0.0
      %1530 = vmatmul.mubr.f32.gmra.mrb[0].mxu0 %v685
      %v1531 = vpop.f32.mrb[0].mxu0
      %v1532 = vadd.f32 0.0, %v1531
      %v1533 = vpop.f32.mrb[0].mxu0
      %1534 = vmatprep.mubr.f32.mxu0 0.0
      %1535 = vmatmul.mubr.f32.gmra.mrb[0].mxu0 %v607
      %v1536 = vpop.f32.mrb[0].mxu0
      %v1537 = vadd.f32 0.0, %v1536
      %v1538 = vpop.f32.mrb[0].mxu0
      %1539 = vmatprep.mubr.f32.mxu0 0.0
      %1540 = vmatmul.mubr.f32.gmra.mrb[0].mxu0 %v686
      %v1541 = vpop.f32.mrb[0].mxu0
      %v1542 = vadd.f32 0.0, %v1541
      %v1543 = vpop.f32.mrb[0].mxu0
      %1544 = vmatprep.mubr.f32.mxu0 0.0
      %1545 = vmatmul.mubr.f32.gmra.mrb[0].mxu0 %v610
      %v1546 = vpop.f32.mrb[0].mxu0
      %v1547 = vadd.f32 0.0, %v1546
      %v1548 = vpop.f32.mrb[0].mxu0
      %1549 = vmatprep.mubr.f32.mxu0 0.0
      %1550 = vmatmul.mubr.f32.gmra.mrb[0].mxu0 %v687
      %v1551 = vpop.f32.mrb[0].mxu0
      %v1552 = vadd.f32 0.0, %v1551
      %v1553 = vpop.f32.mrb[0].mxu0
      %1554 = vmatprep.mubr.f32.mxu0 0.0
      %1555 = vmatmul.mubr.f32.gmra.mrb[0].mxu0 %v613
      %v1556 = vpop.f32.mrb[0].mxu0
      %v1557 = vadd.f32 0.0, %v1556
      %v1558 = vpop.f32.mrb[0].mxu0
      %1559 = vmatprep.mubr.f32.mxu0 0.0
      %1560 = vmatmul.mubr.f32.gmra.mrb[0].mxu0 %v688
      %v1561 = vpop.f32.mrb[0].mxu0
      %v1562 = vadd.f32 0.0, %v1561
      %v1563 = vpop.f32.mrb[0].mxu0
      %1564 = vmatprep.mubr.f32.mxu0 0.0
      %1565 = vmatmul.mubr.f32.gmra.mrb[0].mxu0 %v616
      %v1566 = vpop.f32.mrb[0].mxu0
      %v1567 = vadd.f32 0.0, %v1566
      %v1568 = vpop.f32.mrb[0].mxu0
      %1569 = vmatprep.mubr.f32.mxu0 0.0
      %1570 = vmatmul.mubr.f32.gmra.mrb[0].mxu0 %v689
      %v1571 = vpop.f32.mrb[0].mxu0
      %v1572 = vadd.f32 0.0, %v1571
      %v1573 = vpop.f32.mrb[0].mxu0
      %1574 = vmatprep.mubr.f32.mxu0 0.0
      %1575 = vmatmul.mubr.f32.gmra.mrb[0].mxu0 %v619
      %v1576 = vpop.f32.mrb[0].mxu0
      %v1577 = vadd.f32 0.0, %v1576
      %v1578 = vpop.f32.mrb[0].mxu0
      %1579 = vmatprep.mubr.f32.mxu0 0.0
      %1580 = vmatmul.mubr.f32.gmra.mrb[0].mxu0 %v690
      %v1581 = vpop.f32.mrb[0].mxu0
      %v1582 = vadd.f32 0.0, %v1581
      %v1583 = vpop.f32.mrb[0].mxu0
      %1584 = vmatprep.mubr.f32.mxu0 0.0
      %1585 = vmatmul.mubr.f32.gmra.mrb[0].mxu0 %v622
      %v1586 = vpop.f32.mrb[0].mxu0
      %v1587 = vadd.f32 0.0, %v1586
      %v1588 = vpop.f32.mrb[0].mxu0
      %1589 = vmatprep.mubr.f32.mxu0 0.0
      %1590 = vmatmul.mubr.f32.gmra.mrb[0].mxu0 %v691
      %v1591 = vpop.f32.mrb[0].mxu0
      %v1592 = vadd.f32 0.0, %v1591
      %v1593 = vpop.f32.mrb[0].mxu0
      %1594 = vmatprep.mubr.f32.mxu0 0.0
      %1595 = vmatmul.mubr.f32.gmra.mrb[0].mxu0 %v625
      %v1596 = vpop.f32.mrb[0].mxu0
      %v1597 = vadd.f32 0.0, %v1596
      %v1598 = vpop.f32.mrb[0].mxu0
      %1599 = vmatprep.mubr.f32.mxu0 0.0
      %1600 = vmatmul.mubr.f32.gmra.mrb[0].mxu0 %v692
      %v1601 = vpop.f32.mrb[0].mxu0
      %v1602 = vadd.f32 0.0, %v1601
      %v1603 = vpop.f32.mrb[0].mxu0
      %1604 = vmatprep.mubr.f32.mxu0 0.0
      %1605 = vmatmul.mubr.f32.gmra.mrb[0].mxu0 %v628
      %v1606 = vpop.f32.mrb[0].mxu0
      %v1607 = vadd.f32 0.0, %v1606
      %v1608 = vpop.f32.mrb[0].mxu0
      %1609 = vmatprep.mubr.f32.mxu0 0.0
      %1610 = vmatmul.mubr.f32.gmra.mrb[0].mxu0 %v693
      %v1611 = vpop.f32.mrb[0].mxu0
      %v1612 = vadd.f32 0.0, %v1611
      %v1613 = vpop.f32.mrb[0].mxu0
      %1614 = vmatprep.mubr.f32.mxu0 0.0
      %1615 = vmatmul.mubr.f32.gmra.mrb[0].mxu0 %v631
      %v1616 = vpop.f32.mrb[0].mxu0
      %v1617 = vadd.f32 0.0, %v1616
      %v1618 = vpop.f32.mrb[0].mxu0
      %1619 = vmatprep.mubr.f32.mxu0 0.0
      %1620 = vmatmul.mubr.f32.gmra.mrb[0].mxu0 %v694
      %v1621 = vpop.f32.mrb[0].mxu0
      %v1622 = vadd.f32 0.0, %v1621
      %v1623 = vpop.f32.mrb[0].mxu0
      %1624 = vmatprep.mubr.f32.mxu0 0.0
      %1625 = vmatmul.mubr.f32.gmra.mrb[0].mxu0 %v634
      %v1626 = vpop.f32.mrb[0].mxu0
      %v1627 = vadd.f32 0.0, %v1626
      %v1628 = vpop.f32.mrb[0].mxu0
      %1629 = vmatprep.mubr.f32.mxu0 0.0
      %1630 = vmatmul.mubr.f32.gmra.mrb[0].mxu0 %v695
      %v1631 = vpop.f32.mrb[0].mxu0
      %v1632 = vadd.f32 0.0, %v1631
      %v1633 = vpop.f32.mrb[0].mxu0
      %1634 = vmatprep.mubr.f32.mxu0 0.0
      %1635 = vmatmul.mubr.f32.gmra.mrb[0].mxu0 %v637
      %v1636 = vpop.f32.mrb[0].mxu0
      %v1637 = vadd.f32 0.0, %v1636
      %v1638 = vpop.f32.mrb[0].mxu0
      %1639 = vmatprep.mubr.f32.mxu0 0.0
      %1640 = vmatmul.mubr.f32.gmra.mrb[0].mxu0 %v696
      %v1641 = vpop.f32.mrb[0].mxu0
      %v1642 = vadd.f32 0.0, %v1641
      %v1643 = vpop.f32.mrb[0].mxu0
      %1644 = vmatprep.mubr.f32.mxu0 0.0
      %1645 = vmatmul.mubr.f32.gmra.mrb[0].mxu0 %v640
      %v1646 = vpop.f32.mrb[0].mxu0
      %v1647 = vadd.f32 0.0, %v1646
      %v1648 = vpop.f32.mrb[0].mxu0
      %1649 = vmatprep.mubr.f32.mxu0 0.0
      %1650 = vmatmul.mubr.f32.gmra.mrb[0].mxu0 %v697
      %v1651 = vpop.f32.mrb[0].mxu0
      %v1652 = vadd.f32 0.0, %v1651
      %v1653 = vpop.f32.mrb[0].mxu0
      %1654 = vmatprep.mubr.f32.mxu0 0.0
      %1655 = vmatmul.mubr.f32.gmra.mrb[0].mxu0 %v643
      %v1656 = vpop.f32.mrb[0].mxu0
      %v1657 = vadd.f32 0.0, %v1656
      %v1658 = vpop.f32.mrb[0].mxu0
      %1659 = vdwg.mxu0
      %v1660 = vld [vmem:[#allocation2] sm:$0xff]
      %v1661 = vld [vmem:[#allocation2 + $0x8] sm:$0xff]
      %v1662 = vld [vmem:[#allocation2 + $0x10] sm:$0xff]
      %v1663 = vld [vmem:[#allocation2 + $0x18] sm:$0xff]
      %v1664 = vld [vmem:[#allocation2 + $0x20] sm:$0xff]
      %v1665 = vld [vmem:[#allocation2 + $0x28] sm:$0xff]
      %v1666 = vld [vmem:[#allocation2 + $0x30] sm:$0xff]
      %v1667 = vld [vmem:[#allocation2 + $0x38] sm:$0xff]
      %v1668 = vld [vmem:[#allocation2 + $0x40] sm:$0xff]
      %v1669 = vld [vmem:[#allocation2 + $0x48] sm:$0xff]
      %v1670 = vld [vmem:[#allocation2 + $0x50] sm:$0xff]
      %v1671 = vld [vmem:[#allocation2 + $0x58] sm:$0xff]
      %v1672 = vld [vmem:[#allocation2 + $0x60] sm:$0xff]
      %v1673 = vld [vmem:[#allocation2 + $0x68] sm:$0xff]
      %v1674 = vld [vmem:[#allocation2 + $0x70] sm:$0xff]
      %v1675 = vld [vmem:[#allocation2 + $0x78] sm:$0xff]
      %v1676 = vld [vmem:[#allocation2 + $0x80] sm:$0xff]
      %v1677 = vld [vmem:[#allocation2 + $0x88] sm:$0xff]
      %v1678 = vld [vmem:[#allocation2 + $0x90] sm:$0xff]
      %v1679 = vld [vmem:[#allocation2 + $0x98] sm:$0xff]
      %v1680 = vld [vmem:[#allocation2 + $0xa0] sm:$0xff]
      %v1681 = vld [vmem:[#allocation2 + $0xa8] sm:$0xff]
      %v1682 = vld [vmem:[#allocation2 + $0xb0] sm:$0xff]
      %v1683 = vld [vmem:[#allocation2 + $0xb8] sm:$0xff]
      %v1684 = vld [vmem:[#allocation2 + $0xc0] sm:$0xff]
      %v1685 = vld [vmem:[#allocation2 + $0xc8] sm:$0xff]
      %v1686 = vld [vmem:[#allocation2 + $0xd0] sm:$0xff]
      %v1687 = vld [vmem:[#allocation2 + $0xd8] sm:$0xff]
      %v1688 = vld [vmem:[#allocation2 + $0xe0] sm:$0xff]
      %v1689 = vld [vmem:[#allocation2 + $0xe8] sm:$0xff]
      %v1690 = vld [vmem:[#allocation2 + $0xf0] sm:$0xff]
      %v1691 = vld [vmem:[#allocation2 + $0xf8] sm:$0xff]
      %v1692 = vadd.f32 %v1660, %v1502
      %v1693 = vadd.f32 %v1661, %v1507
      %v1694 = vadd.f32 %v1662, %v1512
      %v1695 = vadd.f32 %v1663, %v1517
      %v1696 = vadd.f32 %v1664, %v1522
      %v1697 = vadd.f32 %v1665, %v1527
      %v1698 = vadd.f32 %v1666, %v1532
      %v1699 = vadd.f32 %v1667, %v1537
      %v1700 = vadd.f32 %v1668, %v1542
      %v1701 = vadd.f32 %v1669, %v1547
      %v1702 = vadd.f32 %v1670, %v1552
      %v1703 = vadd.f32 %v1671, %v1557
      %v1704 = vadd.f32 %v1672, %v1562
      %v1705 = vadd.f32 %v1673, %v1567
      %v1706 = vadd.f32 %v1674, %v1572
      %v1707 = vadd.f32 %v1675, %v1577
      %v1708 = vadd.f32 %v1676, %v1582
      %v1709 = vadd.f32 %v1677, %v1587
      %v1710 = vadd.f32 %v1678, %v1592
      %v1711 = vadd.f32 %v1679, %v1597
      %v1712 = vadd.f32 %v1680, %v1602
      %v1713 = vadd.f32 %v1681, %v1607
      %v1714 = vadd.f32 %v1682, %v1612
      %v1715 = vadd.f32 %v1683, %v1617
      %v1716 = vadd.f32 %v1684, %v1622
      %v1717 = vadd.f32 %v1685, %v1627
      %v1718 = vadd.f32 %v1686, %v1632
      %v1719 = vadd.f32 %v1687, %v1637
      %v1720 = vadd.f32 %v1688, %v1642
      %v1721 = vadd.f32 %v1689, %v1647
      %v1722 = vadd.f32 %v1690, %v1652
      %v1723 = vadd.f32 %v1691, %v1657
      %1724 = vst [vmem:[#allocation2] sm:$0xff] %v1692
      %1725 = vst [vmem:[#allocation2 + $0x8] sm:$0xff] %v1693
      %1726 = vst [vmem:[#allocation2 + $0x10] sm:$0xff] %v1694
      %1727 = vst [vmem:[#allocation2 + $0x18] sm:$0xff] %v1695
      %1728 = vst [vmem:[#allocation2 + $0x20] sm:$0xff] %v1696
      %1729 = vst [vmem:[#allocation2 + $0x28] sm:$0xff] %v1697
      %1730 = vst [vmem:[#allocation2 + $0x30] sm:$0xff] %v1698
      %1731 = vst [vmem:[#allocation2 + $0x38] sm:$0xff] %v1699
      %1732 = vst [vmem:[#allocation2 + $0x40] sm:$0xff] %v1700
      %1733 = vst [vmem:[#allocation2 + $0x48] sm:$0xff] %v1701
      %1734 = vst [vmem:[#allocation2 + $0x50] sm:$0xff] %v1702
      %1735 = vst [vmem:[#allocation2 + $0x58] sm:$0xff] %v1703
      %1736 = vst [vmem:[#allocation2 + $0x60] sm:$0xff] %v1704
      %1737 = vst [vmem:[#allocation2 + $0x68] sm:$0xff] %v1705
      %1738 = vst [vmem:[#allocation2 + $0x70] sm:$0xff] %v1706
      %1739 = vst [vmem:[#allocation2 + $0x78] sm:$0xff] %v1707
      %1740 = vst [vmem:[#allocation2 + $0x80] sm:$0xff] %v1708
      %1741 = vst [vmem:[#allocation2 + $0x88] sm:$0xff] %v1709
      %1742 = vst [vmem:[#allocation2 + $0x90] sm:$0xff] %v1710
      %1743 = vst [vmem:[#allocation2 + $0x98] sm:$0xff] %v1711
      %1744 = vst [vmem:[#allocation2 + $0xa0] sm:$0xff] %v1712
      %1745 = vst [vmem:[#allocation2 + $0xa8] sm:$0xff] %v1713
      %1746 = vst [vmem:[#allocation2 + $0xb0] sm:$0xff] %v1714
      %1747 = vst [vmem:[#allocation2 + $0xb8] sm:$0xff] %v1715
      %1748 = vst [vmem:[#allocation2 + $0xc0] sm:$0xff] %v1716
      %1749 = vst [vmem:[#allocation2 + $0xc8] sm:$0xff] %v1717
      %1750 = vst [vmem:[#allocation2 + $0xd0] sm:$0xff] %v1718
      %1751 = vst [vmem:[#allocation2 + $0xd8] sm:$0xff] %v1719
      %1752 = vst [vmem:[#allocation2 + $0xe0] sm:$0xff] %v1720
      %1753 = vst [vmem:[#allocation2 + $0xe8] sm:$0xff] %v1721
      %1754 = vst [vmem:[#allocation2 + $0xf0] sm:$0xff] %v1722
      %1755 = vst [vmem:[#allocation2 + $0xf8] sm:$0xff] %v1723
      %s1756 = scalar_lea.vmem %s3, 128
      %v1757 = vld [vmem:[%s1756] sm:$0xff]
      %v1758 = vld [vmem:[%s1756 + $0x8] sm:$0xff]
      %v1759 = vld [vmem:[%s1756 + $0x10] sm:$0xff]
      %v1760 = vld [vmem:[%s1756 + $0x18] sm:$0xff]
      %v1761 = vld [vmem:[%s1756 + $0x20] sm:$0xff]
      %v1762 = vld [vmem:[%s1756 + $0x28] sm:$0xff]
      %v1763 = vld [vmem:[%s1756 + $0x30] sm:$0xff]
      %v1764 = vld [vmem:[%s1756 + $0x38] sm:$0xff]
      %v1765 = vld [vmem:[%s1756 + $0x40] sm:$0xff]
      %v1766 = vld [vmem:[%s1756 + $0x48] sm:$0xff]
      %v1767 = vld [vmem:[%s1756 + $0x50] sm:$0xff]
      %v1768 = vld [vmem:[%s1756 + $0x58] sm:$0xff]
      %v1769 = vld [vmem:[%s1756 + $0x60] sm:$0xff]
      %v1770 = vld [vmem:[%s1756 + $0x68] sm:$0xff]
      %v1771 = vld [vmem:[%s1756 + $0x70] sm:$0xff]
      %v1772 = vld [vmem:[%s1756 + $0x78] sm:$0xff]
      %1773 = vmatprep.subr.mxu0 0.0
      %1774 = vmatpush1.msra.mxu0 %v1757
      %1775 = vmatprep.subr.mxu0 0.0
      %1776 = vmatpush1.msra.mxu0 %v1758
      %1777 = vmatprep.subr.mxu0 0.0
      %1778 = vmatpush1.msra.mxu0 %v1759
      %1779 = vmatprep.subr.mxu0 0.0
      %1780 = vmatpush1.msra.mxu0 %v1760
      %1781 = vmatprep.subr.mxu0 0.0
      %1782 = vmatpush1.msra.mxu0 %v1761
      %1783 = vmatprep.subr.mxu0 0.0
      %1784 = vmatpush1.msra.mxu0 %v1762
      %1785 = vmatprep.subr.mxu0 0.0
      %1786 = vmatpush1.msra.mxu0 %v1763
      %1787 = vmatprep.subr.mxu0 0.0
      %1788 = vmatpush1.msra.mxu0 %v1764
      %1789 = vmatprep.subr.mxu0 0.0
      %1790 = vmatpush1.msra.mxu0 %v1765
      %1791 = vmatprep.subr.mxu0 0.0
      %1792 = vmatpush1.msra.mxu0 %v1766
      %1793 = vmatprep.subr.mxu0 0.0
      %1794 = vmatpush1.msra.mxu0 %v1767
      %1795 = vmatprep.subr.mxu0 0.0
      %1796 = vmatpush1.msra.mxu0 %v1768
      %1797 = vmatprep.subr.mxu0 0.0
      %1798 = vmatpush1.msra.mxu0 %v1769
      %1799 = vmatprep.subr.mxu0 0.0
      %1800 = vmatpush1.msra.mxu0 %v1770
      %1801 = vmatprep.subr.mxu0 0.0
      %1802 = vmatpush1.msra.mxu0 %v1771
      %1803 = vmatprep.subr.mxu0 0.0
      %1804 = vmatpush1.msra.mxu0 %v1772
      %1805 = vmatprep.subr.mxu0 0.0
      %1806 = vmatpush1.msra.mxu0 0.0
      %1807 = vmatprep.subr.mxu0 0.0
      %1808 = vmatpush1.msra.mxu0 0.0
      %1809 = vmatprep.subr.mxu0 0.0
      %1810 = vmatpush1.msra.mxu0 0.0
      %1811 = vmatprep.subr.mxu0 0.0
      %1812 = vmatpush1.msra.mxu0 0.0
      %1813 = vmatprep.subr.mxu0 0.0
      %1814 = vmatpush1.msra.mxu0 0.0
      %1815 = vmatprep.subr.mxu0 0.0
      %1816 = vmatpush1.msra.mxu0 0.0
      %1817 = vmatprep.subr.mxu0 0.0
      %1818 = vmatpush1.msra.mxu0 0.0
      %1819 = vmatprep.subr.mxu0 0.0
      %1820 = vmatpush1.msra.mxu0 0.0
      %1821 = vmatprep.subr.mxu0 0.0
      %1822 = vmatpush1.msra.mxu0 0.0
      %1823 = vmatprep.subr.mxu0 0.0
      %1824 = vmatpush1.msra.mxu0 0.0
      %1825 = vmatprep.subr.mxu0 0.0
      %1826 = vmatpush1.msra.mxu0 0.0
      %1827 = vmatprep.subr.mxu0 0.0
      %1828 = vmatpush1.msra.mxu0 0.0
      %1829 = vmatprep.subr.mxu0 0.0
      %1830 = vmatpush1.msra.mxu0 0.0
      %1831 = vmatprep.subr.mxu0 0.0
      %1832 = vmatpush1.msra.mxu0 0.0
      %1833 = vmatprep.subr.mxu0 0.0
      %1834 = vmatpush1.msra.mxu0 0.0
      %1835 = vmatprep.subr.mxu0 0.0
      %1836 = vmatpush1.msra.mxu0 0.0
      %1837 = vmatprep.mubr.f32.mxu0 0.0
      %1838 = vmatmul.mubr.f32.gmra.mrb[0].mxu0 %v481
      %v1839 = vpop.f32.mrb[0].mxu0
      %v1840 = vadd.f32 0.0, %v1839
      %v1841 = vpop.f32.mrb[0].mxu0
      %1842 = vmatprep.mubr.f32.mxu0 0.0
      %1843 = vmatmul.mubr.f32.gmra.mrb[0].mxu0 %v482
      %v1844 = vpop.f32.mrb[0].mxu0
      %v1845 = vadd.f32 0.0, %v1844
      %v1846 = vpop.f32.mrb[0].mxu0
      %1847 = vmatprep.mubr.f32.mxu0 0.0
      %1848 = vmatmul.mubr.f32.gmra.mrb[0].mxu0 %v483
      %v1849 = vpop.f32.mrb[0].mxu0
      %v1850 = vadd.f32 0.0, %v1849
      %v1851 = vpop.f32.mrb[0].mxu0
      %1852 = vmatprep.mubr.f32.mxu0 0.0
      %1853 = vmatmul.mubr.f32.gmra.mrb[0].mxu0 %v484
      %v1854 = vpop.f32.mrb[0].mxu0
      %v1855 = vadd.f32 0.0, %v1854
      %v1856 = vpop.f32.mrb[0].mxu0
      %1857 = vmatprep.mubr.f32.mxu0 0.0
      %1858 = vmatmul.mubr.f32.gmra.mrb[0].mxu0 %v485
      %v1859 = vpop.f32.mrb[0].mxu0
      %v1860 = vadd.f32 0.0, %v1859
      %v1861 = vpop.f32.mrb[0].mxu0
      %1862 = vmatprep.mubr.f32.mxu0 0.0
      %1863 = vmatmul.mubr.f32.gmra.mrb[0].mxu0 %v486
      %v1864 = vpop.f32.mrb[0].mxu0
      %v1865 = vadd.f32 0.0, %v1864
      %v1866 = vpop.f32.mrb[0].mxu0
      %1867 = vmatprep.mubr.f32.mxu0 0.0
      %1868 = vmatmul.mubr.f32.gmra.mrb[0].mxu0 %v487
      %v1869 = vpop.f32.mrb[0].mxu0
      %v1870 = vadd.f32 0.0, %v1869
      %v1871 = vpop.f32.mrb[0].mxu0
      %1872 = vmatprep.mubr.f32.mxu0 0.0
      %1873 = vmatmul.mubr.f32.gmra.mrb[0].mxu0 %v488
      %v1874 = vpop.f32.mrb[0].mxu0
      %v1875 = vadd.f32 0.0, %v1874
      %v1876 = vpop.f32.mrb[0].mxu0
      %1877 = vmatprep.mubr.f32.mxu0 0.0
      %1878 = vmatmul.mubr.f32.gmra.mrb[0].mxu0 %v489
      %v1879 = vpop.f32.mrb[0].mxu0
      %v1880 = vadd.f32 0.0, %v1879
      %v1881 = vpop.f32.mrb[0].mxu0
      %1882 = vmatprep.mubr.f32.mxu0 0.0
      %1883 = vmatmul.mubr.f32.gmra.mrb[0].mxu0 %v490
      %v1884 = vpop.f32.mrb[0].mxu0
      %v1885 = vadd.f32 0.0, %v1884
      %v1886 = vpop.f32.mrb[0].mxu0
      %1887 = vmatprep.mubr.f32.mxu0 0.0
      %1888 = vmatmul.mubr.f32.gmra.mrb[0].mxu0 %v491
      %v1889 = vpop.f32.mrb[0].mxu0
      %v1890 = vadd.f32 0.0, %v1889
      %v1891 = vpop.f32.mrb[0].mxu0
      %1892 = vmatprep.mubr.f32.mxu0 0.0
      %1893 = vmatmul.mubr.f32.gmra.mrb[0].mxu0 %v492
      %v1894 = vpop.f32.mrb[0].mxu0
      %v1895 = vadd.f32 0.0, %v1894
      %v1896 = vpop.f32.mrb[0].mxu0
      %1897 = vmatprep.mubr.f32.mxu0 0.0
      %1898 = vmatmul.mubr.f32.gmra.mrb[0].mxu0 %v493
      %v1899 = vpop.f32.mrb[0].mxu0
      %v1900 = vadd.f32 0.0, %v1899
      %v1901 = vpop.f32.mrb[0].mxu0
      %1902 = vmatprep.mubr.f32.mxu0 0.0
      %1903 = vmatmul.mubr.f32.gmra.mrb[0].mxu0 %v494
      %v1904 = vpop.f32.mrb[0].mxu0
      %v1905 = vadd.f32 0.0, %v1904
      %v1906 = vpop.f32.mrb[0].mxu0
      %1907 = vmatprep.mubr.f32.mxu0 0.0
      %1908 = vmatmul.mubr.f32.gmra.mrb[0].mxu0 %v495
      %v1909 = vpop.f32.mrb[0].mxu0
      %v1910 = vadd.f32 0.0, %v1909
      %v1911 = vpop.f32.mrb[0].mxu0
      %1912 = vmatprep.mubr.f32.mxu0 0.0
      %1913 = vmatmul.mubr.f32.gmra.mrb[0].mxu0 %v496
      %v1914 = vpop.f32.mrb[0].mxu0
      %v1915 = vadd.f32 0.0, %v1914
      %v1916 = vpop.f32.mrb[0].mxu0
      %1917 = vmatprep.mubr.f32.mxu0 0.0
      %1918 = vmatmul.mubr.f32.gmra.mrb[0].mxu0 %v497
      %v1919 = vpop.f32.mrb[0].mxu0
      %v1920 = vadd.f32 0.0, %v1919
      %v1921 = vpop.f32.mrb[0].mxu0
      %1922 = vmatprep.mubr.f32.mxu0 0.0
      %1923 = vmatmul.mubr.f32.gmra.mrb[0].mxu0 %v498
      %v1924 = vpop.f32.mrb[0].mxu0
      %v1925 = vadd.f32 0.0, %v1924
      %v1926 = vpop.f32.mrb[0].mxu0
      %1927 = vmatprep.mubr.f32.mxu0 0.0
      %1928 = vmatmul.mubr.f32.gmra.mrb[0].mxu0 %v499
      %v1929 = vpop.f32.mrb[0].mxu0
      %v1930 = vadd.f32 0.0, %v1929
      %v1931 = vpop.f32.mrb[0].mxu0
      %1932 = vmatprep.mubr.f32.mxu0 0.0
      %1933 = vmatmul.mubr.f32.gmra.mrb[0].mxu0 %v500
      %v1934 = vpop.f32.mrb[0].mxu0
      %v1935 = vadd.f32 0.0, %v1934
      %v1936 = vpop.f32.mrb[0].mxu0
      %1937 = vmatprep.mubr.f32.mxu0 0.0
      %1938 = vmatmul.mubr.f32.gmra.mrb[0].mxu0 %v501
      %v1939 = vpop.f32.mrb[0].mxu0
      %v1940 = vadd.f32 0.0, %v1939
      %v1941 = vpop.f32.mrb[0].mxu0
      %1942 = vmatprep.mubr.f32.mxu0 0.0
      %1943 = vmatmul.mubr.f32.gmra.mrb[0].mxu0 %v502
      %v1944 = vpop.f32.mrb[0].mxu0
      %v1945 = vadd.f32 0.0, %v1944
      %v1946 = vpop.f32.mrb[0].mxu0
      %1947 = vmatprep.mubr.f32.mxu0 0.0
      %1948 = vmatmul.mubr.f32.gmra.mrb[0].mxu0 %v503
      %v1949 = vpop.f32.mrb[0].mxu0
      %v1950 = vadd.f32 0.0, %v1949
      %v1951 = vpop.f32.mrb[0].mxu0
      %1952 = vmatprep.mubr.f32.mxu0 0.0
      %1953 = vmatmul.mubr.f32.gmra.mrb[0].mxu0 %v504
      %v1954 = vpop.f32.mrb[0].mxu0
      %v1955 = vadd.f32 0.0, %v1954
      %v1956 = vpop.f32.mrb[0].mxu0
      %1957 = vmatprep.mubr.f32.mxu0 0.0
      %1958 = vmatmul.mubr.f32.gmra.mrb[0].mxu0 %v505
      %v1959 = vpop.f32.mrb[0].mxu0
      %v1960 = vadd.f32 0.0, %v1959
      %v1961 = vpop.f32.mrb[0].mxu0
      %1962 = vmatprep.mubr.f32.mxu0 0.0
      %1963 = vmatmul.mubr.f32.gmra.mrb[0].mxu0 %v506
      %v1964 = vpop.f32.mrb[0].mxu0
      %v1965 = vadd.f32 0.0, %v1964
      %v1966 = vpop.f32.mrb[0].mxu0
      %1967 = vmatprep.mubr.f32.mxu0 0.0
      %1968 = vmatmul.mubr.f32.gmra.mrb[0].mxu0 %v507
      %v1969 = vpop.f32.mrb[0].mxu0
      %v1970 = vadd.f32 0.0, %v1969
      %v1971 = vpop.f32.mrb[0].mxu0
      %1972 = vmatprep.mubr.f32.mxu0 0.0
      %1973 = vmatmul.mubr.f32.gmra.mrb[0].mxu0 %v508
      %v1974 = vpop.f32.mrb[0].mxu0
      %v1975 = vadd.f32 0.0, %v1974
      %v1976 = vpop.f32.mrb[0].mxu0
      %1977 = vmatprep.mubr.f32.mxu0 0.0
      %1978 = vmatmul.mubr.f32.gmra.mrb[0].mxu0 %v509
      %v1979 = vpop.f32.mrb[0].mxu0
      %v1980 = vadd.f32 0.0, %v1979
      %v1981 = vpop.f32.mrb[0].mxu0
      %1982 = vmatprep.mubr.f32.mxu0 0.0
      %1983 = vmatmul.mubr.f32.gmra.mrb[0].mxu0 %v510
      %v1984 = vpop.f32.mrb[0].mxu0
      %v1985 = vadd.f32 0.0, %v1984
      %v1986 = vpop.f32.mrb[0].mxu0
      %1987 = vmatprep.mubr.f32.mxu0 0.0
      %1988 = vmatmul.mubr.f32.gmra.mrb[0].mxu0 %v511
      %v1989 = vpop.f32.mrb[0].mxu0
      %v1990 = vadd.f32 0.0, %v1989
      %v1991 = vpop.f32.mrb[0].mxu0
      %1992 = vmatprep.mubr.f32.mxu0 0.0
      %1993 = vmatmul.mubr.f32.gmra.mrb[0].mxu0 %v512
      %v1994 = vpop.f32.mrb[0].mxu0
      %v1995 = vadd.f32 0.0, %v1994
      %v1996 = vpop.f32.mrb[0].mxu0
      %1997 = vdwg.mxu0
      %v1998 = vld [vmem:[#allocation2] sm:$0xff]
      %v1999 = vld [vmem:[#allocation2 + $0x8] sm:$0xff]
      %v2000 = vld [vmem:[#allocation2 + $0x10] sm:$0xff]
      %v2001 = vld [vmem:[#allocation2 + $0x18] sm:$0xff]
      %v2002 = vld [vmem:[#allocation2 + $0x20] sm:$0xff]
      %v2003 = vld [vmem:[#allocation2 + $0x28] sm:$0xff]
      %v2004 = vld [vmem:[#allocation2 + $0x30] sm:$0xff]
      %v2005 = vld [vmem:[#allocation2 + $0x38] sm:$0xff]
      %v2006 = vld [vmem:[#allocation2 + $0x40] sm:$0xff]
      %v2007 = vld [vmem:[#allocation2 + $0x48] sm:$0xff]
      %v2008 = vld [vmem:[#allocation2 + $0x50] sm:$0xff]
      %v2009 = vld [vmem:[#allocation2 + $0x58] sm:$0xff]
      %v2010 = vld [vmem:[#allocation2 + $0x60] sm:$0xff]
      %v2011 = vld [vmem:[#allocation2 + $0x68] sm:$0xff]
      %v2012 = vld [vmem:[#allocation2 + $0x70] sm:$0xff]
      %v2013 = vld [vmem:[#allocation2 + $0x78] sm:$0xff]
      %v2014 = vld [vmem:[#allocation2 + $0x80] sm:$0xff]
      %v2015 = vld [vmem:[#allocation2 + $0x88] sm:$0xff]
      %v2016 = vld [vmem:[#allocation2 + $0x90] sm:$0xff]
      %v2017 = vld [vmem:[#allocation2 + $0x98] sm:$0xff]
      %v2018 = vld [vmem:[#allocation2 + $0xa0] sm:$0xff]
      %v2019 = vld [vmem:[#allocation2 + $0xa8] sm:$0xff]
      %v2020 = vld [vmem:[#allocation2 + $0xb0] sm:$0xff]
      %v2021 = vld [vmem:[#allocation2 + $0xb8] sm:$0xff]
      %v2022 = vld [vmem:[#allocation2 + $0xc0] sm:$0xff]
      %v2023 = vld [vmem:[#allocation2 + $0xc8] sm:$0xff]
      %v2024 = vld [vmem:[#allocation2 + $0xd0] sm:$0xff]
      %v2025 = vld [vmem:[#allocation2 + $0xd8] sm:$0xff]
      %v2026 = vld [vmem:[#allocation2 + $0xe0] sm:$0xff]
      %v2027 = vld [vmem:[#allocation2 + $0xe8] sm:$0xff]
      %v2028 = vld [vmem:[#allocation2 + $0xf0] sm:$0xff]
      %v2029 = vld [vmem:[#allocation2 + $0xf8] sm:$0xff]
      %v2030 = vadd.f32 %v1998, %v1840
      %v2031 = vadd.f32 %v1999, %v1845
      %v2032 = vadd.f32 %v2000, %v1850
      %v2033 = vadd.f32 %v2001, %v1855
      %v2034 = vadd.f32 %v2002, %v1860
      %v2035 = vadd.f32 %v2003, %v1865
      %v2036 = vadd.f32 %v2004, %v1870
      %v2037 = vadd.f32 %v2005, %v1875
      %v2038 = vadd.f32 %v2006, %v1880
      %v2039 = vadd.f32 %v2007, %v1885
      %v2040 = vadd.f32 %v2008, %v1890
      %v2041 = vadd.f32 %v2009, %v1895
      %v2042 = vadd.f32 %v2010, %v1900
      %v2043 = vadd.f32 %v2011, %v1905
      %v2044 = vadd.f32 %v2012, %v1910
      %v2045 = vadd.f32 %v2013, %v1915
      %v2046 = vadd.f32 %v2014, %v1920
      %v2047 = vadd.f32 %v2015, %v1925
      %v2048 = vadd.f32 %v2016, %v1930
      %v2049 = vadd.f32 %v2017, %v1935
      %v2050 = vadd.f32 %v2018, %v1940
      %v2051 = vadd.f32 %v2019, %v1945
      %v2052 = vadd.f32 %v2020, %v1950
      %v2053 = vadd.f32 %v2021, %v1955
      %v2054 = vadd.f32 %v2022, %v1960
      %v2055 = vadd.f32 %v2023, %v1965
      %v2056 = vadd.f32 %v2024, %v1970
      %v2057 = vadd.f32 %v2025, %v1975
      %v2058 = vadd.f32 %v2026, %v1980
      %v2059 = vadd.f32 %v2027, %v1985
      %v2060 = vadd.f32 %v2028, %v1990
      %v2061 = vadd.f32 %v2029, %v1995
      %2062 = vst [vmem:[#allocation2] sm:$0xff] %v2030
      %2063 = vst [vmem:[#allocation2 + $0x8] sm:$0xff] %v2031
      %2064 = vst [vmem:[#allocation2 + $0x10] sm:$0xff] %v2032
      %2065 = vst [vmem:[#allocation2 + $0x18] sm:$0xff] %v2033
      %2066 = vst [vmem:[#allocation2 + $0x20] sm:$0xff] %v2034
      %2067 = vst [vmem:[#allocation2 + $0x28] sm:$0xff] %v2035
      %2068 = vst [vmem:[#allocation2 + $0x30] sm:$0xff] %v2036
      %2069 = vst [vmem:[#allocation2 + $0x38] sm:$0xff] %v2037
      %2070 = vst [vmem:[#allocation2 + $0x40] sm:$0xff] %v2038
      %2071 = vst [vmem:[#allocation2 + $0x48] sm:$0xff] %v2039
      %2072 = vst [vmem:[#allocation2 + $0x50] sm:$0xff] %v2040
      %2073 = vst [vmem:[#allocation2 + $0x58] sm:$0xff] %v2041
      %2074 = vst [vmem:[#allocation2 + $0x60] sm:$0xff] %v2042
      %2075 = vst [vmem:[#allocation2 + $0x68] sm:$0xff] %v2043
      %2076 = vst [vmem:[#allocation2 + $0x70] sm:$0xff] %v2044
      %2077 = vst [vmem:[#allocation2 + $0x78] sm:$0xff] %v2045
      %2078 = vst [vmem:[#allocation2 + $0x80] sm:$0xff] %v2046
      %2079 = vst [vmem:[#allocation2 + $0x88] sm:$0xff] %v2047
      %2080 = vst [vmem:[#allocation2 + $0x90] sm:$0xff] %v2048
      %2081 = vst [vmem:[#allocation2 + $0x98] sm:$0xff] %v2049
      %2082 = vst [vmem:[#allocation2 + $0xa0] sm:$0xff] %v2050
      %2083 = vst [vmem:[#allocation2 + $0xa8] sm:$0xff] %v2051
      %2084 = vst [vmem:[#allocation2 + $0xb0] sm:$0xff] %v2052
      %2085 = vst [vmem:[#allocation2 + $0xb8] sm:$0xff] %v2053
      %2086 = vst [vmem:[#allocation2 + $0xc0] sm:$0xff] %v2054
      %2087 = vst [vmem:[#allocation2 + $0xc8] sm:$0xff] %v2055
      %2088 = vst [vmem:[#allocation2 + $0xd0] sm:$0xff] %v2056
      %2089 = vst [vmem:[#allocation2 + $0xd8] sm:$0xff] %v2057
      %2090 = vst [vmem:[#allocation2 + $0xe0] sm:$0xff] %v2058
      %2091 = vst [vmem:[#allocation2 + $0xe8] sm:$0xff] %v2059
      %2092 = vst [vmem:[#allocation2 + $0xf0] sm:$0xff] %v2060
      %2093 = vst [vmem:[#allocation2 + $0xf8] sm:$0xff] %v2061
      %s2094 = scalar_lea.vmem %s3, 512
      %v2095 = vld [vmem:[%s2094] sm:$0xff]
      %v2096 = vld [vmem:[%s2094 + $0x8] sm:$0xff]
      %v2097 = vld [vmem:[%s2094 + $0x10] sm:$0xff]
      %v2098 = vld [vmem:[%s2094 + $0x18] sm:$0xff]
      %v2099 = vld [vmem:[%s2094 + $0x20] sm:$0xff]
      %v2100 = vld [vmem:[%s2094 + $0x28] sm:$0xff]
      %v2101 = vld [vmem:[%s2094 + $0x30] sm:$0xff]
      %v2102 = vld [vmem:[%s2094 + $0x38] sm:$0xff]
      %v2103 = vld [vmem:[%s2094 + $0x40] sm:$0xff]
      %v2104 = vld [vmem:[%s2094 + $0x48] sm:$0xff]
      %v2105 = vld [vmem:[%s2094 + $0x50] sm:$0xff]
      %v2106 = vld [vmem:[%s2094 + $0x58] sm:$0xff]
      %v2107 = vld [vmem:[%s2094 + $0x60] sm:$0xff]
      %v2108 = vld [vmem:[%s2094 + $0x68] sm:$0xff]
      %v2109 = vld [vmem:[%s2094 + $0x70] sm:$0xff]
      %v2110 = vld [vmem:[%s2094 + $0x78] sm:$0xff]
      %2111 = vmatprep.subr.mxu0 0.0
      %2112 = vmatpush1.msra.mxu0 %v2095
      %2113 = vmatprep.subr.mxu0 0.0
      %2114 = vmatpush1.msra.mxu0 %v2096
      %2115 = vmatprep.subr.mxu0 0.0
      %2116 = vmatpush1.msra.mxu0 %v2097
      %2117 = vmatprep.subr.mxu0 0.0
      %2118 = vmatpush1.msra.mxu0 %v2098
      %2119 = vmatprep.subr.mxu0 0.0
      %2120 = vmatpush1.msra.mxu0 %v2099
      %2121 = vmatprep.subr.mxu0 0.0
      %2122 = vmatpush1.msra.mxu0 %v2100
      %2123 = vmatprep.subr.mxu0 0.0
      %2124 = vmatpush1.msra.mxu0 %v2101
      %2125 = vmatprep.subr.mxu0 0.0
      %2126 = vmatpush1.msra.mxu0 %v2102
      %2127 = vmatprep.subr.mxu0 0.0
      %2128 = vmatpush1.msra.mxu0 %v2103
      %2129 = vmatprep.subr.mxu0 0.0
      %2130 = vmatpush1.msra.mxu0 %v2104
      %2131 = vmatprep.subr.mxu0 0.0
      %2132 = vmatpush1.msra.mxu0 %v2105
      %2133 = vmatprep.subr.mxu0 0.0
      %2134 = vmatpush1.msra.mxu0 %v2106
      %2135 = vmatprep.subr.mxu0 0.0
      %2136 = vmatpush1.msra.mxu0 %v2107
      %2137 = vmatprep.subr.mxu0 0.0
      %2138 = vmatpush1.msra.mxu0 %v2108
      %2139 = vmatprep.subr.mxu0 0.0
      %2140 = vmatpush1.msra.mxu0 %v2109
      %2141 = vmatprep.subr.mxu0 0.0
      %2142 = vmatpush1.msra.mxu0 %v2110
      %2143 = vmatprep.subr.mxu0 0.0
      %2144 = vmatpush1.msra.mxu0 0.0
      %2145 = vmatprep.subr.mxu0 0.0
      %2146 = vmatpush1.msra.mxu0 0.0
      %2147 = vmatprep.subr.mxu0 0.0
      %2148 = vmatpush1.msra.mxu0 0.0
      %2149 = vmatprep.subr.mxu0 0.0
      %2150 = vmatpush1.msra.mxu0 0.0
      %2151 = vmatprep.subr.mxu0 0.0
      %2152 = vmatpush1.msra.mxu0 0.0
      %2153 = vmatprep.subr.mxu0 0.0
      %2154 = vmatpush1.msra.mxu0 0.0
      %2155 = vmatprep.subr.mxu0 0.0
      %2156 = vmatpush1.msra.mxu0 0.0
      %2157 = vmatprep.subr.mxu0 0.0
      %2158 = vmatpush1.msra.mxu0 0.0
      %2159 = vmatprep.subr.mxu0 0.0
      %2160 = vmatpush1.msra.mxu0 0.0
      %2161 = vmatprep.subr.mxu0 0.0
      %2162 = vmatpush1.msra.mxu0 0.0
      %2163 = vmatprep.subr.mxu0 0.0
      %2164 = vmatpush1.msra.mxu0 0.0
      %2165 = vmatprep.subr.mxu0 0.0
      %2166 = vmatpush1.msra.mxu0 0.0
      %2167 = vmatprep.subr.mxu0 0.0
      %2168 = vmatpush1.msra.mxu0 0.0
      %2169 = vmatprep.subr.mxu0 0.0
      %2170 = vmatpush1.msra.mxu0 0.0
      %2171 = vmatprep.subr.mxu0 0.0
      %2172 = vmatpush1.msra.mxu0 0.0
      %2173 = vmatprep.subr.mxu0 0.0
      %2174 = vmatpush1.msra.mxu0 0.0
      %2175 = vmatprep.mubr.f32.mxu0 0.0
      %2176 = vmatmul.mubr.f32.gmra.mrb[0].mxu0 %v483
      %v2177 = vpop.f32.mrb[0].mxu0
      %v2178 = vadd.f32 0.0, %v2177
      %v2179 = vpop.f32.mrb[0].mxu0
      %2180 = vmatprep.mubr.f32.mxu0 0.0
      %2181 = vmatmul.mubr.f32.gmra.mrb[0].mxu0 %v484
      %v2182 = vpop.f32.mrb[0].mxu0
      %v2183 = vadd.f32 0.0, %v2182
      %v2184 = vpop.f32.mrb[0].mxu0
      %2185 = vmatprep.mubr.f32.mxu0 0.0
      %2186 = vmatmul.mubr.f32.gmra.mrb[0].mxu0 %v485
      %v2187 = vpop.f32.mrb[0].mxu0
      %v2188 = vadd.f32 0.0, %v2187
      %v2189 = vpop.f32.mrb[0].mxu0
      %2190 = vmatprep.mubr.f32.mxu0 0.0
      %2191 = vmatmul.mubr.f32.gmra.mrb[0].mxu0 %v486
      %v2192 = vpop.f32.mrb[0].mxu0
      %v2193 = vadd.f32 0.0, %v2192
      %v2194 = vpop.f32.mrb[0].mxu0
      %2195 = vmatprep.mubr.f32.mxu0 0.0
      %2196 = vmatmul.mubr.f32.gmra.mrb[0].mxu0 %v487
      %v2197 = vpop.f32.mrb[0].mxu0
      %v2198 = vadd.f32 0.0, %v2197
      %v2199 = vpop.f32.mrb[0].mxu0
      %2200 = vmatprep.mubr.f32.mxu0 0.0
      %2201 = vmatmul.mubr.f32.gmra.mrb[0].mxu0 %v488
      %v2202 = vpop.f32.mrb[0].mxu0
      %v2203 = vadd.f32 0.0, %v2202
      %v2204 = vpop.f32.mrb[0].mxu0
      %2205 = vmatprep.mubr.f32.mxu0 0.0
      %2206 = vmatmul.mubr.f32.gmra.mrb[0].mxu0 %v489
      %v2207 = vpop.f32.mrb[0].mxu0
      %v2208 = vadd.f32 0.0, %v2207
      %v2209 = vpop.f32.mrb[0].mxu0
      %2210 = vmatprep.mubr.f32.mxu0 0.0
      %2211 = vmatmul.mubr.f32.gmra.mrb[0].mxu0 %v490
      %v2212 = vpop.f32.mrb[0].mxu0
      %v2213 = vadd.f32 0.0, %v2212
      %v2214 = vpop.f32.mrb[0].mxu0
      %2215 = vmatprep.mubr.f32.mxu0 0.0
      %2216 = vmatmul.mubr.f32.gmra.mrb[0].mxu0 %v491
      %v2217 = vpop.f32.mrb[0].mxu0
      %v2218 = vadd.f32 0.0, %v2217
      %v2219 = vpop.f32.mrb[0].mxu0
      %2220 = vmatprep.mubr.f32.mxu0 0.0
      %2221 = vmatmul.mubr.f32.gmra.mrb[0].mxu0 %v492
      %v2222 = vpop.f32.mrb[0].mxu0
      %v2223 = vadd.f32 0.0, %v2222
      %v2224 = vpop.f32.mrb[0].mxu0
      %2225 = vmatprep.mubr.f32.mxu0 0.0
      %2226 = vmatmul.mubr.f32.gmra.mrb[0].mxu0 %v493
      %v2227 = vpop.f32.mrb[0].mxu0
      %v2228 = vadd.f32 0.0, %v2227
      %v2229 = vpop.f32.mrb[0].mxu0
      %2230 = vmatprep.mubr.f32.mxu0 0.0
      %2231 = vmatmul.mubr.f32.gmra.mrb[0].mxu0 %v494
      %v2232 = vpop.f32.mrb[0].mxu0
      %v2233 = vadd.f32 0.0, %v2232
      %v2234 = vpop.f32.mrb[0].mxu0
      %2235 = vmatprep.mubr.f32.mxu0 0.0
      %2236 = vmatmul.mubr.f32.gmra.mrb[0].mxu0 %v495
      %v2237 = vpop.f32.mrb[0].mxu0
      %v2238 = vadd.f32 0.0, %v2237
      %v2239 = vpop.f32.mrb[0].mxu0
      %2240 = vmatprep.mubr.f32.mxu0 0.0
      %2241 = vmatmul.mubr.f32.gmra.mrb[0].mxu0 %v496
      %v2242 = vpop.f32.mrb[0].mxu0
      %v2243 = vadd.f32 0.0, %v2242
      %v2244 = vpop.f32.mrb[0].mxu0
      %2245 = vmatprep.mubr.f32.mxu0 0.0
      %2246 = vmatmul.mubr.f32.gmra.mrb[0].mxu0 %v497
      %v2247 = vpop.f32.mrb[0].mxu0
      %v2248 = vadd.f32 0.0, %v2247
      %v2249 = vpop.f32.mrb[0].mxu0
      %2250 = vmatprep.mubr.f32.mxu0 0.0
      %2251 = vmatmul.mubr.f32.gmra.mrb[0].mxu0 %v498
      %v2252 = vpop.f32.mrb[0].mxu0
      %v2253 = vadd.f32 0.0, %v2252
      %v2254 = vpop.f32.mrb[0].mxu0
      %2255 = vmatprep.mubr.f32.mxu0 0.0
      %2256 = vmatmul.mubr.f32.gmra.mrb[0].mxu0 %v499
      %v2257 = vpop.f32.mrb[0].mxu0
      %v2258 = vadd.f32 0.0, %v2257
      %v2259 = vpop.f32.mrb[0].mxu0
      %2260 = vmatprep.mubr.f32.mxu0 0.0
      %2261 = vmatmul.mubr.f32.gmra.mrb[0].mxu0 %v500
      %v2262 = vpop.f32.mrb[0].mxu0
      %v2263 = vadd.f32 0.0, %v2262
      %v2264 = vpop.f32.mrb[0].mxu0
      %2265 = vmatprep.mubr.f32.mxu0 0.0
      %2266 = vmatmul.mubr.f32.gmra.mrb[0].mxu0 %v501
      %v2267 = vpop.f32.mrb[0].mxu0
      %v2268 = vadd.f32 0.0, %v2267
      %v2269 = vpop.f32.mrb[0].mxu0
      %2270 = vmatprep.mubr.f32.mxu0 0.0
      %2271 = vmatmul.mubr.f32.gmra.mrb[0].mxu0 %v502
      %v2272 = vpop.f32.mrb[0].mxu0
      %v2273 = vadd.f32 0.0, %v2272
      %v2274 = vpop.f32.mrb[0].mxu0
      %2275 = vmatprep.mubr.f32.mxu0 0.0
      %2276 = vmatmul.mubr.f32.gmra.mrb[0].mxu0 %v503
      %v2277 = vpop.f32.mrb[0].mxu0
      %v2278 = vadd.f32 0.0, %v2277
      %v2279 = vpop.f32.mrb[0].mxu0
      %2280 = vmatprep.mubr.f32.mxu0 0.0
      %2281 = vmatmul.mubr.f32.gmra.mrb[0].mxu0 %v504
      %v2282 = vpop.f32.mrb[0].mxu0
      %v2283 = vadd.f32 0.0, %v2282
      %v2284 = vpop.f32.mrb[0].mxu0
      %2285 = vmatprep.mubr.f32.mxu0 0.0
      %2286 = vmatmul.mubr.f32.gmra.mrb[0].mxu0 %v505
      %v2287 = vpop.f32.mrb[0].mxu0
      %v2288 = vadd.f32 0.0, %v2287
      %v2289 = vpop.f32.mrb[0].mxu0
      %2290 = vmatprep.mubr.f32.mxu0 0.0
      %2291 = vmatmul.mubr.f32.gmra.mrb[0].mxu0 %v506
      %v2292 = vpop.f32.mrb[0].mxu0
      %v2293 = vadd.f32 0.0, %v2292
      %v2294 = vpop.f32.mrb[0].mxu0
      %2295 = vmatprep.mubr.f32.mxu0 0.0
      %2296 = vmatmul.mubr.f32.gmra.mrb[0].mxu0 %v507
      %v2297 = vpop.f32.mrb[0].mxu0
      %v2298 = vadd.f32 0.0, %v2297
      %v2299 = vpop.f32.mrb[0].mxu0
      %2300 = vmatprep.mubr.f32.mxu0 0.0
      %2301 = vmatmul.mubr.f32.gmra.mrb[0].mxu0 %v508
      %v2302 = vpop.f32.mrb[0].mxu0
      %v2303 = vadd.f32 0.0, %v2302
      %v2304 = vpop.f32.mrb[0].mxu0
      %2305 = vmatprep.mubr.f32.mxu0 0.0
      %2306 = vmatmul.mubr.f32.gmra.mrb[0].mxu0 %v509
      %v2307 = vpop.f32.mrb[0].mxu0
      %v2308 = vadd.f32 0.0, %v2307
      %v2309 = vpop.f32.mrb[0].mxu0
      %2310 = vmatprep.mubr.f32.mxu0 0.0
      %2311 = vmatmul.mubr.f32.gmra.mrb[0].mxu0 %v510
      %v2312 = vpop.f32.mrb[0].mxu0
      %v2313 = vadd.f32 0.0, %v2312
      %v2314 = vpop.f32.mrb[0].mxu0
      %2315 = vmatprep.mubr.f32.mxu0 0.0
      %2316 = vmatmul.mubr.f32.gmra.mrb[0].mxu0 %v511
      %v2317 = vpop.f32.mrb[0].mxu0
      %v2318 = vadd.f32 0.0, %v2317
      %v2319 = vpop.f32.mrb[0].mxu0
      %2320 = vmatprep.mubr.f32.mxu0 0.0
      %2321 = vmatmul.mubr.f32.gmra.mrb[0].mxu0 %v512
      %v2322 = vpop.f32.mrb[0].mxu0
      %v2323 = vadd.f32 0.0, %v2322
      %v2324 = vpop.f32.mrb[0].mxu0
      %2325 = vmatprep.mubr.f32.mxu0 0.0
      %2326 = vmatmul.mubr.f32.gmra.mrb[0].mxu0 %v513
      %v2327 = vpop.f32.mrb[0].mxu0
      %v2328 = vadd.f32 0.0, %v2327
      %v2329 = vpop.f32.mrb[0].mxu0
      %2330 = vmatprep.mubr.f32.mxu0 0.0
      %2331 = vmatmul.mubr.f32.gmra.mrb[0].mxu0 %v514
      %v2332 = vpop.f32.mrb[0].mxu0
      %v2333 = vadd.f32 0.0, %v2332
      %v2334 = vpop.f32.mrb[0].mxu0
      %2335 = vdwg.mxu0
      %v2336 = vld [vmem:[#allocation2] sm:$0xff]
      %v2337 = vld [vmem:[#allocation2 + $0x8] sm:$0xff]
      %v2338 = vld [vmem:[#allocation2 + $0x10] sm:$0xff]
      %v2339 = vld [vmem:[#allocation2 + $0x18] sm:$0xff]
      %v2340 = vld [vmem:[#allocation2 + $0x20] sm:$0xff]
      %v2341 = vld [vmem:[#allocation2 + $0x28] sm:$0xff]
      %v2342 = vld [vmem:[#allocation2 + $0x30] sm:$0xff]
      %v2343 = vld [vmem:[#allocation2 + $0x38] sm:$0xff]
      %v2344 = vld [vmem:[#allocation2 + $0x40] sm:$0xff]
      %v2345 = vld [vmem:[#allocation2 + $0x48] sm:$0xff]
      %v2346 = vld [vmem:[#allocation2 + $0x50] sm:$0xff]
      %v2347 = vld [vmem:[#allocation2 + $0x58] sm:$0xff]
      %v2348 = vld [vmem:[#allocation2 + $0x60] sm:$0xff]
      %v2349 = vld [vmem:[#allocation2 + $0x68] sm:$0xff]
      %v2350 = vld [vmem:[#allocation2 + $0x70] sm:$0xff]
      %v2351 = vld [vmem:[#allocation2 + $0x78] sm:$0xff]
      %v2352 = vld [vmem:[#allocation2 + $0x80] sm:$0xff]
      %v2353 = vld [vmem:[#allocation2 + $0x88] sm:$0xff]
      %v2354 = vld [vmem:[#allocation2 + $0x90] sm:$0xff]
      %v2355 = vld [vmem:[#allocation2 + $0x98] sm:$0xff]
      %v2356 = vld [vmem:[#allocation2 + $0xa0] sm:$0xff]
      %v2357 = vld [vmem:[#allocation2 + $0xa8] sm:$0xff]
      %v2358 = vld [vmem:[#allocation2 + $0xb0] sm:$0xff]
      %v2359 = vld [vmem:[#allocation2 + $0xb8] sm:$0xff]
      %v2360 = vld [vmem:[#allocation2 + $0xc0] sm:$0xff]
      %v2361 = vld [vmem:[#allocation2 + $0xc8] sm:$0xff]
      %v2362 = vld [vmem:[#allocation2 + $0xd0] sm:$0xff]
      %v2363 = vld [vmem:[#allocation2 + $0xd8] sm:$0xff]
      %v2364 = vld [vmem:[#allocation2 + $0xe0] sm:$0xff]
      %v2365 = vld [vmem:[#allocation2 + $0xe8] sm:$0xff]
      %v2366 = vld [vmem:[#allocation2 + $0xf0] sm:$0xff]
      %v2367 = vld [vmem:[#allocation2 + $0xf8] sm:$0xff]
      %v2368 = vadd.f32 %v2336, %v2178
      %v2369 = vadd.f32 %v2337, %v2183
      %v2370 = vadd.f32 %v2338, %v2188
      %v2371 = vadd.f32 %v2339, %v2193
      %v2372 = vadd.f32 %v2340, %v2198
      %v2373 = vadd.f32 %v2341, %v2203
      %v2374 = vadd.f32 %v2342, %v2208
      %v2375 = vadd.f32 %v2343, %v2213
      %v2376 = vadd.f32 %v2344, %v2218
      %v2377 = vadd.f32 %v2345, %v2223
      %v2378 = vadd.f32 %v2346, %v2228
      %v2379 = vadd.f32 %v2347, %v2233
      %v2380 = vadd.f32 %v2348, %v2238
      %v2381 = vadd.f32 %v2349, %v2243
      %v2382 = vadd.f32 %v2350, %v2248
      %v2383 = vadd.f32 %v2351, %v2253
      %v2384 = vadd.f32 %v2352, %v2258
      %v2385 = vadd.f32 %v2353, %v2263
      %v2386 = vadd.f32 %v2354, %v2268
      %v2387 = vadd.f32 %v2355, %v2273
      %v2388 = vadd.f32 %v2356, %v2278
      %v2389 = vadd.f32 %v2357, %v2283
      %v2390 = vadd.f32 %v2358, %v2288
      %v2391 = vadd.f32 %v2359, %v2293
      %v2392 = vadd.f32 %v2360, %v2298
      %v2393 = vadd.f32 %v2361, %v2303
      %v2394 = vadd.f32 %v2362, %v2308
      %v2395 = vadd.f32 %v2363, %v2313
      %v2396 = vadd.f32 %v2364, %v2318
      %v2397 = vadd.f32 %v2365, %v2323
      %v2398 = vadd.f32 %v2366, %v2328
      %v2399 = vadd.f32 %v2367, %v2333
      %2400 = vst [vmem:[#allocation2] sm:$0xff] %v2368
      %2401 = vst [vmem:[#allocation2 + $0x8] sm:$0xff] %v2369
      %2402 = vst [vmem:[#allocation2 + $0x10] sm:$0xff] %v2370
      %2403 = vst [vmem:[#allocation2 + $0x18] sm:$0xff] %v2371
      %2404 = vst [vmem:[#allocation2 + $0x20] sm:$0xff] %v2372
      %2405 = vst [vmem:[#allocation2 + $0x28] sm:$0xff] %v2373
      %2406 = vst [vmem:[#allocation2 + $0x30] sm:$0xff] %v2374
      %2407 = vst [vmem:[#allocation2 + $0x38] sm:$0xff] %v2375
      %2408 = vst [vmem:[#allocation2 + $0x40] sm:$0xff] %v2376
      %2409 = vst [vmem:[#allocation2 + $0x48] sm:$0xff] %v2377
      %2410 = vst [vmem:[#allocation2 + $0x50] sm:$0xff] %v2378
      %2411 = vst [vmem:[#allocation2 + $0x58] sm:$0xff] %v2379
      %2412 = vst [vmem:[#allocation2 + $0x60] sm:$0xff] %v2380
      %2413 = vst [vmem:[#allocation2 + $0x68] sm:$0xff] %v2381
      %2414 = vst [vmem:[#allocation2 + $0x70] sm:$0xff] %v2382
      %2415 = vst [vmem:[#allocation2 + $0x78] sm:$0xff] %v2383
      %2416 = vst [vmem:[#allocation2 + $0x80] sm:$0xff] %v2384
      %2417 = vst [vmem:[#allocation2 + $0x88] sm:$0xff] %v2385
      %2418 = vst [vmem:[#allocation2 + $0x90] sm:$0xff] %v2386
      %2419 = vst [vmem:[#allocation2 + $0x98] sm:$0xff] %v2387
      %2420 = vst [vmem:[#allocation2 + $0xa0] sm:$0xff] %v2388
      %2421 = vst [vmem:[#allocation2 + $0xa8] sm:$0xff] %v2389
      %2422 = vst [vmem:[#allocation2 + $0xb0] sm:$0xff] %v2390
      %2423 = vst [vmem:[#allocation2 + $0xb8] sm:$0xff] %v2391
      %2424 = vst [vmem:[#allocation2 + $0xc0] sm:$0xff] %v2392
      %2425 = vst [vmem:[#allocation2 + $0xc8] sm:$0xff] %v2393
      %2426 = vst [vmem:[#allocation2 + $0xd0] sm:$0xff] %v2394
      %2427 = vst [vmem:[#allocation2 + $0xd8] sm:$0xff] %v2395
      %2428 = vst [vmem:[#allocation2 + $0xe0] sm:$0xff] %v2396
      %2429 = vst [vmem:[#allocation2 + $0xe8] sm:$0xff] %v2397
      %2430 = vst [vmem:[#allocation2 + $0xf0] sm:$0xff] %v2398
      %2431 = vst [vmem:[#allocation2 + $0xf8] sm:$0xff] %v2399
      %s2432 = scalar_lea.vmem %s3, 896
      %v2433 = vld [vmem:[%s2432] sm:$0xff]
      %v2434 = vld [vmem:[%s2432 + $0x8] sm:$0xff]
      %v2435 = vld [vmem:[%s2432 + $0x10] sm:$0xff]
      %v2436 = vld [vmem:[%s2432 + $0x18] sm:$0xff]
      %v2437 = vld [vmem:[%s2432 + $0x20] sm:$0xff]
      %v2438 = vld [vmem:[%s2432 + $0x28] sm:$0xff]
      %v2439 = vld [vmem:[%s2432 + $0x30] sm:$0xff]
      %v2440 = vld [vmem:[%s2432 + $0x38] sm:$0xff]
      %v2441 = vld [vmem:[%s2432 + $0x40] sm:$0xff]
      %v2442 = vld [vmem:[%s2432 + $0x48] sm:$0xff]
      %v2443 = vld [vmem:[%s2432 + $0x50] sm:$0xff]
      %v2444 = vld [vmem:[%s2432 + $0x58] sm:$0xff]
      %v2445 = vld [vmem:[%s2432 + $0x60] sm:$0xff]
      %v2446 = vld [vmem:[%s2432 + $0x68] sm:$0xff]
      %v2447 = vld [vmem:[%s2432 + $0x70] sm:$0xff]
      %v2448 = vld [vmem:[%s2432 + $0x78] sm:$0xff]
      %2449 = vmatprep.subr.mxu0 0.0
      %2450 = vmatpush1.msra.mxu0 %v2433
      %2451 = vmatprep.subr.mxu0 0.0
      %2452 = vmatpush1.msra.mxu0 %v2434
      %2453 = vmatprep.subr.mxu0 0.0
      %2454 = vmatpush1.msra.mxu0 %v2435
      %2455 = vmatprep.subr.mxu0 0.0
      %2456 = vmatpush1.msra.mxu0 %v2436
      %2457 = vmatprep.subr.mxu0 0.0
      %2458 = vmatpush1.msra.mxu0 %v2437
      %2459 = vmatprep.subr.mxu0 0.0
      %2460 = vmatpush1.msra.mxu0 %v2438
      %2461 = vmatprep.subr.mxu0 0.0
      %2462 = vmatpush1.msra.mxu0 %v2439
      %2463 = vmatprep.subr.mxu0 0.0
      %2464 = vmatpush1.msra.mxu0 %v2440
      %2465 = vmatprep.subr.mxu0 0.0
      %2466 = vmatpush1.msra.mxu0 %v2441
      %2467 = vmatprep.subr.mxu0 0.0
      %2468 = vmatpush1.msra.mxu0 %v2442
      %2469 = vmatprep.subr.mxu0 0.0
      %2470 = vmatpush1.msra.mxu0 %v2443
      %2471 = vmatprep.subr.mxu0 0.0
      %2472 = vmatpush1.msra.mxu0 %v2444
      %2473 = vmatprep.subr.mxu0 0.0
      %2474 = vmatpush1.msra.mxu0 %v2445
      %2475 = vmatprep.subr.mxu0 0.0
      %2476 = vmatpush1.msra.mxu0 %v2446
      %2477 = vmatprep.subr.mxu0 0.0
      %2478 = vmatpush1.msra.mxu0 %v2447
      %2479 = vmatprep.subr.mxu0 0.0
      %2480 = vmatpush1.msra.mxu0 %v2448
      %2481 = vmatprep.subr.mxu0 0.0
      %2482 = vmatpush1.msra.mxu0 0.0
      %2483 = vmatprep.subr.mxu0 0.0
      %2484 = vmatpush1.msra.mxu0 0.0
      %2485 = vmatprep.subr.mxu0 0.0
      %2486 = vmatpush1.msra.mxu0 0.0
      %2487 = vmatprep.subr.mxu0 0.0
      %2488 = vmatpush1.msra.mxu0 0.0
      %2489 = vmatprep.subr.mxu0 0.0
      %2490 = vmatpush1.msra.mxu0 0.0
      %2491 = vmatprep.subr.mxu0 0.0
      %2492 = vmatpush1.msra.mxu0 0.0
      %2493 = vmatprep.subr.mxu0 0.0
      %2494 = vmatpush1.msra.mxu0 0.0
      %2495 = vmatprep.subr.mxu0 0.0
      %2496 = vmatpush1.msra.mxu0 0.0
      %2497 = vmatprep.subr.mxu0 0.0
      %2498 = vmatpush1.msra.mxu0 0.0
      %2499 = vmatprep.subr.mxu0 0.0
      %2500 = vmatpush1.msra.mxu0 0.0
      %2501 = vmatprep.subr.mxu0 0.0
      %2502 = vmatpush1.msra.mxu0 0.0
      %2503 = vmatprep.subr.mxu0 0.0
      %2504 = vmatpush1.msra.mxu0 0.0
      %2505 = vmatprep.subr.mxu0 0.0
      %2506 = vmatpush1.msra.mxu0 0.0
      %2507 = vmatprep.subr.mxu0 0.0
      %2508 = vmatpush1.msra.mxu0 0.0
      %2509 = vmatprep.subr.mxu0 0.0
      %2510 = vmatpush1.msra.mxu0 0.0
      %2511 = vmatprep.subr.mxu0 0.0
      %2512 = vmatpush1.msra.mxu0 0.0
      %2513 = vmatprep.mubr.f32.mxu0 0.0
      %2514 = vmatmul.mubr.f32.gmra.mrb[0].mxu0 %v485
      %v2515 = vpop.f32.mrb[0].mxu0
      %v2516 = vadd.f32 0.0, %v2515
      %v2517 = vpop.f32.mrb[0].mxu0
      %2518 = vmatprep.mubr.f32.mxu0 0.0
      %2519 = vmatmul.mubr.f32.gmra.mrb[0].mxu0 %v486
      %v2520 = vpop.f32.mrb[0].mxu0
      %v2521 = vadd.f32 0.0, %v2520
      %v2522 = vpop.f32.mrb[0].mxu0
      %2523 = vmatprep.mubr.f32.mxu0 0.0
      %2524 = vmatmul.mubr.f32.gmra.mrb[0].mxu0 %v487
      %v2525 = vpop.f32.mrb[0].mxu0
      %v2526 = vadd.f32 0.0, %v2525
      %v2527 = vpop.f32.mrb[0].mxu0
      %2528 = vmatprep.mubr.f32.mxu0 0.0
      %2529 = vmatmul.mubr.f32.gmra.mrb[0].mxu0 %v488
      %v2530 = vpop.f32.mrb[0].mxu0
      %v2531 = vadd.f32 0.0, %v2530
      %v2532 = vpop.f32.mrb[0].mxu0
      %2533 = vmatprep.mubr.f32.mxu0 0.0
      %2534 = vmatmul.mubr.f32.gmra.mrb[0].mxu0 %v489
      %v2535 = vpop.f32.mrb[0].mxu0
      %v2536 = vadd.f32 0.0, %v2535
      %v2537 = vpop.f32.mrb[0].mxu0
      %2538 = vmatprep.mubr.f32.mxu0 0.0
      %2539 = vmatmul.mubr.f32.gmra.mrb[0].mxu0 %v490
      %v2540 = vpop.f32.mrb[0].mxu0
      %v2541 = vadd.f32 0.0, %v2540
      %v2542 = vpop.f32.mrb[0].mxu0
      %2543 = vmatprep.mubr.f32.mxu0 0.0
      %2544 = vmatmul.mubr.f32.gmra.mrb[0].mxu0 %v491
      %v2545 = vpop.f32.mrb[0].mxu0
      %v2546 = vadd.f32 0.0, %v2545
      %v2547 = vpop.f32.mrb[0].mxu0
      %2548 = vmatprep.mubr.f32.mxu0 0.0
      %2549 = vmatmul.mubr.f32.gmra.mrb[0].mxu0 %v492
      %v2550 = vpop.f32.mrb[0].mxu0
      %v2551 = vadd.f32 0.0, %v2550
      %v2552 = vpop.f32.mrb[0].mxu0
      %2553 = vmatprep.mubr.f32.mxu0 0.0
      %2554 = vmatmul.mubr.f32.gmra.mrb[0].mxu0 %v493
      %v2555 = vpop.f32.mrb[0].mxu0
      %v2556 = vadd.f32 0.0, %v2555
      %v2557 = vpop.f32.mrb[0].mxu0
      %2558 = vmatprep.mubr.f32.mxu0 0.0
      %2559 = vmatmul.mubr.f32.gmra.mrb[0].mxu0 %v494
      %v2560 = vpop.f32.mrb[0].mxu0
      %v2561 = vadd.f32 0.0, %v2560
      %v2562 = vpop.f32.mrb[0].mxu0
      %2563 = vmatprep.mubr.f32.mxu0 0.0
      %2564 = vmatmul.mubr.f32.gmra.mrb[0].mxu0 %v495
      %v2565 = vpop.f32.mrb[0].mxu0
      %v2566 = vadd.f32 0.0, %v2565
      %v2567 = vpop.f32.mrb[0].mxu0
      %2568 = vmatprep.mubr.f32.mxu0 0.0
      %2569 = vmatmul.mubr.f32.gmra.mrb[0].mxu0 %v496
      %v2570 = vpop.f32.mrb[0].mxu0
      %v2571 = vadd.f32 0.0, %v2570
      %v2572 = vpop.f32.mrb[0].mxu0
      %2573 = vmatprep.mubr.f32.mxu0 0.0
      %2574 = vmatmul.mubr.f32.gmra.mrb[0].mxu0 %v497
      %v2575 = vpop.f32.mrb[0].mxu0
      %v2576 = vadd.f32 0.0, %v2575
      %v2577 = vpop.f32.mrb[0].mxu0
      %2578 = vmatprep.mubr.f32.mxu0 0.0
      %2579 = vmatmul.mubr.f32.gmra.mrb[0].mxu0 %v498
      %v2580 = vpop.f32.mrb[0].mxu0
      %v2581 = vadd.f32 0.0, %v2580
      %v2582 = vpop.f32.mrb[0].mxu0
      %2583 = vmatprep.mubr.f32.mxu0 0.0
      %2584 = vmatmul.mubr.f32.gmra.mrb[0].mxu0 %v499
      %v2585 = vpop.f32.mrb[0].mxu0
      %v2586 = vadd.f32 0.0, %v2585
      %v2587 = vpop.f32.mrb[0].mxu0
      %2588 = vmatprep.mubr.f32.mxu0 0.0
      %2589 = vmatmul.mubr.f32.gmra.mrb[0].mxu0 %v500
      %v2590 = vpop.f32.mrb[0].mxu0
      %v2591 = vadd.f32 0.0, %v2590
      %v2592 = vpop.f32.mrb[0].mxu0
      %2593 = vmatprep.mubr.f32.mxu0 0.0
      %2594 = vmatmul.mubr.f32.gmra.mrb[0].mxu0 %v501
      %v2595 = vpop.f32.mrb[0].mxu0
      %v2596 = vadd.f32 0.0, %v2595
      %v2597 = vpop.f32.mrb[0].mxu0
      %2598 = vmatprep.mubr.f32.mxu0 0.0
      %2599 = vmatmul.mubr.f32.gmra.mrb[0].mxu0 %v502
      %v2600 = vpop.f32.mrb[0].mxu0
      %v2601 = vadd.f32 0.0, %v2600
      %v2602 = vpop.f32.mrb[0].mxu0
      %2603 = vmatprep.mubr.f32.mxu0 0.0
      %2604 = vmatmul.mubr.f32.gmra.mrb[0].mxu0 %v503
      %v2605 = vpop.f32.mrb[0].mxu0
      %v2606 = vadd.f32 0.0, %v2605
      %v2607 = vpop.f32.mrb[0].mxu0
      %2608 = vmatprep.mubr.f32.mxu0 0.0
      %2609 = vmatmul.mubr.f32.gmra.mrb[0].mxu0 %v504
      %v2610 = vpop.f32.mrb[0].mxu0
      %v2611 = vadd.f32 0.0, %v2610
      %v2612 = vpop.f32.mrb[0].mxu0
      %2613 = vmatprep.mubr.f32.mxu0 0.0
      %2614 = vmatmul.mubr.f32.gmra.mrb[0].mxu0 %v505
      %v2615 = vpop.f32.mrb[0].mxu0
      %v2616 = vadd.f32 0.0, %v2615
      %v2617 = vpop.f32.mrb[0].mxu0
      %2618 = vmatprep.mubr.f32.mxu0 0.0
      %2619 = vmatmul.mubr.f32.gmra.mrb[0].mxu0 %v506
      %v2620 = vpop.f32.mrb[0].mxu0
      %v2621 = vadd.f32 0.0, %v2620
      %v2622 = vpop.f32.mrb[0].mxu0
      %2623 = vmatprep.mubr.f32.mxu0 0.0
      %2624 = vmatmul.mubr.f32.gmra.mrb[0].mxu0 %v507
      %v2625 = vpop.f32.mrb[0].mxu0
      %v2626 = vadd.f32 0.0, %v2625
      %v2627 = vpop.f32.mrb[0].mxu0
      %2628 = vmatprep.mubr.f32.mxu0 0.0
      %2629 = vmatmul.mubr.f32.gmra.mrb[0].mxu0 %v508
      %v2630 = vpop.f32.mrb[0].mxu0
      %v2631 = vadd.f32 0.0, %v2630
      %v2632 = vpop.f32.mrb[0].mxu0
      %2633 = vmatprep.mubr.f32.mxu0 0.0
      %2634 = vmatmul.mubr.f32.gmra.mrb[0].mxu0 %v509
      %v2635 = vpop.f32.mrb[0].mxu0
      %v2636 = vadd.f32 0.0, %v2635
      %v2637 = vpop.f32.mrb[0].mxu0
      %2638 = vmatprep.mubr.f32.mxu0 0.0
      %2639 = vmatmul.mubr.f32.gmra.mrb[0].mxu0 %v510
      %v2640 = vpop.f32.mrb[0].mxu0
      %v2641 = vadd.f32 0.0, %v2640
      %v2642 = vpop.f32.mrb[0].mxu0
      %2643 = vmatprep.mubr.f32.mxu0 0.0
      %2644 = vmatmul.mubr.f32.gmra.mrb[0].mxu0 %v511
      %v2645 = vpop.f32.mrb[0].mxu0
      %v2646 = vadd.f32 0.0, %v2645
      %v2647 = vpop.f32.mrb[0].mxu0
      %2648 = vmatprep.mubr.f32.mxu0 0.0
      %2649 = vmatmul.mubr.f32.gmra.mrb[0].mxu0 %v512
      %v2650 = vpop.f32.mrb[0].mxu0
      %v2651 = vadd.f32 0.0, %v2650
      %v2652 = vpop.f32.mrb[0].mxu0
      %2653 = vmatprep.mubr.f32.mxu0 0.0
      %2654 = vmatmul.mubr.f32.gmra.mrb[0].mxu0 %v513
      %v2655 = vpop.f32.mrb[0].mxu0
      %v2656 = vadd.f32 0.0, %v2655
      %v2657 = vpop.f32.mrb[0].mxu0
      %2658 = vmatprep.mubr.f32.mxu0 0.0
      %2659 = vmatmul.mubr.f32.gmra.mrb[0].mxu0 %v514
      %v2660 = vpop.f32.mrb[0].mxu0
      %v2661 = vadd.f32 0.0, %v2660
      %v2662 = vpop.f32.mrb[0].mxu0
      %2663 = vmatprep.mubr.f32.mxu0 0.0
      %2664 = vmatmul.mubr.f32.gmra.mrb[0].mxu0 %v515
      %v2665 = vpop.f32.mrb[0].mxu0
      %v2666 = vadd.f32 0.0, %v2665
      %v2667 = vpop.f32.mrb[0].mxu0
      %2668 = vmatprep.mubr.f32.mxu0 0.0
      %2669 = vmatmul.mubr.f32.gmra.mrb[0].mxu0 %v516
      %v2670 = vpop.f32.mrb[0].mxu0
      %v2671 = vadd.f32 0.0, %v2670
      %v2672 = vpop.f32.mrb[0].mxu0
      %2673 = vdwg.mxu0
      %v2674 = vld [vmem:[#allocation2] sm:$0xff]
      %v2675 = vld [vmem:[#allocation2 + $0x8] sm:$0xff]
      %v2676 = vld [vmem:[#allocation2 + $0x10] sm:$0xff]
      %v2677 = vld [vmem:[#allocation2 + $0x18] sm:$0xff]
      %v2678 = vld [vmem:[#allocation2 + $0x20] sm:$0xff]
      %v2679 = vld [vmem:[#allocation2 + $0x28] sm:$0xff]
      %v2680 = vld [vmem:[#allocation2 + $0x30] sm:$0xff]
      %v2681 = vld [vmem:[#allocation2 + $0x38] sm:$0xff]
      %v2682 = vld [vmem:[#allocation2 + $0x40] sm:$0xff]
      %v2683 = vld [vmem:[#allocation2 + $0x48] sm:$0xff]
      %v2684 = vld [vmem:[#allocation2 + $0x50] sm:$0xff]
      %v2685 = vld [vmem:[#allocation2 + $0x58] sm:$0xff]
      %v2686 = vld [vmem:[#allocation2 + $0x60] sm:$0xff]
      %v2687 = vld [vmem:[#allocation2 + $0x68] sm:$0xff]
      %v2688 = vld [vmem:[#allocation2 + $0x70] sm:$0xff]
      %v2689 = vld [vmem:[#allocation2 + $0x78] sm:$0xff]
      %v2690 = vld [vmem:[#allocation2 + $0x80] sm:$0xff]
      %v2691 = vld [vmem:[#allocation2 + $0x88] sm:$0xff]
      %v2692 = vld [vmem:[#allocation2 + $0x90] sm:$0xff]
      %v2693 = vld [vmem:[#allocation2 + $0x98] sm:$0xff]
      %v2694 = vld [vmem:[#allocation2 + $0xa0] sm:$0xff]
      %v2695 = vld [vmem:[#allocation2 + $0xa8] sm:$0xff]
      %v2696 = vld [vmem:[#allocation2 + $0xb0] sm:$0xff]
      %v2697 = vld [vmem:[#allocation2 + $0xb8] sm:$0xff]
      %v2698 = vld [vmem:[#allocation2 + $0xc0] sm:$0xff]
      %v2699 = vld [vmem:[#allocation2 + $0xc8] sm:$0xff]
      %v2700 = vld [vmem:[#allocation2 + $0xd0] sm:$0xff]
      %v2701 = vld [vmem:[#allocation2 + $0xd8] sm:$0xff]
      %v2702 = vld [vmem:[#allocation2 + $0xe0] sm:$0xff]
      %v2703 = vld [vmem:[#allocation2 + $0xe8] sm:$0xff]
      %v2704 = vld [vmem:[#allocation2 + $0xf0] sm:$0xff]
      %v2705 = vld [vmem:[#allocation2 + $0xf8] sm:$0xff]
      %v2706 = vadd.f32 %v2674, %v2516
      %v2707 = vadd.f32 %v2675, %v2521
      %v2708 = vadd.f32 %v2676, %v2526
      %v2709 = vadd.f32 %v2677, %v2531
      %v2710 = vadd.f32 %v2678, %v2536
      %v2711 = vadd.f32 %v2679, %v2541
      %v2712 = vadd.f32 %v2680, %v2546
      %v2713 = vadd.f32 %v2681, %v2551
      %v2714 = vadd.f32 %v2682, %v2556
      %v2715 = vadd.f32 %v2683, %v2561
      %v2716 = vadd.f32 %v2684, %v2566
      %v2717 = vadd.f32 %v2685, %v2571
      %v2718 = vadd.f32 %v2686, %v2576
      %v2719 = vadd.f32 %v2687, %v2581
      %v2720 = vadd.f32 %v2688, %v2586
      %v2721 = vadd.f32 %v2689, %v2591
      %v2722 = vadd.f32 %v2690, %v2596
      %v2723 = vadd.f32 %v2691, %v2601
      %v2724 = vadd.f32 %v2692, %v2606
      %v2725 = vadd.f32 %v2693, %v2611
      %v2726 = vadd.f32 %v2694, %v2616
      %v2727 = vadd.f32 %v2695, %v2621
      %v2728 = vadd.f32 %v2696, %v2626
      %v2729 = vadd.f32 %v2697, %v2631
      %v2730 = vadd.f32 %v2698, %v2636
      %v2731 = vadd.f32 %v2699, %v2641
      %v2732 = vadd.f32 %v2700, %v2646
      %v2733 = vadd.f32 %v2701, %v2651
      %v2734 = vadd.f32 %v2702, %v2656
      %v2735 = vadd.f32 %v2703, %v2661
      %v2736 = vadd.f32 %v2704, %v2666
      %v2737 = vadd.f32 %v2705, %v2671
      %2738 = vst [vmem:[#allocation2] sm:$0xff] %v2706
      %2739 = vst [vmem:[#allocation2 + $0x8] sm:$0xff] %v2707
      %2740 = vst [vmem:[#allocation2 + $0x10] sm:$0xff] %v2708
      %2741 = vst [vmem:[#allocation2 + $0x18] sm:$0xff] %v2709
      %2742 = vst [vmem:[#allocation2 + $0x20] sm:$0xff] %v2710
      %2743 = vst [vmem:[#allocation2 + $0x28] sm:$0xff] %v2711
      %2744 = vst [vmem:[#allocation2 + $0x30] sm:$0xff] %v2712
      %2745 = vst [vmem:[#allocation2 + $0x38] sm:$0xff] %v2713
      %2746 = vst [vmem:[#allocation2 + $0x40] sm:$0xff] %v2714
      %2747 = vst [vmem:[#allocation2 + $0x48] sm:$0xff] %v2715
      %2748 = vst [vmem:[#allocation2 + $0x50] sm:$0xff] %v2716
      %2749 = vst [vmem:[#allocation2 + $0x58] sm:$0xff] %v2717
      %2750 = vst [vmem:[#allocation2 + $0x60] sm:$0xff] %v2718
      %2751 = vst [vmem:[#allocation2 + $0x68] sm:$0xff] %v2719
      %2752 = vst [vmem:[#allocation2 + $0x70] sm:$0xff] %v2720
      %2753 = vst [vmem:[#allocation2 + $0x78] sm:$0xff] %v2721
      %2754 = vst [vmem:[#allocation2 + $0x80] sm:$0xff] %v2722
      %2755 = vst [vmem:[#allocation2 + $0x88] sm:$0xff] %v2723
      %2756 = vst [vmem:[#allocation2 + $0x90] sm:$0xff] %v2724
      %2757 = vst [vmem:[#allocation2 + $0x98] sm:$0xff] %v2725
      %2758 = vst [vmem:[#allocation2 + $0xa0] sm:$0xff] %v2726
      %2759 = vst [vmem:[#allocation2 + $0xa8] sm:$0xff] %v2727
      %2760 = vst [vmem:[#allocation2 + $0xb0] sm:$0xff] %v2728
      %2761 = vst [vmem:[#allocation2 + $0xb8] sm:$0xff] %v2729
      %2762 = vst [vmem:[#allocation2 + $0xc0] sm:$0xff] %v2730
      %2763 = vst [vmem:[#allocation2 + $0xc8] sm:$0xff] %v2731
      %2764 = vst [vmem:[#allocation2 + $0xd0] sm:$0xff] %v2732
      %2765 = vst [vmem:[#allocation2 + $0xd8] sm:$0xff] %v2733
      %2766 = vst [vmem:[#allocation2 + $0xe0] sm:$0xff] %v2734
      %2767 = vst [vmem:[#allocation2 + $0xe8] sm:$0xff] %v2735
      %2768 = vst [vmem:[#allocation2 + $0xf0] sm:$0xff] %v2736
      %2769 = vst [vmem:[#allocation2 + $0xf8] sm:$0xff] %v2737
      %s2770 = scalar_lea.vmem %s3, 256
      %v2771 = vld [vmem:[%s2770] sm:$0xff]
      %v2772 = vld [vmem:[%s2770 + $0x8] sm:$0xff]
      %v2773 = vld [vmem:[%s2770 + $0x10] sm:$0xff]
      %v2774 = vld [vmem:[%s2770 + $0x18] sm:$0xff]
      %v2775 = vld [vmem:[%s2770 + $0x20] sm:$0xff]
      %v2776 = vld [vmem:[%s2770 + $0x28] sm:$0xff]
      %v2777 = vld [vmem:[%s2770 + $0x30] sm:$0xff]
      %v2778 = vld [vmem:[%s2770 + $0x38] sm:$0xff]
      %v2779 = vld [vmem:[%s2770 + $0x40] sm:$0xff]
      %v2780 = vld [vmem:[%s2770 + $0x48] sm:$0xff]
      %v2781 = vld [vmem:[%s2770 + $0x50] sm:$0xff]
      %v2782 = vld [vmem:[%s2770 + $0x58] sm:$0xff]
      %v2783 = vld [vmem:[%s2770 + $0x60] sm:$0xff]
      %v2784 = vld [vmem:[%s2770 + $0x68] sm:$0xff]
      %v2785 = vld [vmem:[%s2770 + $0x70] sm:$0xff]
      %v2786 = vld [vmem:[%s2770 + $0x78] sm:$0xff]
      %2787 = vmatprep.subr.mxu0 0.0
      %2788 = vmatpush1.msra.mxu0 %v2771
      %2789 = vmatprep.subr.mxu0 0.0
      %2790 = vmatpush1.msra.mxu0 %v2772
      %2791 = vmatprep.subr.mxu0 0.0
      %2792 = vmatpush1.msra.mxu0 %v2773
      %2793 = vmatprep.subr.mxu0 0.0
      %2794 = vmatpush1.msra.mxu0 %v2774
      %2795 = vmatprep.subr.mxu0 0.0
      %2796 = vmatpush1.msra.mxu0 %v2775
      %2797 = vmatprep.subr.mxu0 0.0
      %2798 = vmatpush1.msra.mxu0 %v2776
      %2799 = vmatprep.subr.mxu0 0.0
      %2800 = vmatpush1.msra.mxu0 %v2777
      %2801 = vmatprep.subr.mxu0 0.0
      %2802 = vmatpush1.msra.mxu0 %v2778
      %2803 = vmatprep.subr.mxu0 0.0
      %2804 = vmatpush1.msra.mxu0 %v2779
      %2805 = vmatprep.subr.mxu0 0.0
      %2806 = vmatpush1.msra.mxu0 %v2780
      %2807 = vmatprep.subr.mxu0 0.0
      %2808 = vmatpush1.msra.mxu0 %v2781
      %2809 = vmatprep.subr.mxu0 0.0
      %2810 = vmatpush1.msra.mxu0 %v2782
      %2811 = vmatprep.subr.mxu0 0.0
      %2812 = vmatpush1.msra.mxu0 %v2783
      %2813 = vmatprep.subr.mxu0 0.0
      %2814 = vmatpush1.msra.mxu0 %v2784
      %2815 = vmatprep.subr.mxu0 0.0
      %2816 = vmatpush1.msra.mxu0 %v2785
      %2817 = vmatprep.subr.mxu0 0.0
      %2818 = vmatpush1.msra.mxu0 %v2786
      %2819 = vmatprep.subr.mxu0 0.0
      %2820 = vmatpush1.msra.mxu0 0.0
      %2821 = vmatprep.subr.mxu0 0.0
      %2822 = vmatpush1.msra.mxu0 0.0
      %2823 = vmatprep.subr.mxu0 0.0
      %2824 = vmatpush1.msra.mxu0 0.0
      %2825 = vmatprep.subr.mxu0 0.0
      %2826 = vmatpush1.msra.mxu0 0.0
      %2827 = vmatprep.subr.mxu0 0.0
      %2828 = vmatpush1.msra.mxu0 0.0
      %2829 = vmatprep.subr.mxu0 0.0
      %2830 = vmatpush1.msra.mxu0 0.0
      %2831 = vmatprep.subr.mxu0 0.0
      %2832 = vmatpush1.msra.mxu0 0.0
      %2833 = vmatprep.subr.mxu0 0.0
      %2834 = vmatpush1.msra.mxu0 0.0
      %2835 = vmatprep.subr.mxu0 0.0
      %2836 = vmatpush1.msra.mxu0 0.0
      %2837 = vmatprep.subr.mxu0 0.0
      %2838 = vmatpush1.msra.mxu0 0.0
      %2839 = vmatprep.subr.mxu0 0.0
      %2840 = vmatpush1.msra.mxu0 0.0
      %2841 = vmatprep.subr.mxu0 0.0
      %2842 = vmatpush1.msra.mxu0 0.0
      %2843 = vmatprep.subr.mxu0 0.0
      %2844 = vmatpush1.msra.mxu0 0.0
      %2845 = vmatprep.subr.mxu0 0.0
      %2846 = vmatpush1.msra.mxu0 0.0
      %2847 = vmatprep.subr.mxu0 0.0
      %2848 = vmatpush1.msra.mxu0 0.0
      %2849 = vmatprep.subr.mxu0 0.0
      %2850 = vmatpush1.msra.mxu0 0.0
      %2851 = vmatprep.mubr.f32.mxu0 0.0
      %2852 = vmatmul.mubr.f32.gmra.mrb[0].mxu0 %v700
      %v2853 = vpop.f32.mrb[0].mxu0
      %v2854 = vadd.f32 0.0, %v2853
      %v2855 = vpop.f32.mrb[0].mxu0
      %2856 = vmatprep.mubr.f32.mxu0 0.0
      %2857 = vmatmul.mubr.f32.gmra.mrb[0].mxu0 %v789
      %v2858 = vpop.f32.mrb[0].mxu0
      %v2859 = vadd.f32 0.0, %v2858
      %v2860 = vpop.f32.mrb[0].mxu0
      %2861 = vmatprep.mubr.f32.mxu0 0.0
      %2862 = vmatmul.mubr.f32.gmra.mrb[0].mxu0 %v702
      %v2863 = vpop.f32.mrb[0].mxu0
      %v2864 = vadd.f32 0.0, %v2863
      %v2865 = vpop.f32.mrb[0].mxu0
      %2866 = vmatprep.mubr.f32.mxu0 0.0
      %2867 = vmatmul.mubr.f32.gmra.mrb[0].mxu0 %v790
      %v2868 = vpop.f32.mrb[0].mxu0
      %v2869 = vadd.f32 0.0, %v2868
      %v2870 = vpop.f32.mrb[0].mxu0
      %2871 = vmatprep.mubr.f32.mxu0 0.0
      %2872 = vmatmul.mubr.f32.gmra.mrb[0].mxu0 %v704
      %v2873 = vpop.f32.mrb[0].mxu0
      %v2874 = vadd.f32 0.0, %v2873
      %v2875 = vpop.f32.mrb[0].mxu0
      %2876 = vmatprep.mubr.f32.mxu0 0.0
      %2877 = vmatmul.mubr.f32.gmra.mrb[0].mxu0 %v791
      %v2878 = vpop.f32.mrb[0].mxu0
      %v2879 = vadd.f32 0.0, %v2878
      %v2880 = vpop.f32.mrb[0].mxu0
      %2881 = vmatprep.mubr.f32.mxu0 0.0
      %2882 = vmatmul.mubr.f32.gmra.mrb[0].mxu0 %v706
      %v2883 = vpop.f32.mrb[0].mxu0
      %v2884 = vadd.f32 0.0, %v2883
      %v2885 = vpop.f32.mrb[0].mxu0
      %2886 = vmatprep.mubr.f32.mxu0 0.0
      %2887 = vmatmul.mubr.f32.gmra.mrb[0].mxu0 %v792
      %v2888 = vpop.f32.mrb[0].mxu0
      %v2889 = vadd.f32 0.0, %v2888
      %v2890 = vpop.f32.mrb[0].mxu0
      %2891 = vmatprep.mubr.f32.mxu0 0.0
      %2892 = vmatmul.mubr.f32.gmra.mrb[0].mxu0 %v708
      %v2893 = vpop.f32.mrb[0].mxu0
      %v2894 = vadd.f32 0.0, %v2893
      %v2895 = vpop.f32.mrb[0].mxu0
      %2896 = vmatprep.mubr.f32.mxu0 0.0
      %2897 = vmatmul.mubr.f32.gmra.mrb[0].mxu0 %v793
      %v2898 = vpop.f32.mrb[0].mxu0
      %v2899 = vadd.f32 0.0, %v2898
      %v2900 = vpop.f32.mrb[0].mxu0
      %2901 = vmatprep.mubr.f32.mxu0 0.0
      %2902 = vmatmul.mubr.f32.gmra.mrb[0].mxu0 %v710
      %v2903 = vpop.f32.mrb[0].mxu0
      %v2904 = vadd.f32 0.0, %v2903
      %v2905 = vpop.f32.mrb[0].mxu0
      %2906 = vmatprep.mubr.f32.mxu0 0.0
      %2907 = vmatmul.mubr.f32.gmra.mrb[0].mxu0 %v794
      %v2908 = vpop.f32.mrb[0].mxu0
      %v2909 = vadd.f32 0.0, %v2908
      %v2910 = vpop.f32.mrb[0].mxu0
      %2911 = vmatprep.mubr.f32.mxu0 0.0
      %2912 = vmatmul.mubr.f32.gmra.mrb[0].mxu0 %v712
      %v2913 = vpop.f32.mrb[0].mxu0
      %v2914 = vadd.f32 0.0, %v2913
      %v2915 = vpop.f32.mrb[0].mxu0
      %2916 = vmatprep.mubr.f32.mxu0 0.0
      %2917 = vmatmul.mubr.f32.gmra.mrb[0].mxu0 %v795
      %v2918 = vpop.f32.mrb[0].mxu0
      %v2919 = vadd.f32 0.0, %v2918
      %v2920 = vpop.f32.mrb[0].mxu0
      %2921 = vmatprep.mubr.f32.mxu0 0.0
      %2922 = vmatmul.mubr.f32.gmra.mrb[0].mxu0 %v714
      %v2923 = vpop.f32.mrb[0].mxu0
      %v2924 = vadd.f32 0.0, %v2923
      %v2925 = vpop.f32.mrb[0].mxu0
      %2926 = vmatprep.mubr.f32.mxu0 0.0
      %2927 = vmatmul.mubr.f32.gmra.mrb[0].mxu0 %v796
      %v2928 = vpop.f32.mrb[0].mxu0
      %v2929 = vadd.f32 0.0, %v2928
      %v2930 = vpop.f32.mrb[0].mxu0
      %2931 = vmatprep.mubr.f32.mxu0 0.0
      %2932 = vmatmul.mubr.f32.gmra.mrb[0].mxu0 %v716
      %v2933 = vpop.f32.mrb[0].mxu0
      %v2934 = vadd.f32 0.0, %v2933
      %v2935 = vpop.f32.mrb[0].mxu0
      %2936 = vmatprep.mubr.f32.mxu0 0.0
      %2937 = vmatmul.mubr.f32.gmra.mrb[0].mxu0 %v797
      %v2938 = vpop.f32.mrb[0].mxu0
      %v2939 = vadd.f32 0.0, %v2938
      %v2940 = vpop.f32.mrb[0].mxu0
      %2941 = vmatprep.mubr.f32.mxu0 0.0
      %2942 = vmatmul.mubr.f32.gmra.mrb[0].mxu0 %v718
      %v2943 = vpop.f32.mrb[0].mxu0
      %v2944 = vadd.f32 0.0, %v2943
      %v2945 = vpop.f32.mrb[0].mxu0
      %2946 = vmatprep.mubr.f32.mxu0 0.0
      %2947 = vmatmul.mubr.f32.gmra.mrb[0].mxu0 %v798
      %v2948 = vpop.f32.mrb[0].mxu0
      %v2949 = vadd.f32 0.0, %v2948
      %v2950 = vpop.f32.mrb[0].mxu0
      %2951 = vmatprep.mubr.f32.mxu0 0.0
      %2952 = vmatmul.mubr.f32.gmra.mrb[0].mxu0 %v720
      %v2953 = vpop.f32.mrb[0].mxu0
      %v2954 = vadd.f32 0.0, %v2953
      %v2955 = vpop.f32.mrb[0].mxu0
      %2956 = vmatprep.mubr.f32.mxu0 0.0
      %2957 = vmatmul.mubr.f32.gmra.mrb[0].mxu0 %v799
      %v2958 = vpop.f32.mrb[0].mxu0
      %v2959 = vadd.f32 0.0, %v2958
      %v2960 = vpop.f32.mrb[0].mxu0
      %2961 = vmatprep.mubr.f32.mxu0 0.0
      %2962 = vmatmul.mubr.f32.gmra.mrb[0].mxu0 %v722
      %v2963 = vpop.f32.mrb[0].mxu0
      %v2964 = vadd.f32 0.0, %v2963
      %v2965 = vpop.f32.mrb[0].mxu0
      %2966 = vmatprep.mubr.f32.mxu0 0.0
      %2967 = vmatmul.mubr.f32.gmra.mrb[0].mxu0 %v800
      %v2968 = vpop.f32.mrb[0].mxu0
      %v2969 = vadd.f32 0.0, %v2968
      %v2970 = vpop.f32.mrb[0].mxu0
      %2971 = vmatprep.mubr.f32.mxu0 0.0
      %2972 = vmatmul.mubr.f32.gmra.mrb[0].mxu0 %v724
      %v2973 = vpop.f32.mrb[0].mxu0
      %v2974 = vadd.f32 0.0, %v2973
      %v2975 = vpop.f32.mrb[0].mxu0
      %2976 = vmatprep.mubr.f32.mxu0 0.0
      %2977 = vmatmul.mubr.f32.gmra.mrb[0].mxu0 %v801
      %v2978 = vpop.f32.mrb[0].mxu0
      %v2979 = vadd.f32 0.0, %v2978
      %v2980 = vpop.f32.mrb[0].mxu0
      %2981 = vmatprep.mubr.f32.mxu0 0.0
      %2982 = vmatmul.mubr.f32.gmra.mrb[0].mxu0 %v726
      %v2983 = vpop.f32.mrb[0].mxu0
      %v2984 = vadd.f32 0.0, %v2983
      %v2985 = vpop.f32.mrb[0].mxu0
      %2986 = vmatprep.mubr.f32.mxu0 0.0
      %2987 = vmatmul.mubr.f32.gmra.mrb[0].mxu0 %v802
      %v2988 = vpop.f32.mrb[0].mxu0
      %v2989 = vadd.f32 0.0, %v2988
      %v2990 = vpop.f32.mrb[0].mxu0
      %2991 = vmatprep.mubr.f32.mxu0 0.0
      %2992 = vmatmul.mubr.f32.gmra.mrb[0].mxu0 %v728
      %v2993 = vpop.f32.mrb[0].mxu0
      %v2994 = vadd.f32 0.0, %v2993
      %v2995 = vpop.f32.mrb[0].mxu0
      %2996 = vmatprep.mubr.f32.mxu0 0.0
      %2997 = vmatmul.mubr.f32.gmra.mrb[0].mxu0 %v803
      %v2998 = vpop.f32.mrb[0].mxu0
      %v2999 = vadd.f32 0.0, %v2998
      %v3000 = vpop.f32.mrb[0].mxu0
      %3001 = vmatprep.mubr.f32.mxu0 0.0
      %3002 = vmatmul.mubr.f32.gmra.mrb[0].mxu0 %v730
      %v3003 = vpop.f32.mrb[0].mxu0
      %v3004 = vadd.f32 0.0, %v3003
      %v3005 = vpop.f32.mrb[0].mxu0
      %3006 = vmatprep.mubr.f32.mxu0 0.0
      %3007 = vmatmul.mubr.f32.gmra.mrb[0].mxu0 %v804
      %v3008 = vpop.f32.mrb[0].mxu0
      %v3009 = vadd.f32 0.0, %v3008
      %v3010 = vpop.f32.mrb[0].mxu0
      %3011 = vdwg.mxu0
      %v3012 = vld [vmem:[#allocation2] sm:$0xff]
      %v3013 = vld [vmem:[#allocation2 + $0x8] sm:$0xff]
      %v3014 = vld [vmem:[#allocation2 + $0x10] sm:$0xff]
      %v3015 = vld [vmem:[#allocation2 + $0x18] sm:$0xff]
      %v3016 = vld [vmem:[#allocation2 + $0x20] sm:$0xff]
      %v3017 = vld [vmem:[#allocation2 + $0x28] sm:$0xff]
      %v3018 = vld [vmem:[#allocation2 + $0x30] sm:$0xff]
      %v3019 = vld [vmem:[#allocation2 + $0x38] sm:$0xff]
      %v3020 = vld [vmem:[#allocation2 + $0x40] sm:$0xff]
      %v3021 = vld [vmem:[#allocation2 + $0x48] sm:$0xff]
      %v3022 = vld [vmem:[#allocation2 + $0x50] sm:$0xff]
      %v3023 = vld [vmem:[#allocation2 + $0x58] sm:$0xff]
      %v3024 = vld [vmem:[#allocation2 + $0x60] sm:$0xff]
      %v3025 = vld [vmem:[#allocation2 + $0x68] sm:$0xff]
      %v3026 = vld [vmem:[#allocation2 + $0x70] sm:$0xff]
      %v3027 = vld [vmem:[#allocation2 + $0x78] sm:$0xff]
      %v3028 = vld [vmem:[#allocation2 + $0x80] sm:$0xff]
      %v3029 = vld [vmem:[#allocation2 + $0x88] sm:$0xff]
      %v3030 = vld [vmem:[#allocation2 + $0x90] sm:$0xff]
      %v3031 = vld [vmem:[#allocation2 + $0x98] sm:$0xff]
      %v3032 = vld [vmem:[#allocation2 + $0xa0] sm:$0xff]
      %v3033 = vld [vmem:[#allocation2 + $0xa8] sm:$0xff]
      %v3034 = vld [vmem:[#allocation2 + $0xb0] sm:$0xff]
      %v3035 = vld [vmem:[#allocation2 + $0xb8] sm:$0xff]
      %v3036 = vld [vmem:[#allocation2 + $0xc0] sm:$0xff]
      %v3037 = vld [vmem:[#allocation2 + $0xc8] sm:$0xff]
      %v3038 = vld [vmem:[#allocation2 + $0xd0] sm:$0xff]
      %v3039 = vld [vmem:[#allocation2 + $0xd8] sm:$0xff]
      %v3040 = vld [vmem:[#allocation2 + $0xe0] sm:$0xff]
      %v3041 = vld [vmem:[#allocation2 + $0xe8] sm:$0xff]
      %v3042 = vld [vmem:[#allocation2 + $0xf0] sm:$0xff]
      %v3043 = vld [vmem:[#allocation2 + $0xf8] sm:$0xff]
      %v3044 = vadd.f32 %v3012, %v2854
      %v3045 = vadd.f32 %v3013, %v2859
      %v3046 = vadd.f32 %v3014, %v2864
      %v3047 = vadd.f32 %v3015, %v2869
      %v3048 = vadd.f32 %v3016, %v2874
      %v3049 = vadd.f32 %v3017, %v2879
      %v3050 = vadd.f32 %v3018, %v2884
      %v3051 = vadd.f32 %v3019, %v2889
      %v3052 = vadd.f32 %v3020, %v2894
      %v3053 = vadd.f32 %v3021, %v2899
      %v3054 = vadd.f32 %v3022, %v2904
      %v3055 = vadd.f32 %v3023, %v2909
      %v3056 = vadd.f32 %v3024, %v2914
      %v3057 = vadd.f32 %v3025, %v2919
      %v3058 = vadd.f32 %v3026, %v2924
      %v3059 = vadd.f32 %v3027, %v2929
      %v3060 = vadd.f32 %v3028, %v2934
      %v3061 = vadd.f32 %v3029, %v2939
      %v3062 = vadd.f32 %v3030, %v2944
      %v3063 = vadd.f32 %v3031, %v2949
      %v3064 = vadd.f32 %v3032, %v2954
      %v3065 = vadd.f32 %v3033, %v2959
      %v3066 = vadd.f32 %v3034, %v2964
      %v3067 = vadd.f32 %v3035, %v2969
      %v3068 = vadd.f32 %v3036, %v2974
      %v3069 = vadd.f32 %v3037, %v2979
      %v3070 = vadd.f32 %v3038, %v2984
      %v3071 = vadd.f32 %v3039, %v2989
      %v3072 = vadd.f32 %v3040, %v2994
      %v3073 = vadd.f32 %v3041, %v2999
      %v3074 = vadd.f32 %v3042, %v3004
      %v3075 = vadd.f32 %v3043, %v3009
      %3076 = vst [vmem:[#allocation2] sm:$0xff] %v3044
      %3077 = vst [vmem:[#allocation2 + $0x8] sm:$0xff] %v3045
      %3078 = vst [vmem:[#allocation2 + $0x10] sm:$0xff] %v3046
      %3079 = vst [vmem:[#allocation2 + $0x18] sm:$0xff] %v3047
      %3080 = vst [vmem:[#allocation2 + $0x20] sm:$0xff] %v3048
      %3081 = vst [vmem:[#allocation2 + $0x28] sm:$0xff] %v3049
      %3082 = vst [vmem:[#allocation2 + $0x30] sm:$0xff] %v3050
      %3083 = vst [vmem:[#allocation2 + $0x38] sm:$0xff] %v3051
      %3084 = vst [vmem:[#allocation2 + $0x40] sm:$0xff] %v3052
      %3085 = vst [vmem:[#allocation2 + $0x48] sm:$0xff] %v3053
      %3086 = vst [vmem:[#allocation2 + $0x50] sm:$0xff] %v3054
      %3087 = vst [vmem:[#allocation2 + $0x58] sm:$0xff] %v3055
      %3088 = vst [vmem:[#allocation2 + $0x60] sm:$0xff] %v3056
      %3089 = vst [vmem:[#allocation2 + $0x68] sm:$0xff] %v3057
      %3090 = vst [vmem:[#allocation2 + $0x70] sm:$0xff] %v3058
      %3091 = vst [vmem:[#allocation2 + $0x78] sm:$0xff] %v3059
      %3092 = vst [vmem:[#allocation2 + $0x80] sm:$0xff] %v3060
      %3093 = vst [vmem:[#allocation2 + $0x88] sm:$0xff] %v3061
      %3094 = vst [vmem:[#allocation2 + $0x90] sm:$0xff] %v3062
      %3095 = vst [vmem:[#allocation2 + $0x98] sm:$0xff] %v3063
      %3096 = vst [vmem:[#allocation2 + $0xa0] sm:$0xff] %v3064
      %3097 = vst [vmem:[#allocation2 + $0xa8] sm:$0xff] %v3065
      %3098 = vst [vmem:[#allocation2 + $0xb0] sm:$0xff] %v3066
      %3099 = vst [vmem:[#allocation2 + $0xb8] sm:$0xff] %v3067
      %3100 = vst [vmem:[#allocation2 + $0xc0] sm:$0xff] %v3068
      %3101 = vst [vmem:[#allocation2 + $0xc8] sm:$0xff] %v3069
      %3102 = vst [vmem:[#allocation2 + $0xd0] sm:$0xff] %v3070
      %3103 = vst [vmem:[#allocation2 + $0xd8] sm:$0xff] %v3071
      %3104 = vst [vmem:[#allocation2 + $0xe0] sm:$0xff] %v3072
      %3105 = vst [vmem:[#allocation2 + $0xe8] sm:$0xff] %v3073
      %3106 = vst [vmem:[#allocation2 + $0xf0] sm:$0xff] %v3074
      %3107 = vst [vmem:[#allocation2 + $0xf8] sm:$0xff] %v3075
      %s3108 = scalar_lea.vmem %s3, 640
      %v3109 = vld [vmem:[%s3108] sm:$0xff]
      %v3110 = vld [vmem:[%s3108 + $0x8] sm:$0xff]
      %v3111 = vld [vmem:[%s3108 + $0x10] sm:$0xff]
      %v3112 = vld [vmem:[%s3108 + $0x18] sm:$0xff]
      %v3113 = vld [vmem:[%s3108 + $0x20] sm:$0xff]
      %v3114 = vld [vmem:[%s3108 + $0x28] sm:$0xff]
      %v3115 = vld [vmem:[%s3108 + $0x30] sm:$0xff]
      %v3116 = vld [vmem:[%s3108 + $0x38] sm:$0xff]
      %v3117 = vld [vmem:[%s3108 + $0x40] sm:$0xff]
      %v3118 = vld [vmem:[%s3108 + $0x48] sm:$0xff]
      %v3119 = vld [vmem:[%s3108 + $0x50] sm:$0xff]
      %v3120 = vld [vmem:[%s3108 + $0x58] sm:$0xff]
      %v3121 = vld [vmem:[%s3108 + $0x60] sm:$0xff]
      %v3122 = vld [vmem:[%s3108 + $0x68] sm:$0xff]
      %v3123 = vld [vmem:[%s3108 + $0x70] sm:$0xff]
      %v3124 = vld [vmem:[%s3108 + $0x78] sm:$0xff]
      %3125 = vmatprep.subr.mxu0 0.0
      %3126 = vmatpush1.msra.mxu0 %v3109
      %3127 = vmatprep.subr.mxu0 0.0
      %3128 = vmatpush1.msra.mxu0 %v3110
      %3129 = vmatprep.subr.mxu0 0.0
      %3130 = vmatpush1.msra.mxu0 %v3111
      %3131 = vmatprep.subr.mxu0 0.0
      %3132 = vmatpush1.msra.mxu0 %v3112
      %3133 = vmatprep.subr.mxu0 0.0
      %3134 = vmatpush1.msra.mxu0 %v3113
      %3135 = vmatprep.subr.mxu0 0.0
      %3136 = vmatpush1.msra.mxu0 %v3114
      %3137 = vmatprep.subr.mxu0 0.0
      %3138 = vmatpush1.msra.mxu0 %v3115
      %3139 = vmatprep.subr.mxu0 0.0
      %3140 = vmatpush1.msra.mxu0 %v3116
      %3141 = vmatprep.subr.mxu0 0.0
      %3142 = vmatpush1.msra.mxu0 %v3117
      %3143 = vmatprep.subr.mxu0 0.0
      %3144 = vmatpush1.msra.mxu0 %v3118
      %3145 = vmatprep.subr.mxu0 0.0
      %3146 = vmatpush1.msra.mxu0 %v3119
      %3147 = vmatprep.subr.mxu0 0.0
      %3148 = vmatpush1.msra.mxu0 %v3120
      %3149 = vmatprep.subr.mxu0 0.0
      %3150 = vmatpush1.msra.mxu0 %v3121
      %3151 = vmatprep.subr.mxu0 0.0
      %3152 = vmatpush1.msra.mxu0 %v3122
      %3153 = vmatprep.subr.mxu0 0.0
      %3154 = vmatpush1.msra.mxu0 %v3123
      %3155 = vmatprep.subr.mxu0 0.0
      %3156 = vmatpush1.msra.mxu0 %v3124
      %3157 = vmatprep.subr.mxu0 0.0
      %3158 = vmatpush1.msra.mxu0 0.0
      %3159 = vmatprep.subr.mxu0 0.0
      %3160 = vmatpush1.msra.mxu0 0.0
      %3161 = vmatprep.subr.mxu0 0.0
      %3162 = vmatpush1.msra.mxu0 0.0
      %3163 = vmatprep.subr.mxu0 0.0
      %3164 = vmatpush1.msra.mxu0 0.0
      %3165 = vmatprep.subr.mxu0 0.0
      %3166 = vmatpush1.msra.mxu0 0.0
      %3167 = vmatprep.subr.mxu0 0.0
      %3168 = vmatpush1.msra.mxu0 0.0
      %3169 = vmatprep.subr.mxu0 0.0
      %3170 = vmatpush1.msra.mxu0 0.0
      %3171 = vmatprep.subr.mxu0 0.0
      %3172 = vmatpush1.msra.mxu0 0.0
      %3173 = vmatprep.subr.mxu0 0.0
      %3174 = vmatpush1.msra.mxu0 0.0
      %3175 = vmatprep.subr.mxu0 0.0
      %3176 = vmatpush1.msra.mxu0 0.0
      %3177 = vmatprep.subr.mxu0 0.0
      %3178 = vmatpush1.msra.mxu0 0.0
      %3179 = vmatprep.subr.mxu0 0.0
      %3180 = vmatpush1.msra.mxu0 0.0
      %3181 = vmatprep.subr.mxu0 0.0
      %3182 = vmatpush1.msra.mxu0 0.0
      %3183 = vmatprep.subr.mxu0 0.0
      %3184 = vmatpush1.msra.mxu0 0.0
      %3185 = vmatprep.subr.mxu0 0.0
      %3186 = vmatpush1.msra.mxu0 0.0
      %3187 = vmatprep.subr.mxu0 0.0
      %3188 = vmatpush1.msra.mxu0 0.0
      %3189 = vmatprep.mubr.f32.mxu0 0.0
      %3190 = vmatmul.mubr.f32.gmra.mrb[0].mxu0 %v702
      %v3191 = vpop.f32.mrb[0].mxu0
      %v3192 = vadd.f32 0.0, %v3191
      %v3193 = vpop.f32.mrb[0].mxu0
      %3194 = vmatprep.mubr.f32.mxu0 0.0
      %3195 = vmatmul.mubr.f32.gmra.mrb[0].mxu0 %v790
      %v3196 = vpop.f32.mrb[0].mxu0
      %v3197 = vadd.f32 0.0, %v3196
      %v3198 = vpop.f32.mrb[0].mxu0
      %3199 = vmatprep.mubr.f32.mxu0 0.0
      %3200 = vmatmul.mubr.f32.gmra.mrb[0].mxu0 %v704
      %v3201 = vpop.f32.mrb[0].mxu0
      %v3202 = vadd.f32 0.0, %v3201
      %v3203 = vpop.f32.mrb[0].mxu0
      %3204 = vmatprep.mubr.f32.mxu0 0.0
      %3205 = vmatmul.mubr.f32.gmra.mrb[0].mxu0 %v791
      %v3206 = vpop.f32.mrb[0].mxu0
      %v3207 = vadd.f32 0.0, %v3206
      %v3208 = vpop.f32.mrb[0].mxu0
      %3209 = vmatprep.mubr.f32.mxu0 0.0
      %3210 = vmatmul.mubr.f32.gmra.mrb[0].mxu0 %v706
      %v3211 = vpop.f32.mrb[0].mxu0
      %v3212 = vadd.f32 0.0, %v3211
      %v3213 = vpop.f32.mrb[0].mxu0
      %3214 = vmatprep.mubr.f32.mxu0 0.0
      %3215 = vmatmul.mubr.f32.gmra.mrb[0].mxu0 %v792
      %v3216 = vpop.f32.mrb[0].mxu0
      %v3217 = vadd.f32 0.0, %v3216
      %v3218 = vpop.f32.mrb[0].mxu0
      %3219 = vmatprep.mubr.f32.mxu0 0.0
      %3220 = vmatmul.mubr.f32.gmra.mrb[0].mxu0 %v708
      %v3221 = vpop.f32.mrb[0].mxu0
      %v3222 = vadd.f32 0.0, %v3221
      %v3223 = vpop.f32.mrb[0].mxu0
      %3224 = vmatprep.mubr.f32.mxu0 0.0
      %3225 = vmatmul.mubr.f32.gmra.mrb[0].mxu0 %v793
      %v3226 = vpop.f32.mrb[0].mxu0
      %v3227 = vadd.f32 0.0, %v3226
      %v3228 = vpop.f32.mrb[0].mxu0
      %3229 = vmatprep.mubr.f32.mxu0 0.0
      %3230 = vmatmul.mubr.f32.gmra.mrb[0].mxu0 %v710
      %v3231 = vpop.f32.mrb[0].mxu0
      %v3232 = vadd.f32 0.0, %v3231
      %v3233 = vpop.f32.mrb[0].mxu0
      %3234 = vmatprep.mubr.f32.mxu0 0.0
      %3235 = vmatmul.mubr.f32.gmra.mrb[0].mxu0 %v794
      %v3236 = vpop.f32.mrb[0].mxu0
      %v3237 = vadd.f32 0.0, %v3236
      %v3238 = vpop.f32.mrb[0].mxu0
      %3239 = vmatprep.mubr.f32.mxu0 0.0
      %3240 = vmatmul.mubr.f32.gmra.mrb[0].mxu0 %v712
      %v3241 = vpop.f32.mrb[0].mxu0
      %v3242 = vadd.f32 0.0, %v3241
      %v3243 = vpop.f32.mrb[0].mxu0
      %3244 = vmatprep.mubr.f32.mxu0 0.0
      %3245 = vmatmul.mubr.f32.gmra.mrb[0].mxu0 %v795
      %v3246 = vpop.f32.mrb[0].mxu0
      %v3247 = vadd.f32 0.0, %v3246
      %v3248 = vpop.f32.mrb[0].mxu0
      %3249 = vmatprep.mubr.f32.mxu0 0.0
      %3250 = vmatmul.mubr.f32.gmra.mrb[0].mxu0 %v714
      %v3251 = vpop.f32.mrb[0].mxu0
      %v3252 = vadd.f32 0.0, %v3251
      %v3253 = vpop.f32.mrb[0].mxu0
      %3254 = vmatprep.mubr.f32.mxu0 0.0
      %3255 = vmatmul.mubr.f32.gmra.mrb[0].mxu0 %v796
      %v3256 = vpop.f32.mrb[0].mxu0
      %v3257 = vadd.f32 0.0, %v3256
      %v3258 = vpop.f32.mrb[0].mxu0
      %3259 = vmatprep.mubr.f32.mxu0 0.0
      %3260 = vmatmul.mubr.f32.gmra.mrb[0].mxu0 %v716
      %v3261 = vpop.f32.mrb[0].mxu0
      %v3262 = vadd.f32 0.0, %v3261
      %v3263 = vpop.f32.mrb[0].mxu0
      %3264 = vmatprep.mubr.f32.mxu0 0.0
      %3265 = vmatmul.mubr.f32.gmra.mrb[0].mxu0 %v797
      %v3266 = vpop.f32.mrb[0].mxu0
      %v3267 = vadd.f32 0.0, %v3266
      %v3268 = vpop.f32.mrb[0].mxu0
      %3269 = vmatprep.mubr.f32.mxu0 0.0
      %3270 = vmatmul.mubr.f32.gmra.mrb[0].mxu0 %v718
      %v3271 = vpop.f32.mrb[0].mxu0
      %v3272 = vadd.f32 0.0, %v3271
      %v3273 = vpop.f32.mrb[0].mxu0
      %3274 = vmatprep.mubr.f32.mxu0 0.0
      %3275 = vmatmul.mubr.f32.gmra.mrb[0].mxu0 %v798
      %v3276 = vpop.f32.mrb[0].mxu0
      %v3277 = vadd.f32 0.0, %v3276
      %v3278 = vpop.f32.mrb[0].mxu0
      %3279 = vmatprep.mubr.f32.mxu0 0.0
      %3280 = vmatmul.mubr.f32.gmra.mrb[0].mxu0 %v720
      %v3281 = vpop.f32.mrb[0].mxu0
      %v3282 = vadd.f32 0.0, %v3281
      %v3283 = vpop.f32.mrb[0].mxu0
      %3284 = vmatprep.mubr.f32.mxu0 0.0
      %3285 = vmatmul.mubr.f32.gmra.mrb[0].mxu0 %v799
      %v3286 = vpop.f32.mrb[0].mxu0
      %v3287 = vadd.f32 0.0, %v3286
      %v3288 = vpop.f32.mrb[0].mxu0
      %3289 = vmatprep.mubr.f32.mxu0 0.0
      %3290 = vmatmul.mubr.f32.gmra.mrb[0].mxu0 %v722
      %v3291 = vpop.f32.mrb[0].mxu0
      %v3292 = vadd.f32 0.0, %v3291
      %v3293 = vpop.f32.mrb[0].mxu0
      %3294 = vmatprep.mubr.f32.mxu0 0.0
      %3295 = vmatmul.mubr.f32.gmra.mrb[0].mxu0 %v800
      %v3296 = vpop.f32.mrb[0].mxu0
      %v3297 = vadd.f32 0.0, %v3296
      %v3298 = vpop.f32.mrb[0].mxu0
      %3299 = vmatprep.mubr.f32.mxu0 0.0
      %3300 = vmatmul.mubr.f32.gmra.mrb[0].mxu0 %v724
      %v3301 = vpop.f32.mrb[0].mxu0
      %v3302 = vadd.f32 0.0, %v3301
      %v3303 = vpop.f32.mrb[0].mxu0
      %3304 = vmatprep.mubr.f32.mxu0 0.0
      %3305 = vmatmul.mubr.f32.gmra.mrb[0].mxu0 %v801
      %v3306 = vpop.f32.mrb[0].mxu0
      %v3307 = vadd.f32 0.0, %v3306
      %v3308 = vpop.f32.mrb[0].mxu0
      %3309 = vmatprep.mubr.f32.mxu0 0.0
      %3310 = vmatmul.mubr.f32.gmra.mrb[0].mxu0 %v726
      %v3311 = vpop.f32.mrb[0].mxu0
      %v3312 = vadd.f32 0.0, %v3311
      %v3313 = vpop.f32.mrb[0].mxu0
      %3314 = vmatprep.mubr.f32.mxu0 0.0
      %3315 = vmatmul.mubr.f32.gmra.mrb[0].mxu0 %v802
      %v3316 = vpop.f32.mrb[0].mxu0
      %v3317 = vadd.f32 0.0, %v3316
      %v3318 = vpop.f32.mrb[0].mxu0
      %3319 = vmatprep.mubr.f32.mxu0 0.0
      %3320 = vmatmul.mubr.f32.gmra.mrb[0].mxu0 %v728
      %v3321 = vpop.f32.mrb[0].mxu0
      %v3322 = vadd.f32 0.0, %v3321
      %v3323 = vpop.f32.mrb[0].mxu0
      %3324 = vmatprep.mubr.f32.mxu0 0.0
      %3325 = vmatmul.mubr.f32.gmra.mrb[0].mxu0 %v803
      %v3326 = vpop.f32.mrb[0].mxu0
      %v3327 = vadd.f32 0.0, %v3326
      %v3328 = vpop.f32.mrb[0].mxu0
      %3329 = vmatprep.mubr.f32.mxu0 0.0
      %3330 = vmatmul.mubr.f32.gmra.mrb[0].mxu0 %v730
      %v3331 = vpop.f32.mrb[0].mxu0
      %v3332 = vadd.f32 0.0, %v3331
      %v3333 = vpop.f32.mrb[0].mxu0
      %3334 = vmatprep.mubr.f32.mxu0 0.0
      %3335 = vmatmul.mubr.f32.gmra.mrb[0].mxu0 %v804
      %v3336 = vpop.f32.mrb[0].mxu0
      %v3337 = vadd.f32 0.0, %v3336
      %v3338 = vpop.f32.mrb[0].mxu0
      %3339 = vmatprep.mubr.f32.mxu0 0.0
      %3340 = vmatmul.mubr.f32.gmra.mrb[0].mxu0 %v732
      %v3341 = vpop.f32.mrb[0].mxu0
      %v3342 = vadd.f32 0.0, %v3341
      %v3343 = vpop.f32.mrb[0].mxu0
      %3344 = vmatprep.mubr.f32.mxu0 0.0
      %3345 = vmatmul.mubr.f32.gmra.mrb[0].mxu0 %v805
      %v3346 = vpop.f32.mrb[0].mxu0
      %v3347 = vadd.f32 0.0, %v3346
      %v3348 = vpop.f32.mrb[0].mxu0
      %3349 = vdwg.mxu0
      %v3350 = vld [vmem:[#allocation2] sm:$0xff]
      %v3351 = vld [vmem:[#allocation2 + $0x8] sm:$0xff]
      %v3352 = vld [vmem:[#allocation2 + $0x10] sm:$0xff]
      %v3353 = vld [vmem:[#allocation2 + $0x18] sm:$0xff]
      %v3354 = vld [vmem:[#allocation2 + $0x20] sm:$0xff]
      %v3355 = vld [vmem:[#allocation2 + $0x28] sm:$0xff]
      %v3356 = vld [vmem:[#allocation2 + $0x30] sm:$0xff]
      %v3357 = vld [vmem:[#allocation2 + $0x38] sm:$0xff]
      %v3358 = vld [vmem:[#allocation2 + $0x40] sm:$0xff]
      %v3359 = vld [vmem:[#allocation2 + $0x48] sm:$0xff]
      %v3360 = vld [vmem:[#allocation2 + $0x50] sm:$0xff]
      %v3361 = vld [vmem:[#allocation2 + $0x58] sm:$0xff]
      %v3362 = vld [vmem:[#allocation2 + $0x60] sm:$0xff]
      %v3363 = vld [vmem:[#allocation2 + $0x68] sm:$0xff]
      %v3364 = vld [vmem:[#allocation2 + $0x70] sm:$0xff]
      %v3365 = vld [vmem:[#allocation2 + $0x78] sm:$0xff]
      %v3366 = vld [vmem:[#allocation2 + $0x80] sm:$0xff]
      %v3367 = vld [vmem:[#allocation2 + $0x88] sm:$0xff]
      %v3368 = vld [vmem:[#allocation2 + $0x90] sm:$0xff]
      %v3369 = vld [vmem:[#allocation2 + $0x98] sm:$0xff]
      %v3370 = vld [vmem:[#allocation2 + $0xa0] sm:$0xff]
      %v3371 = vld [vmem:[#allocation2 + $0xa8] sm:$0xff]
      %v3372 = vld [vmem:[#allocation2 + $0xb0] sm:$0xff]
      %v3373 = vld [vmem:[#allocation2 + $0xb8] sm:$0xff]
      %v3374 = vld [vmem:[#allocation2 + $0xc0] sm:$0xff]
      %v3375 = vld [vmem:[#allocation2 + $0xc8] sm:$0xff]
      %v3376 = vld [vmem:[#allocation2 + $0xd0] sm:$0xff]
      %v3377 = vld [vmem:[#allocation2 + $0xd8] sm:$0xff]
      %v3378 = vld [vmem:[#allocation2 + $0xe0] sm:$0xff]
      %v3379 = vld [vmem:[#allocation2 + $0xe8] sm:$0xff]
      %v3380 = vld [vmem:[#allocation2 + $0xf0] sm:$0xff]
      %v3381 = vld [vmem:[#allocation2 + $0xf8] sm:$0xff]
      %v3382 = vadd.f32 %v3350, %v3192
      %v3383 = vadd.f32 %v3351, %v3197
      %v3384 = vadd.f32 %v3352, %v3202
      %v3385 = vadd.f32 %v3353, %v3207
      %v3386 = vadd.f32 %v3354, %v3212
      %v3387 = vadd.f32 %v3355, %v3217
      %v3388 = vadd.f32 %v3356, %v3222
      %v3389 = vadd.f32 %v3357, %v3227
      %v3390 = vadd.f32 %v3358, %v3232
      %v3391 = vadd.f32 %v3359, %v3237
      %v3392 = vadd.f32 %v3360, %v3242
      %v3393 = vadd.f32 %v3361, %v3247
      %v3394 = vadd.f32 %v3362, %v3252
      %v3395 = vadd.f32 %v3363, %v3257
      %v3396 = vadd.f32 %v3364, %v3262
      %v3397 = vadd.f32 %v3365, %v3267
      %v3398 = vadd.f32 %v3366, %v3272
      %v3399 = vadd.f32 %v3367, %v3277
      %v3400 = vadd.f32 %v3368, %v3282
      %v3401 = vadd.f32 %v3369, %v3287
      %v3402 = vadd.f32 %v3370, %v3292
      %v3403 = vadd.f32 %v3371, %v3297
      %v3404 = vadd.f32 %v3372, %v3302
      %v3405 = vadd.f32 %v3373, %v3307
      %v3406 = vadd.f32 %v3374, %v3312
      %v3407 = vadd.f32 %v3375, %v3317
      %v3408 = vadd.f32 %v3376, %v3322
      %v3409 = vadd.f32 %v3377, %v3327
      %v3410 = vadd.f32 %v3378, %v3332
      %v3411 = vadd.f32 %v3379, %v3337
      %v3412 = vadd.f32 %v3380, %v3342
      %v3413 = vadd.f32 %v3381, %v3347
      %3414 = vst [vmem:[#allocation2] sm:$0xff] %v3382
      %3415 = vst [vmem:[#allocation2 + $0x8] sm:$0xff] %v3383
      %3416 = vst [vmem:[#allocation2 + $0x10] sm:$0xff] %v3384
      %3417 = vst [vmem:[#allocation2 + $0x18] sm:$0xff] %v3385
      %3418 = vst [vmem:[#allocation2 + $0x20] sm:$0xff] %v3386
      %3419 = vst [vmem:[#allocation2 + $0x28] sm:$0xff] %v3387
      %3420 = vst [vmem:[#allocation2 + $0x30] sm:$0xff] %v3388
      %3421 = vst [vmem:[#allocation2 + $0x38] sm:$0xff] %v3389
      %3422 = vst [vmem:[#allocation2 + $0x40] sm:$0xff] %v3390
      %3423 = vst [vmem:[#allocation2 + $0x48] sm:$0xff] %v3391
      %3424 = vst [vmem:[#allocation2 + $0x50] sm:$0xff] %v3392
      %3425 = vst [vmem:[#allocation2 + $0x58] sm:$0xff] %v3393
      %3426 = vst [vmem:[#allocation2 + $0x60] sm:$0xff] %v3394
      %3427 = vst [vmem:[#allocation2 + $0x68] sm:$0xff] %v3395
      %3428 = vst [vmem:[#allocation2 + $0x70] sm:$0xff] %v3396
      %3429 = vst [vmem:[#allocation2 + $0x78] sm:$0xff] %v3397
      %3430 = vst [vmem:[#allocation2 + $0x80] sm:$0xff] %v3398
      %3431 = vst [vmem:[#allocation2 + $0x88] sm:$0xff] %v3399
      %3432 = vst [vmem:[#allocation2 + $0x90] sm:$0xff] %v3400
      %3433 = vst [vmem:[#allocation2 + $0x98] sm:$0xff] %v3401
      %3434 = vst [vmem:[#allocation2 + $0xa0] sm:$0xff] %v3402
      %3435 = vst [vmem:[#allocation2 + $0xa8] sm:$0xff] %v3403
      %3436 = vst [vmem:[#allocation2 + $0xb0] sm:$0xff] %v3404
      %3437 = vst [vmem:[#allocation2 + $0xb8] sm:$0xff] %v3405
      %3438 = vst [vmem:[#allocation2 + $0xc0] sm:$0xff] %v3406
      %3439 = vst [vmem:[#allocation2 + $0xc8] sm:$0xff] %v3407
      %3440 = vst [vmem:[#allocation2 + $0xd0] sm:$0xff] %v3408
      %3441 = vst [vmem:[#allocation2 + $0xd8] sm:$0xff] %v3409
      %3442 = vst [vmem:[#allocation2 + $0xe0] sm:$0xff] %v3410
      %3443 = vst [vmem:[#allocation2 + $0xe8] sm:$0xff] %v3411
      %3444 = vst [vmem:[#allocation2 + $0xf0] sm:$0xff] %v3412
      %3445 = vst [vmem:[#allocation2 + $0xf8] sm:$0xff] %v3413
      %s3446 = scalar_lea.vmem %s3, 1024
      %v3447 = vld [vmem:[%s3446] sm:$0xff]
      %v3448 = vld [vmem:[%s3446 + $0x8] sm:$0xff]
      %v3449 = vld [vmem:[%s3446 + $0x10] sm:$0xff]
      %v3450 = vld [vmem:[%s3446 + $0x18] sm:$0xff]
      %v3451 = vld [vmem:[%s3446 + $0x20] sm:$0xff]
      %v3452 = vld [vmem:[%s3446 + $0x28] sm:$0xff]
      %v3453 = vld [vmem:[%s3446 + $0x30] sm:$0xff]
      %v3454 = vld [vmem:[%s3446 + $0x38] sm:$0xff]
      %v3455 = vld [vmem:[%s3446 + $0x40] sm:$0xff]
      %v3456 = vld [vmem:[%s3446 + $0x48] sm:$0xff]
      %v3457 = vld [vmem:[%s3446 + $0x50] sm:$0xff]
      %v3458 = vld [vmem:[%s3446 + $0x58] sm:$0xff]
      %v3459 = vld [vmem:[%s3446 + $0x60] sm:$0xff]
      %v3460 = vld [vmem:[%s3446 + $0x68] sm:$0xff]
      %v3461 = vld [vmem:[%s3446 + $0x70] sm:$0xff]
      %v3462 = vld [vmem:[%s3446 + $0x78] sm:$0xff]
      %3463 = vmatprep.subr.mxu0 0.0
      %3464 = vmatpush1.msra.mxu0 %v3447
      %3465 = vmatprep.subr.mxu0 0.0
      %3466 = vmatpush1.msra.mxu0 %v3448
      %3467 = vmatprep.subr.mxu0 0.0
      %3468 = vmatpush1.msra.mxu0 %v3449
      %3469 = vmatprep.subr.mxu0 0.0
      %3470 = vmatpush1.msra.mxu0 %v3450
      %3471 = vmatprep.subr.mxu0 0.0
      %3472 = vmatpush1.msra.mxu0 %v3451
      %3473 = vmatprep.subr.mxu0 0.0
      %3474 = vmatpush1.msra.mxu0 %v3452
      %3475 = vmatprep.subr.mxu0 0.0
      %3476 = vmatpush1.msra.mxu0 %v3453
      %3477 = vmatprep.subr.mxu0 0.0
      %3478 = vmatpush1.msra.mxu0 %v3454
      %3479 = vmatprep.subr.mxu0 0.0
      %3480 = vmatpush1.msra.mxu0 %v3455
      %3481 = vmatprep.subr.mxu0 0.0
      %3482 = vmatpush1.msra.mxu0 %v3456
      %3483 = vmatprep.subr.mxu0 0.0
      %3484 = vmatpush1.msra.mxu0 %v3457
      %3485 = vmatprep.subr.mxu0 0.0
      %3486 = vmatpush1.msra.mxu0 %v3458
      %3487 = vmatprep.subr.mxu0 0.0
      %3488 = vmatpush1.msra.mxu0 %v3459
      %3489 = vmatprep.subr.mxu0 0.0
      %3490 = vmatpush1.msra.mxu0 %v3460
      %3491 = vmatprep.subr.mxu0 0.0
      %3492 = vmatpush1.msra.mxu0 %v3461
      %3493 = vmatprep.subr.mxu0 0.0
      %3494 = vmatpush1.msra.mxu0 %v3462
      %3495 = vmatprep.subr.mxu0 0.0
      %3496 = vmatpush1.msra.mxu0 0.0
      %3497 = vmatprep.subr.mxu0 0.0
      %3498 = vmatpush1.msra.mxu0 0.0
      %3499 = vmatprep.subr.mxu0 0.0
      %3500 = vmatpush1.msra.mxu0 0.0
      %3501 = vmatprep.subr.mxu0 0.0
      %3502 = vmatpush1.msra.mxu0 0.0
      %3503 = vmatprep.subr.mxu0 0.0
      %3504 = vmatpush1.msra.mxu0 0.0
      %3505 = vmatprep.subr.mxu0 0.0
      %3506 = vmatpush1.msra.mxu0 0.0
      %3507 = vmatprep.subr.mxu0 0.0
      %3508 = vmatpush1.msra.mxu0 0.0
      %3509 = vmatprep.subr.mxu0 0.0
      %3510 = vmatpush1.msra.mxu0 0.0
      %3511 = vmatprep.subr.mxu0 0.0
      %3512 = vmatpush1.msra.mxu0 0.0
      %3513 = vmatprep.subr.mxu0 0.0
      %3514 = vmatpush1.msra.mxu0 0.0
      %3515 = vmatprep.subr.mxu0 0.0
      %3516 = vmatpush1.msra.mxu0 0.0
      %3517 = vmatprep.subr.mxu0 0.0
      %3518 = vmatpush1.msra.mxu0 0.0
      %3519 = vmatprep.subr.mxu0 0.0
      %3520 = vmatpush1.msra.mxu0 0.0
      %3521 = vmatprep.subr.mxu0 0.0
      %3522 = vmatpush1.msra.mxu0 0.0
      %3523 = vmatprep.subr.mxu0 0.0
      %3524 = vmatpush1.msra.mxu0 0.0
      %3525 = vmatprep.subr.mxu0 0.0
      %3526 = vmatpush1.msra.mxu0 0.0
      %3527 = vmatprep.mubr.f32.mxu0 0.0
      %3528 = vmatmul.mubr.f32.gmra.mrb[0].mxu0 %v704
      %v3529 = vpop.f32.mrb[0].mxu0
      %v3530 = vadd.f32 0.0, %v3529
      %v3531 = vpop.f32.mrb[0].mxu0
      %3532 = vmatprep.mubr.f32.mxu0 0.0
      %3533 = vmatmul.mubr.f32.gmra.mrb[0].mxu0 %v791
      %v3534 = vpop.f32.mrb[0].mxu0
      %v3535 = vadd.f32 0.0, %v3534
      %v3536 = vpop.f32.mrb[0].mxu0
      %3537 = vmatprep.mubr.f32.mxu0 0.0
      %3538 = vmatmul.mubr.f32.gmra.mrb[0].mxu0 %v706
      %v3539 = vpop.f32.mrb[0].mxu0
      %v3540 = vadd.f32 0.0, %v3539
      %v3541 = vpop.f32.mrb[0].mxu0
      %3542 = vmatprep.mubr.f32.mxu0 0.0
      %3543 = vmatmul.mubr.f32.gmra.mrb[0].mxu0 %v792
      %v3544 = vpop.f32.mrb[0].mxu0
      %v3545 = vadd.f32 0.0, %v3544
      %v3546 = vpop.f32.mrb[0].mxu0
      %3547 = vmatprep.mubr.f32.mxu0 0.0
      %3548 = vmatmul.mubr.f32.gmra.mrb[0].mxu0 %v708
      %v3549 = vpop.f32.mrb[0].mxu0
      %v3550 = vadd.f32 0.0, %v3549
      %v3551 = vpop.f32.mrb[0].mxu0
      %3552 = vmatprep.mubr.f32.mxu0 0.0
      %3553 = vmatmul.mubr.f32.gmra.mrb[0].mxu0 %v793
      %v3554 = vpop.f32.mrb[0].mxu0
      %v3555 = vadd.f32 0.0, %v3554
      %v3556 = vpop.f32.mrb[0].mxu0
      %3557 = vmatprep.mubr.f32.mxu0 0.0
      %3558 = vmatmul.mubr.f32.gmra.mrb[0].mxu0 %v710
      %v3559 = vpop.f32.mrb[0].mxu0
      %v3560 = vadd.f32 0.0, %v3559
      %v3561 = vpop.f32.mrb[0].mxu0
      %3562 = vmatprep.mubr.f32.mxu0 0.0
      %3563 = vmatmul.mubr.f32.gmra.mrb[0].mxu0 %v794
      %v3564 = vpop.f32.mrb[0].mxu0
      %v3565 = vadd.f32 0.0, %v3564
      %v3566 = vpop.f32.mrb[0].mxu0
      %3567 = vmatprep.mubr.f32.mxu0 0.0
      %3568 = vmatmul.mubr.f32.gmra.mrb[0].mxu0 %v712
      %v3569 = vpop.f32.mrb[0].mxu0
      %v3570 = vadd.f32 0.0, %v3569
      %v3571 = vpop.f32.mrb[0].mxu0
      %3572 = vmatprep.mubr.f32.mxu0 0.0
      %3573 = vmatmul.mubr.f32.gmra.mrb[0].mxu0 %v795
      %v3574 = vpop.f32.mrb[0].mxu0
      %v3575 = vadd.f32 0.0, %v3574
      %v3576 = vpop.f32.mrb[0].mxu0
      %3577 = vmatprep.mubr.f32.mxu0 0.0
      %3578 = vmatmul.mubr.f32.gmra.mrb[0].mxu0 %v714
      %v3579 = vpop.f32.mrb[0].mxu0
      %v3580 = vadd.f32 0.0, %v3579
      %v3581 = vpop.f32.mrb[0].mxu0
      %3582 = vmatprep.mubr.f32.mxu0 0.0
      %3583 = vmatmul.mubr.f32.gmra.mrb[0].mxu0 %v796
      %v3584 = vpop.f32.mrb[0].mxu0
      %v3585 = vadd.f32 0.0, %v3584
      %v3586 = vpop.f32.mrb[0].mxu0
      %3587 = vmatprep.mubr.f32.mxu0 0.0
      %3588 = vmatmul.mubr.f32.gmra.mrb[0].mxu0 %v716
      %v3589 = vpop.f32.mrb[0].mxu0
      %v3590 = vadd.f32 0.0, %v3589
      %v3591 = vpop.f32.mrb[0].mxu0
      %3592 = vmatprep.mubr.f32.mxu0 0.0
      %3593 = vmatmul.mubr.f32.gmra.mrb[0].mxu0 %v797
      %v3594 = vpop.f32.mrb[0].mxu0
      %v3595 = vadd.f32 0.0, %v3594
      %v3596 = vpop.f32.mrb[0].mxu0
      %3597 = vmatprep.mubr.f32.mxu0 0.0
      %3598 = vmatmul.mubr.f32.gmra.mrb[0].mxu0 %v718
      %v3599 = vpop.f32.mrb[0].mxu0
      %v3600 = vadd.f32 0.0, %v3599
      %v3601 = vpop.f32.mrb[0].mxu0
      %3602 = vmatprep.mubr.f32.mxu0 0.0
      %3603 = vmatmul.mubr.f32.gmra.mrb[0].mxu0 %v798
      %v3604 = vpop.f32.mrb[0].mxu0
      %v3605 = vadd.f32 0.0, %v3604
      %v3606 = vpop.f32.mrb[0].mxu0
      %3607 = vmatprep.mubr.f32.mxu0 0.0
      %3608 = vmatmul.mubr.f32.gmra.mrb[0].mxu0 %v720
      %v3609 = vpop.f32.mrb[0].mxu0
      %v3610 = vadd.f32 0.0, %v3609
      %v3611 = vpop.f32.mrb[0].mxu0
      %3612 = vmatprep.mubr.f32.mxu0 0.0
      %3613 = vmatmul.mubr.f32.gmra.mrb[0].mxu0 %v799
      %v3614 = vpop.f32.mrb[0].mxu0
      %v3615 = vadd.f32 0.0, %v3614
      %v3616 = vpop.f32.mrb[0].mxu0
      %3617 = vmatprep.mubr.f32.mxu0 0.0
      %3618 = vmatmul.mubr.f32.gmra.mrb[0].mxu0 %v722
      %v3619 = vpop.f32.mrb[0].mxu0
      %v3620 = vadd.f32 0.0, %v3619
      %v3621 = vpop.f32.mrb[0].mxu0
      %3622 = vmatprep.mubr.f32.mxu0 0.0
      %3623 = vmatmul.mubr.f32.gmra.mrb[0].mxu0 %v800
      %v3624 = vpop.f32.mrb[0].mxu0
      %v3625 = vadd.f32 0.0, %v3624
      %v3626 = vpop.f32.mrb[0].mxu0
      %3627 = vmatprep.mubr.f32.mxu0 0.0
      %3628 = vmatmul.mubr.f32.gmra.mrb[0].mxu0 %v724
      %v3629 = vpop.f32.mrb[0].mxu0
      %v3630 = vadd.f32 0.0, %v3629
      %v3631 = vpop.f32.mrb[0].mxu0
      %3632 = vmatprep.mubr.f32.mxu0 0.0
      %3633 = vmatmul.mubr.f32.gmra.mrb[0].mxu0 %v801
      %v3634 = vpop.f32.mrb[0].mxu0
      %v3635 = vadd.f32 0.0, %v3634
      %v3636 = vpop.f32.mrb[0].mxu0
      %3637 = vmatprep.mubr.f32.mxu0 0.0
      %3638 = vmatmul.mubr.f32.gmra.mrb[0].mxu0 %v726
      %v3639 = vpop.f32.mrb[0].mxu0
      %v3640 = vadd.f32 0.0, %v3639
      %v3641 = vpop.f32.mrb[0].mxu0
      %3642 = vmatprep.mubr.f32.mxu0 0.0
      %3643 = vmatmul.mubr.f32.gmra.mrb[0].mxu0 %v802
      %v3644 = vpop.f32.mrb[0].mxu0
      %v3645 = vadd.f32 0.0, %v3644
      %v3646 = vpop.f32.mrb[0].mxu0
      %3647 = vmatprep.mubr.f32.mxu0 0.0
      %3648 = vmatmul.mubr.f32.gmra.mrb[0].mxu0 %v728
      %v3649 = vpop.f32.mrb[0].mxu0
      %v3650 = vadd.f32 0.0, %v3649
      %v3651 = vpop.f32.mrb[0].mxu0
      %3652 = vmatprep.mubr.f32.mxu0 0.0
      %3653 = vmatmul.mubr.f32.gmra.mrb[0].mxu0 %v803
      %v3654 = vpop.f32.mrb[0].mxu0
      %v3655 = vadd.f32 0.0, %v3654
      %v3656 = vpop.f32.mrb[0].mxu0
      %3657 = vmatprep.mubr.f32.mxu0 0.0
      %3658 = vmatmul.mubr.f32.gmra.mrb[0].mxu0 %v730
      %v3659 = vpop.f32.mrb[0].mxu0
      %v3660 = vadd.f32 0.0, %v3659
      %v3661 = vpop.f32.mrb[0].mxu0
      %3662 = vmatprep.mubr.f32.mxu0 0.0
      %3663 = vmatmul.mubr.f32.gmra.mrb[0].mxu0 %v804
      %v3664 = vpop.f32.mrb[0].mxu0
      %v3665 = vadd.f32 0.0, %v3664
      %v3666 = vpop.f32.mrb[0].mxu0
      %3667 = vmatprep.mubr.f32.mxu0 0.0
      %3668 = vmatmul.mubr.f32.gmra.mrb[0].mxu0 %v732
      %v3669 = vpop.f32.mrb[0].mxu0
      %v3670 = vadd.f32 0.0, %v3669
      %v3671 = vpop.f32.mrb[0].mxu0
      %3672 = vmatprep.mubr.f32.mxu0 0.0
      %3673 = vmatmul.mubr.f32.gmra.mrb[0].mxu0 %v805
      %v3674 = vpop.f32.mrb[0].mxu0
      %v3675 = vadd.f32 0.0, %v3674
      %v3676 = vpop.f32.mrb[0].mxu0
      %3677 = vmatprep.mubr.f32.mxu0 0.0
      %3678 = vmatmul.mubr.f32.gmra.mrb[0].mxu0 %v734
      %v3679 = vpop.f32.mrb[0].mxu0
      %v3680 = vadd.f32 0.0, %v3679
      %v3681 = vpop.f32.mrb[0].mxu0
      %3682 = vmatprep.mubr.f32.mxu0 0.0
      %3683 = vmatmul.mubr.f32.gmra.mrb[0].mxu0 %v806
      %v3684 = vpop.f32.mrb[0].mxu0
      %v3685 = vadd.f32 0.0, %v3684
      %v3686 = vpop.f32.mrb[0].mxu0
      %3687 = vdwg.mxu0
      %v3688 = vld [vmem:[#allocation2] sm:$0xff]
      %v3689 = vld [vmem:[#allocation2 + $0x8] sm:$0xff]
      %v3690 = vld [vmem:[#allocation2 + $0x10] sm:$0xff]
      %v3691 = vld [vmem:[#allocation2 + $0x18] sm:$0xff]
      %v3692 = vld [vmem:[#allocation2 + $0x20] sm:$0xff]
      %v3693 = vld [vmem:[#allocation2 + $0x28] sm:$0xff]
      %v3694 = vld [vmem:[#allocation2 + $0x30] sm:$0xff]
      %v3695 = vld [vmem:[#allocation2 + $0x38] sm:$0xff]
      %v3696 = vld [vmem:[#allocation2 + $0x40] sm:$0xff]
      %v3697 = vld [vmem:[#allocation2 + $0x48] sm:$0xff]
      %v3698 = vld [vmem:[#allocation2 + $0x50] sm:$0xff]
      %v3699 = vld [vmem:[#allocation2 + $0x58] sm:$0xff]
      %v3700 = vld [vmem:[#allocation2 + $0x60] sm:$0xff]
      %v3701 = vld [vmem:[#allocation2 + $0x68] sm:$0xff]
      %v3702 = vld [vmem:[#allocation2 + $0x70] sm:$0xff]
      %v3703 = vld [vmem:[#allocation2 + $0x78] sm:$0xff]
      %v3704 = vld [vmem:[#allocation2 + $0x80] sm:$0xff]
      %v3705 = vld [vmem:[#allocation2 + $0x88] sm:$0xff]
      %v3706 = vld [vmem:[#allocation2 + $0x90] sm:$0xff]
      %v3707 = vld [vmem:[#allocation2 + $0x98] sm:$0xff]
      %v3708 = vld [vmem:[#allocation2 + $0xa0] sm:$0xff]
      %v3709 = vld [vmem:[#allocation2 + $0xa8] sm:$0xff]
      %v3710 = vld [vmem:[#allocation2 + $0xb0] sm:$0xff]
      %v3711 = vld [vmem:[#allocation2 + $0xb8] sm:$0xff]
      %v3712 = vld [vmem:[#allocation2 + $0xc0] sm:$0xff]
      %v3713 = vld [vmem:[#allocation2 + $0xc8] sm:$0xff]
      %v3714 = vld [vmem:[#allocation2 + $0xd0] sm:$0xff]
      %v3715 = vld [vmem:[#allocation2 + $0xd8] sm:$0xff]
      %v3716 = vld [vmem:[#allocation2 + $0xe0] sm:$0xff]
      %v3717 = vld [vmem:[#allocation2 + $0xe8] sm:$0xff]
      %v3718 = vld [vmem:[#allocation2 + $0xf0] sm:$0xff]
      %v3719 = vld [vmem:[#allocation2 + $0xf8] sm:$0xff]
      %v3720 = vadd.f32 %v3688, %v3530
      %v3721 = vadd.f32 %v3689, %v3535
      %v3722 = vadd.f32 %v3690, %v3540
      %v3723 = vadd.f32 %v3691, %v3545
      %v3724 = vadd.f32 %v3692, %v3550
      %v3725 = vadd.f32 %v3693, %v3555
      %v3726 = vadd.f32 %v3694, %v3560
      %v3727 = vadd.f32 %v3695, %v3565
      %v3728 = vadd.f32 %v3696, %v3570
      %v3729 = vadd.f32 %v3697, %v3575
      %v3730 = vadd.f32 %v3698, %v3580
      %v3731 = vadd.f32 %v3699, %v3585
      %v3732 = vadd.f32 %v3700, %v3590
      %v3733 = vadd.f32 %v3701, %v3595
      %v3734 = vadd.f32 %v3702, %v3600
      %v3735 = vadd.f32 %v3703, %v3605
      %v3736 = vadd.f32 %v3704, %v3610
      %v3737 = vadd.f32 %v3705, %v3615
      %v3738 = vadd.f32 %v3706, %v3620
      %v3739 = vadd.f32 %v3707, %v3625
      %v3740 = vadd.f32 %v3708, %v3630
      %v3741 = vadd.f32 %v3709, %v3635
      %v3742 = vadd.f32 %v3710, %v3640
      %v3743 = vadd.f32 %v3711, %v3645
      %v3744 = vadd.f32 %v3712, %v3650
      %v3745 = vadd.f32 %v3713, %v3655
      %v3746 = vadd.f32 %v3714, %v3660
      %v3747 = vadd.f32 %v3715, %v3665
      %v3748 = vadd.f32 %v3716, %v3670
      %v3749 = vadd.f32 %v3717, %v3675
      %v3750 = vadd.f32 %v3718, %v3680
      %v3751 = vadd.f32 %v3719, %v3685
      %3752 = vst [vmem:[#allocation2] sm:$0xff] %v3720
      %3753 = vst [vmem:[#allocation2 + $0x8] sm:$0xff] %v3721
      %3754 = vst [vmem:[#allocation2 + $0x10] sm:$0xff] %v3722
      %3755 = vst [vmem:[#allocation2 + $0x18] sm:$0xff] %v3723
      %3756 = vst [vmem:[#allocation2 + $0x20] sm:$0xff] %v3724
      %3757 = vst [vmem:[#allocation2 + $0x28] sm:$0xff] %v3725
      %3758 = vst [vmem:[#allocation2 + $0x30] sm:$0xff] %v3726
      %3759 = vst [vmem:[#allocation2 + $0x38] sm:$0xff] %v3727
      %3760 = vst [vmem:[#allocation2 + $0x40] sm:$0xff] %v3728
      %3761 = vst [vmem:[#allocation2 + $0x48] sm:$0xff] %v3729
      %3762 = vst [vmem:[#allocation2 + $0x50] sm:$0xff] %v3730
      %3763 = vst [vmem:[#allocation2 + $0x58] sm:$0xff] %v3731
      %3764 = vst [vmem:[#allocation2 + $0x60] sm:$0xff] %v3732
      %3765 = vst [vmem:[#allocation2 + $0x68] sm:$0xff] %v3733
      %3766 = vst [vmem:[#allocation2 + $0x70] sm:$0xff] %v3734
      %3767 = vst [vmem:[#allocation2 + $0x78] sm:$0xff] %v3735
      %3768 = vst [vmem:[#allocation2 + $0x80] sm:$0xff] %v3736
      %3769 = vst [vmem:[#allocation2 + $0x88] sm:$0xff] %v3737
      %3770 = vst [vmem:[#allocation2 + $0x90] sm:$0xff] %v3738
      %3771 = vst [vmem:[#allocation2 + $0x98] sm:$0xff] %v3739
      %3772 = vst [vmem:[#allocation2 + $0xa0] sm:$0xff] %v3740
      %3773 = vst [vmem:[#allocation2 + $0xa8] sm:$0xff] %v3741
      %3774 = vst [vmem:[#allocation2 + $0xb0] sm:$0xff] %v3742
      %3775 = vst [vmem:[#allocation2 + $0xb8] sm:$0xff] %v3743
      %3776 = vst [vmem:[#allocation2 + $0xc0] sm:$0xff] %v3744
      %3777 = vst [vmem:[#allocation2 + $0xc8] sm:$0xff] %v3745
      %3778 = vst [vmem:[#allocation2 + $0xd0] sm:$0xff] %v3746
      %3779 = vst [vmem:[#allocation2 + $0xd8] sm:$0xff] %v3747
      %3780 = vst [vmem:[#allocation2 + $0xe0] sm:$0xff] %v3748
      %3781 = vst [vmem:[#allocation2 + $0xe8] sm:$0xff] %v3749
      %3782 = vst [vmem:[#allocation2 + $0xf0] sm:$0xff] %v3750
      %3783 = vst [vmem:[#allocation2 + $0xf8] sm:$0xff] %v3751
      %v3784 = vld [vmem:[#allocation2] sm:$0xff]
      %v3785 = vld [vmem:[#allocation2 + $0x8] sm:$0xff]
      %v3786 = vld [vmem:[#allocation2 + $0x10] sm:$0xff]
      %v3787 = vld [vmem:[#allocation2 + $0x18] sm:$0xff]
      %v3788 = vld [vmem:[#allocation2 + $0x20] sm:$0xff]
      %v3789 = vld [vmem:[#allocation2 + $0x28] sm:$0xff]
      %v3790 = vld [vmem:[#allocation2 + $0x30] sm:$0xff]
      %v3791 = vld [vmem:[#allocation2 + $0x38] sm:$0xff]
      %v3792 = vld [vmem:[#allocation2 + $0x40] sm:$0xff]
      %v3793 = vld [vmem:[#allocation2 + $0x48] sm:$0xff]
      %v3794 = vld [vmem:[#allocation2 + $0x50] sm:$0xff]
      %v3795 = vld [vmem:[#allocation2 + $0x58] sm:$0xff]
      %v3796 = vld [vmem:[#allocation2 + $0x60] sm:$0xff]
      %v3797 = vld [vmem:[#allocation2 + $0x68] sm:$0xff]
      %v3798 = vld [vmem:[#allocation2 + $0x70] sm:$0xff]
      %v3799 = vld [vmem:[#allocation2 + $0x78] sm:$0xff]
      %v3800 = vld [vmem:[#allocation2 + $0x80] sm:$0xff]
      %v3801 = vld [vmem:[#allocation2 + $0x88] sm:$0xff]
      %v3802 = vld [vmem:[#allocation2 + $0x90] sm:$0xff]
      %v3803 = vld [vmem:[#allocation2 + $0x98] sm:$0xff]
      %v3804 = vld [vmem:[#allocation2 + $0xa0] sm:$0xff]
      %v3805 = vld [vmem:[#allocation2 + $0xa8] sm:$0xff]
      %v3806 = vld [vmem:[#allocation2 + $0xb0] sm:$0xff]
      %v3807 = vld [vmem:[#allocation2 + $0xb8] sm:$0xff]
      %v3808 = vld [vmem:[#allocation2 + $0xc0] sm:$0xff]
      %v3809 = vld [vmem:[#allocation2 + $0xc8] sm:$0xff]
      %v3810 = vld [vmem:[#allocation2 + $0xd0] sm:$0xff]
      %v3811 = vld [vmem:[#allocation2 + $0xd8] sm:$0xff]
      %v3812 = vld [vmem:[#allocation2 + $0xe0] sm:$0xff]
      %v3813 = vld [vmem:[#allocation2 + $0xe8] sm:$0xff]
      %v3814 = vld [vmem:[#allocation2 + $0xf0] sm:$0xff]
      %v3815 = vld [vmem:[#allocation2 + $0xf8] sm:$0xff]
      %3816 = vst [vmem:[%s467] sm:$0xff] %v3784
      %3817 = vst [vmem:[%s467 + $0x8] sm:$0xff] %v3785
      %3818 = vst [vmem:[%s467 + $0x10] sm:$0xff] %v3786
      %3819 = vst [vmem:[%s467 + $0x18] sm:$0xff] %v3787
      %3820 = vst [vmem:[%s467 + $0x20] sm:$0xff] %v3788
      %3821 = vst [vmem:[%s467 + $0x28] sm:$0xff] %v3789
      %3822 = vst [vmem:[%s467 + $0x30] sm:$0xff] %v3790
      %3823 = vst [vmem:[%s467 + $0x38] sm:$0xff] %v3791
      %3824 = vst [vmem:[%s467 + $0x40] sm:$0xff] %v3792
      %3825 = vst [vmem:[%s467 + $0x48] sm:$0xff] %v3793
      %3826 = vst [vmem:[%s467 + $0x50] sm:$0xff] %v3794
      %3827 = vst [vmem:[%s467 + $0x58] sm:$0xff] %v3795
      %3828 = vst [vmem:[%s467 + $0x60] sm:$0xff] %v3796
      %3829 = vst [vmem:[%s467 + $0x68] sm:$0xff] %v3797
      %3830 = vst [vmem:[%s467 + $0x70] sm:$0xff] %v3798
      %3831 = vst [vmem:[%s467 + $0x78] sm:$0xff] %v3799
      %3832 = vst [vmem:[%s467 + $0x80] sm:$0xff] %v3800
      %3833 = vst [vmem:[%s467 + $0x88] sm:$0xff] %v3801
      %3834 = vst [vmem:[%s467 + $0x90] sm:$0xff] %v3802
      %3835 = vst [vmem:[%s467 + $0x98] sm:$0xff] %v3803
      %3836 = vst [vmem:[%s467 + $0xa0] sm:$0xff] %v3804
      %3837 = vst [vmem:[%s467 + $0xa8] sm:$0xff] %v3805
      %3838 = vst [vmem:[%s467 + $0xb0] sm:$0xff] %v3806
      %3839 = vst [vmem:[%s467 + $0xb8] sm:$0xff] %v3807
      %3840 = vst [vmem:[%s467 + $0xc0] sm:$0xff] %v3808
      %3841 = vst [vmem:[%s467 + $0xc8] sm:$0xff] %v3809
      %3842 = vst [vmem:[%s467 + $0xd0] sm:$0xff] %v3810
      %3843 = vst [vmem:[%s467 + $0xd8] sm:$0xff] %v3811
      %3844 = vst [vmem:[%s467 + $0xe0] sm:$0xff] %v3812
      %3845 = vst [vmem:[%s467 + $0xe8] sm:$0xff] %v3813
      %3846 = vst [vmem:[%s467 + $0xf0] sm:$0xff] %v3814
      %3847 = vst [vmem:[%s467 + $0xf8] sm:$0xff] %v3815
      %v3848 = vadd.f32 %v3784, %v3785
      %v3849 = vadd.f32 %v3848, %v3786
      %v3850 = vadd.f32 %v3849, %v3787
      %v3851 = vadd.f32 %v3850, %v3788
      %v3852 = vadd.f32 %v3851, %v3789
      %v3853 = vadd.f32 %v3852, %v3790
      %v3854 = vadd.f32 %v3853, %v3791
      %v3855 = vadd.f32 %v3854, %v3792
      %v3856 = vadd.f32 %v3855, %v3793
      %v3857 = vadd.f32 %v3856, %v3794
      %v3858 = vadd.f32 %v3857, %v3795
      %v3859 = vadd.f32 %v3858, %v3796
      %v3860 = vadd.f32 %v3859, %v3797
      %v3861 = vadd.f32 %v3860, %v3798
      %v3862 = vadd.f32 %v3861, %v3799
      %v3863 = vadd.f32 %v3862, %v3800
      %v3864 = vadd.f32 %v3863, %v3801
      %v3865 = vadd.f32 %v3864, %v3802
      %v3866 = vadd.f32 %v3865, %v3803
      %v3867 = vadd.f32 %v3866, %v3804
      %v3868 = vadd.f32 %v3867, %v3805
      %v3869 = vadd.f32 %v3868, %v3806
      %v3870 = vadd.f32 %v3869, %v3807
      %v3871 = vadd.f32 %v3870, %v3808
      %v3872 = vadd.f32 %v3871, %v3809
      %v3873 = vadd.f32 %v3872, %v3810
      %v3874 = vadd.f32 %v3873, %v3811
      %v3875 = vadd.f32 %v3874, %v3812
      %v3876 = vadd.f32 %v3875, %v3813
      %v3877 = vadd.f32 %v3876, %v3814
      %v3878 = vadd.f32 %v3877, %v3815
      %v3879 = vrot.slane %v3878, 4
      %v3880 = vadd.f32 %v3878, %v3879
      %v3881 = vrot.slane %v3880, 2
      %v3882 = vadd.f32 %v3880, %v3881
      %v3883 = vrot.slane %v3882, 1
      %v3884 = vadd.f32 %v3882, %v3883
      %3885 = vst [vmem:[%s474] sm:$0x1] %v3884
      %v3886 = vmul.f32 %v3784, %v3784
      %v3887 = vmul.f32 %v3785, %v3785
      %v3888 = vmul.f32 %v3786, %v3786
      %v3889 = vmul.f32 %v3787, %v3787
      %v3890 = vmul.f32 %v3788, %v3788
      %v3891 = vmul.f32 %v3789, %v3789
      %v3892 = vmul.f32 %v3790, %v3790
      %v3893 = vmul.f32 %v3791, %v3791
      %v3894 = vmul.f32 %v3792, %v3792
      %v3895 = vmul.f32 %v3793, %v3793
      %v3896 = vmul.f32 %v3794, %v3794
      %v3897 = vmul.f32 %v3795, %v3795
      %v3898 = vmul.f32 %v3796, %v3796
      %v3899 = vmul.f32 %v3797, %v3797
      %v3900 = vmul.f32 %v3798, %v3798
      %v3901 = vmul.f32 %v3799, %v3799
      %v3902 = vmul.f32 %v3800, %v3800
      %v3903 = vmul.f32 %v3801, %v3801
      %v3904 = vmul.f32 %v3802, %v3802
      %v3905 = vmul.f32 %v3803, %v3803
      %v3906 = vmul.f32 %v3804, %v3804
      %v3907 = vmul.f32 %v3805, %v3805
      %v3908 = vmul.f32 %v3806, %v3806
      %v3909 = vmul.f32 %v3807, %v3807
      %v3910 = vmul.f32 %v3808, %v3808
      %v3911 = vmul.f32 %v3809, %v3809
      %v3912 = vmul.f32 %v3810, %v3810
      %v3913 = vmul.f32 %v3811, %v3811
      %v3914 = vmul.f32 %v3812, %v3812
      %v3915 = vmul.f32 %v3813, %v3813
      %v3916 = vmul.f32 %v3814, %v3814
      %v3917 = vmul.f32 %v3815, %v3815
      %v3918 = vadd.f32 %v3886, %v3887
      %v3919 = vadd.f32 %v3918, %v3888
      %v3920 = vadd.f32 %v3919, %v3889
      %v3921 = vadd.f32 %v3920, %v3890
      %v3922 = vadd.f32 %v3921, %v3891
      %v3923 = vadd.f32 %v3922, %v3892
      %v3924 = vadd.f32 %v3923, %v3893
      %v3925 = vadd.f32 %v3924, %v3894
      %v3926 = vadd.f32 %v3925, %v3895
      %v3927 = vadd.f32 %v3926, %v3896
      %v3928 = vadd.f32 %v3927, %v3897
      %v3929 = vadd.f32 %v3928, %v3898
      %v3930 = vadd.f32 %v3929, %v3899
      %v3931 = vadd.f32 %v3930, %v3900
      %v3932 = vadd.f32 %v3931, %v3901
      %v3933 = vadd.f32 %v3932, %v3902
      %v3934 = vadd.f32 %v3933, %v3903
      %v3935 = vadd.f32 %v3934, %v3904
      %v3936 = vadd.f32 %v3935, %v3905
      %v3937 = vadd.f32 %v3936, %v3906
      %v3938 = vadd.f32 %v3937, %v3907
      %v3939 = vadd.f32 %v3938, %v3908
      %v3940 = vadd.f32 %v3939, %v3909
      %v3941 = vadd.f32 %v3940, %v3910
      %v3942 = vadd.f32 %v3941, %v3911
      %v3943 = vadd.f32 %v3942, %v3912
      %v3944 = vadd.f32 %v3943, %v3913
      %v3945 = vadd.f32 %v3944, %v3914
      %v3946 = vadd.f32 %v3945, %v3915
      %v3947 = vadd.f32 %v3946, %v3916
      %v3948 = vadd.f32 %v3947, %v3917
      %v3949 = vrot.slane %v3948, 4
      %v3950 = vadd.f32 %v3948, %v3949
      %v3951 = vrot.slane %v3950, 2
      %v3952 = vadd.f32 %v3950, %v3951
      %v3953 = vrot.slane %v3952, 1
      %v3954 = vadd.f32 %v3952, %v3953
      %3955 = vst [vmem:[%s480] sm:$0x1] %v3954
      %s3956 = smul.u32 16, %s23
      %p3957 = scmp.lt.s32.totalorder %s22, 1
      %s3958 = scalar_select %p3957, %s22, 1
      %p3959 = scmp.lt.s32.totalorder %s3956, 15
      %s3960 = scalar_select %p3959, %s3956, 15
      %s3961 = smul.addr %s3960, 2
      %s3962 = smul.addr %s3958, 32
      %s3963 = sadd.s32 %s3961, %s3962
      %s3964 = smul.addr %s3963, 8
      %s3965 = scalar_lea.vmem %s4, %s3964
      %p3966 = scmp.lt.s32.totalorder %s22, 1
      %s3967 = scalar_select %p3966, %s22, 1
      %p3968 = scmp.lt.s32.totalorder %s23, 0
      %s3969 = scalar_select %p3968, %s23, 0
      %s3970 = sadd.s32 %s3969, %s3967
      %s3971 = scalar_lea.vmem %s5, %s3970
      %p3972 = scmp.lt.s32.totalorder %s22, 1
      %s3973 = scalar_select %p3972, %s22, 1
      %p3974 = scmp.lt.s32.totalorder %s23, 0
      %s3975 = scalar_select %p3974, %s23, 0
      %s3976 = sadd.s32 %s3975, %s3973
      %s3977 = scalar_lea.vmem %s6, %s3976
      // Predicated region
      $region37: #{resnet_block_forward.3} parent=35 // pred_check
        %p3978 = pneg %p179
      $region38: #{resnet_block_forward.3} parent=35 // pred_check_branch
        %3980 = sbr.rel (%p3978) target = $region40
      $region39: #{resnet_block_forward.3} parent=35 // pred_region
        %s3981 = smul.u32 16, %s23
      $region40: #{resnet_block_forward.3} parent=35 // pred_fallthru
        _
      // Predicated region
      $region41: #{resnet_block_forward.3} parent=35 // pred_check
        %p3982 = pneg %p207
      $region42: #{resnet_block_forward.3} parent=35 // pred_check_branch
        %3984 = sbr.rel (%p3982) target = $region44
      $region43: #{resnet_block_forward.3} parent=35 // pred_region
        _
      $region44: #{resnet_block_forward.3} parent=35 // pred_fallthru
        _
      // Predicated region
      $region45: #{resnet_block_forward.3} parent=35 // pred_check
        %p3985 = pneg %p235
      $region46: #{resnet_block_forward.3} parent=35 // pred_check_branch
        %3987 = sbr.rel (%p3985) target = $region48
      $region47: #{resnet_block_forward.3} parent=35 // pred_region
        _
      $region48: #{resnet_block_forward.3} parent=35 // pred_fallthru
        _
    $region36: #{resnet_block_forward.3} parent=5 // pred_fallthru
      _
    %p3988 = scmp.le.s32.totalorder 2, %s13
    // Predicated region
    $region49: #{resnet_block_forward.3} parent=5 // pred_check
      %p3989 = pneg %p3988
    $region50: #{resnet_block_forward.3} parent=5 // pred_check_branch
      %3991 = sbr.rel (%p3989) target = $region52
    $region51: #{resnet_block_forward.3} parent=5 // pred_region
      %s3992 = ssub.s32 %s13, 2
      // Predicated region
      $region53: #{resnet_block_forward.3} parent=51 // pred_check
        %p3993 = pneg %p185
      $region54: #{resnet_block_forward.3} parent=51 // pred_check_branch
        %3995 = sbr.rel (%p3993) target = $region56
      $region55: #{resnet_block_forward.3} parent=51 // pred_region
        %s3996 = smul.u32 16, %s25
        %p3997 = scmp.lt.s32.totalorder %s24, 1
        %s3998 = scalar_select %p3997, %s24, 1
        %p3999 = scmp.lt.s32.totalorder %s3996, 15
        %s4000 = scalar_select %p3999, %s3996, 15
        %s4001 = smul.addr %s4000, 2
        %s4002 = smul.addr %s3998, 32
        %s4003 = sadd.s32 %s4001, %s4002
        %s4004 = smul.addr %s4003, 8
        %s4005 = scalar_lea.vmem %s4, %s4004
      $region56: #{resnet_block_forward.3} parent=51 // pred_fallthru
        _
      // Predicated region
      $region57: #{resnet_block_forward.3} parent=51 // pred_check
        %p4006 = pneg %p213
      $region58: #{resnet_block_forward.3} parent=51 // pred_check_branch
        %4008 = sbr.rel (%p4006) target = $region60
      $region59: #{resnet_block_forward.3} parent=51 // pred_region
        %p4009 = scmp.lt.s32.totalorder %s24, 1
        %s4010 = scalar_select %p4009, %s24, 1
        %p4011 = scmp.lt.s32.totalorder %s25, 0
        %s4012 = scalar_select %p4011, %s25, 0
        %s4013 = sadd.s32 %s4012, %s4010
        %s4014 = scalar_lea.vmem %s5, %s4013
      $region60: #{resnet_block_forward.3} parent=51 // pred_fallthru
        _
      // Predicated region
      $region61: #{resnet_block_forward.3} parent=51 // pred_check
        %p4015 = pneg %p241
      $region62: #{resnet_block_forward.3} parent=51 // pred_check_branch
        %4017 = sbr.rel (%p4015) target = $region64
      $region63: #{resnet_block_forward.3} parent=51 // pred_region
        %p4018 = scmp.lt.s32.totalorder %s24, 1
        %s4019 = scalar_select %p4018, %s24, 1
        %p4020 = scmp.lt.s32.totalorder %s25, 0
        %s4021 = scalar_select %p4020, %s25, 0
        %s4022 = sadd.s32 %s4021, %s4019
        %s4023 = scalar_lea.vmem %s6, %s4022
      $region64: #{resnet_block_forward.3} parent=51 // pred_fallthru
        _
    $region52: #{resnet_block_forward.3} parent=5 // pred_fallthru
      _
  $region6: #{resnet_block_forward.3} parent=0 // loop_footer
    %s17 = sadd.s32 1, %s13
  $region7: #{resnet_block_forward.3} parent=0 // loop_footer_branch
    %12 = sbr.rel target = $region3
  $region8: #{resnet_block_forward.3} parent=0 // loop_exit
    _

// kernel: resnet_block_forward.4
$region0: #{resnet_block_forward.4}
  #allocation0 [shape = 'u32[]', space=smem, size = 0x4, offset = 0x4, fixed_abs, tag = 'smem constant byte address 0x4 - core index']
  #allocation1 [shape = 'u32[144,128]{1,0:T(1,128)}', space=vmem, size = 0x12000, scoped, tag = 'internal scratch']
  #allocation2 [shape = 'f32[256,128]{1,0:T(8,128)}', space=vmem, size = 0x20000, scoped, tag = 'scratch operand']
  %s0 = inlined_call_operand.vmem [shape: f32[2,16,16,128], index: 0, kind: input, shape index: {}, may-alias: {0,1,2}]
  %s1 = inlined_call_operand.vmem [shape: f32[2,16,16,128], index: 1, kind: input, shape index: {}, may-alias: {0,1,2}]
  %s2 = inlined_call_operand.vmem [shape: f32[2,16,16,128], index: 2, kind: input, shape index: {}, may-alias: {0,1,2}]
  %s3 = inlined_call_operand.vmem [shape: f32[9,128,128], index: 3, kind: input, shape index: {}]
  %s4 = inlined_call_operand.vmem [shape: f32[1,128], index: 4, kind: input, shape index: {}]
  %s5 = inlined_call_operand.vmem [shape: f32[1,128], index: 5, kind: input, shape index: {}]
  %s6 = inlined_call_operand.vmem [shape: f32[2,16,16,128], index: 6, kind: output, shape index: {0}]
  %s7 = inlined_call_operand.vmem [shape: f32[2,1,1,128], index: 7, kind: output, shape index: {1}]
  %s8 = inlined_call_operand.vmem [shape: f32[2,1,1,128], index: 8, kind: output, shape index: {2}]
  %9 = xla_tuple %s6, %s7, %s8
  %s10 = sld [smem:[#allocation0]]
  $region73: #{resnet_block_forward.4} parent=0
    _
  %s12 = ssub.s32 1, %s10
  %s13 = scalar_select 0, %s12, %s10
  loop: start=0, step=1, limit=4
  $region2: #{resnet_block_forward.4} parent=0 // loop_pre_header
    _
  $region3: #{resnet_block_forward.4} parent=0 // loop_header
    %s15 = sphi 0, %s19
    %p16 = scmp.ge.s32.totalorder %s15, 4
    %s22 = sphi 0, %s34
    %s23 = sphi 0, %s30
    %s24 = sphi 0, %s22
    %s25 = sphi 0, %s23
    %s26 = sphi 0, %s24
    %s27 = sphi 0, %s25
    %s39 = sphi 0, %s41
    %s42 = sphi 0, %s39
    %s43 = sphi 0, %s42
    %s59 = sphi 0, %s43
    %s77 = sphi 0, %s79
    %s80 = sphi 0, %s77
    %s81 = sphi 0, %s80
    %s97 = sphi 0, %s81
    %s119 = sphi 0, %s121
    %s122 = sphi 0, %s119
    %s123 = sphi 0, %s122
    %s139 = sphi 0, %s123
    %s143 = sphi 0, %s143
    %s145 = sphi 0, %s143
    %s146 = sphi 0, %s145
    %s160 = sphi 0, %s146
    %s164 = sphi 0, %s164
    %s166 = sphi 0, %s164
    %s167 = sphi 0, %s166
    %s181 = sphi 0, %s167
    %s185 = sphi 0, %s185
    %s187 = sphi 0, %s185
    %s188 = sphi 0, %s187
    %s202 = sphi 0, %s188
    %s210 = sphi 0, %s212
    %s213 = sphi 0, %s210
    %s214 = sphi 0, %s213
    %s230 = sphi 0, %s214
    %s238 = sphi 0, %s240
    %s241 = sphi 0, %s238
    %s242 = sphi 0, %s241
    %s258 = sphi 0, %s242
    %s266 = sphi 0, %s268
    %s269 = sphi 0, %s266
    %s270 = sphi 0, %s269
    %s286 = sphi 0, %s270
  $region4: #{resnet_block_forward.4} parent=0 // loop_header_branch
    %18 = sbr.rel (%p16) target = $region8
  $region5: #{resnet_block_forward.4} parent=0 // loop_body
    %s20 = ssub.s32 %s15, 1
    %s21 = ssub.s32 %s15, 2
    %s28 = sadd.s32 1, %s23
    %p29 = scmp.ge.s32.totalorder %s28, 1
    %s30 = scalar_select %p29, 0, %s28
    %s31 = sadd.s32 1, %s22
    %s32 = scalar_select %p29, %s31, %s22
    %p33 = scmp.ge.s32.totalorder %s32, 2
    %s34 = scalar_select %p33, 0, %s32
    %s35 = ssub.s32 %s22, %s34
    %s36 = ssub.s32 %s23, %s30
    %s37 = sor.u32 %s35, %s36
    %p38 = scmp.eq.s32.totalorder %s37, 0
    %s40 = sadd.s32 %s39, 1
    %s41 = scalar_select %p38, %s39, %s40
    %p44 = pneg %p38
    %p45 = scmp.eq.s32.totalorder %s15, 1
    %p46 = por %p44, %p45
    %p47 = scmp.ne.s32.totalorder %s39, %s42
    %p48 = scmp.eq.s32.totalorder %s15, 0
    %p49 = por %p47, %p48
    %p50 = scmp.ne.s32.totalorder %s39, %s42
    %p51 = scmp.eq.s32.totalorder %s20, 1
    %p52 = por %p50, %p51
    %p53 = scmp.ne.s32.totalorder %s42, %s43
    %p54 = scmp.eq.s32.totalorder %s20, 0
    %p55 = por %p53, %p54
    %p56 = scmp.ne.s32.totalorder %s42, %s43
    %p57 = scmp.eq.s32.totalorder %s21, 1
    %p58 = por %p56, %p57
    %p60 = scmp.ne.s32.totalorder %s43, %s59
    %p61 = scmp.eq.s32.totalorder %s21, 0
    %p62 = por %p60, %p61
    %s63 = smul.u32 %s23, 16
    %s64 = ssub.s32 %s63, 1
    %s65 = ssub.s32 1, %s63
    %p66 = scmp.gt.s32.totalorder %s64, %s65
    %s67 = scalar_select %p66, %s64, %s65
    %s68 = smul.u32 %s30, 16
    %s69 = ssub.s32 %s68, 1
    %s70 = ssub.s32 1, %s68
    %p71 = scmp.gt.s32.totalorder %s69, %s70
    %s72 = scalar_select %p71, %s69, %s70
    %s73 = ssub.s32 %s22, %s34
    %s74 = ssub.s32 %s67, %s72
    %s75 = sor.u32 %s73, %s74
    %p76 = scmp.eq.s32.totalorder %s75, 0
    %s78 = sadd.s32 %s77, 1
    %s79 = scalar_select %p76, %s77, %s78
    %p82 = pneg %p76
    %p83 = scmp.eq.s32.totalorder %s15, 1
    %p84 = por %p82, %p83
    %p85 = scmp.ne.s32.totalorder %s77, %s80
    %p86 = scmp.eq.s32.totalorder %s15, 0
    %p87 = por %p85, %p86
    %p88 = scmp.ne.s32.totalorder %s77, %s80
    %p89 = scmp.eq.s32.totalorder %s20, 1
    %p90 = por %p88, %p89
    %p91 = scmp.ne.s32.totalorder %s80, %s81
    %p92 = scmp.eq.s32.totalorder %s20, 0
    %p93 = por %p91, %p92
    %p94 = scmp.ne.s32.totalorder %s80, %s81
    %p95 = scmp.eq.s32.totalorder %s21, 1
    %p96 = por %p94, %p95
    %p98 = scmp.ne.s32.totalorder %s81, %s97
    %p99 = scmp.eq.s32.totalorder %s21, 0
    %p100 = por %p98, %p99
    %s101 = sadd.s32 %s23, 1
    %s102 = smul.u32 %s101, 16
    %s103 = ssub.s32 %s102, 15
    %s104 = ssub.s32 15, %s102
    %p105 = scmp.gt.s32.totalorder %s103, %s104
    %s106 = scalar_select %p105, %s103, %s104
    %s107 = ssub.s32 15, %s106
    %s108 = sadd.s32 %s30, 1
    %s109 = smul.u32 %s108, 16
    %s110 = ssub.s32 %s109, 15
    %s111 = ssub.s32 15, %s109
    %p112 = scmp.gt.s32.totalorder %s110, %s111
    %s113 = scalar_select %p112, %s110, %s111
    %s114 = ssub.s32 15, %s113
    %s115 = ssub.s32 %s22, %s34
    %s116 = ssub.s32 %s107, %s114
    %s117 = sor.u32 %s115, %s116
    %p118 = scmp.eq.s32.totalorder %s117, 0
    %s120 = sadd.s32 %s119, 1
    %s121 = scalar_select %p118, %s119, %s120
    %p124 = pneg %p118
    %p125 = scmp.eq.s32.totalorder %s15, 1
    %p126 = por %p124, %p125
    %p127 = scmp.ne.s32.totalorder %s119, %s122
    %p128 = scmp.eq.s32.totalorder %s15, 0
    %p129 = por %p127, %p128
    %p130 = scmp.ne.s32.totalorder %s119, %s122
    %p131 = scmp.eq.s32.totalorder %s20, 1
    %p132 = por %p130, %p131
    %p133 = scmp.ne.s32.totalorder %s122, %s123
    %p134 = scmp.eq.s32.totalorder %s20, 0
    %p135 = por %p133, %p134
    %p136 = scmp.ne.s32.totalorder %s122, %s123
    %p137 = scmp.eq.s32.totalorder %s21, 1
    %p138 = por %p136, %p137
    %p140 = scmp.ne.s32.totalorder %s123, %s139
    %p141 = scmp.eq.s32.totalorder %s21, 0
    %p142 = por %p140, %p141
    %s144 = sadd.s32 %s143, 1
    %p147 = scmp.eq.s32.totalorder %s15, 1
    %p148 = scmp.ne.s32.totalorder %s143, %s145
    %p149 = scmp.eq.s32.totalorder %s15, 0
    %p150 = por %p148, %p149
    %p151 = scmp.ne.s32.totalorder %s143, %s145
    %p152 = scmp.eq.s32.totalorder %s20, 1
    %p153 = por %p151, %p152
    %p154 = scmp.ne.s32.totalorder %s145, %s146
    %p155 = scmp.eq.s32.totalorder %s20, 0
    %p156 = por %p154, %p155
    %p157 = scmp.ne.s32.totalorder %s145, %s146
    %p158 = scmp.eq.s32.totalorder %s21, 1
    %p159 = por %p157, %p158
    %p161 = scmp.ne.s32.totalorder %s146, %s160
    %p162 = scmp.eq.s32.totalorder %s21, 0
    %p163 = por %p161, %p162
    %s165 = sadd.s32 %s164, 1
    %p168 = scmp.eq.s32.totalorder %s15, 1
    %p169 = scmp.ne.s32.totalorder %s164, %s166
    %p170 = scmp.eq.s32.totalorder %s15, 0
    %p171 = por %p169, %p170
    %p172 = scmp.ne.s32.totalorder %s164, %s166
    %p173 = scmp.eq.s32.totalorder %s20, 1
    %p174 = por %p172, %p173
    %p175 = scmp.ne.s32.totalorder %s166, %s167
    %p176 = scmp.eq.s32.totalorder %s20, 0
    %p177 = por %p175, %p176
    %p178 = scmp.ne.s32.totalorder %s166, %s167
    %p179 = scmp.eq.s32.totalorder %s21, 1
    %p180 = por %p178, %p179
    %p182 = scmp.ne.s32.totalorder %s167, %s181
    %p183 = scmp.eq.s32.totalorder %s21, 0
    %p184 = por %p182, %p183
    %s186 = sadd.s32 %s185, 1
    %p189 = scmp.eq.s32.totalorder %s15, 1
    %p190 = scmp.ne.s32.totalorder %s185, %s187
    %p191 = scmp.eq.s32.totalorder %s15, 0
    %p192 = por %p190, %p191
    %p193 = scmp.ne.s32.totalorder %s185, %s187
    %p194 = scmp.eq.s32.totalorder %s20, 1
    %p195 = por %p193, %p194
    %p196 = scmp.ne.s32.totalorder %s187, %s188
    %p197 = scmp.eq.s32.totalorder %s20, 0
    %p198 = por %p196, %p197
    %p199 = scmp.ne.s32.totalorder %s187, %s188
    %p200 = scmp.eq.s32.totalorder %s21, 1
    %p201 = por %p199, %p200
    %p203 = scmp.ne.s32.totalorder %s188, %s202
    %p204 = scmp.eq.s32.totalorder %s21, 0
    %p205 = por %p203, %p204
    %s206 = ssub.s32 %s22, %s34
    %s207 = ssub.s32 %s23, %s30
    %s208 = sor.u32 %s206, %s207
    %p209 = scmp.eq.s32.totalorder %s208, 0
    %s211 = sadd.s32 %s210, 1
    %s212 = scalar_select %p209, %s210, %s211
    %p215 = pneg %p209
    %p216 = scmp.eq.s32.totalorder %s15, 1
    %p217 = por %p215, %p216
    %p218 = scmp.ne.s32.totalorder %s210, %s213
    %p219 = scmp.eq.s32.totalorder %s15, 0
    %p220 = por %p218, %p219
    %p221 = scmp.ne.s32.totalorder %s210, %s213
    %p222 = scmp.eq.s32.totalorder %s20, 1
    %p223 = por %p221, %p222
    %p224 = scmp.ne.s32.totalorder %s213, %s214
    %p225 = scmp.eq.s32.totalorder %s20, 0
    %p226 = por %p224, %p225
    %p227 = scmp.ne.s32.totalorder %s213, %s214
    %p228 = scmp.eq.s32.totalorder %s21, 1
    %p229 = por %p227, %p228
    %p231 = scmp.ne.s32.totalorder %s214, %s230
    %p232 = scmp.eq.s32.totalorder %s21, 0
    %p233 = por %p231, %p232
    %s234 = ssub.s32 %s22, %s34
    %s235 = ssub.s32 %s23, %s30
    %s236 = sor.u32 %s234, %s235
    %p237 = scmp.eq.s32.totalorder %s236, 0
    %s239 = sadd.s32 %s238, 1
    %s240 = scalar_select %p237, %s238, %s239
    %p243 = pneg %p237
    %p244 = scmp.eq.s32.totalorder %s15, 1
    %p245 = por %p243, %p244
    %p246 = scmp.ne.s32.totalorder %s238, %s241
    %p247 = scmp.eq.s32.totalorder %s15, 0
    %p248 = por %p246, %p247
    %p249 = scmp.ne.s32.totalorder %s238, %s241
    %p250 = scmp.eq.s32.totalorder %s20, 1
    %p251 = por %p249, %p250
    %p252 = scmp.ne.s32.totalorder %s241, %s242
    %p253 = scmp.eq.s32.totalorder %s20, 0
    %p254 = por %p252, %p253
    %p255 = scmp.ne.s32.totalorder %s241, %s242
    %p256 = scmp.eq.s32.totalorder %s21, 1
    %p257 = por %p255, %p256
    %p259 = scmp.ne.s32.totalorder %s242, %s258
    %p260 = scmp.eq.s32.totalorder %s21, 0
    %p261 = por %p259, %p260
    %s262 = ssub.s32 %s22, %s34
    %s263 = ssub.s32 %s23, %s30
    %s264 = sor.u32 %s262, %s263
    %p265 = scmp.eq.s32.totalorder %s264, 0
    %s267 = sadd.s32 %s266, 1
    %s268 = scalar_select %p265, %s266, %s267
    %p271 = pneg %p265
    %p272 = scmp.eq.s32.totalorder %s15, 1
    %p273 = por %p271, %p272
    %p274 = scmp.ne.s32.totalorder %s266, %s269
    %p275 = scmp.eq.s32.totalorder %s15, 0
    %p276 = por %p274, %p275
    %p277 = scmp.ne.s32.totalorder %s266, %s269
    %p278 = scmp.eq.s32.totalorder %s20, 1
    %p279 = por %p277, %p278
    %p280 = scmp.ne.s32.totalorder %s269, %s270
    %p281 = scmp.eq.s32.totalorder %s20, 0
    %p282 = por %p280, %p281
    %p283 = scmp.ne.s32.totalorder %s269, %s270
    %p284 = scmp.eq.s32.totalorder %s21, 1
    %p285 = por %p283, %p284
    %p287 = scmp.ne.s32.totalorder %s270, %s286
    %p288 = scmp.eq.s32.totalorder %s21, 0
    %p289 = por %p287, %p288
    %p290 = scmp.le.s32.totalorder 1, %s15
    %p291 = scmp.lt.s32.totalorder %s15, 3
    %p292 = pnand %p290, %p291
    %p293 = pneg %p292
    // Predicated region
    $region9: #{resnet_block_forward.4} parent=5 // pred_check
      _
    $region10: #{resnet_block_forward.4} parent=5 // pred_check_branch
      %295 = sbr.rel (%p292) target = $region12
    $region11: #{resnet_block_forward.4} parent=5 // pred_region
      %s296 = ssub.s32 %s15, 1
      // Predicated region
      $region13: #{resnet_block_forward.4} parent=11 // pred_check
        %p297 = pneg %p156
      $region14: #{resnet_block_forward.4} parent=11 // pred_check_branch
        %299 = sbr.rel (%p297) target = $region16
      $region15: #{resnet_block_forward.4} parent=11 // pred_region
        _
      $region16: #{resnet_block_forward.4} parent=11 // pred_fallthru
        _
      // Predicated region
      $region17: #{resnet_block_forward.4} parent=11 // pred_check
        %p300 = pneg %p177
      $region18: #{resnet_block_forward.4} parent=11 // pred_check_branch
        %302 = sbr.rel (%p300) target = $region20
      $region19: #{resnet_block_forward.4} parent=11 // pred_region
        _
      $region20: #{resnet_block_forward.4} parent=11 // pred_fallthru
        _
      // Predicated region
      $region21: #{resnet_block_forward.4} parent=11 // pred_check
        %p303 = pneg %p198
      $region22: #{resnet_block_forward.4} parent=11 // pred_check_branch
        %305 = sbr.rel (%p303) target = $region24
      $region23: #{resnet_block_forward.4} parent=11 // pred_region
        _
      $region24: #{resnet_block_forward.4} parent=11 // pred_fallthru
        _
    $region12: #{resnet_block_forward.4} parent=5 // pred_fallthru
      _
    %p306 = scmp.lt.s32.totalorder %s15, 2
    // Predicated region
    $region25: #{resnet_block_forward.4} parent=5 // pred_check
      %p307 = pneg %p306
    $region26: #{resnet_block_forward.4} parent=5 // pred_check_branch
      %309 = sbr.rel (%p307) target = $region28
    $region27: #{resnet_block_forward.4} parent=5 // pred_region
      // Predicated region
      $region29: #{resnet_block_forward.4} parent=27 // pred_check
        %p310 = pneg %p49
      $region30: #{resnet_block_forward.4} parent=27 // pred_check_branch
        %312 = sbr.rel (%p310) target = $region32
      $region31: #{resnet_block_forward.4} parent=27 // pred_region
        %s313 = smul.u32 16, %s23
        %p314 = scmp.lt.s32.totalorder %s22, 1
        %s315 = scalar_select %p314, %s22, 1
        %p316 = scmp.lt.s32.totalorder %s313, 15
        %s317 = scalar_select %p316, %s313, 15
        %s318 = smul.addr %s317, 2
        %s319 = smul.addr %s315, 32
        %s320 = sadd.s32 %s318, %s319
        %s321 = smul.addr %s320, 8
        %s322 = scalar_lea.vmem %s0, %s321
        %s323 = smul.u32 16, %s23
      $region32: #{resnet_block_forward.4} parent=27 // pred_fallthru
        _
      // Predicated region
      $region33: #{resnet_block_forward.4} parent=27 // pred_check
        %p324 = pneg %p87
      $region34: #{resnet_block_forward.4} parent=27 // pred_check_branch
        %326 = sbr.rel (%p324) target = $region36
      $region35: #{resnet_block_forward.4} parent=27 // pred_region
        %s327 = smul.u32 %s23, 16
        %s328 = ssub.s32 %s327, 1
        %s329 = ssub.s32 1, %s327
        %p330 = scmp.gt.s32.totalorder %s328, %s329
        %s331 = scalar_select %p330, %s328, %s329
        %p332 = scmp.lt.s32.totalorder %s22, 1
        %s333 = scalar_select %p332, %s22, 1
        %p334 = scmp.lt.s32.totalorder %s331, 15
        %s335 = scalar_select %p334, %s331, 15
        %s336 = smul.addr %s335, 2
        %s337 = smul.addr %s333, 32
        %s338 = sadd.s32 %s336, %s337
        %s339 = smul.addr %s338, 8
        %s340 = scalar_lea.vmem %s1, %s339
        %s341 = smul.u32 %s23, 16
        %s342 = ssub.s32 %s341, 1
        %s343 = ssub.s32 1, %s341
        %p344 = scmp.gt.s32.totalorder %s342, %s343
        %s345 = scalar_select %p344, %s342, %s343
      $region36: #{resnet_block_forward.4} parent=27 // pred_fallthru
        _
      // Predicated region
      $region37: #{resnet_block_forward.4} parent=27 // pred_check
        %p346 = pneg %p129
      $region38: #{resnet_block_forward.4} parent=27 // pred_check_branch
        %348 = sbr.rel (%p346) target = $region40
      $region39: #{resnet_block_forward.4} parent=27 // pred_region
        %s349 = sadd.s32 %s23, 1
        %s350 = smul.u32 %s349, 16
        %s351 = ssub.s32 %s350, 15
        %s352 = ssub.s32 15, %s350
        %p353 = scmp.gt.s32.totalorder %s351, %s352
        %s354 = scalar_select %p353, %s351, %s352
        %s355 = ssub.s32 15, %s354
        %p356 = scmp.lt.s32.totalorder %s22, 1
        %s357 = scalar_select %p356, %s22, 1
        %p358 = scmp.lt.s32.totalorder %s355, 15
        %s359 = scalar_select %p358, %s355, 15
        %s360 = smul.addr %s359, 2
        %s361 = smul.addr %s357, 32
        %s362 = sadd.s32 %s360, %s361
        %s363 = smul.addr %s362, 8
        %s364 = scalar_lea.vmem %s2, %s363
        %s365 = sadd.s32 %s23, 1
        %s366 = smul.u32 %s365, 16
        %s367 = ssub.s32 %s366, 15
        %s368 = ssub.s32 15, %s366
        %p369 = scmp.gt.s32.totalorder %s367, %s368
        %s370 = scalar_select %p369, %s367, %s368
        %s371 = ssub.s32 15, %s370
      $region40: #{resnet_block_forward.4} parent=27 // pred_fallthru
        _
    $region28: #{resnet_block_forward.4} parent=5 // pred_fallthru
      _
    %p372 = scmp.le.s32.totalorder 1, %s15
    %p373 = scmp.lt.s32.totalorder %s15, 3
    %p374 = pnand %p372, %p373
    %p375 = pneg %p374
    // Predicated region
    $region41: #{resnet_block_forward.4} parent=5 // pred_check
      _
    $region42: #{resnet_block_forward.4} parent=5 // pred_check_branch
      %377 = sbr.rel (%p374) target = $region44
    $region43: #{resnet_block_forward.4} parent=5 // pred_region
      %s378 = ssub.s32 %s15, 1
      %s379 = smul.u32 16, %s25
      %p380 = scmp.lt.s32.totalorder %s24, 1
      %s381 = scalar_select %p380, %s24, 1
      %p382 = scmp.lt.s32.totalorder %s379, 15
      %s383 = scalar_select %p382, %s379, 15
      %s384 = smul.addr %s383, 2
      %s385 = smul.addr %s381, 32
      %s386 = sadd.s32 %s384, %s385
      %s387 = smul.addr %s386, 8
      %s388 = scalar_lea.vmem %s0, %s387
      %p389 = pneg %p55
      %p390 = pneg %p52
      %s391 = smul.u32 %s25, 16
      %s392 = ssub.s32 %s391, 1
      %s393 = ssub.s32 1, %s391
      %p394 = scmp.gt.s32.totalorder %s392, %s393
      %s395 = scalar_select %p394, %s392, %s393
      %p396 = scmp.lt.s32.totalorder %s24, 1
      %s397 = scalar_select %p396, %s24, 1
      %p398 = scmp.lt.s32.totalorder %s395, 15
      %s399 = scalar_select %p398, %s395, 15
      %s400 = smul.addr %s399, 2
      %s401 = smul.addr %s397, 32
      %s402 = sadd.s32 %s400, %s401
      %s403 = smul.addr %s402, 8
      %s404 = scalar_lea.vmem %s1, %s403
      %p405 = pneg %p93
      %p406 = pneg %p90
      %s407 = sadd.s32 %s25, 1
      %s408 = smul.u32 %s407, 16
      %s409 = ssub.s32 %s408, 15
      %s410 = ssub.s32 15, %s408
      %p411 = scmp.gt.s32.totalorder %s409, %s410
      %s412 = scalar_select %p411, %s409, %s410
      %s413 = ssub.s32 15, %s412
      %p414 = scmp.lt.s32.totalorder %s24, 1
      %s415 = scalar_select %p414, %s24, 1
      %p416 = scmp.lt.s32.totalorder %s413, 15
      %s417 = scalar_select %p416, %s413, 15
      %s418 = smul.addr %s417, 2
      %s419 = smul.addr %s415, 32
      %s420 = sadd.s32 %s418, %s419
      %s421 = smul.addr %s420, 8
      %s422 = scalar_lea.vmem %s2, %s421
      %p423 = pneg %p135
      %p424 = pneg %p132
      %p425 = pneg %p156
      %p426 = pneg %p153
      %p427 = pneg %p177
      %p428 = pneg %p174
      %p429 = pneg %p198
      %p430 = pneg %p195
      %p431 = pneg %p226
      %p432 = pneg %p223
      %s433 = smul.u32 16, %s25
      %p434 = scmp.lt.s32.totalorder %s24, 1
      %s435 = scalar_select %p434, %s24, 1
      %p436 = scmp.lt.s32.totalorder %s433, 15
      %s437 = scalar_select %p436, %s433, 15
      %s438 = smul.addr %s437, 2
      %s439 = smul.addr %s435, 32
      %s440 = sadd.s32 %s438, %s439
      %s441 = smul.addr %s440, 8
      %s442 = scalar_lea.vmem %s6, %s441
      %p443 = pneg %p254
      %p444 = pneg %p251
      %p445 = scmp.lt.s32.totalorder %s24, 1
      %s446 = scalar_select %p445, %s24, 1
      %p447 = scmp.lt.s32.totalorder %s25, 0
      %s448 = scalar_select %p447, %s25, 0
      %s449 = sadd.s32 %s448, %s446
      %s450 = scalar_lea.vmem %s7, %s449
      %p451 = pneg %p282
      %p452 = pneg %p279
      %p453 = scmp.lt.s32.totalorder %s24, 1
      %s454 = scalar_select %p453, %s24, 1
      %p455 = scmp.lt.s32.totalorder %s25, 0
      %s456 = scalar_select %p455, %s25, 0
      %s457 = sadd.s32 %s456, %s454
      %s458 = scalar_lea.vmem %s8, %s457
      %s459 = smul.u32 16, %s25
      %p460 = scmp.lt.s32.totalorder %s24, 1
      %s461 = scalar_select %p460, %s24, 1
      %p462 = scmp.lt.s32.totalorder %s459, 15
      %s463 = scalar_select %p462, %s459, 15
      %s464 = smul.addr %s463, 2
      %s465 = smul.addr %s461, 32
      %s466 = sadd.s32 %s464, %s465
      %s467 = smul.addr %s466, 8
      %s468 = scalar_lea.vmem %s0, %s467
      %s469 = smul.u32 16, %s25
      %s470 = smul.u32 %s25, 16
      %s471 = ssub.s32 %s470, 1
      %s472 = ssub.s32 1, %s470
      %p473 = scmp.gt.s32.totalorder %s471, %s472
      %s474 = scalar_select %p473, %s471, %s472
      %p475 = scmp.lt.s32.totalorder %s24, 1
      %s476 = scalar_select %p475, %s24, 1
      %p477 = scmp.lt.s32.totalorder %s474, 15
      %s478 = scalar_select %p477, %s474, 15
      %s479 = smul.addr %s478, 2
      %s480 = smul.addr %s476, 32
      %s481 = sadd.s32 %s479, %s480
      %s482 = smul.addr %s481, 8
      %s483 = scalar_lea.vmem %s1, %s482
      %s484 = smul.u32 %s25, 16
      %s485 = ssub.s32 %s484, 1
      %s486 = ssub.s32 1, %s484
      %p487 = scmp.gt.s32.totalorder %s485, %s486
      %s488 = scalar_select %p487, %s485, %s486
      %s489 = sadd.s32 %s25, 1
      %s490 = smul.u32 %s489, 16
      %s491 = ssub.s32 %s490, 15
      %s492 = ssub.s32 15, %s490
      %p493 = scmp.gt.s32.totalorder %s491, %s492
      %s494 = scalar_select %p493, %s491, %s492
      %s495 = ssub.s32 15, %s494
      %p496 = scmp.lt.s32.totalorder %s24, 1
      %s497 = scalar_select %p496, %s24, 1
      %p498 = scmp.lt.s32.totalorder %s495, 15
      %s499 = scalar_select %p498, %s495, 15
      %s500 = smul.addr %s499, 2
      %s501 = smul.addr %s497, 32
      %s502 = sadd.s32 %s500, %s501
      %s503 = smul.addr %s502, 8
      %s504 = scalar_lea.vmem %s2, %s503
      %s505 = sadd.s32 %s25, 1
      %s506 = smul.u32 %s505, 16
      %s507 = ssub.s32 %s506, 15
      %s508 = ssub.s32 15, %s506
      %p509 = scmp.gt.s32.totalorder %s507, %s508
      %s510 = scalar_select %p509, %s507, %s508
      %s511 = ssub.s32 15, %s510
      %s512 = smul.u32 16, %s25
      %p513 = scmp.lt.s32.totalorder %s24, 1
      %s514 = scalar_select %p513, %s24, 1
      %p515 = scmp.lt.s32.totalorder %s512, 15
      %s516 = scalar_select %p515, %s512, 15
      %s517 = smul.addr %s516, 2
      %s518 = smul.addr %s514, 32
      %s519 = sadd.s32 %s517, %s518
      %s520 = smul.addr %s519, 8
      %s521 = scalar_lea.vmem %s6, %s520
      %s522 = smul.u32 16, %s25
      %p523 = scmp.lt.s32.totalorder %s24, 1
      %s524 = scalar_select %p523, %s24, 1
      %p525 = scmp.lt.s32.totalorder %s25, 0
      %s526 = scalar_select %p525, %s25, 0
      %s527 = sadd.s32 %s526, %s524
      %s528 = scalar_lea.vmem %s7, %s527
      %p529 = scmp.lt.s32.totalorder %s24, 1
      %s530 = scalar_select %p529, %s24, 1
      %p531 = scmp.lt.s32.totalorder %s25, 0
      %s532 = scalar_select %p531, %s25, 0
      %s533 = sadd.s32 %s532, %s530
      %s534 = scalar_lea.vmem %s8, %s533
      %v535 = vld [vmem:[%s483] sm:$0xff]
      %v536 = vld [vmem:[%s483 + $0x8] sm:$0xff]
      %v537 = vld [vmem:[%s468] sm:$0xff]
      %v538 = vld [vmem:[%s468 + $0x8] sm:$0xff]
      %v539 = vld [vmem:[%s468 + $0x10] sm:$0xff]
      %v540 = vld [vmem:[%s468 + $0x18] sm:$0xff]
      %v541 = vld [vmem:[%s468 + $0x20] sm:$0xff]
      %v542 = vld [vmem:[%s468 + $0x28] sm:$0xff]
      %v543 = vld [vmem:[%s468 + $0x30] sm:$0xff]
      %v544 = vld [vmem:[%s468 + $0x38] sm:$0xff]
      %v545 = vld [vmem:[%s468 + $0x40] sm:$0xff]
      %v546 = vld [vmem:[%s468 + $0x48] sm:$0xff]
      %v547 = vld [vmem:[%s468 + $0x50] sm:$0xff]
      %v548 = vld [vmem:[%s468 + $0x58] sm:$0xff]
      %v549 = vld [vmem:[%s468 + $0x60] sm:$0xff]
      %v550 = vld [vmem:[%s468 + $0x68] sm:$0xff]
      %v551 = vld [vmem:[%s468 + $0x70] sm:$0xff]
      %v552 = vld [vmem:[%s468 + $0x78] sm:$0xff]
      %v553 = vld [vmem:[%s468 + $0x80] sm:$0xff]
      %v554 = vld [vmem:[%s468 + $0x88] sm:$0xff]
      %v555 = vld [vmem:[%s468 + $0x90] sm:$0xff]
      %v556 = vld [vmem:[%s468 + $0x98] sm:$0xff]
      %v557 = vld [vmem:[%s468 + $0xa0] sm:$0xff]
      %v558 = vld [vmem:[%s468 + $0xa8] sm:$0xff]
      %v559 = vld [vmem:[%s468 + $0xb0] sm:$0xff]
      %v560 = vld [vmem:[%s468 + $0xb8] sm:$0xff]
      %v561 = vld [vmem:[%s468 + $0xc0] sm:$0xff]
      %v562 = vld [vmem:[%s468 + $0xc8] sm:$0xff]
      %v563 = vld [vmem:[%s468 + $0xd0] sm:$0xff]
      %v564 = vld [vmem:[%s468 + $0xd8] sm:$0xff]
      %v565 = vld [vmem:[%s468 + $0xe0] sm:$0xff]
      %v566 = vld [vmem:[%s468 + $0xe8] sm:$0xff]
      %v567 = vld [vmem:[%s468 + $0xf0] sm:$0xff]
      %v568 = vld [vmem:[%s468 + $0xf8] sm:$0xff]
      %v569 = vld [vmem:[%s504] sm:$0xff]
      %v570 = vld [vmem:[%s504 + $0x8] sm:$0xff]
      %v571 = vld [vmem:[%s4] sm:$0x1]
      %v572 = vld [vmem:[%s5] sm:$0x1]
      %v574 = vlaneseq
      %v575 = vshrl.u32 %v574, 7
      %v576 = vsub.s32 0, %v575
      %v577 = vrot.slane %v571, %v576
      %v579 = vmul.f32 %v535, %v577
      %v580 = vmul.f32 %v536, %v577
      %v581 = vmul.f32 %v537, %v577
      %v582 = vmul.f32 %v538, %v577
      %v583 = vmul.f32 %v539, %v577
      %v584 = vmul.f32 %v540, %v577
      %v585 = vmul.f32 %v541, %v577
      %v586 = vmul.f32 %v542, %v577
      %v587 = vmul.f32 %v543, %v577
      %v588 = vmul.f32 %v544, %v577
      %v589 = vmul.f32 %v545, %v577
      %v590 = vmul.f32 %v546, %v577
      %v591 = vmul.f32 %v547, %v577
      %v592 = vmul.f32 %v548, %v577
      %v593 = vmul.f32 %v549, %v577
      %v594 = vmul.f32 %v550, %v577
      %v595 = vmul.f32 %v551, %v577
      %v596 = vmul.f32 %v552, %v577
      %v597 = vmul.f32 %v553, %v577
      %v598 = vmul.f32 %v554, %v577
      %v599 = vmul.f32 %v555, %v577
      %v600 = vmul.f32 %v556, %v577
      %v601 = vmul.f32 %v557, %v577
      %v602 = vmul.f32 %v558, %v577
      %v603 = vmul.f32 %v559, %v577
      %v604 = vmul.f32 %v560, %v577
      %v605 = vmul.f32 %v561, %v577
      %v606 = vmul.f32 %v562, %v577
      %v607 = vmul.f32 %v563, %v577
      %v608 = vmul.f32 %v564, %v577
      %v609 = vmul.f32 %v565, %v577
      %v610 = vmul.f32 %v566, %v577
      %v611 = vmul.f32 %v567, %v577
      %v612 = vmul.f32 %v568, %v577
      %v613 = vmul.f32 %v569, %v577
      %v614 = vmul.f32 %v570, %v577
      %v616 = vlaneseq
      %v617 = vshrl.u32 %v616, 7
      %v618 = vsub.s32 0, %v617
      %v619 = vrot.slane %v572, %v618
      %v621 = vadd.f32 %v579, %v619
      %v622 = vadd.f32 %v580, %v619
      %v623 = vadd.f32 %v581, %v619
      %v624 = vadd.f32 %v582, %v619
      %v625 = vadd.f32 %v583, %v619
      %v626 = vadd.f32 %v584, %v619
      %v627 = vadd.f32 %v585, %v619
      %v628 = vadd.f32 %v586, %v619
      %v629 = vadd.f32 %v587, %v619
      %v630 = vadd.f32 %v588, %v619
      %v631 = vadd.f32 %v589, %v619
      %v632 = vadd.f32 %v590, %v619
      %v633 = vadd.f32 %v591, %v619
      %v634 = vadd.f32 %v592, %v619
      %v635 = vadd.f32 %v593, %v619
      %v636 = vadd.f32 %v594, %v619
      %v637 = vadd.f32 %v595, %v619
      %v638 = vadd.f32 %v596, %v619
      %v639 = vadd.f32 %v597, %v619
      %v640 = vadd.f32 %v598, %v619
      %v641 = vadd.f32 %v599, %v619
      %v642 = vadd.f32 %v600, %v619
      %v643 = vadd.f32 %v601, %v619
      %v644 = vadd.f32 %v602, %v619
      %v645 = vadd.f32 %v603, %v619
      %v646 = vadd.f32 %v604, %v619
      %v647 = vadd.f32 %v605, %v619
      %v648 = vadd.f32 %v606, %v619
      %v649 = vadd.f32 %v607, %v619
      %v650 = vadd.f32 %v608, %v619
      %v651 = vadd.f32 %v609, %v619
      %v652 = vadd.f32 %v610, %v619
      %v653 = vadd.f32 %v611, %v619
      %v654 = vadd.f32 %v612, %v619
      %v655 = vadd.f32 %v613, %v619
      %v656 = vadd.f32 %v614, %v619
      %v657 = vmax.f32 %v621, 0.0
      %v658 = vmax.f32 %v622, 0.0
      %v659 = vmax.f32 %v623, 0.0
      %v660 = vmax.f32 %v624, 0.0
      %v661 = vmax.f32 %v625, 0.0
      %v662 = vmax.f32 %v626, 0.0
      %v663 = vmax.f32 %v627, 0.0
      %v664 = vmax.f32 %v628, 0.0
      %v665 = vmax.f32 %v629, 0.0
      %v666 = vmax.f32 %v630, 0.0
      %v667 = vmax.f32 %v631, 0.0
      %v668 = vmax.f32 %v632, 0.0
      %v669 = vmax.f32 %v633, 0.0
      %v670 = vmax.f32 %v634, 0.0
      %v671 = vmax.f32 %v635, 0.0
      %v672 = vmax.f32 %v636, 0.0
      %v673 = vmax.f32 %v637, 0.0
      %v674 = vmax.f32 %v638, 0.0
      %v675 = vmax.f32 %v639, 0.0
      %v676 = vmax.f32 %v640, 0.0
      %v677 = vmax.f32 %v641, 0.0
      %v678 = vmax.f32 %v642, 0.0
      %v679 = vmax.f32 %v643, 0.0
      %v680 = vmax.f32 %v644, 0.0
      %v681 = vmax.f32 %v645, 0.0
      %v682 = vmax.f32 %v646, 0.0
      %v683 = vmax.f32 %v647, 0.0
      %v684 = vmax.f32 %v648, 0.0
      %v685 = vmax.f32 %v649, 0.0
      %v686 = vmax.f32 %v650, 0.0
      %v687 = vmax.f32 %v651, 0.0
      %v688 = vmax.f32 %v652, 0.0
      %v689 = vmax.f32 %v653, 0.0
      %v690 = vmax.f32 %v654, 0.0
      %v691 = vmax.f32 %v655, 0.0
      %v692 = vmax.f32 %v656, 0.0
      %v711 = vrot.slane %v657, 1
      %v712 = vrot.slane %v659, 1
      %v713 = vrot.slane %v661, 1
      %v714 = vrot.slane %v663, 1
      %v715 = vrot.slane %v665, 1
      %v716 = vrot.slane %v667, 1
      %v717 = vrot.slane %v669, 1
      %v718 = vrot.slane %v671, 1
      %v719 = vrot.slane %v673, 1
      %v720 = vrot.slane %v675, 1
      %v721 = vrot.slane %v677, 1
      %v722 = vrot.slane %v679, 1
      %v723 = vrot.slane %v681, 1
      %v724 = vrot.slane %v683, 1
      %v725 = vrot.slane %v685, 1
      %v726 = vrot.slane %v687, 1
      %v727 = vrot.slane %v689, 1
      %v728 = vrot.slane %v691, 1
      %vm765 = vcmask 1040384
      %v766 = vrot.slane %v657, 7
      %v767 = vrot.slane %v658, 7
      %v768 = vsel %vm765, %v766, %v767
      %v769 = vrot.slane %v659, 7
      %v770 = vrot.slane %v660, 7
      %v771 = vsel %vm765, %v769, %v770
      %v772 = vrot.slane %v661, 7
      %v773 = vrot.slane %v662, 7
      %v774 = vsel %vm765, %v772, %v773
      %v775 = vrot.slane %v663, 7
      %v776 = vrot.slane %v664, 7
      %v777 = vsel %vm765, %v775, %v776
      %v778 = vrot.slane %v665, 7
      %v779 = vrot.slane %v666, 7
      %v780 = vsel %vm765, %v778, %v779
      %v781 = vrot.slane %v667, 7
      %v782 = vrot.slane %v668, 7
      %v783 = vsel %vm765, %v781, %v782
      %v784 = vrot.slane %v669, 7
      %v785 = vrot.slane %v670, 7
      %v786 = vsel %vm765, %v784, %v785
      %v787 = vrot.slane %v671, 7
      %v788 = vrot.slane %v672, 7
      %v789 = vsel %vm765, %v787, %v788
      %v790 = vrot.slane %v673, 7
      %v791 = vrot.slane %v674, 7
      %v792 = vsel %vm765, %v790, %v791
      %v793 = vrot.slane %v675, 7
      %v794 = vrot.slane %v676, 7
      %v795 = vsel %vm765, %v793, %v794
      %v796 = vrot.slane %v677, 7
      %v797 = vrot.slane %v678, 7
      %v798 = vsel %vm765, %v796, %v797
      %v799 = vrot.slane %v679, 7
      %v800 = vrot.slane %v680, 7
      %v801 = vsel %vm765, %v799, %v800
      %v802 = vrot.slane %v681, 7
      %v803 = vrot.slane %v682, 7
      %v804 = vsel %vm765, %v802, %v803
      %v805 = vrot.slane %v683, 7
      %v806 = vrot.slane %v684, 7
      %v807 = vsel %vm765, %v805, %v806
      %v808 = vrot.slane %v685, 7
      %v809 = vrot.slane %v686, 7
      %v810 = vsel %vm765, %v808, %v809
      %v811 = vrot.slane %v687, 7
      %v812 = vrot.slane %v688, 7
      %v813 = vsel %vm765, %v811, %v812
      %v814 = vrot.slane %v689, 7
      %v815 = vrot.slane %v690, 7
      %v816 = vsel %vm765, %v814, %v815
      %v817 = vrot.slane %v691, 7
      %v818 = vrot.slane %v692, 7
      %v819 = vsel %vm765, %v817, %v818
      %v856 = vsel %vm765, %v711, %v766
      %v857 = vsel %vm765, %v712, %v769
      %v858 = vsel %vm765, %v713, %v772
      %v859 = vsel %vm765, %v714, %v775
      %v860 = vsel %vm765, %v715, %v778
      %v861 = vsel %vm765, %v716, %v781
      %v862 = vsel %vm765, %v717, %v784
      %v863 = vsel %vm765, %v718, %v787
      %v864 = vsel %vm765, %v719, %v790
      %v865 = vsel %vm765, %v720, %v793
      %v866 = vsel %vm765, %v721, %v796
      %v867 = vsel %vm765, %v722, %v799
      %v868 = vsel %vm765, %v723, %v802
      %v869 = vsel %vm765, %v724, %v805
      %v870 = vsel %vm765, %v725, %v808
      %v871 = vsel %vm765, %v726, %v811
      %v872 = vsel %vm765, %v727, %v814
      %v873 = vsel %vm765, %v728, %v817
      %vm874 = vcmask 1046528
      %v875 = vrot.slane %v658, 1
      %v876 = vsel %vm874, %v711, %v875
      %v877 = vrot.slane %v660, 1
      %v878 = vsel %vm874, %v712, %v877
      %v879 = vrot.slane %v662, 1
      %v880 = vsel %vm874, %v713, %v879
      %v881 = vrot.slane %v664, 1
      %v882 = vsel %vm874, %v714, %v881
      %v883 = vrot.slane %v666, 1
      %v884 = vsel %vm874, %v715, %v883
      %v885 = vrot.slane %v668, 1
      %v886 = vsel %vm874, %v716, %v885
      %v887 = vrot.slane %v670, 1
      %v888 = vsel %vm874, %v717, %v887
      %v889 = vrot.slane %v672, 1
      %v890 = vsel %vm874, %v718, %v889
      %v891 = vrot.slane %v674, 1
      %v892 = vsel %vm874, %v719, %v891
      %v893 = vrot.slane %v676, 1
      %v894 = vsel %vm874, %v720, %v893
      %v895 = vrot.slane %v678, 1
      %v896 = vsel %vm874, %v721, %v895
      %v897 = vrot.slane %v680, 1
      %v898 = vsel %vm874, %v722, %v897
      %v899 = vrot.slane %v682, 1
      %v900 = vsel %vm874, %v723, %v899
      %v901 = vrot.slane %v684, 1
      %v902 = vsel %vm874, %v724, %v901
      %v903 = vrot.slane %v686, 1
      %v904 = vsel %vm874, %v725, %v903
      %v905 = vrot.slane %v688, 1
      %v906 = vsel %vm874, %v726, %v905
      %v907 = vrot.slane %v690, 1
      %v908 = vsel %vm874, %v727, %v907
      %v909 = vrot.slane %v692, 1
      %v910 = vsel %vm874, %v728, %v909
      %v965 = vsel %vm874, %v875, %v767
      %v966 = vsel %vm874, %v877, %v770
      %v967 = vsel %vm874, %v879, %v773
      %v968 = vsel %vm874, %v881, %v776
      %v969 = vsel %vm874, %v883, %v779
      %v970 = vsel %vm874, %v885, %v782
      %v971 = vsel %vm874, %v887, %v785
      %v972 = vsel %vm874, %v889, %v788
      %v973 = vsel %vm874, %v891, %v791
      %v974 = vsel %vm874, %v893, %v794
      %v975 = vsel %vm874, %v895, %v797
      %v976 = vsel %vm874, %v897, %v800
      %v977 = vsel %vm874, %v899, %v803
      %v978 = vsel %vm874, %v901, %v806
      %v979 = vsel %vm874, %v903, %v809
      %v980 = vsel %vm874, %v905, %v812
      %v981 = vsel %vm874, %v907, %v815
      %v982 = vsel %vm874, %v909, %v818
      %v983 = vld [vmem:[%s3] sm:$0xff]
      %v984 = vld [vmem:[%s3 + $0x8] sm:$0xff]
      %v985 = vld [vmem:[%s3 + $0x10] sm:$0xff]
      %v986 = vld [vmem:[%s3 + $0x18] sm:$0xff]
      %v987 = vld [vmem:[%s3 + $0x20] sm:$0xff]
      %v988 = vld [vmem:[%s3 + $0x28] sm:$0xff]
      %v989 = vld [vmem:[%s3 + $0x30] sm:$0xff]
      %v990 = vld [vmem:[%s3 + $0x38] sm:$0xff]
      %v991 = vld [vmem:[%s3 + $0x40] sm:$0xff]
      %v992 = vld [vmem:[%s3 + $0x48] sm:$0xff]
      %v993 = vld [vmem:[%s3 + $0x50] sm:$0xff]
      %v994 = vld [vmem:[%s3 + $0x58] sm:$0xff]
      %v995 = vld [vmem:[%s3 + $0x60] sm:$0xff]
      %v996 = vld [vmem:[%s3 + $0x68] sm:$0xff]
      %v997 = vld [vmem:[%s3 + $0x70] sm:$0xff]
      %v998 = vld [vmem:[%s3 + $0x78] sm:$0xff]
      %999 = vmatprep.subr.mxu0 0.0
      %1000 = vmatpush1.msra.mxu0 %v983
      %1001 = vmatprep.subr.mxu0 0.0
      %1002 = vmatpush1.msra.mxu0 %v984
      %1003 = vmatprep.subr.mxu0 0.0
      %1004 = vmatpush1.msra.mxu0 %v985
      %1005 = vmatprep.subr.mxu0 0.0
      %1006 = vmatpush1.msra.mxu0 %v986
      %1007 = vmatprep.subr.mxu0 0.0
      %1008 = vmatpush1.msra.mxu0 %v987
      %1009 = vmatprep.subr.mxu0 0.0
      %1010 = vmatpush1.msra.mxu0 %v988
      %1011 = vmatprep.subr.mxu0 0.0
      %1012 = vmatpush1.msra.mxu0 %v989
      %1013 = vmatprep.subr.mxu0 0.0
      %1014 = vmatpush1.msra.mxu0 %v990
      %1015 = vmatprep.subr.mxu0 0.0
      %1016 = vmatpush1.msra.mxu0 %v991
      %1017 = vmatprep.subr.mxu0 0.0
      %1018 = vmatpush1.msra.mxu0 %v992
      %1019 = vmatprep.subr.mxu0 0.0
      %1020 = vmatpush1.msra.mxu0 %v993
      %1021 = vmatprep.subr.mxu0 0.0
      %1022 = vmatpush1.msra.mxu0 %v994
      %1023 = vmatprep.subr.mxu0 0.0
      %1024 = vmatpush1.msra.mxu0 %v995
      %1025 = vmatprep.subr.mxu0 0.0
      %1026 = vmatpush1.msra.mxu0 %v996
      %1027 = vmatprep.subr.mxu0 0.0
      %1028 = vmatpush1.msra.mxu0 %v997
      %1029 = vmatprep.subr.mxu0 0.0
      %1030 = vmatpush1.msra.mxu0 %v998
      %1031 = vmatprep.subr.mxu0 0.0
      %1032 = vmatpush1.msra.mxu0 0.0
      %1033 = vmatprep.subr.mxu0 0.0
      %1034 = vmatpush1.msra.mxu0 0.0
      %1035 = vmatprep.subr.mxu0 0.0
      %1036 = vmatpush1.msra.mxu0 0.0
      %1037 = vmatprep.subr.mxu0 0.0
      %1038 = vmatpush1.msra.mxu0 0.0
      %1039 = vmatprep.subr.mxu0 0.0
      %1040 = vmatpush1.msra.mxu0 0.0
      %1041 = vmatprep.subr.mxu0 0.0
      %1042 = vmatpush1.msra.mxu0 0.0
      %1043 = vmatprep.subr.mxu0 0.0
      %1044 = vmatpush1.msra.mxu0 0.0
      %1045 = vmatprep.subr.mxu0 0.0
      %1046 = vmatpush1.msra.mxu0 0.0
      %1047 = vmatprep.subr.mxu0 0.0
      %1048 = vmatpush1.msra.mxu0 0.0
      %1049 = vmatprep.subr.mxu0 0.0
      %1050 = vmatpush1.msra.mxu0 0.0
      %1051 = vmatprep.subr.mxu0 0.0
      %1052 = vmatpush1.msra.mxu0 0.0
      %1053 = vmatprep.subr.mxu0 0.0
      %1054 = vmatpush1.msra.mxu0 0.0
      %1055 = vmatprep.subr.mxu0 0.0
      %1056 = vmatpush1.msra.mxu0 0.0
      %1057 = vmatprep.subr.mxu0 0.0
      %1058 = vmatpush1.msra.mxu0 0.0
      %1059 = vmatprep.subr.mxu0 0.0
      %1060 = vmatpush1.msra.mxu0 0.0
      %1061 = vmatprep.subr.mxu0 0.0
      %1062 = vmatpush1.msra.mxu0 0.0
      %1063 = vmatprep.mubr.f32.mxu0 0.0
      %1064 = vmatmul.mubr.f32.gmra.mrb[0].mxu0 %v856
      %v1065 = vpop.f32.mrb[0].mxu0
      %v1066 = vadd.f32 0.0, %v1065
      %v1067 = vpop.f32.mrb[0].mxu0
      %1068 = vmatprep.mubr.f32.mxu0 0.0
      %1069 = vmatmul.mubr.f32.gmra.mrb[0].mxu0 %v768
      %v1070 = vpop.f32.mrb[0].mxu0
      %v1071 = vadd.f32 0.0, %v1070
      %v1072 = vpop.f32.mrb[0].mxu0
      %1073 = vmatprep.mubr.f32.mxu0 0.0
      %1074 = vmatmul.mubr.f32.gmra.mrb[0].mxu0 %v857
      %v1075 = vpop.f32.mrb[0].mxu0
      %v1076 = vadd.f32 0.0, %v1075
      %v1077 = vpop.f32.mrb[0].mxu0
      %1078 = vmatprep.mubr.f32.mxu0 0.0
      %1079 = vmatmul.mubr.f32.gmra.mrb[0].mxu0 %v771
      %v1080 = vpop.f32.mrb[0].mxu0
      %v1081 = vadd.f32 0.0, %v1080
      %v1082 = vpop.f32.mrb[0].mxu0
      %1083 = vmatprep.mubr.f32.mxu0 0.0
      %1084 = vmatmul.mubr.f32.gmra.mrb[0].mxu0 %v858
      %v1085 = vpop.f32.mrb[0].mxu0
      %v1086 = vadd.f32 0.0, %v1085
      %v1087 = vpop.f32.mrb[0].mxu0
      %1088 = vmatprep.mubr.f32.mxu0 0.0
      %1089 = vmatmul.mubr.f32.gmra.mrb[0].mxu0 %v774
      %v1090 = vpop.f32.mrb[0].mxu0
      %v1091 = vadd.f32 0.0, %v1090
      %v1092 = vpop.f32.mrb[0].mxu0
      %1093 = vmatprep.mubr.f32.mxu0 0.0
      %1094 = vmatmul.mubr.f32.gmra.mrb[0].mxu0 %v859
      %v1095 = vpop.f32.mrb[0].mxu0
      %v1096 = vadd.f32 0.0, %v1095
      %v1097 = vpop.f32.mrb[0].mxu0
      %1098 = vmatprep.mubr.f32.mxu0 0.0
      %1099 = vmatmul.mubr.f32.gmra.mrb[0].mxu0 %v777
      %v1100 = vpop.f32.mrb[0].mxu0
      %v1101 = vadd.f32 0.0, %v1100
      %v1102 = vpop.f32.mrb[0].mxu0
      %1103 = vmatprep.mubr.f32.mxu0 0.0
      %1104 = vmatmul.mubr.f32.gmra.mrb[0].mxu0 %v860
      %v1105 = vpop.f32.mrb[0].mxu0
      %v1106 = vadd.f32 0.0, %v1105
      %v1107 = vpop.f32.mrb[0].mxu0
      %1108 = vmatprep.mubr.f32.mxu0 0.0
      %1109 = vmatmul.mubr.f32.gmra.mrb[0].mxu0 %v780
      %v1110 = vpop.f32.mrb[0].mxu0
      %v1111 = vadd.f32 0.0, %v1110
      %v1112 = vpop.f32.mrb[0].mxu0
      %1113 = vmatprep.mubr.f32.mxu0 0.0
      %1114 = vmatmul.mubr.f32.gmra.mrb[0].mxu0 %v861
      %v1115 = vpop.f32.mrb[0].mxu0
      %v1116 = vadd.f32 0.0, %v1115
      %v1117 = vpop.f32.mrb[0].mxu0
      %1118 = vmatprep.mubr.f32.mxu0 0.0
      %1119 = vmatmul.mubr.f32.gmra.mrb[0].mxu0 %v783
      %v1120 = vpop.f32.mrb[0].mxu0
      %v1121 = vadd.f32 0.0, %v1120
      %v1122 = vpop.f32.mrb[0].mxu0
      %1123 = vmatprep.mubr.f32.mxu0 0.0
      %1124 = vmatmul.mubr.f32.gmra.mrb[0].mxu0 %v862
      %v1125 = vpop.f32.mrb[0].mxu0
      %v1126 = vadd.f32 0.0, %v1125
      %v1127 = vpop.f32.mrb[0].mxu0
      %1128 = vmatprep.mubr.f32.mxu0 0.0
      %1129 = vmatmul.mubr.f32.gmra.mrb[0].mxu0 %v786
      %v1130 = vpop.f32.mrb[0].mxu0
      %v1131 = vadd.f32 0.0, %v1130
      %v1132 = vpop.f32.mrb[0].mxu0
      %1133 = vmatprep.mubr.f32.mxu0 0.0
      %1134 = vmatmul.mubr.f32.gmra.mrb[0].mxu0 %v863
      %v1135 = vpop.f32.mrb[0].mxu0
      %v1136 = vadd.f32 0.0, %v1135
      %v1137 = vpop.f32.mrb[0].mxu0
      %1138 = vmatprep.mubr.f32.mxu0 0.0
      %1139 = vmatmul.mubr.f32.gmra.mrb[0].mxu0 %v789
      %v1140 = vpop.f32.mrb[0].mxu0
      %v1141 = vadd.f32 0.0, %v1140
      %v1142 = vpop.f32.mrb[0].mxu0
      %1143 = vmatprep.mubr.f32.mxu0 0.0
      %1144 = vmatmul.mubr.f32.gmra.mrb[0].mxu0 %v864
      %v1145 = vpop.f32.mrb[0].mxu0
      %v1146 = vadd.f32 0.0, %v1145
      %v1147 = vpop.f32.mrb[0].mxu0
      %1148 = vmatprep.mubr.f32.mxu0 0.0
      %1149 = vmatmul.mubr.f32.gmra.mrb[0].mxu0 %v792
      %v1150 = vpop.f32.mrb[0].mxu0
      %v1151 = vadd.f32 0.0, %v1150
      %v1152 = vpop.f32.mrb[0].mxu0
      %1153 = vmatprep.mubr.f32.mxu0 0.0
      %1154 = vmatmul.mubr.f32.gmra.mrb[0].mxu0 %v865
      %v1155 = vpop.f32.mrb[0].mxu0
      %v1156 = vadd.f32 0.0, %v1155
      %v1157 = vpop.f32.mrb[0].mxu0
      %1158 = vmatprep.mubr.f32.mxu0 0.0
      %1159 = vmatmul.mubr.f32.gmra.mrb[0].mxu0 %v795
      %v1160 = vpop.f32.mrb[0].mxu0
      %v1161 = vadd.f32 0.0, %v1160
      %v1162 = vpop.f32.mrb[0].mxu0
      %1163 = vmatprep.mubr.f32.mxu0 0.0
      %1164 = vmatmul.mubr.f32.gmra.mrb[0].mxu0 %v866
      %v1165 = vpop.f32.mrb[0].mxu0
      %v1166 = vadd.f32 0.0, %v1165
      %v1167 = vpop.f32.mrb[0].mxu0
      %1168 = vmatprep.mubr.f32.mxu0 0.0
      %1169 = vmatmul.mubr.f32.gmra.mrb[0].mxu0 %v798
      %v1170 = vpop.f32.mrb[0].mxu0
      %v1171 = vadd.f32 0.0, %v1170
      %v1172 = vpop.f32.mrb[0].mxu0
      %1173 = vmatprep.mubr.f32.mxu0 0.0
      %1174 = vmatmul.mubr.f32.gmra.mrb[0].mxu0 %v867
      %v1175 = vpop.f32.mrb[0].mxu0
      %v1176 = vadd.f32 0.0, %v1175
      %v1177 = vpop.f32.mrb[0].mxu0
      %1178 = vmatprep.mubr.f32.mxu0 0.0
      %1179 = vmatmul.mubr.f32.gmra.mrb[0].mxu0 %v801
      %v1180 = vpop.f32.mrb[0].mxu0
      %v1181 = vadd.f32 0.0, %v1180
      %v1182 = vpop.f32.mrb[0].mxu0
      %1183 = vmatprep.mubr.f32.mxu0 0.0
      %1184 = vmatmul.mubr.f32.gmra.mrb[0].mxu0 %v868
      %v1185 = vpop.f32.mrb[0].mxu0
      %v1186 = vadd.f32 0.0, %v1185
      %v1187 = vpop.f32.mrb[0].mxu0
      %1188 = vmatprep.mubr.f32.mxu0 0.0
      %1189 = vmatmul.mubr.f32.gmra.mrb[0].mxu0 %v804
      %v1190 = vpop.f32.mrb[0].mxu0
      %v1191 = vadd.f32 0.0, %v1190
      %v1192 = vpop.f32.mrb[0].mxu0
      %1193 = vmatprep.mubr.f32.mxu0 0.0
      %1194 = vmatmul.mubr.f32.gmra.mrb[0].mxu0 %v869
      %v1195 = vpop.f32.mrb[0].mxu0
      %v1196 = vadd.f32 0.0, %v1195
      %v1197 = vpop.f32.mrb[0].mxu0
      %1198 = vmatprep.mubr.f32.mxu0 0.0
      %1199 = vmatmul.mubr.f32.gmra.mrb[0].mxu0 %v807
      %v1200 = vpop.f32.mrb[0].mxu0
      %v1201 = vadd.f32 0.0, %v1200
      %v1202 = vpop.f32.mrb[0].mxu0
      %1203 = vmatprep.mubr.f32.mxu0 0.0
      %1204 = vmatmul.mubr.f32.gmra.mrb[0].mxu0 %v870
      %v1205 = vpop.f32.mrb[0].mxu0
      %v1206 = vadd.f32 0.0, %v1205
      %v1207 = vpop.f32.mrb[0].mxu0
      %1208 = vmatprep.mubr.f32.mxu0 0.0
      %1209 = vmatmul.mubr.f32.gmra.mrb[0].mxu0 %v810
      %v1210 = vpop.f32.mrb[0].mxu0
      %v1211 = vadd.f32 0.0, %v1210
      %v1212 = vpop.f32.mrb[0].mxu0
      %1213 = vmatprep.mubr.f32.mxu0 0.0
      %1214 = vmatmul.mubr.f32.gmra.mrb[0].mxu0 %v871
      %v1215 = vpop.f32.mrb[0].mxu0
      %v1216 = vadd.f32 0.0, %v1215
      %v1217 = vpop.f32.mrb[0].mxu0
      %1218 = vmatprep.mubr.f32.mxu0 0.0
      %1219 = vmatmul.mubr.f32.gmra.mrb[0].mxu0 %v813
      %v1220 = vpop.f32.mrb[0].mxu0
      %v1221 = vadd.f32 0.0, %v1220
      %v1222 = vpop.f32.mrb[0].mxu0
      %1223 = vdwg.mxu0
      %1224 = vst [vmem:[#allocation2] sm:$0xff] %v1066
      %1225 = vst [vmem:[#allocation2 + $0x8] sm:$0xff] %v1071
      %1226 = vst [vmem:[#allocation2 + $0x10] sm:$0xff] %v1076
      %1227 = vst [vmem:[#allocation2 + $0x18] sm:$0xff] %v1081
      %1228 = vst [vmem:[#allocation2 + $0x20] sm:$0xff] %v1086
      %1229 = vst [vmem:[#allocation2 + $0x28] sm:$0xff] %v1091
      %1230 = vst [vmem:[#allocation2 + $0x30] sm:$0xff] %v1096
      %1231 = vst [vmem:[#allocation2 + $0x38] sm:$0xff] %v1101
      %1232 = vst [vmem:[#allocation2 + $0x40] sm:$0xff] %v1106
      %1233 = vst [vmem:[#allocation2 + $0x48] sm:$0xff] %v1111
      %1234 = vst [vmem:[#allocation2 + $0x50] sm:$0xff] %v1116
      %1235 = vst [vmem:[#allocation2 + $0x58] sm:$0xff] %v1121
      %1236 = vst [vmem:[#allocation2 + $0x60] sm:$0xff] %v1126
      %1237 = vst [vmem:[#allocation2 + $0x68] sm:$0xff] %v1131
      %1238 = vst [vmem:[#allocation2 + $0x70] sm:$0xff] %v1136
      %1239 = vst [vmem:[#allocation2 + $0x78] sm:$0xff] %v1141
      %1240 = vst [vmem:[#allocation2 + $0x80] sm:$0xff] %v1146
      %1241 = vst [vmem:[#allocation2 + $0x88] sm:$0xff] %v1151
      %1242 = vst [vmem:[#allocation2 + $0x90] sm:$0xff] %v1156
      %1243 = vst [vmem:[#allocation2 + $0x98] sm:$0xff] %v1161
      %1244 = vst [vmem:[#allocation2 + $0xa0] sm:$0xff] %v1166
      %1245 = vst [vmem:[#allocation2 + $0xa8] sm:$0xff] %v1171
      %1246 = vst [vmem:[#allocation2 + $0xb0] sm:$0xff] %v1176
      %1247 = vst [vmem:[#allocation2 + $0xb8] sm:$0xff] %v1181
      %1248 = vst [vmem:[#allocation2 + $0xc0] sm:$0xff] %v1186
      %1249 = vst [vmem:[#allocation2 + $0xc8] sm:$0xff] %v1191
      %1250 = vst [vmem:[#allocation2 + $0xd0] sm:$0xff] %v1196
      %1251 = vst [vmem:[#allocation2 + $0xd8] sm:$0xff] %v1201
      %1252 = vst [vmem:[#allocation2 + $0xe0] sm:$0xff] %v1206
      %1253 = vst [vmem:[#allocation2 + $0xe8] sm:$0xff] %v1211
      %1254 = vst [vmem:[#allocation2 + $0xf0] sm:$0xff] %v1216
      %1255 = vst [vmem:[#allocation2 + $0xf8] sm:$0xff] %v1221
      %s1256 = scalar_lea.vmem %s3, 384
      %v1257 = vld [vmem:[%s1256] sm:$0xff]
      %v1258 = vld [vmem:[%s1256 + $0x8] sm:$0xff]
      %v1259 = vld [vmem:[%s1256 + $0x10] sm:$0xff]
      %v1260 = vld [vmem:[%s1256 + $0x18] sm:$0xff]
      %v1261 = vld [vmem:[%s1256 + $0x20] sm:$0xff]
      %v1262 = vld [vmem:[%s1256 + $0x28] sm:$0xff]
      %v1263 = vld [vmem:[%s1256 + $0x30] sm:$0xff]
      %v1264 = vld [vmem:[%s1256 + $0x38] sm:$0xff]
      %v1265 = vld [vmem:[%s1256 + $0x40] sm:$0xff]
      %v1266 = vld [vmem:[%s1256 + $0x48] sm:$0xff]
      %v1267 = vld [vmem:[%s1256 + $0x50] sm:$0xff]
      %v1268 = vld [vmem:[%s1256 + $0x58] sm:$0xff]
      %v1269 = vld [vmem:[%s1256 + $0x60] sm:$0xff]
      %v1270 = vld [vmem:[%s1256 + $0x68] sm:$0xff]
      %v1271 = vld [vmem:[%s1256 + $0x70] sm:$0xff]
      %v1272 = vld [vmem:[%s1256 + $0x78] sm:$0xff]
      %1273 = vmatprep.subr.mxu0 0.0
      %1274 = vmatpush1.msra.mxu0 %v1257
      %1275 = vmatprep.subr.mxu0 0.0
      %1276 = vmatpush1.msra.mxu0 %v1258
      %1277 = vmatprep.subr.mxu0 0.0
      %1278 = vmatpush1.msra.mxu0 %v1259
      %1279 = vmatprep.subr.mxu0 0.0
      %1280 = vmatpush1.msra.mxu0 %v1260
      %1281 = vmatprep.subr.mxu0 0.0
      %1282 = vmatpush1.msra.mxu0 %v1261
      %1283 = vmatprep.subr.mxu0 0.0
      %1284 = vmatpush1.msra.mxu0 %v1262
      %1285 = vmatprep.subr.mxu0 0.0
      %1286 = vmatpush1.msra.mxu0 %v1263
      %1287 = vmatprep.subr.mxu0 0.0
      %1288 = vmatpush1.msra.mxu0 %v1264
      %1289 = vmatprep.subr.mxu0 0.0
      %1290 = vmatpush1.msra.mxu0 %v1265
      %1291 = vmatprep.subr.mxu0 0.0
      %1292 = vmatpush1.msra.mxu0 %v1266
      %1293 = vmatprep.subr.mxu0 0.0
      %1294 = vmatpush1.msra.mxu0 %v1267
      %1295 = vmatprep.subr.mxu0 0.0
      %1296 = vmatpush1.msra.mxu0 %v1268
      %1297 = vmatprep.subr.mxu0 0.0
      %1298 = vmatpush1.msra.mxu0 %v1269
      %1299 = vmatprep.subr.mxu0 0.0
      %1300 = vmatpush1.msra.mxu0 %v1270
      %1301 = vmatprep.subr.mxu0 0.0
      %1302 = vmatpush1.msra.mxu0 %v1271
      %1303 = vmatprep.subr.mxu0 0.0
      %1304 = vmatpush1.msra.mxu0 %v1272
      %1305 = vmatprep.subr.mxu0 0.0
      %1306 = vmatpush1.msra.mxu0 0.0
      %1307 = vmatprep.subr.mxu0 0.0
      %1308 = vmatpush1.msra.mxu0 0.0
      %1309 = vmatprep.subr.mxu0 0.0
      %1310 = vmatpush1.msra.mxu0 0.0
      %1311 = vmatprep.subr.mxu0 0.0
      %1312 = vmatpush1.msra.mxu0 0.0
      %1313 = vmatprep.subr.mxu0 0.0
      %1314 = vmatpush1.msra.mxu0 0.0
      %1315 = vmatprep.subr.mxu0 0.0
      %1316 = vmatpush1.msra.mxu0 0.0
      %1317 = vmatprep.subr.mxu0 0.0
      %1318 = vmatpush1.msra.mxu0 0.0
      %1319 = vmatprep.subr.mxu0 0.0
      %1320 = vmatpush1.msra.mxu0 0.0
      %1321 = vmatprep.subr.mxu0 0.0
      %1322 = vmatpush1.msra.mxu0 0.0
      %1323 = vmatprep.subr.mxu0 0.0
      %1324 = vmatpush1.msra.mxu0 0.0
      %1325 = vmatprep.subr.mxu0 0.0
      %1326 = vmatpush1.msra.mxu0 0.0
      %1327 = vmatprep.subr.mxu0 0.0
      %1328 = vmatpush1.msra.mxu0 0.0
      %1329 = vmatprep.subr.mxu0 0.0
      %1330 = vmatpush1.msra.mxu0 0.0
      %1331 = vmatprep.subr.mxu0 0.0
      %1332 = vmatpush1.msra.mxu0 0.0
      %1333 = vmatprep.subr.mxu0 0.0
      %1334 = vmatpush1.msra.mxu0 0.0
      %1335 = vmatprep.subr.mxu0 0.0
      %1336 = vmatpush1.msra.mxu0 0.0
      %1337 = vmatprep.mubr.f32.mxu0 0.0
      %1338 = vmatmul.mubr.f32.gmra.mrb[0].mxu0 %v857
      %v1339 = vpop.f32.mrb[0].mxu0
      %v1340 = vadd.f32 0.0, %v1339
      %v1341 = vpop.f32.mrb[0].mxu0
      %1342 = vmatprep.mubr.f32.mxu0 0.0
      %1343 = vmatmul.mubr.f32.gmra.mrb[0].mxu0 %v771
      %v1344 = vpop.f32.mrb[0].mxu0
      %v1345 = vadd.f32 0.0, %v1344
      %v1346 = vpop.f32.mrb[0].mxu0
      %1347 = vmatprep.mubr.f32.mxu0 0.0
      %1348 = vmatmul.mubr.f32.gmra.mrb[0].mxu0 %v858
      %v1349 = vpop.f32.mrb[0].mxu0
      %v1350 = vadd.f32 0.0, %v1349
      %v1351 = vpop.f32.mrb[0].mxu0
      %1352 = vmatprep.mubr.f32.mxu0 0.0
      %1353 = vmatmul.mubr.f32.gmra.mrb[0].mxu0 %v774
      %v1354 = vpop.f32.mrb[0].mxu0
      %v1355 = vadd.f32 0.0, %v1354
      %v1356 = vpop.f32.mrb[0].mxu0
      %1357 = vmatprep.mubr.f32.mxu0 0.0
      %1358 = vmatmul.mubr.f32.gmra.mrb[0].mxu0 %v859
      %v1359 = vpop.f32.mrb[0].mxu0
      %v1360 = vadd.f32 0.0, %v1359
      %v1361 = vpop.f32.mrb[0].mxu0
      %1362 = vmatprep.mubr.f32.mxu0 0.0
      %1363 = vmatmul.mubr.f32.gmra.mrb[0].mxu0 %v777
      %v1364 = vpop.f32.mrb[0].mxu0
      %v1365 = vadd.f32 0.0, %v1364
      %v1366 = vpop.f32.mrb[0].mxu0
      %1367 = vmatprep.mubr.f32.mxu0 0.0
      %1368 = vmatmul.mubr.f32.gmra.mrb[0].mxu0 %v860
      %v1369 = vpop.f32.mrb[0].mxu0
      %v1370 = vadd.f32 0.0, %v1369
      %v1371 = vpop.f32.mrb[0].mxu0
      %1372 = vmatprep.mubr.f32.mxu0 0.0
      %1373 = vmatmul.mubr.f32.gmra.mrb[0].mxu0 %v780
      %v1374 = vpop.f32.mrb[0].mxu0
      %v1375 = vadd.f32 0.0, %v1374
      %v1376 = vpop.f32.mrb[0].mxu0
      %1377 = vmatprep.mubr.f32.mxu0 0.0
      %1378 = vmatmul.mubr.f32.gmra.mrb[0].mxu0 %v861
      %v1379 = vpop.f32.mrb[0].mxu0
      %v1380 = vadd.f32 0.0, %v1379
      %v1381 = vpop.f32.mrb[0].mxu0
      %1382 = vmatprep.mubr.f32.mxu0 0.0
      %1383 = vmatmul.mubr.f32.gmra.mrb[0].mxu0 %v783
      %v1384 = vpop.f32.mrb[0].mxu0
      %v1385 = vadd.f32 0.0, %v1384
      %v1386 = vpop.f32.mrb[0].mxu0
      %1387 = vmatprep.mubr.f32.mxu0 0.0
      %1388 = vmatmul.mubr.f32.gmra.mrb[0].mxu0 %v862
      %v1389 = vpop.f32.mrb[0].mxu0
      %v1390 = vadd.f32 0.0, %v1389
      %v1391 = vpop.f32.mrb[0].mxu0
      %1392 = vmatprep.mubr.f32.mxu0 0.0
      %1393 = vmatmul.mubr.f32.gmra.mrb[0].mxu0 %v786
      %v1394 = vpop.f32.mrb[0].mxu0
      %v1395 = vadd.f32 0.0, %v1394
      %v1396 = vpop.f32.mrb[0].mxu0
      %1397 = vmatprep.mubr.f32.mxu0 0.0
      %1398 = vmatmul.mubr.f32.gmra.mrb[0].mxu0 %v863
      %v1399 = vpop.f32.mrb[0].mxu0
      %v1400 = vadd.f32 0.0, %v1399
      %v1401 = vpop.f32.mrb[0].mxu0
      %1402 = vmatprep.mubr.f32.mxu0 0.0
      %1403 = vmatmul.mubr.f32.gmra.mrb[0].mxu0 %v789
      %v1404 = vpop.f32.mrb[0].mxu0
      %v1405 = vadd.f32 0.0, %v1404
      %v1406 = vpop.f32.mrb[0].mxu0
      %1407 = vmatprep.mubr.f32.mxu0 0.0
      %1408 = vmatmul.mubr.f32.gmra.mrb[0].mxu0 %v864
      %v1409 = vpop.f32.mrb[0].mxu0
      %v1410 = vadd.f32 0.0, %v1409
      %v1411 = vpop.f32.mrb[0].mxu0
      %1412 = vmatprep.mubr.f32.mxu0 0.0
      %1413 = vmatmul.mubr.f32.gmra.mrb[0].mxu0 %v792
      %v1414 = vpop.f32.mrb[0].mxu0
      %v1415 = vadd.f32 0.0, %v1414
      %v1416 = vpop.f32.mrb[0].mxu0
      %1417 = vmatprep.mubr.f32.mxu0 0.0
      %1418 = vmatmul.mubr.f32.gmra.mrb[0].mxu0 %v865
      %v1419 = vpop.f32.mrb[0].mxu0
      %v1420 = vadd.f32 0.0, %v1419
      %v1421 = vpop.f32.mrb[0].mxu0
      %1422 = vmatprep.mubr.f32.mxu0 0.0
      %1423 = vmatmul.mubr.f32.gmra.mrb[0].mxu0 %v795
      %v1424 = vpop.f32.mrb[0].mxu0
      %v1425 = vadd.f32 0.0, %v1424
      %v1426 = vpop.f32.mrb[0].mxu0
      %1427 = vmatprep.mubr.f32.mxu0 0.0
      %1428 = vmatmul.mubr.f32.gmra.mrb[0].mxu0 %v866
      %v1429 = vpop.f32.mrb[0].mxu0
      %v1430 = vadd.f32 0.0, %v1429
      %v1431 = vpop.f32.mrb[0].mxu0
      %1432 = vmatprep.mubr.f32.mxu0 0.0
      %1433 = vmatmul.mubr.f32.gmra.mrb[0].mxu0 %v798
      %v1434 = vpop.f32.mrb[0].mxu0
      %v1435 = vadd.f32 0.0, %v1434
      %v1436 = vpop.f32.mrb[0].mxu0
      %1437 = vmatprep.mubr.f32.mxu0 0.0
      %1438 = vmatmul.mubr.f32.gmra.mrb[0].mxu0 %v867
      %v1439 = vpop.f32.mrb[0].mxu0
      %v1440 = vadd.f32 0.0, %v1439
      %v1441 = vpop.f32.mrb[0].mxu0
      %1442 = vmatprep.mubr.f32.mxu0 0.0
      %1443 = vmatmul.mubr.f32.gmra.mrb[0].mxu0 %v801
      %v1444 = vpop.f32.mrb[0].mxu0
      %v1445 = vadd.f32 0.0, %v1444
      %v1446 = vpop.f32.mrb[0].mxu0
      %1447 = vmatprep.mubr.f32.mxu0 0.0
      %1448 = vmatmul.mubr.f32.gmra.mrb[0].mxu0 %v868
      %v1449 = vpop.f32.mrb[0].mxu0
      %v1450 = vadd.f32 0.0, %v1449
      %v1451 = vpop.f32.mrb[0].mxu0
      %1452 = vmatprep.mubr.f32.mxu0 0.0
      %1453 = vmatmul.mubr.f32.gmra.mrb[0].mxu0 %v804
      %v1454 = vpop.f32.mrb[0].mxu0
      %v1455 = vadd.f32 0.0, %v1454
      %v1456 = vpop.f32.mrb[0].mxu0
      %1457 = vmatprep.mubr.f32.mxu0 0.0
      %1458 = vmatmul.mubr.f32.gmra.mrb[0].mxu0 %v869
      %v1459 = vpop.f32.mrb[0].mxu0
      %v1460 = vadd.f32 0.0, %v1459
      %v1461 = vpop.f32.mrb[0].mxu0
      %1462 = vmatprep.mubr.f32.mxu0 0.0
      %1463 = vmatmul.mubr.f32.gmra.mrb[0].mxu0 %v807
      %v1464 = vpop.f32.mrb[0].mxu0
      %v1465 = vadd.f32 0.0, %v1464
      %v1466 = vpop.f32.mrb[0].mxu0
      %1467 = vmatprep.mubr.f32.mxu0 0.0
      %1468 = vmatmul.mubr.f32.gmra.mrb[0].mxu0 %v870
      %v1469 = vpop.f32.mrb[0].mxu0
      %v1470 = vadd.f32 0.0, %v1469
      %v1471 = vpop.f32.mrb[0].mxu0
      %1472 = vmatprep.mubr.f32.mxu0 0.0
      %1473 = vmatmul.mubr.f32.gmra.mrb[0].mxu0 %v810
      %v1474 = vpop.f32.mrb[0].mxu0
      %v1475 = vadd.f32 0.0, %v1474
      %v1476 = vpop.f32.mrb[0].mxu0
      %1477 = vmatprep.mubr.f32.mxu0 0.0
      %1478 = vmatmul.mubr.f32.gmra.mrb[0].mxu0 %v871
      %v1479 = vpop.f32.mrb[0].mxu0
      %v1480 = vadd.f32 0.0, %v1479
      %v1481 = vpop.f32.mrb[0].mxu0
      %1482 = vmatprep.mubr.f32.mxu0 0.0
      %1483 = vmatmul.mubr.f32.gmra.mrb[0].mxu0 %v813
      %v1484 = vpop.f32.mrb[0].mxu0
      %v1485 = vadd.f32 0.0, %v1484
      %v1486 = vpop.f32.mrb[0].mxu0
      %1487 = vmatprep.mubr.f32.mxu0 0.0
      %1488 = vmatmul.mubr.f32.gmra.mrb[0].mxu0 %v872
      %v1489 = vpop.f32.mrb[0].mxu0
      %v1490 = vadd.f32 0.0, %v1489
      %v1491 = vpop.f32.mrb[0].mxu0
      %1492 = vmatprep.mubr.f32.mxu0 0.0
      %1493 = vmatmul.mubr.f32.gmra.mrb[0].mxu0 %v816
      %v1494 = vpop.f32.mrb[0].mxu0
      %v1495 = vadd.f32 0.0, %v1494
      %v1496 = vpop.f32.mrb[0].mxu0
      %1497 = vdwg.mxu0
      %v1498 = vld [vmem:[#allocation2] sm:$0xff]
      %v1499 = vld [vmem:[#allocation2 + $0x8] sm:$0xff]
      %v1500 = vld [vmem:[#allocation2 + $0x10] sm:$0xff]
      %v1501 = vld [vmem:[#allocation2 + $0x18] sm:$0xff]
      %v1502 = vld [vmem:[#allocation2 + $0x20] sm:$0xff]
      %v1503 = vld [vmem:[#allocation2 + $0x28] sm:$0xff]
      %v1504 = vld [vmem:[#allocation2 + $0x30] sm:$0xff]
      %v1505 = vld [vmem:[#allocation2 + $0x38] sm:$0xff]
      %v1506 = vld [vmem:[#allocation2 + $0x40] sm:$0xff]
      %v1507 = vld [vmem:[#allocation2 + $0x48] sm:$0xff]
      %v1508 = vld [vmem:[#allocation2 + $0x50] sm:$0xff]
      %v1509 = vld [vmem:[#allocation2 + $0x58] sm:$0xff]
      %v1510 = vld [vmem:[#allocation2 + $0x60] sm:$0xff]
      %v1511 = vld [vmem:[#allocation2 + $0x68] sm:$0xff]
      %v1512 = vld [vmem:[#allocation2 + $0x70] sm:$0xff]
      %v1513 = vld [vmem:[#allocation2 + $0x78] sm:$0xff]
      %v1514 = vld [vmem:[#allocation2 + $0x80] sm:$0xff]
      %v1515 = vld [vmem:[#allocation2 + $0x88] sm:$0xff]
      %v1516 = vld [vmem:[#allocation2 + $0x90] sm:$0xff]
      %v1517 = vld [vmem:[#allocation2 + $0x98] sm:$0xff]
      %v1518 = vld [vmem:[#allocation2 + $0xa0] sm:$0xff]
      %v1519 = vld [vmem:[#allocation2 + $0xa8] sm:$0xff]
      %v1520 = vld [vmem:[#allocation2 + $0xb0] sm:$0xff]
      %v1521 = vld [vmem:[#allocation2 + $0xb8] sm:$0xff]
      %v1522 = vld [vmem:[#allocation2 + $0xc0] sm:$0xff]
      %v1523 = vld [vmem:[#allocation2 + $0xc8] sm:$0xff]
      %v1524 = vld [vmem:[#allocation2 + $0xd0] sm:$0xff]
      %v1525 = vld [vmem:[#allocation2 + $0xd8] sm:$0xff]
      %v1526 = vld [vmem:[#allocation2 + $0xe0] sm:$0xff]
      %v1527 = vld [vmem:[#allocation2 + $0xe8] sm:$0xff]
      %v1528 = vld [vmem:[#allocation2 + $0xf0] sm:$0xff]
      %v1529 = vld [vmem:[#allocation2 + $0xf8] sm:$0xff]
      %v1530 = vadd.f32 %v1498, %v1340
      %v1531 = vadd.f32 %v1499, %v1345
      %v1532 = vadd.f32 %v1500, %v1350
      %v1533 = vadd.f32 %v1501, %v1355
      %v1534 = vadd.f32 %v1502, %v1360
      %v1535 = vadd.f32 %v1503, %v1365
      %v1536 = vadd.f32 %v1504, %v1370
      %v1537 = vadd.f32 %v1505, %v1375
      %v1538 = vadd.f32 %v1506, %v1380
      %v1539 = vadd.f32 %v1507, %v1385
      %v1540 = vadd.f32 %v1508, %v1390
      %v1541 = vadd.f32 %v1509, %v1395
      %v1542 = vadd.f32 %v1510, %v1400
      %v1543 = vadd.f32 %v1511, %v1405
      %v1544 = vadd.f32 %v1512, %v1410
      %v1545 = vadd.f32 %v1513, %v1415
      %v1546 = vadd.f32 %v1514, %v1420
      %v1547 = vadd.f32 %v1515, %v1425
      %v1548 = vadd.f32 %v1516, %v1430
      %v1549 = vadd.f32 %v1517, %v1435
      %v1550 = vadd.f32 %v1518, %v1440
      %v1551 = vadd.f32 %v1519, %v1445
      %v1552 = vadd.f32 %v1520, %v1450
      %v1553 = vadd.f32 %v1521, %v1455
      %v1554 = vadd.f32 %v1522, %v1460
      %v1555 = vadd.f32 %v1523, %v1465
      %v1556 = vadd.f32 %v1524, %v1470
      %v1557 = vadd.f32 %v1525, %v1475
      %v1558 = vadd.f32 %v1526, %v1480
      %v1559 = vadd.f32 %v1527, %v1485
      %v1560 = vadd.f32 %v1528, %v1490
      %v1561 = vadd.f32 %v1529, %v1495
      %1562 = vst [vmem:[#allocation2] sm:$0xff] %v1530
      %1563 = vst [vmem:[#allocation2 + $0x8] sm:$0xff] %v1531
      %1564 = vst [vmem:[#allocation2 + $0x10] sm:$0xff] %v1532
      %1565 = vst [vmem:[#allocation2 + $0x18] sm:$0xff] %v1533
      %1566 = vst [vmem:[#allocation2 + $0x20] sm:$0xff] %v1534
      %1567 = vst [vmem:[#allocation2 + $0x28] sm:$0xff] %v1535
      %1568 = vst [vmem:[#allocation2 + $0x30] sm:$0xff] %v1536
      %1569 = vst [vmem:[#allocation2 + $0x38] sm:$0xff] %v1537
      %1570 = vst [vmem:[#allocation2 + $0x40] sm:$0xff] %v1538
      %1571 = vst [vmem:[#allocation2 + $0x48] sm:$0xff] %v1539
      %1572 = vst [vmem:[#allocation2 + $0x50] sm:$0xff] %v1540
      %1573 = vst [vmem:[#allocation2 + $0x58] sm:$0xff] %v1541
      %1574 = vst [vmem:[#allocation2 + $0x60] sm:$0xff] %v1542
      %1575 = vst [vmem:[#allocation2 + $0x68] sm:$0xff] %v1543
      %1576 = vst [vmem:[#allocation2 + $0x70] sm:$0xff] %v1544
      %1577 = vst [vmem:[#allocation2 + $0x78] sm:$0xff] %v1545
      %1578 = vst [vmem:[#allocation2 + $0x80] sm:$0xff] %v1546
      %1579 = vst [vmem:[#allocation2 + $0x88] sm:$0xff] %v1547
      %1580 = vst [vmem:[#allocation2 + $0x90] sm:$0xff] %v1548
      %1581 = vst [vmem:[#allocation2 + $0x98] sm:$0xff] %v1549
      %1582 = vst [vmem:[#allocation2 + $0xa0] sm:$0xff] %v1550
      %1583 = vst [vmem:[#allocation2 + $0xa8] sm:$0xff] %v1551
      %1584 = vst [vmem:[#allocation2 + $0xb0] sm:$0xff] %v1552
      %1585 = vst [vmem:[#allocation2 + $0xb8] sm:$0xff] %v1553
      %1586 = vst [vmem:[#allocation2 + $0xc0] sm:$0xff] %v1554
      %1587 = vst [vmem:[#allocation2 + $0xc8] sm:$0xff] %v1555
      %1588 = vst [vmem:[#allocation2 + $0xd0] sm:$0xff] %v1556
      %1589 = vst [vmem:[#allocation2 + $0xd8] sm:$0xff] %v1557
      %1590 = vst [vmem:[#allocation2 + $0xe0] sm:$0xff] %v1558
      %1591 = vst [vmem:[#allocation2 + $0xe8] sm:$0xff] %v1559
      %1592 = vst [vmem:[#allocation2 + $0xf0] sm:$0xff] %v1560
      %1593 = vst [vmem:[#allocation2 + $0xf8] sm:$0xff] %v1561
      %s1594 = scalar_lea.vmem %s3, 768
      %v1595 = vld [vmem:[%s1594] sm:$0xff]
      %v1596 = vld [vmem:[%s1594 + $0x8] sm:$0xff]
      %v1597 = vld [vmem:[%s1594 + $0x10] sm:$0xff]
      %v1598 = vld [vmem:[%s1594 + $0x18] sm:$0xff]
      %v1599 = vld [vmem:[%s1594 + $0x20] sm:$0xff]
      %v1600 = vld [vmem:[%s1594 + $0x28] sm:$0xff]
      %v1601 = vld [vmem:[%s1594 + $0x30] sm:$0xff]
      %v1602 = vld [vmem:[%s1594 + $0x38] sm:$0xff]
      %v1603 = vld [vmem:[%s1594 + $0x40] sm:$0xff]
      %v1604 = vld [vmem:[%s1594 + $0x48] sm:$0xff]
      %v1605 = vld [vmem:[%s1594 + $0x50] sm:$0xff]
      %v1606 = vld [vmem:[%s1594 + $0x58] sm:$0xff]
      %v1607 = vld [vmem:[%s1594 + $0x60] sm:$0xff]
      %v1608 = vld [vmem:[%s1594 + $0x68] sm:$0xff]
      %v1609 = vld [vmem:[%s1594 + $0x70] sm:$0xff]
      %v1610 = vld [vmem:[%s1594 + $0x78] sm:$0xff]
      %1611 = vmatprep.subr.mxu0 0.0
      %1612 = vmatpush1.msra.mxu0 %v1595
      %1613 = vmatprep.subr.mxu0 0.0
      %1614 = vmatpush1.msra.mxu0 %v1596
      %1615 = vmatprep.subr.mxu0 0.0
      %1616 = vmatpush1.msra.mxu0 %v1597
      %1617 = vmatprep.subr.mxu0 0.0
      %1618 = vmatpush1.msra.mxu0 %v1598
      %1619 = vmatprep.subr.mxu0 0.0
      %1620 = vmatpush1.msra.mxu0 %v1599
      %1621 = vmatprep.subr.mxu0 0.0
      %1622 = vmatpush1.msra.mxu0 %v1600
      %1623 = vmatprep.subr.mxu0 0.0
      %1624 = vmatpush1.msra.mxu0 %v1601
      %1625 = vmatprep.subr.mxu0 0.0
      %1626 = vmatpush1.msra.mxu0 %v1602
      %1627 = vmatprep.subr.mxu0 0.0
      %1628 = vmatpush1.msra.mxu0 %v1603
      %1629 = vmatprep.subr.mxu0 0.0
      %1630 = vmatpush1.msra.mxu0 %v1604
      %1631 = vmatprep.subr.mxu0 0.0
      %1632 = vmatpush1.msra.mxu0 %v1605
      %1633 = vmatprep.subr.mxu0 0.0
      %1634 = vmatpush1.msra.mxu0 %v1606
      %1635 = vmatprep.subr.mxu0 0.0
      %1636 = vmatpush1.msra.mxu0 %v1607
      %1637 = vmatprep.subr.mxu0 0.0
      %1638 = vmatpush1.msra.mxu0 %v1608
      %1639 = vmatprep.subr.mxu0 0.0
      %1640 = vmatpush1.msra.mxu0 %v1609
      %1641 = vmatprep.subr.mxu0 0.0
      %1642 = vmatpush1.msra.mxu0 %v1610
      %1643 = vmatprep.subr.mxu0 0.0
      %1644 = vmatpush1.msra.mxu0 0.0
      %1645 = vmatprep.subr.mxu0 0.0
      %1646 = vmatpush1.msra.mxu0 0.0
      %1647 = vmatprep.subr.mxu0 0.0
      %1648 = vmatpush1.msra.mxu0 0.0
      %1649 = vmatprep.subr.mxu0 0.0
      %1650 = vmatpush1.msra.mxu0 0.0
      %1651 = vmatprep.subr.mxu0 0.0
      %1652 = vmatpush1.msra.mxu0 0.0
      %1653 = vmatprep.subr.mxu0 0.0
      %1654 = vmatpush1.msra.mxu0 0.0
      %1655 = vmatprep.subr.mxu0 0.0
      %1656 = vmatpush1.msra.mxu0 0.0
      %1657 = vmatprep.subr.mxu0 0.0
      %1658 = vmatpush1.msra.mxu0 0.0
      %1659 = vmatprep.subr.mxu0 0.0
      %1660 = vmatpush1.msra.mxu0 0.0
      %1661 = vmatprep.subr.mxu0 0.0
      %1662 = vmatpush1.msra.mxu0 0.0
      %1663 = vmatprep.subr.mxu0 0.0
      %1664 = vmatpush1.msra.mxu0 0.0
      %1665 = vmatprep.subr.mxu0 0.0
      %1666 = vmatpush1.msra.mxu0 0.0
      %1667 = vmatprep.subr.mxu0 0.0
      %1668 = vmatpush1.msra.mxu0 0.0
      %1669 = vmatprep.subr.mxu0 0.0
      %1670 = vmatpush1.msra.mxu0 0.0
      %1671 = vmatprep.subr.mxu0 0.0
      %1672 = vmatpush1.msra.mxu0 0.0
      %1673 = vmatprep.subr.mxu0 0.0
      %1674 = vmatpush1.msra.mxu0 0.0
      %1675 = vmatprep.mubr.f32.mxu0 0.0
      %1676 = vmatmul.mubr.f32.gmra.mrb[0].mxu0 %v858
      %v1677 = vpop.f32.mrb[0].mxu0
      %v1678 = vadd.f32 0.0, %v1677
      %v1679 = vpop.f32.mrb[0].mxu0
      %1680 = vmatprep.mubr.f32.mxu0 0.0
      %1681 = vmatmul.mubr.f32.gmra.mrb[0].mxu0 %v774
      %v1682 = vpop.f32.mrb[0].mxu0
      %v1683 = vadd.f32 0.0, %v1682
      %v1684 = vpop.f32.mrb[0].mxu0
      %1685 = vmatprep.mubr.f32.mxu0 0.0
      %1686 = vmatmul.mubr.f32.gmra.mrb[0].mxu0 %v859
      %v1687 = vpop.f32.mrb[0].mxu0
      %v1688 = vadd.f32 0.0, %v1687
      %v1689 = vpop.f32.mrb[0].mxu0
      %1690 = vmatprep.mubr.f32.mxu0 0.0
      %1691 = vmatmul.mubr.f32.gmra.mrb[0].mxu0 %v777
      %v1692 = vpop.f32.mrb[0].mxu0
      %v1693 = vadd.f32 0.0, %v1692
      %v1694 = vpop.f32.mrb[0].mxu0
      %1695 = vmatprep.mubr.f32.mxu0 0.0
      %1696 = vmatmul.mubr.f32.gmra.mrb[0].mxu0 %v860
      %v1697 = vpop.f32.mrb[0].mxu0
      %v1698 = vadd.f32 0.0, %v1697
      %v1699 = vpop.f32.mrb[0].mxu0
      %1700 = vmatprep.mubr.f32.mxu0 0.0
      %1701 = vmatmul.mubr.f32.gmra.mrb[0].mxu0 %v780
      %v1702 = vpop.f32.mrb[0].mxu0
      %v1703 = vadd.f32 0.0, %v1702
      %v1704 = vpop.f32.mrb[0].mxu0
      %1705 = vmatprep.mubr.f32.mxu0 0.0
      %1706 = vmatmul.mubr.f32.gmra.mrb[0].mxu0 %v861
      %v1707 = vpop.f32.mrb[0].mxu0
      %v1708 = vadd.f32 0.0, %v1707
      %v1709 = vpop.f32.mrb[0].mxu0
      %1710 = vmatprep.mubr.f32.mxu0 0.0
      %1711 = vmatmul.mubr.f32.gmra.mrb[0].mxu0 %v783
      %v1712 = vpop.f32.mrb[0].mxu0
      %v1713 = vadd.f32 0.0, %v1712
      %v1714 = vpop.f32.mrb[0].mxu0
      %1715 = vmatprep.mubr.f32.mxu0 0.0
      %1716 = vmatmul.mubr.f32.gmra.mrb[0].mxu0 %v862
      %v1717 = vpop.f32.mrb[0].mxu0
      %v1718 = vadd.f32 0.0, %v1717
      %v1719 = vpop.f32.mrb[0].mxu0
      %1720 = vmatprep.mubr.f32.mxu0 0.0
      %1721 = vmatmul.mubr.f32.gmra.mrb[0].mxu0 %v786
      %v1722 = vpop.f32.mrb[0].mxu0
      %v1723 = vadd.f32 0.0, %v1722
      %v1724 = vpop.f32.mrb[0].mxu0
      %1725 = vmatprep.mubr.f32.mxu0 0.0
      %1726 = vmatmul.mubr.f32.gmra.mrb[0].mxu0 %v863
      %v1727 = vpop.f32.mrb[0].mxu0
      %v1728 = vadd.f32 0.0, %v1727
      %v1729 = vpop.f32.mrb[0].mxu0
      %1730 = vmatprep.mubr.f32.mxu0 0.0
      %1731 = vmatmul.mubr.f32.gmra.mrb[0].mxu0 %v789
      %v1732 = vpop.f32.mrb[0].mxu0
      %v1733 = vadd.f32 0.0, %v1732
      %v1734 = vpop.f32.mrb[0].mxu0
      %1735 = vmatprep.mubr.f32.mxu0 0.0
      %1736 = vmatmul.mubr.f32.gmra.mrb[0].mxu0 %v864
      %v1737 = vpop.f32.mrb[0].mxu0
      %v1738 = vadd.f32 0.0, %v1737
      %v1739 = vpop.f32.mrb[0].mxu0
      %1740 = vmatprep.mubr.f32.mxu0 0.0
      %1741 = vmatmul.mubr.f32.gmra.mrb[0].mxu0 %v792
      %v1742 = vpop.f32.mrb[0].mxu0
      %v1743 = vadd.f32 0.0, %v1742
      %v1744 = vpop.f32.mrb[0].mxu0
      %1745 = vmatprep.mubr.f32.mxu0 0.0
      %1746 = vmatmul.mubr.f32.gmra.mrb[0].mxu0 %v865
      %v1747 = vpop.f32.mrb[0].mxu0
      %v1748 = vadd.f32 0.0, %v1747
      %v1749 = vpop.f32.mrb[0].mxu0
      %1750 = vmatprep.mubr.f32.mxu0 0.0
      %1751 = vmatmul.mubr.f32.gmra.mrb[0].mxu0 %v795
      %v1752 = vpop.f32.mrb[0].mxu0
      %v1753 = vadd.f32 0.0, %v1752
      %v1754 = vpop.f32.mrb[0].mxu0
      %1755 = vmatprep.mubr.f32.mxu0 0.0
      %1756 = vmatmul.mubr.f32.gmra.mrb[0].mxu0 %v866
      %v1757 = vpop.f32.mrb[0].mxu0
      %v1758 = vadd.f32 0.0, %v1757
      %v1759 = vpop.f32.mrb[0].mxu0
      %1760 = vmatprep.mubr.f32.mxu0 0.0
      %1761 = vmatmul.mubr.f32.gmra.mrb[0].mxu0 %v798
      %v1762 = vpop.f32.mrb[0].mxu0
      %v1763 = vadd.f32 0.0, %v1762
      %v1764 = vpop.f32.mrb[0].mxu0
      %1765 = vmatprep.mubr.f32.mxu0 0.0
      %1766 = vmatmul.mubr.f32.gmra.mrb[0].mxu0 %v867
      %v1767 = vpop.f32.mrb[0].mxu0
      %v1768 = vadd.f32 0.0, %v1767
      %v1769 = vpop.f32.mrb[0].mxu0
      %1770 = vmatprep.mubr.f32.mxu0 0.0
      %1771 = vmatmul.mubr.f32.gmra.mrb[0].mxu0 %v801
      %v1772 = vpop.f32.mrb[0].mxu0
      %v1773 = vadd.f32 0.0, %v1772
      %v1774 = vpop.f32.mrb[0].mxu0
      %1775 = vmatprep.mubr.f32.mxu0 0.0
      %1776 = vmatmul.mubr.f32.gmra.mrb[0].mxu0 %v868
      %v1777 = vpop.f32.mrb[0].mxu0
      %v1778 = vadd.f32 0.0, %v1777
      %v1779 = vpop.f32.mrb[0].mxu0
      %1780 = vmatprep.mubr.f32.mxu0 0.0
      %1781 = vmatmul.mubr.f32.gmra.mrb[0].mxu0 %v804
      %v1782 = vpop.f32.mrb[0].mxu0
      %v1783 = vadd.f32 0.0, %v1782
      %v1784 = vpop.f32.mrb[0].mxu0
      %1785 = vmatprep.mubr.f32.mxu0 0.0
      %1786 = vmatmul.mubr.f32.gmra.mrb[0].mxu0 %v869
      %v1787 = vpop.f32.mrb[0].mxu0
      %v1788 = vadd.f32 0.0, %v1787
      %v1789 = vpop.f32.mrb[0].mxu0
      %1790 = vmatprep.mubr.f32.mxu0 0.0
      %1791 = vmatmul.mubr.f32.gmra.mrb[0].mxu0 %v807
      %v1792 = vpop.f32.mrb[0].mxu0
      %v1793 = vadd.f32 0.0, %v1792
      %v1794 = vpop.f32.mrb[0].mxu0
      %1795 = vmatprep.mubr.f32.mxu0 0.0
      %1796 = vmatmul.mubr.f32.gmra.mrb[0].mxu0 %v870
      %v1797 = vpop.f32.mrb[0].mxu0
      %v1798 = vadd.f32 0.0, %v1797
      %v1799 = vpop.f32.mrb[0].mxu0
      %1800 = vmatprep.mubr.f32.mxu0 0.0
      %1801 = vmatmul.mubr.f32.gmra.mrb[0].mxu0 %v810
      %v1802 = vpop.f32.mrb[0].mxu0
      %v1803 = vadd.f32 0.0, %v1802
      %v1804 = vpop.f32.mrb[0].mxu0
      %1805 = vmatprep.mubr.f32.mxu0 0.0
      %1806 = vmatmul.mubr.f32.gmra.mrb[0].mxu0 %v871
      %v1807 = vpop.f32.mrb[0].mxu0
      %v1808 = vadd.f32 0.0, %v1807
      %v1809 = vpop.f32.mrb[0].mxu0
      %1810 = vmatprep.mubr.f32.mxu0 0.0
      %1811 = vmatmul.mubr.f32.gmra.mrb[0].mxu0 %v813
      %v1812 = vpop.f32.mrb[0].mxu0
      %v1813 = vadd.f32 0.0, %v1812
      %v1814 = vpop.f32.mrb[0].mxu0
      %1815 = vmatprep.mubr.f32.mxu0 0.0
      %1816 = vmatmul.mubr.f32.gmra.mrb[0].mxu0 %v872
      %v1817 = vpop.f32.mrb[0].mxu0
      %v1818 = vadd.f32 0.0, %v1817
      %v1819 = vpop.f32.mrb[0].mxu0
      %1820 = vmatprep.mubr.f32.mxu0 0.0
      %1821 = vmatmul.mubr.f32.gmra.mrb[0].mxu0 %v816
      %v1822 = vpop.f32.mrb[0].mxu0
      %v1823 = vadd.f32 0.0, %v1822
      %v1824 = vpop.f32.mrb[0].mxu0
      %1825 = vmatprep.mubr.f32.mxu0 0.0
      %1826 = vmatmul.mubr.f32.gmra.mrb[0].mxu0 %v873
      %v1827 = vpop.f32.mrb[0].mxu0
      %v1828 = vadd.f32 0.0, %v1827
      %v1829 = vpop.f32.mrb[0].mxu0
      %1830 = vmatprep.mubr.f32.mxu0 0.0
      %1831 = vmatmul.mubr.f32.gmra.mrb[0].mxu0 %v819
      %v1832 = vpop.f32.mrb[0].mxu0
      %v1833 = vadd.f32 0.0, %v1832
      %v1834 = vpop.f32.mrb[0].mxu0
      %1835 = vdwg.mxu0
      %v1836 = vld [vmem:[#allocation2] sm:$0xff]
      %v1837 = vld [vmem:[#allocation2 + $0x8] sm:$0xff]
      %v1838 = vld [vmem:[#allocation2 + $0x10] sm:$0xff]
      %v1839 = vld [vmem:[#allocation2 + $0x18] sm:$0xff]
      %v1840 = vld [vmem:[#allocation2 + $0x20] sm:$0xff]
      %v1841 = vld [vmem:[#allocation2 + $0x28] sm:$0xff]
      %v1842 = vld [vmem:[#allocation2 + $0x30] sm:$0xff]
      %v1843 = vld [vmem:[#allocation2 + $0x38] sm:$0xff]
      %v1844 = vld [vmem:[#allocation2 + $0x40] sm:$0xff]
      %v1845 = vld [vmem:[#allocation2 + $0x48] sm:$0xff]
      %v1846 = vld [vmem:[#allocation2 + $0x50] sm:$0xff]
      %v1847 = vld [vmem:[#allocation2 + $0x58] sm:$0xff]
      %v1848 = vld [vmem:[#allocation2 + $0x60] sm:$0xff]
      %v1849 = vld [vmem:[#allocation2 + $0x68] sm:$0xff]
      %v1850 = vld [vmem:[#allocation2 + $0x70] sm:$0xff]
      %v1851 = vld [vmem:[#allocation2 + $0x78] sm:$0xff]
      %v1852 = vld [vmem:[#allocation2 + $0x80] sm:$0xff]
      %v1853 = vld [vmem:[#allocation2 + $0x88] sm:$0xff]
      %v1854 = vld [vmem:[#allocation2 + $0x90] sm:$0xff]
      %v1855 = vld [vmem:[#allocation2 + $0x98] sm:$0xff]
      %v1856 = vld [vmem:[#allocation2 + $0xa0] sm:$0xff]
      %v1857 = vld [vmem:[#allocation2 + $0xa8] sm:$0xff]
      %v1858 = vld [vmem:[#allocation2 + $0xb0] sm:$0xff]
      %v1859 = vld [vmem:[#allocation2 + $0xb8] sm:$0xff]
      %v1860 = vld [vmem:[#allocation2 + $0xc0] sm:$0xff]
      %v1861 = vld [vmem:[#allocation2 + $0xc8] sm:$0xff]
      %v1862 = vld [vmem:[#allocation2 + $0xd0] sm:$0xff]
      %v1863 = vld [vmem:[#allocation2 + $0xd8] sm:$0xff]
      %v1864 = vld [vmem:[#allocation2 + $0xe0] sm:$0xff]
      %v1865 = vld [vmem:[#allocation2 + $0xe8] sm:$0xff]
      %v1866 = vld [vmem:[#allocation2 + $0xf0] sm:$0xff]
      %v1867 = vld [vmem:[#allocation2 + $0xf8] sm:$0xff]
      %v1868 = vadd.f32 %v1836, %v1678
      %v1869 = vadd.f32 %v1837, %v1683
      %v1870 = vadd.f32 %v1838, %v1688
      %v1871 = vadd.f32 %v1839, %v1693
      %v1872 = vadd.f32 %v1840, %v1698
      %v1873 = vadd.f32 %v1841, %v1703
      %v1874 = vadd.f32 %v1842, %v1708
      %v1875 = vadd.f32 %v1843, %v1713
      %v1876 = vadd.f32 %v1844, %v1718
      %v1877 = vadd.f32 %v1845, %v1723
      %v1878 = vadd.f32 %v1846, %v1728
      %v1879 = vadd.f32 %v1847, %v1733
      %v1880 = vadd.f32 %v1848, %v1738
      %v1881 = vadd.f32 %v1849, %v1743
      %v1882 = vadd.f32 %v1850, %v1748
      %v1883 = vadd.f32 %v1851, %v1753
      %v1884 = vadd.f32 %v1852, %v1758
      %v1885 = vadd.f32 %v1853, %v1763
      %v1886 = vadd.f32 %v1854, %v1768
      %v1887 = vadd.f32 %v1855, %v1773
      %v1888 = vadd.f32 %v1856, %v1778
      %v1889 = vadd.f32 %v1857, %v1783
      %v1890 = vadd.f32 %v1858, %v1788
      %v1891 = vadd.f32 %v1859, %v1793
      %v1892 = vadd.f32 %v1860, %v1798
      %v1893 = vadd.f32 %v1861, %v1803
      %v1894 = vadd.f32 %v1862, %v1808
      %v1895 = vadd.f32 %v1863, %v1813
      %v1896 = vadd.f32 %v1864, %v1818
      %v1897 = vadd.f32 %v1865, %v1823
      %v1898 = vadd.f32 %v1866, %v1828
      %v1899 = vadd.f32 %v1867, %v1833
      %1900 = vst [vmem:[#allocation2] sm:$0xff] %v1868
      %1901 = vst [vmem:[#allocation2 + $0x8] sm:$0xff] %v1869
      %1902 = vst [vmem:[#allocation2 + $0x10] sm:$0xff] %v1870
      %1903 = vst [vmem:[#allocation2 + $0x18] sm:$0xff] %v1871
      %1904 = vst [vmem:[#allocation2 + $0x20] sm:$0xff] %v1872
      %1905 = vst [vmem:[#allocation2 + $0x28] sm:$0xff] %v1873
      %1906 = vst [vmem:[#allocation2 + $0x30] sm:$0xff] %v1874
      %1907 = vst [vmem:[#allocation2 + $0x38] sm:$0xff] %v1875
      %1908 = vst [vmem:[#allocation2 + $0x40] sm:$0xff] %v1876
      %1909 = vst [vmem:[#allocation2 + $0x48] sm:$0xff] %v1877
      %1910 = vst [vmem:[#allocation2 + $0x50] sm:$0xff] %v1878
      %1911 = vst [vmem:[#allocation2 + $0x58] sm:$0xff] %v1879
      %1912 = vst [vmem:[#allocation2 + $0x60] sm:$0xff] %v1880
      %1913 = vst [vmem:[#allocation2 + $0x68] sm:$0xff] %v1881
      %1914 = vst [vmem:[#allocation2 + $0x70] sm:$0xff] %v1882
      %1915 = vst [vmem:[#allocation2 + $0x78] sm:$0xff] %v1883
      %1916 = vst [vmem:[#allocation2 + $0x80] sm:$0xff] %v1884
      %1917 = vst [vmem:[#allocation2 + $0x88] sm:$0xff] %v1885
      %1918 = vst [vmem:[#allocation2 + $0x90] sm:$0xff] %v1886
      %1919 = vst [vmem:[#allocation2 + $0x98] sm:$0xff] %v1887
      %1920 = vst [vmem:[#allocation2 + $0xa0] sm:$0xff] %v1888
      %1921 = vst [vmem:[#allocation2 + $0xa8] sm:$0xff] %v1889
      %1922 = vst [vmem:[#allocation2 + $0xb0] sm:$0xff] %v1890
      %1923 = vst [vmem:[#allocation2 + $0xb8] sm:$0xff] %v1891
      %1924 = vst [vmem:[#allocation2 + $0xc0] sm:$0xff] %v1892
      %1925 = vst [vmem:[#allocation2 + $0xc8] sm:$0xff] %v1893
      %1926 = vst [vmem:[#allocation2 + $0xd0] sm:$0xff] %v1894
      %1927 = vst [vmem:[#allocation2 + $0xd8] sm:$0xff] %v1895
      %1928 = vst [vmem:[#allocation2 + $0xe0] sm:$0xff] %v1896
      %1929 = vst [vmem:[#allocation2 + $0xe8] sm:$0xff] %v1897
      %1930 = vst [vmem:[#allocation2 + $0xf0] sm:$0xff] %v1898
      %1931 = vst [vmem:[#allocation2 + $0xf8] sm:$0xff] %v1899
      %s1932 = scalar_lea.vmem %s3, 128
      %v1933 = vld [vmem:[%s1932] sm:$0xff]
      %v1934 = vld [vmem:[%s1932 + $0x8] sm:$0xff]
      %v1935 = vld [vmem:[%s1932 + $0x10] sm:$0xff]
      %v1936 = vld [vmem:[%s1932 + $0x18] sm:$0xff]
      %v1937 = vld [vmem:[%s1932 + $0x20] sm:$0xff]
      %v1938 = vld [vmem:[%s1932 + $0x28] sm:$0xff]
      %v1939 = vld [vmem:[%s1932 + $0x30] sm:$0xff]
      %v1940 = vld [vmem:[%s1932 + $0x38] sm:$0xff]
      %v1941 = vld [vmem:[%s1932 + $0x40] sm:$0xff]
      %v1942 = vld [vmem:[%s1932 + $0x48] sm:$0xff]
      %v1943 = vld [vmem:[%s1932 + $0x50] sm:$0xff]
      %v1944 = vld [vmem:[%s1932 + $0x58] sm:$0xff]
      %v1945 = vld [vmem:[%s1932 + $0x60] sm:$0xff]
      %v1946 = vld [vmem:[%s1932 + $0x68] sm:$0xff]
      %v1947 = vld [vmem:[%s1932 + $0x70] sm:$0xff]
      %v1948 = vld [vmem:[%s1932 + $0x78] sm:$0xff]
      %1949 = vmatprep.subr.mxu0 0.0
      %1950 = vmatpush1.msra.mxu0 %v1933
      %1951 = vmatprep.subr.mxu0 0.0
      %1952 = vmatpush1.msra.mxu0 %v1934
      %1953 = vmatprep.subr.mxu0 0.0
      %1954 = vmatpush1.msra.mxu0 %v1935
      %1955 = vmatprep.subr.mxu0 0.0
      %1956 = vmatpush1.msra.mxu0 %v1936
      %1957 = vmatprep.subr.mxu0 0.0
      %1958 = vmatpush1.msra.mxu0 %v1937
      %1959 = vmatprep.subr.mxu0 0.0
      %1960 = vmatpush1.msra.mxu0 %v1938
      %1961 = vmatprep.subr.mxu0 0.0
      %1962 = vmatpush1.msra.mxu0 %v1939
      %1963 = vmatprep.subr.mxu0 0.0
      %1964 = vmatpush1.msra.mxu0 %v1940
      %1965 = vmatprep.subr.mxu0 0.0
      %1966 = vmatpush1.msra.mxu0 %v1941
      %1967 = vmatprep.subr.mxu0 0.0
      %1968 = vmatpush1.msra.mxu0 %v1942
      %1969 = vmatprep.subr.mxu0 0.0
      %1970 = vmatpush1.msra.mxu0 %v1943
      %1971 = vmatprep.subr.mxu0 0.0
      %1972 = vmatpush1.msra.mxu0 %v1944
      %1973 = vmatprep.subr.mxu0 0.0
      %1974 = vmatpush1.msra.mxu0 %v1945
      %1975 = vmatprep.subr.mxu0 0.0
      %1976 = vmatpush1.msra.mxu0 %v1946
      %1977 = vmatprep.subr.mxu0 0.0
      %1978 = vmatpush1.msra.mxu0 %v1947
      %1979 = vmatprep.subr.mxu0 0.0
      %1980 = vmatpush1.msra.mxu0 %v1948
      %1981 = vmatprep.subr.mxu0 0.0
      %1982 = vmatpush1.msra.mxu0 0.0
      %1983 = vmatprep.subr.mxu0 0.0
      %1984 = vmatpush1.msra.mxu0 0.0
      %1985 = vmatprep.subr.mxu0 0.0
      %1986 = vmatpush1.msra.mxu0 0.0
      %1987 = vmatprep.subr.mxu0 0.0
      %1988 = vmatpush1.msra.mxu0 0.0
      %1989 = vmatprep.subr.mxu0 0.0
      %1990 = vmatpush1.msra.mxu0 0.0
      %1991 = vmatprep.subr.mxu0 0.0
      %1992 = vmatpush1.msra.mxu0 0.0
      %1993 = vmatprep.subr.mxu0 0.0
      %1994 = vmatpush1.msra.mxu0 0.0
      %1995 = vmatprep.subr.mxu0 0.0
      %1996 = vmatpush1.msra.mxu0 0.0
      %1997 = vmatprep.subr.mxu0 0.0
      %1998 = vmatpush1.msra.mxu0 0.0
      %1999 = vmatprep.subr.mxu0 0.0
      %2000 = vmatpush1.msra.mxu0 0.0
      %2001 = vmatprep.subr.mxu0 0.0
      %2002 = vmatpush1.msra.mxu0 0.0
      %2003 = vmatprep.subr.mxu0 0.0
      %2004 = vmatpush1.msra.mxu0 0.0
      %2005 = vmatprep.subr.mxu0 0.0
      %2006 = vmatpush1.msra.mxu0 0.0
      %2007 = vmatprep.subr.mxu0 0.0
      %2008 = vmatpush1.msra.mxu0 0.0
      %2009 = vmatprep.subr.mxu0 0.0
      %2010 = vmatpush1.msra.mxu0 0.0
      %2011 = vmatprep.subr.mxu0 0.0
      %2012 = vmatpush1.msra.mxu0 0.0
      %2013 = vmatprep.mubr.f32.mxu0 0.0
      %2014 = vmatmul.mubr.f32.gmra.mrb[0].mxu0 %v657
      %v2015 = vpop.f32.mrb[0].mxu0
      %v2016 = vadd.f32 0.0, %v2015
      %v2017 = vpop.f32.mrb[0].mxu0
      %2018 = vmatprep.mubr.f32.mxu0 0.0
      %2019 = vmatmul.mubr.f32.gmra.mrb[0].mxu0 %v658
      %v2020 = vpop.f32.mrb[0].mxu0
      %v2021 = vadd.f32 0.0, %v2020
      %v2022 = vpop.f32.mrb[0].mxu0
      %2023 = vmatprep.mubr.f32.mxu0 0.0
      %2024 = vmatmul.mubr.f32.gmra.mrb[0].mxu0 %v659
      %v2025 = vpop.f32.mrb[0].mxu0
      %v2026 = vadd.f32 0.0, %v2025
      %v2027 = vpop.f32.mrb[0].mxu0
      %2028 = vmatprep.mubr.f32.mxu0 0.0
      %2029 = vmatmul.mubr.f32.gmra.mrb[0].mxu0 %v660
      %v2030 = vpop.f32.mrb[0].mxu0
      %v2031 = vadd.f32 0.0, %v2030
      %v2032 = vpop.f32.mrb[0].mxu0
      %2033 = vmatprep.mubr.f32.mxu0 0.0
      %2034 = vmatmul.mubr.f32.gmra.mrb[0].mxu0 %v661
      %v2035 = vpop.f32.mrb[0].mxu0
      %v2036 = vadd.f32 0.0, %v2035
      %v2037 = vpop.f32.mrb[0].mxu0
      %2038 = vmatprep.mubr.f32.mxu0 0.0
      %2039 = vmatmul.mubr.f32.gmra.mrb[0].mxu0 %v662
      %v2040 = vpop.f32.mrb[0].mxu0
      %v2041 = vadd.f32 0.0, %v2040
      %v2042 = vpop.f32.mrb[0].mxu0
      %2043 = vmatprep.mubr.f32.mxu0 0.0
      %2044 = vmatmul.mubr.f32.gmra.mrb[0].mxu0 %v663
      %v2045 = vpop.f32.mrb[0].mxu0
      %v2046 = vadd.f32 0.0, %v2045
      %v2047 = vpop.f32.mrb[0].mxu0
      %2048 = vmatprep.mubr.f32.mxu0 0.0
      %2049 = vmatmul.mubr.f32.gmra.mrb[0].mxu0 %v664
      %v2050 = vpop.f32.mrb[0].mxu0
      %v2051 = vadd.f32 0.0, %v2050
      %v2052 = vpop.f32.mrb[0].mxu0
      %2053 = vmatprep.mubr.f32.mxu0 0.0
      %2054 = vmatmul.mubr.f32.gmra.mrb[0].mxu0 %v665
      %v2055 = vpop.f32.mrb[0].mxu0
      %v2056 = vadd.f32 0.0, %v2055
      %v2057 = vpop.f32.mrb[0].mxu0
      %2058 = vmatprep.mubr.f32.mxu0 0.0
      %2059 = vmatmul.mubr.f32.gmra.mrb[0].mxu0 %v666
      %v2060 = vpop.f32.mrb[0].mxu0
      %v2061 = vadd.f32 0.0, %v2060
      %v2062 = vpop.f32.mrb[0].mxu0
      %2063 = vmatprep.mubr.f32.mxu0 0.0
      %2064 = vmatmul.mubr.f32.gmra.mrb[0].mxu0 %v667
      %v2065 = vpop.f32.mrb[0].mxu0
      %v2066 = vadd.f32 0.0, %v2065
      %v2067 = vpop.f32.mrb[0].mxu0
      %2068 = vmatprep.mubr.f32.mxu0 0.0
      %2069 = vmatmul.mubr.f32.gmra.mrb[0].mxu0 %v668
      %v2070 = vpop.f32.mrb[0].mxu0
      %v2071 = vadd.f32 0.0, %v2070
      %v2072 = vpop.f32.mrb[0].mxu0
      %2073 = vmatprep.mubr.f32.mxu0 0.0
      %2074 = vmatmul.mubr.f32.gmra.mrb[0].mxu0 %v669
      %v2075 = vpop.f32.mrb[0].mxu0
      %v2076 = vadd.f32 0.0, %v2075
      %v2077 = vpop.f32.mrb[0].mxu0
      %2078 = vmatprep.mubr.f32.mxu0 0.0
      %2079 = vmatmul.mubr.f32.gmra.mrb[0].mxu0 %v670
      %v2080 = vpop.f32.mrb[0].mxu0
      %v2081 = vadd.f32 0.0, %v2080
      %v2082 = vpop.f32.mrb[0].mxu0
      %2083 = vmatprep.mubr.f32.mxu0 0.0
      %2084 = vmatmul.mubr.f32.gmra.mrb[0].mxu0 %v671
      %v2085 = vpop.f32.mrb[0].mxu0
      %v2086 = vadd.f32 0.0, %v2085
      %v2087 = vpop.f32.mrb[0].mxu0
      %2088 = vmatprep.mubr.f32.mxu0 0.0
      %2089 = vmatmul.mubr.f32.gmra.mrb[0].mxu0 %v672
      %v2090 = vpop.f32.mrb[0].mxu0
      %v2091 = vadd.f32 0.0, %v2090
      %v2092 = vpop.f32.mrb[0].mxu0
      %2093 = vmatprep.mubr.f32.mxu0 0.0
      %2094 = vmatmul.mubr.f32.gmra.mrb[0].mxu0 %v673
      %v2095 = vpop.f32.mrb[0].mxu0
      %v2096 = vadd.f32 0.0, %v2095
      %v2097 = vpop.f32.mrb[0].mxu0
      %2098 = vmatprep.mubr.f32.mxu0 0.0
      %2099 = vmatmul.mubr.f32.gmra.mrb[0].mxu0 %v674
      %v2100 = vpop.f32.mrb[0].mxu0
      %v2101 = vadd.f32 0.0, %v2100
      %v2102 = vpop.f32.mrb[0].mxu0
      %2103 = vmatprep.mubr.f32.mxu0 0.0
      %2104 = vmatmul.mubr.f32.gmra.mrb[0].mxu0 %v675
      %v2105 = vpop.f32.mrb[0].mxu0
      %v2106 = vadd.f32 0.0, %v2105
      %v2107 = vpop.f32.mrb[0].mxu0
      %2108 = vmatprep.mubr.f32.mxu0 0.0
      %2109 = vmatmul.mubr.f32.gmra.mrb[0].mxu0 %v676
      %v2110 = vpop.f32.mrb[0].mxu0
      %v2111 = vadd.f32 0.0, %v2110
      %v2112 = vpop.f32.mrb[0].mxu0
      %2113 = vmatprep.mubr.f32.mxu0 0.0
      %2114 = vmatmul.mubr.f32.gmra.mrb[0].mxu0 %v677
      %v2115 = vpop.f32.mrb[0].mxu0
      %v2116 = vadd.f32 0.0, %v2115
      %v2117 = vpop.f32.mrb[0].mxu0
      %2118 = vmatprep.mubr.f32.mxu0 0.0
      %2119 = vmatmul.mubr.f32.gmra.mrb[0].mxu0 %v678
      %v2120 = vpop.f32.mrb[0].mxu0
      %v2121 = vadd.f32 0.0, %v2120
      %v2122 = vpop.f32.mrb[0].mxu0
      %2123 = vmatprep.mubr.f32.mxu0 0.0
      %2124 = vmatmul.mubr.f32.gmra.mrb[0].mxu0 %v679
      %v2125 = vpop.f32.mrb[0].mxu0
      %v2126 = vadd.f32 0.0, %v2125
      %v2127 = vpop.f32.mrb[0].mxu0
      %2128 = vmatprep.mubr.f32.mxu0 0.0
      %2129 = vmatmul.mubr.f32.gmra.mrb[0].mxu0 %v680
      %v2130 = vpop.f32.mrb[0].mxu0
      %v2131 = vadd.f32 0.0, %v2130
      %v2132 = vpop.f32.mrb[0].mxu0
      %2133 = vmatprep.mubr.f32.mxu0 0.0
      %2134 = vmatmul.mubr.f32.gmra.mrb[0].mxu0 %v681
      %v2135 = vpop.f32.mrb[0].mxu0
      %v2136 = vadd.f32 0.0, %v2135
      %v2137 = vpop.f32.mrb[0].mxu0
      %2138 = vmatprep.mubr.f32.mxu0 0.0
      %2139 = vmatmul.mubr.f32.gmra.mrb[0].mxu0 %v682
      %v2140 = vpop.f32.mrb[0].mxu0
      %v2141 = vadd.f32 0.0, %v2140
      %v2142 = vpop.f32.mrb[0].mxu0
      %2143 = vmatprep.mubr.f32.mxu0 0.0
      %2144 = vmatmul.mubr.f32.gmra.mrb[0].mxu0 %v683
      %v2145 = vpop.f32.mrb[0].mxu0
      %v2146 = vadd.f32 0.0, %v2145
      %v2147 = vpop.f32.mrb[0].mxu0
      %2148 = vmatprep.mubr.f32.mxu0 0.0
      %2149 = vmatmul.mubr.f32.gmra.mrb[0].mxu0 %v684
      %v2150 = vpop.f32.mrb[0].mxu0
      %v2151 = vadd.f32 0.0, %v2150
      %v2152 = vpop.f32.mrb[0].mxu0
      %2153 = vmatprep.mubr.f32.mxu0 0.0
      %2154 = vmatmul.mubr.f32.gmra.mrb[0].mxu0 %v685
      %v2155 = vpop.f32.mrb[0].mxu0
      %v2156 = vadd.f32 0.0, %v2155
      %v2157 = vpop.f32.mrb[0].mxu0
      %2158 = vmatprep.mubr.f32.mxu0 0.0
      %2159 = vmatmul.mubr.f32.gmra.mrb[0].mxu0 %v686
      %v2160 = vpop.f32.mrb[0].mxu0
      %v2161 = vadd.f32 0.0, %v2160
      %v2162 = vpop.f32.mrb[0].mxu0
      %2163 = vmatprep.mubr.f32.mxu0 0.0
      %2164 = vmatmul.mubr.f32.gmra.mrb[0].mxu0 %v687
      %v2165 = vpop.f32.mrb[0].mxu0
      %v2166 = vadd.f32 0.0, %v2165
      %v2167 = vpop.f32.mrb[0].mxu0
      %2168 = vmatprep.mubr.f32.mxu0 0.0
      %2169 = vmatmul.mubr.f32.gmra.mrb[0].mxu0 %v688
      %v2170 = vpop.f32.mrb[0].mxu0
      %v2171 = vadd.f32 0.0, %v2170
      %v2172 = vpop.f32.mrb[0].mxu0
      %2173 = vdwg.mxu0
      %v2174 = vld [vmem:[#allocation2] sm:$0xff]
      %v2175 = vld [vmem:[#allocation2 + $0x8] sm:$0xff]
      %v2176 = vld [vmem:[#allocation2 + $0x10] sm:$0xff]
      %v2177 = vld [vmem:[#allocation2 + $0x18] sm:$0xff]
      %v2178 = vld [vmem:[#allocation2 + $0x20] sm:$0xff]
      %v2179 = vld [vmem:[#allocation2 + $0x28] sm:$0xff]
      %v2180 = vld [vmem:[#allocation2 + $0x30] sm:$0xff]
      %v2181 = vld [vmem:[#allocation2 + $0x38] sm:$0xff]
      %v2182 = vld [vmem:[#allocation2 + $0x40] sm:$0xff]
      %v2183 = vld [vmem:[#allocation2 + $0x48] sm:$0xff]
      %v2184 = vld [vmem:[#allocation2 + $0x50] sm:$0xff]
      %v2185 = vld [vmem:[#allocation2 + $0x58] sm:$0xff]
      %v2186 = vld [vmem:[#allocation2 + $0x60] sm:$0xff]
      %v2187 = vld [vmem:[#allocation2 + $0x68] sm:$0xff]
      %v2188 = vld [vmem:[#allocation2 + $0x70] sm:$0xff]
      %v2189 = vld [vmem:[#allocation2 + $0x78] sm:$0xff]
      %v2190 = vld [vmem:[#allocation2 + $0x80] sm:$0xff]
      %v2191 = vld [vmem:[#allocation2 + $0x88] sm:$0xff]
      %v2192 = vld [vmem:[#allocation2 + $0x90] sm:$0xff]
      %v2193 = vld [vmem:[#allocation2 + $0x98] sm:$0xff]
      %v2194 = vld [vmem:[#allocation2 + $0xa0] sm:$0xff]
      %v2195 = vld [vmem:[#allocation2 + $0xa8] sm:$0xff]
      %v2196 = vld [vmem:[#allocation2 + $0xb0] sm:$0xff]
      %v2197 = vld [vmem:[#allocation2 + $0xb8] sm:$0xff]
      %v2198 = vld [vmem:[#allocation2 + $0xc0] sm:$0xff]
      %v2199 = vld [vmem:[#allocation2 + $0xc8] sm:$0xff]
      %v2200 = vld [vmem:[#allocation2 + $0xd0] sm:$0xff]
      %v2201 = vld [vmem:[#allocation2 + $0xd8] sm:$0xff]
      %v2202 = vld [vmem:[#allocation2 + $0xe0] sm:$0xff]
      %v2203 = vld [vmem:[#allocation2 + $0xe8] sm:$0xff]
      %v2204 = vld [vmem:[#allocation2 + $0xf0] sm:$0xff]
      %v2205 = vld [vmem:[#allocation2 + $0xf8] sm:$0xff]
      %v2206 = vadd.f32 %v2174, %v2016
      %v2207 = vadd.f32 %v2175, %v2021
      %v2208 = vadd.f32 %v2176, %v2026
      %v2209 = vadd.f32 %v2177, %v2031
      %v2210 = vadd.f32 %v2178, %v2036
      %v2211 = vadd.f32 %v2179, %v2041
      %v2212 = vadd.f32 %v2180, %v2046
      %v2213 = vadd.f32 %v2181, %v2051
      %v2214 = vadd.f32 %v2182, %v2056
      %v2215 = vadd.f32 %v2183, %v2061
      %v2216 = vadd.f32 %v2184, %v2066
      %v2217 = vadd.f32 %v2185, %v2071
      %v2218 = vadd.f32 %v2186, %v2076
      %v2219 = vadd.f32 %v2187, %v2081
      %v2220 = vadd.f32 %v2188, %v2086
      %v2221 = vadd.f32 %v2189, %v2091
      %v2222 = vadd.f32 %v2190, %v2096
      %v2223 = vadd.f32 %v2191, %v2101
      %v2224 = vadd.f32 %v2192, %v2106
      %v2225 = vadd.f32 %v2193, %v2111
      %v2226 = vadd.f32 %v2194, %v2116
      %v2227 = vadd.f32 %v2195, %v2121
      %v2228 = vadd.f32 %v2196, %v2126
      %v2229 = vadd.f32 %v2197, %v2131
      %v2230 = vadd.f32 %v2198, %v2136
      %v2231 = vadd.f32 %v2199, %v2141
      %v2232 = vadd.f32 %v2200, %v2146
      %v2233 = vadd.f32 %v2201, %v2151
      %v2234 = vadd.f32 %v2202, %v2156
      %v2235 = vadd.f32 %v2203, %v2161
      %v2236 = vadd.f32 %v2204, %v2166
      %v2237 = vadd.f32 %v2205, %v2171
      %2238 = vst [vmem:[#allocation2] sm:$0xff] %v2206
      %2239 = vst [vmem:[#allocation2 + $0x8] sm:$0xff] %v2207
      %2240 = vst [vmem:[#allocation2 + $0x10] sm:$0xff] %v2208
      %2241 = vst [vmem:[#allocation2 + $0x18] sm:$0xff] %v2209
      %2242 = vst [vmem:[#allocation2 + $0x20] sm:$0xff] %v2210
      %2243 = vst [vmem:[#allocation2 + $0x28] sm:$0xff] %v2211
      %2244 = vst [vmem:[#allocation2 + $0x30] sm:$0xff] %v2212
      %2245 = vst [vmem:[#allocation2 + $0x38] sm:$0xff] %v2213
      %2246 = vst [vmem:[#allocation2 + $0x40] sm:$0xff] %v2214
      %2247 = vst [vmem:[#allocation2 + $0x48] sm:$0xff] %v2215
      %2248 = vst [vmem:[#allocation2 + $0x50] sm:$0xff] %v2216
      %2249 = vst [vmem:[#allocation2 + $0x58] sm:$0xff] %v2217
      %2250 = vst [vmem:[#allocation2 + $0x60] sm:$0xff] %v2218
      %2251 = vst [vmem:[#allocation2 + $0x68] sm:$0xff] %v2219
      %2252 = vst [vmem:[#allocation2 + $0x70] sm:$0xff] %v2220
      %2253 = vst [vmem:[#allocation2 + $0x78] sm:$0xff] %v2221
      %2254 = vst [vmem:[#allocation2 + $0x80] sm:$0xff] %v2222
      %2255 = vst [vmem:[#allocation2 + $0x88] sm:$0xff] %v2223
      %2256 = vst [vmem:[#allocation2 + $0x90] sm:$0xff] %v2224
      %2257 = vst [vmem:[#allocation2 + $0x98] sm:$0xff] %v2225
      %2258 = vst [vmem:[#allocation2 + $0xa0] sm:$0xff] %v2226
      %2259 = vst [vmem:[#allocation2 + $0xa8] sm:$0xff] %v2227
      %2260 = vst [vmem:[#allocation2 + $0xb0] sm:$0xff] %v2228
      %2261 = vst [vmem:[#allocation2 + $0xb8] sm:$0xff] %v2229
      %2262 = vst [vmem:[#allocation2 + $0xc0] sm:$0xff] %v2230
      %2263 = vst [vmem:[#allocation2 + $0xc8] sm:$0xff] %v2231
      %2264 = vst [vmem:[#allocation2 + $0xd0] sm:$0xff] %v2232
      %2265 = vst [vmem:[#allocation2 + $0xd8] sm:$0xff] %v2233
      %2266 = vst [vmem:[#allocation2 + $0xe0] sm:$0xff] %v2234
      %2267 = vst [vmem:[#allocation2 + $0xe8] sm:$0xff] %v2235
      %2268 = vst [vmem:[#allocation2 + $0xf0] sm:$0xff] %v2236
      %2269 = vst [vmem:[#allocation2 + $0xf8] sm:$0xff] %v2237
      %s2270 = scalar_lea.vmem %s3, 512
      %v2271 = vld [vmem:[%s2270] sm:$0xff]
      %v2272 = vld [vmem:[%s2270 + $0x8] sm:$0xff]
      %v2273 = vld [vmem:[%s2270 + $0x10] sm:$0xff]
      %v2274 = vld [vmem:[%s2270 + $0x18] sm:$0xff]
      %v2275 = vld [vmem:[%s2270 + $0x20] sm:$0xff]
      %v2276 = vld [vmem:[%s2270 + $0x28] sm:$0xff]
      %v2277 = vld [vmem:[%s2270 + $0x30] sm:$0xff]
      %v2278 = vld [vmem:[%s2270 + $0x38] sm:$0xff]
      %v2279 = vld [vmem:[%s2270 + $0x40] sm:$0xff]
      %v2280 = vld [vmem:[%s2270 + $0x48] sm:$0xff]
      %v2281 = vld [vmem:[%s2270 + $0x50] sm:$0xff]
      %v2282 = vld [vmem:[%s2270 + $0x58] sm:$0xff]
      %v2283 = vld [vmem:[%s2270 + $0x60] sm:$0xff]
      %v2284 = vld [vmem:[%s2270 + $0x68] sm:$0xff]
      %v2285 = vld [vmem:[%s2270 + $0x70] sm:$0xff]
      %v2286 = vld [vmem:[%s2270 + $0x78] sm:$0xff]
      %2287 = vmatprep.subr.mxu0 0.0
      %2288 = vmatpush1.msra.mxu0 %v2271
      %2289 = vmatprep.subr.mxu0 0.0
      %2290 = vmatpush1.msra.mxu0 %v2272
      %2291 = vmatprep.subr.mxu0 0.0
      %2292 = vmatpush1.msra.mxu0 %v2273
      %2293 = vmatprep.subr.mxu0 0.0
      %2294 = vmatpush1.msra.mxu0 %v2274
      %2295 = vmatprep.subr.mxu0 0.0
      %2296 = vmatpush1.msra.mxu0 %v2275
      %2297 = vmatprep.subr.mxu0 0.0
      %2298 = vmatpush1.msra.mxu0 %v2276
      %2299 = vmatprep.subr.mxu0 0.0
      %2300 = vmatpush1.msra.mxu0 %v2277
      %2301 = vmatprep.subr.mxu0 0.0
      %2302 = vmatpush1.msra.mxu0 %v2278
      %2303 = vmatprep.subr.mxu0 0.0
      %2304 = vmatpush1.msra.mxu0 %v2279
      %2305 = vmatprep.subr.mxu0 0.0
      %2306 = vmatpush1.msra.mxu0 %v2280
      %2307 = vmatprep.subr.mxu0 0.0
      %2308 = vmatpush1.msra.mxu0 %v2281
      %2309 = vmatprep.subr.mxu0 0.0
      %2310 = vmatpush1.msra.mxu0 %v2282
      %2311 = vmatprep.subr.mxu0 0.0
      %2312 = vmatpush1.msra.mxu0 %v2283
      %2313 = vmatprep.subr.mxu0 0.0
      %2314 = vmatpush1.msra.mxu0 %v2284
      %2315 = vmatprep.subr.mxu0 0.0
      %2316 = vmatpush1.msra.mxu0 %v2285
      %2317 = vmatprep.subr.mxu0 0.0
      %2318 = vmatpush1.msra.mxu0 %v2286
      %2319 = vmatprep.subr.mxu0 0.0
      %2320 = vmatpush1.msra.mxu0 0.0
      %2321 = vmatprep.subr.mxu0 0.0
      %2322 = vmatpush1.msra.mxu0 0.0
      %2323 = vmatprep.subr.mxu0 0.0
      %2324 = vmatpush1.msra.mxu0 0.0
      %2325 = vmatprep.subr.mxu0 0.0
      %2326 = vmatpush1.msra.mxu0 0.0
      %2327 = vmatprep.subr.mxu0 0.0
      %2328 = vmatpush1.msra.mxu0 0.0
      %2329 = vmatprep.subr.mxu0 0.0
      %2330 = vmatpush1.msra.mxu0 0.0
      %2331 = vmatprep.subr.mxu0 0.0
      %2332 = vmatpush1.msra.mxu0 0.0
      %2333 = vmatprep.subr.mxu0 0.0
      %2334 = vmatpush1.msra.mxu0 0.0
      %2335 = vmatprep.subr.mxu0 0.0
      %2336 = vmatpush1.msra.mxu0 0.0
      %2337 = vmatprep.subr.mxu0 0.0
      %2338 = vmatpush1.msra.mxu0 0.0
      %2339 = vmatprep.subr.mxu0 0.0
      %2340 = vmatpush1.msra.mxu0 0.0
      %2341 = vmatprep.subr.mxu0 0.0
      %2342 = vmatpush1.msra.mxu0 0.0
      %2343 = vmatprep.subr.mxu0 0.0
      %2344 = vmatpush1.msra.mxu0 0.0
      %2345 = vmatprep.subr.mxu0 0.0
      %2346 = vmatpush1.msra.mxu0 0.0
      %2347 = vmatprep.subr.mxu0 0.0
      %2348 = vmatpush1.msra.mxu0 0.0
      %2349 = vmatprep.subr.mxu0 0.0
      %2350 = vmatpush1.msra.mxu0 0.0
      %2351 = vmatprep.mubr.f32.mxu0 0.0
      %2352 = vmatmul.mubr.f32.gmra.mrb[0].mxu0 %v659
      %v2353 = vpop.f32.mrb[0].mxu0
      %v2354 = vadd.f32 0.0, %v2353
      %v2355 = vpop.f32.mrb[0].mxu0
      %2356 = vmatprep.mubr.f32.mxu0 0.0
      %2357 = vmatmul.mubr.f32.gmra.mrb[0].mxu0 %v660
      %v2358 = vpop.f32.mrb[0].mxu0
      %v2359 = vadd.f32 0.0, %v2358
      %v2360 = vpop.f32.mrb[0].mxu0
      %2361 = vmatprep.mubr.f32.mxu0 0.0
      %2362 = vmatmul.mubr.f32.gmra.mrb[0].mxu0 %v661
      %v2363 = vpop.f32.mrb[0].mxu0
      %v2364 = vadd.f32 0.0, %v2363
      %v2365 = vpop.f32.mrb[0].mxu0
      %2366 = vmatprep.mubr.f32.mxu0 0.0
      %2367 = vmatmul.mubr.f32.gmra.mrb[0].mxu0 %v662
      %v2368 = vpop.f32.mrb[0].mxu0
      %v2369 = vadd.f32 0.0, %v2368
      %v2370 = vpop.f32.mrb[0].mxu0
      %2371 = vmatprep.mubr.f32.mxu0 0.0
      %2372 = vmatmul.mubr.f32.gmra.mrb[0].mxu0 %v663
      %v2373 = vpop.f32.mrb[0].mxu0
      %v2374 = vadd.f32 0.0, %v2373
      %v2375 = vpop.f32.mrb[0].mxu0
      %2376 = vmatprep.mubr.f32.mxu0 0.0
      %2377 = vmatmul.mubr.f32.gmra.mrb[0].mxu0 %v664
      %v2378 = vpop.f32.mrb[0].mxu0
      %v2379 = vadd.f32 0.0, %v2378
      %v2380 = vpop.f32.mrb[0].mxu0
      %2381 = vmatprep.mubr.f32.mxu0 0.0
      %2382 = vmatmul.mubr.f32.gmra.mrb[0].mxu0 %v665
      %v2383 = vpop.f32.mrb[0].mxu0
      %v2384 = vadd.f32 0.0, %v2383
      %v2385 = vpop.f32.mrb[0].mxu0
      %2386 = vmatprep.mubr.f32.mxu0 0.0
      %2387 = vmatmul.mubr.f32.gmra.mrb[0].mxu0 %v666
      %v2388 = vpop.f32.mrb[0].mxu0
      %v2389 = vadd.f32 0.0, %v2388
      %v2390 = vpop.f32.mrb[0].mxu0
      %2391 = vmatprep.mubr.f32.mxu0 0.0
      %2392 = vmatmul.mubr.f32.gmra.mrb[0].mxu0 %v667
      %v2393 = vpop.f32.mrb[0].mxu0
      %v2394 = vadd.f32 0.0, %v2393
      %v2395 = vpop.f32.mrb[0].mxu0
      %2396 = vmatprep.mubr.f32.mxu0 0.0
      %2397 = vmatmul.mubr.f32.gmra.mrb[0].mxu0 %v668
      %v2398 = vpop.f32.mrb[0].mxu0
      %v2399 = vadd.f32 0.0, %v2398
      %v2400 = vpop.f32.mrb[0].mxu0
      %2401 = vmatprep.mubr.f32.mxu0 0.0
      %2402 = vmatmul.mubr.f32.gmra.mrb[0].mxu0 %v669
      %v2403 = vpop.f32.mrb[0].mxu0
      %v2404 = vadd.f32 0.0, %v2403
      %v2405 = vpop.f32.mrb[0].mxu0
      %2406 = vmatprep.mubr.f32.mxu0 0.0
      %2407 = vmatmul.mubr.f32.gmra.mrb[0].mxu0 %v670
      %v2408 = vpop.f32.mrb[0].mxu0
      %v2409 = vadd.f32 0.0, %v2408
      %v2410 = vpop.f32.mrb[0].mxu0
      %2411 = vmatprep.mubr.f32.mxu0 0.0
      %2412 = vmatmul.mubr.f32.gmra.mrb[0].mxu0 %v671
      %v2413 = vpop.f32.mrb[0].mxu0
      %v2414 = vadd.f32 0.0, %v2413
      %v2415 = vpop.f32.mrb[0].mxu0
      %2416 = vmatprep.mubr.f32.mxu0 0.0
      %2417 = vmatmul.mubr.f32.gmra.mrb[0].mxu0 %v672
      %v2418 = vpop.f32.mrb[0].mxu0
      %v2419 = vadd.f32 0.0, %v2418
      %v2420 = vpop.f32.mrb[0].mxu0
      %2421 = vmatprep.mubr.f32.mxu0 0.0
      %2422 = vmatmul.mubr.f32.gmra.mrb[0].mxu0 %v673
      %v2423 = vpop.f32.mrb[0].mxu0
      %v2424 = vadd.f32 0.0, %v2423
      %v2425 = vpop.f32.mrb[0].mxu0
      %2426 = vmatprep.mubr.f32.mxu0 0.0
      %2427 = vmatmul.mubr.f32.gmra.mrb[0].mxu0 %v674
      %v2428 = vpop.f32.mrb[0].mxu0
      %v2429 = vadd.f32 0.0, %v2428
      %v2430 = vpop.f32.mrb[0].mxu0
      %2431 = vmatprep.mubr.f32.mxu0 0.0
      %2432 = vmatmul.mubr.f32.gmra.mrb[0].mxu0 %v675
      %v2433 = vpop.f32.mrb[0].mxu0
      %v2434 = vadd.f32 0.0, %v2433
      %v2435 = vpop.f32.mrb[0].mxu0
      %2436 = vmatprep.mubr.f32.mxu0 0.0
      %2437 = vmatmul.mubr.f32.gmra.mrb[0].mxu0 %v676
      %v2438 = vpop.f32.mrb[0].mxu0
      %v2439 = vadd.f32 0.0, %v2438
      %v2440 = vpop.f32.mrb[0].mxu0
      %2441 = vmatprep.mubr.f32.mxu0 0.0
      %2442 = vmatmul.mubr.f32.gmra.mrb[0].mxu0 %v677
      %v2443 = vpop.f32.mrb[0].mxu0
      %v2444 = vadd.f32 0.0, %v2443
      %v2445 = vpop.f32.mrb[0].mxu0
      %2446 = vmatprep.mubr.f32.mxu0 0.0
      %2447 = vmatmul.mubr.f32.gmra.mrb[0].mxu0 %v678
      %v2448 = vpop.f32.mrb[0].mxu0
      %v2449 = vadd.f32 0.0, %v2448
      %v2450 = vpop.f32.mrb[0].mxu0
      %2451 = vmatprep.mubr.f32.mxu0 0.0
      %2452 = vmatmul.mubr.f32.gmra.mrb[0].mxu0 %v679
      %v2453 = vpop.f32.mrb[0].mxu0
      %v2454 = vadd.f32 0.0, %v2453
      %v2455 = vpop.f32.mrb[0].mxu0
      %2456 = vmatprep.mubr.f32.mxu0 0.0
      %2457 = vmatmul.mubr.f32.gmra.mrb[0].mxu0 %v680
      %v2458 = vpop.f32.mrb[0].mxu0
      %v2459 = vadd.f32 0.0, %v2458
      %v2460 = vpop.f32.mrb[0].mxu0
      %2461 = vmatprep.mubr.f32.mxu0 0.0
      %2462 = vmatmul.mubr.f32.gmra.mrb[0].mxu0 %v681
      %v2463 = vpop.f32.mrb[0].mxu0
      %v2464 = vadd.f32 0.0, %v2463
      %v2465 = vpop.f32.mrb[0].mxu0
      %2466 = vmatprep.mubr.f32.mxu0 0.0
      %2467 = vmatmul.mubr.f32.gmra.mrb[0].mxu0 %v682
      %v2468 = vpop.f32.mrb[0].mxu0
      %v2469 = vadd.f32 0.0, %v2468
      %v2470 = vpop.f32.mrb[0].mxu0
      %2471 = vmatprep.mubr.f32.mxu0 0.0
      %2472 = vmatmul.mubr.f32.gmra.mrb[0].mxu0 %v683
      %v2473 = vpop.f32.mrb[0].mxu0
      %v2474 = vadd.f32 0.0, %v2473
      %v2475 = vpop.f32.mrb[0].mxu0
      %2476 = vmatprep.mubr.f32.mxu0 0.0
      %2477 = vmatmul.mubr.f32.gmra.mrb[0].mxu0 %v684
      %v2478 = vpop.f32.mrb[0].mxu0
      %v2479 = vadd.f32 0.0, %v2478
      %v2480 = vpop.f32.mrb[0].mxu0
      %2481 = vmatprep.mubr.f32.mxu0 0.0
      %2482 = vmatmul.mubr.f32.gmra.mrb[0].mxu0 %v685
      %v2483 = vpop.f32.mrb[0].mxu0
      %v2484 = vadd.f32 0.0, %v2483
      %v2485 = vpop.f32.mrb[0].mxu0
      %2486 = vmatprep.mubr.f32.mxu0 0.0
      %2487 = vmatmul.mubr.f32.gmra.mrb[0].mxu0 %v686
      %v2488 = vpop.f32.mrb[0].mxu0
      %v2489 = vadd.f32 0.0, %v2488
      %v2490 = vpop.f32.mrb[0].mxu0
      %2491 = vmatprep.mubr.f32.mxu0 0.0
      %2492 = vmatmul.mubr.f32.gmra.mrb[0].mxu0 %v687
      %v2493 = vpop.f32.mrb[0].mxu0
      %v2494 = vadd.f32 0.0, %v2493
      %v2495 = vpop.f32.mrb[0].mxu0
      %2496 = vmatprep.mubr.f32.mxu0 0.0
      %2497 = vmatmul.mubr.f32.gmra.mrb[0].mxu0 %v688
      %v2498 = vpop.f32.mrb[0].mxu0
      %v2499 = vadd.f32 0.0, %v2498
      %v2500 = vpop.f32.mrb[0].mxu0
      %2501 = vmatprep.mubr.f32.mxu0 0.0
      %2502 = vmatmul.mubr.f32.gmra.mrb[0].mxu0 %v689
      %v2503 = vpop.f32.mrb[0].mxu0
      %v2504 = vadd.f32 0.0, %v2503
      %v2505 = vpop.f32.mrb[0].mxu0
      %2506 = vmatprep.mubr.f32.mxu0 0.0
      %2507 = vmatmul.mubr.f32.gmra.mrb[0].mxu0 %v690
      %v2508 = vpop.f32.mrb[0].mxu0
      %v2509 = vadd.f32 0.0, %v2508
      %v2510 = vpop.f32.mrb[0].mxu0
      %2511 = vdwg.mxu0
      %v2512 = vld [vmem:[#allocation2] sm:$0xff]
      %v2513 = vld [vmem:[#allocation2 + $0x8] sm:$0xff]
      %v2514 = vld [vmem:[#allocation2 + $0x10] sm:$0xff]
      %v2515 = vld [vmem:[#allocation2 + $0x18] sm:$0xff]
      %v2516 = vld [vmem:[#allocation2 + $0x20] sm:$0xff]
      %v2517 = vld [vmem:[#allocation2 + $0x28] sm:$0xff]
      %v2518 = vld [vmem:[#allocation2 + $0x30] sm:$0xff]
      %v2519 = vld [vmem:[#allocation2 + $0x38] sm:$0xff]
      %v2520 = vld [vmem:[#allocation2 + $0x40] sm:$0xff]
      %v2521 = vld [vmem:[#allocation2 + $0x48] sm:$0xff]
      %v2522 = vld [vmem:[#allocation2 + $0x50] sm:$0xff]
      %v2523 = vld [vmem:[#allocation2 + $0x58] sm:$0xff]
      %v2524 = vld [vmem:[#allocation2 + $0x60] sm:$0xff]
      %v2525 = vld [vmem:[#allocation2 + $0x68] sm:$0xff]
      %v2526 = vld [vmem:[#allocation2 + $0x70] sm:$0xff]
      %v2527 = vld [vmem:[#allocation2 + $0x78] sm:$0xff]
      %v2528 = vld [vmem:[#allocation2 + $0x80] sm:$0xff]
      %v2529 = vld [vmem:[#allocation2 + $0x88] sm:$0xff]
      %v2530 = vld [vmem:[#allocation2 + $0x90] sm:$0xff]
      %v2531 = vld [vmem:[#allocation2 + $0x98] sm:$0xff]
      %v2532 = vld [vmem:[#allocation2 + $0xa0] sm:$0xff]
      %v2533 = vld [vmem:[#allocation2 + $0xa8] sm:$0xff]
      %v2534 = vld [vmem:[#allocation2 + $0xb0] sm:$0xff]
      %v2535 = vld [vmem:[#allocation2 + $0xb8] sm:$0xff]
      %v2536 = vld [vmem:[#allocation2 + $0xc0] sm:$0xff]
      %v2537 = vld [vmem:[#allocation2 + $0xc8] sm:$0xff]
      %v2538 = vld [vmem:[#allocation2 + $0xd0] sm:$0xff]
      %v2539 = vld [vmem:[#allocation2 + $0xd8] sm:$0xff]
      %v2540 = vld [vmem:[#allocation2 + $0xe0] sm:$0xff]
      %v2541 = vld [vmem:[#allocation2 + $0xe8] sm:$0xff]
      %v2542 = vld [vmem:[#allocation2 + $0xf0] sm:$0xff]
      %v2543 = vld [vmem:[#allocation2 + $0xf8] sm:$0xff]
      %v2544 = vadd.f32 %v2512, %v2354
      %v2545 = vadd.f32 %v2513, %v2359
      %v2546 = vadd.f32 %v2514, %v2364
      %v2547 = vadd.f32 %v2515, %v2369
      %v2548 = vadd.f32 %v2516, %v2374
      %v2549 = vadd.f32 %v2517, %v2379
      %v2550 = vadd.f32 %v2518, %v2384
      %v2551 = vadd.f32 %v2519, %v2389
      %v2552 = vadd.f32 %v2520, %v2394
      %v2553 = vadd.f32 %v2521, %v2399
      %v2554 = vadd.f32 %v2522, %v2404
      %v2555 = vadd.f32 %v2523, %v2409
      %v2556 = vadd.f32 %v2524, %v2414
      %v2557 = vadd.f32 %v2525, %v2419
      %v2558 = vadd.f32 %v2526, %v2424
      %v2559 = vadd.f32 %v2527, %v2429
      %v2560 = vadd.f32 %v2528, %v2434
      %v2561 = vadd.f32 %v2529, %v2439
      %v2562 = vadd.f32 %v2530, %v2444
      %v2563 = vadd.f32 %v2531, %v2449
      %v2564 = vadd.f32 %v2532, %v2454
      %v2565 = vadd.f32 %v2533, %v2459
      %v2566 = vadd.f32 %v2534, %v2464
      %v2567 = vadd.f32 %v2535, %v2469
      %v2568 = vadd.f32 %v2536, %v2474
      %v2569 = vadd.f32 %v2537, %v2479
      %v2570 = vadd.f32 %v2538, %v2484
      %v2571 = vadd.f32 %v2539, %v2489
      %v2572 = vadd.f32 %v2540, %v2494
      %v2573 = vadd.f32 %v2541, %v2499
      %v2574 = vadd.f32 %v2542, %v2504
      %v2575 = vadd.f32 %v2543, %v2509
      %2576 = vst [vmem:[#allocation2] sm:$0xff] %v2544
      %2577 = vst [vmem:[#allocation2 + $0x8] sm:$0xff] %v2545
      %2578 = vst [vmem:[#allocation2 + $0x10] sm:$0xff] %v2546
      %2579 = vst [vmem:[#allocation2 + $0x18] sm:$0xff] %v2547
      %2580 = vst [vmem:[#allocation2 + $0x20] sm:$0xff] %v2548
      %2581 = vst [vmem:[#allocation2 + $0x28] sm:$0xff] %v2549
      %2582 = vst [vmem:[#allocation2 + $0x30] sm:$0xff] %v2550
      %2583 = vst [vmem:[#allocation2 + $0x38] sm:$0xff] %v2551
      %2584 = vst [vmem:[#allocation2 + $0x40] sm:$0xff] %v2552
      %2585 = vst [vmem:[#allocation2 + $0x48] sm:$0xff] %v2553
      %2586 = vst [vmem:[#allocation2 + $0x50] sm:$0xff] %v2554
      %2587 = vst [vmem:[#allocation2 + $0x58] sm:$0xff] %v2555
      %2588 = vst [vmem:[#allocation2 + $0x60] sm:$0xff] %v2556
      %2589 = vst [vmem:[#allocation2 + $0x68] sm:$0xff] %v2557
      %2590 = vst [vmem:[#allocation2 + $0x70] sm:$0xff] %v2558
      %2591 = vst [vmem:[#allocation2 + $0x78] sm:$0xff] %v2559
      %2592 = vst [vmem:[#allocation2 + $0x80] sm:$0xff] %v2560
      %2593 = vst [vmem:[#allocation2 + $0x88] sm:$0xff] %v2561
      %2594 = vst [vmem:[#allocation2 + $0x90] sm:$0xff] %v2562
      %2595 = vst [vmem:[#allocation2 + $0x98] sm:$0xff] %v2563
      %2596 = vst [vmem:[#allocation2 + $0xa0] sm:$0xff] %v2564
      %2597 = vst [vmem:[#allocation2 + $0xa8] sm:$0xff] %v2565
      %2598 = vst [vmem:[#allocation2 + $0xb0] sm:$0xff] %v2566
      %2599 = vst [vmem:[#allocation2 + $0xb8] sm:$0xff] %v2567
      %2600 = vst [vmem:[#allocation2 + $0xc0] sm:$0xff] %v2568
      %2601 = vst [vmem:[#allocation2 + $0xc8] sm:$0xff] %v2569
      %2602 = vst [vmem:[#allocation2 + $0xd0] sm:$0xff] %v2570
      %2603 = vst [vmem:[#allocation2 + $0xd8] sm:$0xff] %v2571
      %2604 = vst [vmem:[#allocation2 + $0xe0] sm:$0xff] %v2572
      %2605 = vst [vmem:[#allocation2 + $0xe8] sm:$0xff] %v2573
      %2606 = vst [vmem:[#allocation2 + $0xf0] sm:$0xff] %v2574
      %2607 = vst [vmem:[#allocation2 + $0xf8] sm:$0xff] %v2575
      %s2608 = scalar_lea.vmem %s3, 896
      %v2609 = vld [vmem:[%s2608] sm:$0xff]
      %v2610 = vld [vmem:[%s2608 + $0x8] sm:$0xff]
      %v2611 = vld [vmem:[%s2608 + $0x10] sm:$0xff]
      %v2612 = vld [vmem:[%s2608 + $0x18] sm:$0xff]
      %v2613 = vld [vmem:[%s2608 + $0x20] sm:$0xff]
      %v2614 = vld [vmem:[%s2608 + $0x28] sm:$0xff]
      %v2615 = vld [vmem:[%s2608 + $0x30] sm:$0xff]
      %v2616 = vld [vmem:[%s2608 + $0x38] sm:$0xff]
      %v2617 = vld [vmem:[%s2608 + $0x40] sm:$0xff]
      %v2618 = vld [vmem:[%s2608 + $0x48] sm:$0xff]
      %v2619 = vld [vmem:[%s2608 + $0x50] sm:$0xff]
      %v2620 = vld [vmem:[%s2608 + $0x58] sm:$0xff]
      %v2621 = vld [vmem:[%s2608 + $0x60] sm:$0xff]
      %v2622 = vld [vmem:[%s2608 + $0x68] sm:$0xff]
      %v2623 = vld [vmem:[%s2608 + $0x70] sm:$0xff]
      %v2624 = vld [vmem:[%s2608 + $0x78] sm:$0xff]
      %2625 = vmatprep.subr.mxu0 0.0
      %2626 = vmatpush1.msra.mxu0 %v2609
      %2627 = vmatprep.subr.mxu0 0.0
      %2628 = vmatpush1.msra.mxu0 %v2610
      %2629 = vmatprep.subr.mxu0 0.0
      %2630 = vmatpush1.msra.mxu0 %v2611
      %2631 = vmatprep.subr.mxu0 0.0
      %2632 = vmatpush1.msra.mxu0 %v2612
      %2633 = vmatprep.subr.mxu0 0.0
      %2634 = vmatpush1.msra.mxu0 %v2613
      %2635 = vmatprep.subr.mxu0 0.0
      %2636 = vmatpush1.msra.mxu0 %v2614
      %2637 = vmatprep.subr.mxu0 0.0
      %2638 = vmatpush1.msra.mxu0 %v2615
      %2639 = vmatprep.subr.mxu0 0.0
      %2640 = vmatpush1.msra.mxu0 %v2616
      %2641 = vmatprep.subr.mxu0 0.0
      %2642 = vmatpush1.msra.mxu0 %v2617
      %2643 = vmatprep.subr.mxu0 0.0
      %2644 = vmatpush1.msra.mxu0 %v2618
      %2645 = vmatprep.subr.mxu0 0.0
      %2646 = vmatpush1.msra.mxu0 %v2619
      %2647 = vmatprep.subr.mxu0 0.0
      %2648 = vmatpush1.msra.mxu0 %v2620
      %2649 = vmatprep.subr.mxu0 0.0
      %2650 = vmatpush1.msra.mxu0 %v2621
      %2651 = vmatprep.subr.mxu0 0.0
      %2652 = vmatpush1.msra.mxu0 %v2622
      %2653 = vmatprep.subr.mxu0 0.0
      %2654 = vmatpush1.msra.mxu0 %v2623
      %2655 = vmatprep.subr.mxu0 0.0
      %2656 = vmatpush1.msra.mxu0 %v2624
      %2657 = vmatprep.subr.mxu0 0.0
      %2658 = vmatpush1.msra.mxu0 0.0
      %2659 = vmatprep.subr.mxu0 0.0
      %2660 = vmatpush1.msra.mxu0 0.0
      %2661 = vmatprep.subr.mxu0 0.0
      %2662 = vmatpush1.msra.mxu0 0.0
      %2663 = vmatprep.subr.mxu0 0.0
      %2664 = vmatpush1.msra.mxu0 0.0
      %2665 = vmatprep.subr.mxu0 0.0
      %2666 = vmatpush1.msra.mxu0 0.0
      %2667 = vmatprep.subr.mxu0 0.0
      %2668 = vmatpush1.msra.mxu0 0.0
      %2669 = vmatprep.subr.mxu0 0.0
      %2670 = vmatpush1.msra.mxu0 0.0
      %2671 = vmatprep.subr.mxu0 0.0
      %2672 = vmatpush1.msra.mxu0 0.0
      %2673 = vmatprep.subr.mxu0 0.0
      %2674 = vmatpush1.msra.mxu0 0.0
      %2675 = vmatprep.subr.mxu0 0.0
      %2676 = vmatpush1.msra.mxu0 0.0
      %2677 = vmatprep.subr.mxu0 0.0
      %2678 = vmatpush1.msra.mxu0 0.0
      %2679 = vmatprep.subr.mxu0 0.0
      %2680 = vmatpush1.msra.mxu0 0.0
      %2681 = vmatprep.subr.mxu0 0.0
      %2682 = vmatpush1.msra.mxu0 0.0
      %2683 = vmatprep.subr.mxu0 0.0
      %2684 = vmatpush1.msra.mxu0 0.0
      %2685 = vmatprep.subr.mxu0 0.0
      %2686 = vmatpush1.msra.mxu0 0.0
      %2687 = vmatprep.subr.mxu0 0.0
      %2688 = vmatpush1.msra.mxu0 0.0
      %2689 = vmatprep.mubr.f32.mxu0 0.0
      %2690 = vmatmul.mubr.f32.gmra.mrb[0].mxu0 %v661
      %v2691 = vpop.f32.mrb[0].mxu0
      %v2692 = vadd.f32 0.0, %v2691
      %v2693 = vpop.f32.mrb[0].mxu0
      %2694 = vmatprep.mubr.f32.mxu0 0.0
      %2695 = vmatmul.mubr.f32.gmra.mrb[0].mxu0 %v662
      %v2696 = vpop.f32.mrb[0].mxu0
      %v2697 = vadd.f32 0.0, %v2696
      %v2698 = vpop.f32.mrb[0].mxu0
      %2699 = vmatprep.mubr.f32.mxu0 0.0
      %2700 = vmatmul.mubr.f32.gmra.mrb[0].mxu0 %v663
      %v2701 = vpop.f32.mrb[0].mxu0
      %v2702 = vadd.f32 0.0, %v2701
      %v2703 = vpop.f32.mrb[0].mxu0
      %2704 = vmatprep.mubr.f32.mxu0 0.0
      %2705 = vmatmul.mubr.f32.gmra.mrb[0].mxu0 %v664
      %v2706 = vpop.f32.mrb[0].mxu0
      %v2707 = vadd.f32 0.0, %v2706
      %v2708 = vpop.f32.mrb[0].mxu0
      %2709 = vmatprep.mubr.f32.mxu0 0.0
      %2710 = vmatmul.mubr.f32.gmra.mrb[0].mxu0 %v665
      %v2711 = vpop.f32.mrb[0].mxu0
      %v2712 = vadd.f32 0.0, %v2711
      %v2713 = vpop.f32.mrb[0].mxu0
      %2714 = vmatprep.mubr.f32.mxu0 0.0
      %2715 = vmatmul.mubr.f32.gmra.mrb[0].mxu0 %v666
      %v2716 = vpop.f32.mrb[0].mxu0
      %v2717 = vadd.f32 0.0, %v2716
      %v2718 = vpop.f32.mrb[0].mxu0
      %2719 = vmatprep.mubr.f32.mxu0 0.0
      %2720 = vmatmul.mubr.f32.gmra.mrb[0].mxu0 %v667
      %v2721 = vpop.f32.mrb[0].mxu0
      %v2722 = vadd.f32 0.0, %v2721
      %v2723 = vpop.f32.mrb[0].mxu0
      %2724 = vmatprep.mubr.f32.mxu0 0.0
      %2725 = vmatmul.mubr.f32.gmra.mrb[0].mxu0 %v668
      %v2726 = vpop.f32.mrb[0].mxu0
      %v2727 = vadd.f32 0.0, %v2726
      %v2728 = vpop.f32.mrb[0].mxu0
      %2729 = vmatprep.mubr.f32.mxu0 0.0
      %2730 = vmatmul.mubr.f32.gmra.mrb[0].mxu0 %v669
      %v2731 = vpop.f32.mrb[0].mxu0
      %v2732 = vadd.f32 0.0, %v2731
      %v2733 = vpop.f32.mrb[0].mxu0
      %2734 = vmatprep.mubr.f32.mxu0 0.0
      %2735 = vmatmul.mubr.f32.gmra.mrb[0].mxu0 %v670
      %v2736 = vpop.f32.mrb[0].mxu0
      %v2737 = vadd.f32 0.0, %v2736
      %v2738 = vpop.f32.mrb[0].mxu0
      %2739 = vmatprep.mubr.f32.mxu0 0.0
      %2740 = vmatmul.mubr.f32.gmra.mrb[0].mxu0 %v671
      %v2741 = vpop.f32.mrb[0].mxu0
      %v2742 = vadd.f32 0.0, %v2741
      %v2743 = vpop.f32.mrb[0].mxu0
      %2744 = vmatprep.mubr.f32.mxu0 0.0
      %2745 = vmatmul.mubr.f32.gmra.mrb[0].mxu0 %v672
      %v2746 = vpop.f32.mrb[0].mxu0
      %v2747 = vadd.f32 0.0, %v2746
      %v2748 = vpop.f32.mrb[0].mxu0
      %2749 = vmatprep.mubr.f32.mxu0 0.0
      %2750 = vmatmul.mubr.f32.gmra.mrb[0].mxu0 %v673
      %v2751 = vpop.f32.mrb[0].mxu0
      %v2752 = vadd.f32 0.0, %v2751
      %v2753 = vpop.f32.mrb[0].mxu0
      %2754 = vmatprep.mubr.f32.mxu0 0.0
      %2755 = vmatmul.mubr.f32.gmra.mrb[0].mxu0 %v674
      %v2756 = vpop.f32.mrb[0].mxu0
      %v2757 = vadd.f32 0.0, %v2756
      %v2758 = vpop.f32.mrb[0].mxu0
      %2759 = vmatprep.mubr.f32.mxu0 0.0
      %2760 = vmatmul.mubr.f32.gmra.mrb[0].mxu0 %v675
      %v2761 = vpop.f32.mrb[0].mxu0
      %v2762 = vadd.f32 0.0, %v2761
      %v2763 = vpop.f32.mrb[0].mxu0
      %2764 = vmatprep.mubr.f32.mxu0 0.0
      %2765 = vmatmul.mubr.f32.gmra.mrb[0].mxu0 %v676
      %v2766 = vpop.f32.mrb[0].mxu0
      %v2767 = vadd.f32 0.0, %v2766
      %v2768 = vpop.f32.mrb[0].mxu0
      %2769 = vmatprep.mubr.f32.mxu0 0.0
      %2770 = vmatmul.mubr.f32.gmra.mrb[0].mxu0 %v677
      %v2771 = vpop.f32.mrb[0].mxu0
      %v2772 = vadd.f32 0.0, %v2771
      %v2773 = vpop.f32.mrb[0].mxu0
      %2774 = vmatprep.mubr.f32.mxu0 0.0
      %2775 = vmatmul.mubr.f32.gmra.mrb[0].mxu0 %v678
      %v2776 = vpop.f32.mrb[0].mxu0
      %v2777 = vadd.f32 0.0, %v2776
      %v2778 = vpop.f32.mrb[0].mxu0
      %2779 = vmatprep.mubr.f32.mxu0 0.0
      %2780 = vmatmul.mubr.f32.gmra.mrb[0].mxu0 %v679
      %v2781 = vpop.f32.mrb[0].mxu0
      %v2782 = vadd.f32 0.0, %v2781
      %v2783 = vpop.f32.mrb[0].mxu0
      %2784 = vmatprep.mubr.f32.mxu0 0.0
      %2785 = vmatmul.mubr.f32.gmra.mrb[0].mxu0 %v680
      %v2786 = vpop.f32.mrb[0].mxu0
      %v2787 = vadd.f32 0.0, %v2786
      %v2788 = vpop.f32.mrb[0].mxu0
      %2789 = vmatprep.mubr.f32.mxu0 0.0
      %2790 = vmatmul.mubr.f32.gmra.mrb[0].mxu0 %v681
      %v2791 = vpop.f32.mrb[0].mxu0
      %v2792 = vadd.f32 0.0, %v2791
      %v2793 = vpop.f32.mrb[0].mxu0
      %2794 = vmatprep.mubr.f32.mxu0 0.0
      %2795 = vmatmul.mubr.f32.gmra.mrb[0].mxu0 %v682
      %v2796 = vpop.f32.mrb[0].mxu0
      %v2797 = vadd.f32 0.0, %v2796
      %v2798 = vpop.f32.mrb[0].mxu0
      %2799 = vmatprep.mubr.f32.mxu0 0.0
      %2800 = vmatmul.mubr.f32.gmra.mrb[0].mxu0 %v683
      %v2801 = vpop.f32.mrb[0].mxu0
      %v2802 = vadd.f32 0.0, %v2801
      %v2803 = vpop.f32.mrb[0].mxu0
      %2804 = vmatprep.mubr.f32.mxu0 0.0
      %2805 = vmatmul.mubr.f32.gmra.mrb[0].mxu0 %v684
      %v2806 = vpop.f32.mrb[0].mxu0
      %v2807 = vadd.f32 0.0, %v2806
      %v2808 = vpop.f32.mrb[0].mxu0
      %2809 = vmatprep.mubr.f32.mxu0 0.0
      %2810 = vmatmul.mubr.f32.gmra.mrb[0].mxu0 %v685
      %v2811 = vpop.f32.mrb[0].mxu0
      %v2812 = vadd.f32 0.0, %v2811
      %v2813 = vpop.f32.mrb[0].mxu0
      %2814 = vmatprep.mubr.f32.mxu0 0.0
      %2815 = vmatmul.mubr.f32.gmra.mrb[0].mxu0 %v686
      %v2816 = vpop.f32.mrb[0].mxu0
      %v2817 = vadd.f32 0.0, %v2816
      %v2818 = vpop.f32.mrb[0].mxu0
      %2819 = vmatprep.mubr.f32.mxu0 0.0
      %2820 = vmatmul.mubr.f32.gmra.mrb[0].mxu0 %v687
      %v2821 = vpop.f32.mrb[0].mxu0
      %v2822 = vadd.f32 0.0, %v2821
      %v2823 = vpop.f32.mrb[0].mxu0
      %2824 = vmatprep.mubr.f32.mxu0 0.0
      %2825 = vmatmul.mubr.f32.gmra.mrb[0].mxu0 %v688
      %v2826 = vpop.f32.mrb[0].mxu0
      %v2827 = vadd.f32 0.0, %v2826
      %v2828 = vpop.f32.mrb[0].mxu0
      %2829 = vmatprep.mubr.f32.mxu0 0.0
      %2830 = vmatmul.mubr.f32.gmra.mrb[0].mxu0 %v689
      %v2831 = vpop.f32.mrb[0].mxu0
      %v2832 = vadd.f32 0.0, %v2831
      %v2833 = vpop.f32.mrb[0].mxu0
      %2834 = vmatprep.mubr.f32.mxu0 0.0
      %2835 = vmatmul.mubr.f32.gmra.mrb[0].mxu0 %v690
      %v2836 = vpop.f32.mrb[0].mxu0
      %v2837 = vadd.f32 0.0, %v2836
      %v2838 = vpop.f32.mrb[0].mxu0
      %2839 = vmatprep.mubr.f32.mxu0 0.0
      %2840 = vmatmul.mubr.f32.gmra.mrb[0].mxu0 %v691
      %v2841 = vpop.f32.mrb[0].mxu0
      %v2842 = vadd.f32 0.0, %v2841
      %v2843 = vpop.f32.mrb[0].mxu0
      %2844 = vmatprep.mubr.f32.mxu0 0.0
      %2845 = vmatmul.mubr.f32.gmra.mrb[0].mxu0 %v692
      %v2846 = vpop.f32.mrb[0].mxu0
      %v2847 = vadd.f32 0.0, %v2846
      %v2848 = vpop.f32.mrb[0].mxu0
      %2849 = vdwg.mxu0
      %v2850 = vld [vmem:[#allocation2] sm:$0xff]
      %v2851 = vld [vmem:[#allocation2 + $0x8] sm:$0xff]
      %v2852 = vld [vmem:[#allocation2 + $0x10] sm:$0xff]
      %v2853 = vld [vmem:[#allocation2 + $0x18] sm:$0xff]
      %v2854 = vld [vmem:[#allocation2 + $0x20] sm:$0xff]
      %v2855 = vld [vmem:[#allocation2 + $0x28] sm:$0xff]
      %v2856 = vld [vmem:[#allocation2 + $0x30] sm:$0xff]
      %v2857 = vld [vmem:[#allocation2 + $0x38] sm:$0xff]
      %v2858 = vld [vmem:[#allocation2 + $0x40] sm:$0xff]
      %v2859 = vld [vmem:[#allocation2 + $0x48] sm:$0xff]
      %v2860 = vld [vmem:[#allocation2 + $0x50] sm:$0xff]
      %v2861 = vld [vmem:[#allocation2 + $0x58] sm:$0xff]
      %v2862 = vld [vmem:[#allocation2 + $0x60] sm:$0xff]
      %v2863 = vld [vmem:[#allocation2 + $0x68] sm:$0xff]
      %v2864 = vld [vmem:[#allocation2 + $0x70] sm:$0xff]
      %v2865 = vld [vmem:[#allocation2 + $0x78] sm:$0xff]
      %v2866 = vld [vmem:[#allocation2 + $0x80] sm:$0xff]
      %v2867 = vld [vmem:[#allocation2 + $0x88] sm:$0xff]
      %v2868 = vld [vmem:[#allocation2 + $0x90] sm:$0xff]
      %v2869 = vld [vmem:[#allocation2 + $0x98] sm:$0xff]
      %v2870 = vld [vmem:[#allocation2 + $0xa0] sm:$0xff]
      %v2871 = vld [vmem:[#allocation2 + $0xa8] sm:$0xff]
      %v2872 = vld [vmem:[#allocation2 + $0xb0] sm:$0xff]
      %v2873 = vld [vmem:[#allocation2 + $0xb8] sm:$0xff]
      %v2874 = vld [vmem:[#allocation2 + $0xc0] sm:$0xff]
      %v2875 = vld [vmem:[#allocation2 + $0xc8] sm:$0xff]
      %v2876 = vld [vmem:[#allocation2 + $0xd0] sm:$0xff]
      %v2877 = vld [vmem:[#allocation2 + $0xd8] sm:$0xff]
      %v2878 = vld [vmem:[#allocation2 + $0xe0] sm:$0xff]
      %v2879 = vld [vmem:[#allocation2 + $0xe8] sm:$0xff]
      %v2880 = vld [vmem:[#allocation2 + $0xf0] sm:$0xff]
      %v2881 = vld [vmem:[#allocation2 + $0xf8] sm:$0xff]
      %v2882 = vadd.f32 %v2850, %v2692
      %v2883 = vadd.f32 %v2851, %v2697
      %v2884 = vadd.f32 %v2852, %v2702
      %v2885 = vadd.f32 %v2853, %v2707
      %v2886 = vadd.f32 %v2854, %v2712
      %v2887 = vadd.f32 %v2855, %v2717
      %v2888 = vadd.f32 %v2856, %v2722
      %v2889 = vadd.f32 %v2857, %v2727
      %v2890 = vadd.f32 %v2858, %v2732
      %v2891 = vadd.f32 %v2859, %v2737
      %v2892 = vadd.f32 %v2860, %v2742
      %v2893 = vadd.f32 %v2861, %v2747
      %v2894 = vadd.f32 %v2862, %v2752
      %v2895 = vadd.f32 %v2863, %v2757
      %v2896 = vadd.f32 %v2864, %v2762
      %v2897 = vadd.f32 %v2865, %v2767
      %v2898 = vadd.f32 %v2866, %v2772
      %v2899 = vadd.f32 %v2867, %v2777
      %v2900 = vadd.f32 %v2868, %v2782
      %v2901 = vadd.f32 %v2869, %v2787
      %v2902 = vadd.f32 %v2870, %v2792
      %v2903 = vadd.f32 %v2871, %v2797
      %v2904 = vadd.f32 %v2872, %v2802
      %v2905 = vadd.f32 %v2873, %v2807
      %v2906 = vadd.f32 %v2874, %v2812
      %v2907 = vadd.f32 %v2875, %v2817
      %v2908 = vadd.f32 %v2876, %v2822
      %v2909 = vadd.f32 %v2877, %v2827
      %v2910 = vadd.f32 %v2878, %v2832
      %v2911 = vadd.f32 %v2879, %v2837
      %v2912 = vadd.f32 %v2880, %v2842
      %v2913 = vadd.f32 %v2881, %v2847
      %2914 = vst [vmem:[#allocation2] sm:$0xff] %v2882
      %2915 = vst [vmem:[#allocation2 + $0x8] sm:$0xff] %v2883
      %2916 = vst [vmem:[#allocation2 + $0x10] sm:$0xff] %v2884
      %2917 = vst [vmem:[#allocation2 + $0x18] sm:$0xff] %v2885
      %2918 = vst [vmem:[#allocation2 + $0x20] sm:$0xff] %v2886
      %2919 = vst [vmem:[#allocation2 + $0x28] sm:$0xff] %v2887
      %2920 = vst [vmem:[#allocation2 + $0x30] sm:$0xff] %v2888
      %2921 = vst [vmem:[#allocation2 + $0x38] sm:$0xff] %v2889
      %2922 = vst [vmem:[#allocation2 + $0x40] sm:$0xff] %v2890
      %2923 = vst [vmem:[#allocation2 + $0x48] sm:$0xff] %v2891
      %2924 = vst [vmem:[#allocation2 + $0x50] sm:$0xff] %v2892
      %2925 = vst [vmem:[#allocation2 + $0x58] sm:$0xff] %v2893
      %2926 = vst [vmem:[#allocation2 + $0x60] sm:$0xff] %v2894
      %2927 = vst [vmem:[#allocation2 + $0x68] sm:$0xff] %v2895
      %2928 = vst [vmem:[#allocation2 + $0x70] sm:$0xff] %v2896
      %2929 = vst [vmem:[#allocation2 + $0x78] sm:$0xff] %v2897
      %2930 = vst [vmem:[#allocation2 + $0x80] sm:$0xff] %v2898
      %2931 = vst [vmem:[#allocation2 + $0x88] sm:$0xff] %v2899
      %2932 = vst [vmem:[#allocation2 + $0x90] sm:$0xff] %v2900
      %2933 = vst [vmem:[#allocation2 + $0x98] sm:$0xff] %v2901
      %2934 = vst [vmem:[#allocation2 + $0xa0] sm:$0xff] %v2902
      %2935 = vst [vmem:[#allocation2 + $0xa8] sm:$0xff] %v2903
      %2936 = vst [vmem:[#allocation2 + $0xb0] sm:$0xff] %v2904
      %2937 = vst [vmem:[#allocation2 + $0xb8] sm:$0xff] %v2905
      %2938 = vst [vmem:[#allocation2 + $0xc0] sm:$0xff] %v2906
      %2939 = vst [vmem:[#allocation2 + $0xc8] sm:$0xff] %v2907
      %2940 = vst [vmem:[#allocation2 + $0xd0] sm:$0xff] %v2908
      %2941 = vst [vmem:[#allocation2 + $0xd8] sm:$0xff] %v2909
      %2942 = vst [vmem:[#allocation2 + $0xe0] sm:$0xff] %v2910
      %2943 = vst [vmem:[#allocation2 + $0xe8] sm:$0xff] %v2911
      %2944 = vst [vmem:[#allocation2 + $0xf0] sm:$0xff] %v2912
      %2945 = vst [vmem:[#allocation2 + $0xf8] sm:$0xff] %v2913
      %s2946 = scalar_lea.vmem %s3, 256
      %v2947 = vld [vmem:[%s2946] sm:$0xff]
      %v2948 = vld [vmem:[%s2946 + $0x8] sm:$0xff]
      %v2949 = vld [vmem:[%s2946 + $0x10] sm:$0xff]
      %v2950 = vld [vmem:[%s2946 + $0x18] sm:$0xff]
      %v2951 = vld [vmem:[%s2946 + $0x20] sm:$0xff]
      %v2952 = vld [vmem:[%s2946 + $0x28] sm:$0xff]
      %v2953 = vld [vmem:[%s2946 + $0x30] sm:$0xff]
      %v2954 = vld [vmem:[%s2946 + $0x38] sm:$0xff]
      %v2955 = vld [vmem:[%s2946 + $0x40] sm:$0xff]
      %v2956 = vld [vmem:[%s2946 + $0x48] sm:$0xff]
      %v2957 = vld [vmem:[%s2946 + $0x50] sm:$0xff]
      %v2958 = vld [vmem:[%s2946 + $0x58] sm:$0xff]
      %v2959 = vld [vmem:[%s2946 + $0x60] sm:$0xff]
      %v2960 = vld [vmem:[%s2946 + $0x68] sm:$0xff]
      %v2961 = vld [vmem:[%s2946 + $0x70] sm:$0xff]
      %v2962 = vld [vmem:[%s2946 + $0x78] sm:$0xff]
      %2963 = vmatprep.subr.mxu0 0.0
      %2964 = vmatpush1.msra.mxu0 %v2947
      %2965 = vmatprep.subr.mxu0 0.0
      %2966 = vmatpush1.msra.mxu0 %v2948
      %2967 = vmatprep.subr.mxu0 0.0
      %2968 = vmatpush1.msra.mxu0 %v2949
      %2969 = vmatprep.subr.mxu0 0.0
      %2970 = vmatpush1.msra.mxu0 %v2950
      %2971 = vmatprep.subr.mxu0 0.0
      %2972 = vmatpush1.msra.mxu0 %v2951
      %2973 = vmatprep.subr.mxu0 0.0
      %2974 = vmatpush1.msra.mxu0 %v2952
      %2975 = vmatprep.subr.mxu0 0.0
      %2976 = vmatpush1.msra.mxu0 %v2953
      %2977 = vmatprep.subr.mxu0 0.0
      %2978 = vmatpush1.msra.mxu0 %v2954
      %2979 = vmatprep.subr.mxu0 0.0
      %2980 = vmatpush1.msra.mxu0 %v2955
      %2981 = vmatprep.subr.mxu0 0.0
      %2982 = vmatpush1.msra.mxu0 %v2956
      %2983 = vmatprep.subr.mxu0 0.0
      %2984 = vmatpush1.msra.mxu0 %v2957
      %2985 = vmatprep.subr.mxu0 0.0
      %2986 = vmatpush1.msra.mxu0 %v2958
      %2987 = vmatprep.subr.mxu0 0.0
      %2988 = vmatpush1.msra.mxu0 %v2959
      %2989 = vmatprep.subr.mxu0 0.0
      %2990 = vmatpush1.msra.mxu0 %v2960
      %2991 = vmatprep.subr.mxu0 0.0
      %2992 = vmatpush1.msra.mxu0 %v2961
      %2993 = vmatprep.subr.mxu0 0.0
      %2994 = vmatpush1.msra.mxu0 %v2962
      %2995 = vmatprep.subr.mxu0 0.0
      %2996 = vmatpush1.msra.mxu0 0.0
      %2997 = vmatprep.subr.mxu0 0.0
      %2998 = vmatpush1.msra.mxu0 0.0
      %2999 = vmatprep.subr.mxu0 0.0
      %3000 = vmatpush1.msra.mxu0 0.0
      %3001 = vmatprep.subr.mxu0 0.0
      %3002 = vmatpush1.msra.mxu0 0.0
      %3003 = vmatprep.subr.mxu0 0.0
      %3004 = vmatpush1.msra.mxu0 0.0
      %3005 = vmatprep.subr.mxu0 0.0
      %3006 = vmatpush1.msra.mxu0 0.0
      %3007 = vmatprep.subr.mxu0 0.0
      %3008 = vmatpush1.msra.mxu0 0.0
      %3009 = vmatprep.subr.mxu0 0.0
      %3010 = vmatpush1.msra.mxu0 0.0
      %3011 = vmatprep.subr.mxu0 0.0
      %3012 = vmatpush1.msra.mxu0 0.0
      %3013 = vmatprep.subr.mxu0 0.0
      %3014 = vmatpush1.msra.mxu0 0.0
      %3015 = vmatprep.subr.mxu0 0.0
      %3016 = vmatpush1.msra.mxu0 0.0
      %3017 = vmatprep.subr.mxu0 0.0
      %3018 = vmatpush1.msra.mxu0 0.0
      %3019 = vmatprep.subr.mxu0 0.0
      %3020 = vmatpush1.msra.mxu0 0.0
      %3021 = vmatprep.subr.mxu0 0.0
      %3022 = vmatpush1.msra.mxu0 0.0
      %3023 = vmatprep.subr.mxu0 0.0
      %3024 = vmatpush1.msra.mxu0 0.0
      %3025 = vmatprep.subr.mxu0 0.0
      %3026 = vmatpush1.msra.mxu0 0.0
      %3027 = vmatprep.mubr.f32.mxu0 0.0
      %3028 = vmatmul.mubr.f32.gmra.mrb[0].mxu0 %v876
      %v3029 = vpop.f32.mrb[0].mxu0
      %v3030 = vadd.f32 0.0, %v3029
      %v3031 = vpop.f32.mrb[0].mxu0
      %3032 = vmatprep.mubr.f32.mxu0 0.0
      %3033 = vmatmul.mubr.f32.gmra.mrb[0].mxu0 %v965
      %v3034 = vpop.f32.mrb[0].mxu0
      %v3035 = vadd.f32 0.0, %v3034
      %v3036 = vpop.f32.mrb[0].mxu0
      %3037 = vmatprep.mubr.f32.mxu0 0.0
      %3038 = vmatmul.mubr.f32.gmra.mrb[0].mxu0 %v878
      %v3039 = vpop.f32.mrb[0].mxu0
      %v3040 = vadd.f32 0.0, %v3039
      %v3041 = vpop.f32.mrb[0].mxu0
      %3042 = vmatprep.mubr.f32.mxu0 0.0
      %3043 = vmatmul.mubr.f32.gmra.mrb[0].mxu0 %v966
      %v3044 = vpop.f32.mrb[0].mxu0
      %v3045 = vadd.f32 0.0, %v3044
      %v3046 = vpop.f32.mrb[0].mxu0
      %3047 = vmatprep.mubr.f32.mxu0 0.0
      %3048 = vmatmul.mubr.f32.gmra.mrb[0].mxu0 %v880
      %v3049 = vpop.f32.mrb[0].mxu0
      %v3050 = vadd.f32 0.0, %v3049
      %v3051 = vpop.f32.mrb[0].mxu0
      %3052 = vmatprep.mubr.f32.mxu0 0.0
      %3053 = vmatmul.mubr.f32.gmra.mrb[0].mxu0 %v967
      %v3054 = vpop.f32.mrb[0].mxu0
      %v3055 = vadd.f32 0.0, %v3054
      %v3056 = vpop.f32.mrb[0].mxu0
      %3057 = vmatprep.mubr.f32.mxu0 0.0
      %3058 = vmatmul.mubr.f32.gmra.mrb[0].mxu0 %v882
      %v3059 = vpop.f32.mrb[0].mxu0
      %v3060 = vadd.f32 0.0, %v3059
      %v3061 = vpop.f32.mrb[0].mxu0
      %3062 = vmatprep.mubr.f32.mxu0 0.0
      %3063 = vmatmul.mubr.f32.gmra.mrb[0].mxu0 %v968
      %v3064 = vpop.f32.mrb[0].mxu0
      %v3065 = vadd.f32 0.0, %v3064
      %v3066 = vpop.f32.mrb[0].mxu0
      %3067 = vmatprep.mubr.f32.mxu0 0.0
      %3068 = vmatmul.mubr.f32.gmra.mrb[0].mxu0 %v884
      %v3069 = vpop.f32.mrb[0].mxu0
      %v3070 = vadd.f32 0.0, %v3069
      %v3071 = vpop.f32.mrb[0].mxu0
      %3072 = vmatprep.mubr.f32.mxu0 0.0
      %3073 = vmatmul.mubr.f32.gmra.mrb[0].mxu0 %v969
      %v3074 = vpop.f32.mrb[0].mxu0
      %v3075 = vadd.f32 0.0, %v3074
      %v3076 = vpop.f32.mrb[0].mxu0
      %3077 = vmatprep.mubr.f32.mxu0 0.0
      %3078 = vmatmul.mubr.f32.gmra.mrb[0].mxu0 %v886
      %v3079 = vpop.f32.mrb[0].mxu0
      %v3080 = vadd.f32 0.0, %v3079
      %v3081 = vpop.f32.mrb[0].mxu0
      %3082 = vmatprep.mubr.f32.mxu0 0.0
      %3083 = vmatmul.mubr.f32.gmra.mrb[0].mxu0 %v970
      %v3084 = vpop.f32.mrb[0].mxu0
      %v3085 = vadd.f32 0.0, %v3084
      %v3086 = vpop.f32.mrb[0].mxu0
      %3087 = vmatprep.mubr.f32.mxu0 0.0
      %3088 = vmatmul.mubr.f32.gmra.mrb[0].mxu0 %v888
      %v3089 = vpop.f32.mrb[0].mxu0
      %v3090 = vadd.f32 0.0, %v3089
      %v3091 = vpop.f32.mrb[0].mxu0
      %3092 = vmatprep.mubr.f32.mxu0 0.0
      %3093 = vmatmul.mubr.f32.gmra.mrb[0].mxu0 %v971
      %v3094 = vpop.f32.mrb[0].mxu0
      %v3095 = vadd.f32 0.0, %v3094
      %v3096 = vpop.f32.mrb[0].mxu0
      %3097 = vmatprep.mubr.f32.mxu0 0.0
      %3098 = vmatmul.mubr.f32.gmra.mrb[0].mxu0 %v890
      %v3099 = vpop.f32.mrb[0].mxu0
      %v3100 = vadd.f32 0.0, %v3099
      %v3101 = vpop.f32.mrb[0].mxu0
      %3102 = vmatprep.mubr.f32.mxu0 0.0
      %3103 = vmatmul.mubr.f32.gmra.mrb[0].mxu0 %v972
      %v3104 = vpop.f32.mrb[0].mxu0
      %v3105 = vadd.f32 0.0, %v3104
      %v3106 = vpop.f32.mrb[0].mxu0
      %3107 = vmatprep.mubr.f32.mxu0 0.0
      %3108 = vmatmul.mubr.f32.gmra.mrb[0].mxu0 %v892
      %v3109 = vpop.f32.mrb[0].mxu0
      %v3110 = vadd.f32 0.0, %v3109
      %v3111 = vpop.f32.mrb[0].mxu0
      %3112 = vmatprep.mubr.f32.mxu0 0.0
      %3113 = vmatmul.mubr.f32.gmra.mrb[0].mxu0 %v973
      %v3114 = vpop.f32.mrb[0].mxu0
      %v3115 = vadd.f32 0.0, %v3114
      %v3116 = vpop.f32.mrb[0].mxu0
      %3117 = vmatprep.mubr.f32.mxu0 0.0
      %3118 = vmatmul.mubr.f32.gmra.mrb[0].mxu0 %v894
      %v3119 = vpop.f32.mrb[0].mxu0
      %v3120 = vadd.f32 0.0, %v3119
      %v3121 = vpop.f32.mrb[0].mxu0
      %3122 = vmatprep.mubr.f32.mxu0 0.0
      %3123 = vmatmul.mubr.f32.gmra.mrb[0].mxu0 %v974
      %v3124 = vpop.f32.mrb[0].mxu0
      %v3125 = vadd.f32 0.0, %v3124
      %v3126 = vpop.f32.mrb[0].mxu0
      %3127 = vmatprep.mubr.f32.mxu0 0.0
      %3128 = vmatmul.mubr.f32.gmra.mrb[0].mxu0 %v896
      %v3129 = vpop.f32.mrb[0].mxu0
      %v3130 = vadd.f32 0.0, %v3129
      %v3131 = vpop.f32.mrb[0].mxu0
      %3132 = vmatprep.mubr.f32.mxu0 0.0
      %3133 = vmatmul.mubr.f32.gmra.mrb[0].mxu0 %v975
      %v3134 = vpop.f32.mrb[0].mxu0
      %v3135 = vadd.f32 0.0, %v3134
      %v3136 = vpop.f32.mrb[0].mxu0
      %3137 = vmatprep.mubr.f32.mxu0 0.0
      %3138 = vmatmul.mubr.f32.gmra.mrb[0].mxu0 %v898
      %v3139 = vpop.f32.mrb[0].mxu0
      %v3140 = vadd.f32 0.0, %v3139
      %v3141 = vpop.f32.mrb[0].mxu0
      %3142 = vmatprep.mubr.f32.mxu0 0.0
      %3143 = vmatmul.mubr.f32.gmra.mrb[0].mxu0 %v976
      %v3144 = vpop.f32.mrb[0].mxu0
      %v3145 = vadd.f32 0.0, %v3144
      %v3146 = vpop.f32.mrb[0].mxu0
      %3147 = vmatprep.mubr.f32.mxu0 0.0
      %3148 = vmatmul.mubr.f32.gmra.mrb[0].mxu0 %v900
      %v3149 = vpop.f32.mrb[0].mxu0
      %v3150 = vadd.f32 0.0, %v3149
      %v3151 = vpop.f32.mrb[0].mxu0
      %3152 = vmatprep.mubr.f32.mxu0 0.0
      %3153 = vmatmul.mubr.f32.gmra.mrb[0].mxu0 %v977
      %v3154 = vpop.f32.mrb[0].mxu0
      %v3155 = vadd.f32 0.0, %v3154
      %v3156 = vpop.f32.mrb[0].mxu0
      %3157 = vmatprep.mubr.f32.mxu0 0.0
      %3158 = vmatmul.mubr.f32.gmra.mrb[0].mxu0 %v902
      %v3159 = vpop.f32.mrb[0].mxu0
      %v3160 = vadd.f32 0.0, %v3159
      %v3161 = vpop.f32.mrb[0].mxu0
      %3162 = vmatprep.mubr.f32.mxu0 0.0
      %3163 = vmatmul.mubr.f32.gmra.mrb[0].mxu0 %v978
      %v3164 = vpop.f32.mrb[0].mxu0
      %v3165 = vadd.f32 0.0, %v3164
      %v3166 = vpop.f32.mrb[0].mxu0
      %3167 = vmatprep.mubr.f32.mxu0 0.0
      %3168 = vmatmul.mubr.f32.gmra.mrb[0].mxu0 %v904
      %v3169 = vpop.f32.mrb[0].mxu0
      %v3170 = vadd.f32 0.0, %v3169
      %v3171 = vpop.f32.mrb[0].mxu0
      %3172 = vmatprep.mubr.f32.mxu0 0.0
      %3173 = vmatmul.mubr.f32.gmra.mrb[0].mxu0 %v979
      %v3174 = vpop.f32.mrb[0].mxu0
      %v3175 = vadd.f32 0.0, %v3174
      %v3176 = vpop.f32.mrb[0].mxu0
      %3177 = vmatprep.mubr.f32.mxu0 0.0
      %3178 = vmatmul.mubr.f32.gmra.mrb[0].mxu0 %v906
      %v3179 = vpop.f32.mrb[0].mxu0
      %v3180 = vadd.f32 0.0, %v3179
      %v3181 = vpop.f32.mrb[0].mxu0
      %3182 = vmatprep.mubr.f32.mxu0 0.0
      %3183 = vmatmul.mubr.f32.gmra.mrb[0].mxu0 %v980
      %v3184 = vpop.f32.mrb[0].mxu0
      %v3185 = vadd.f32 0.0, %v3184
      %v3186 = vpop.f32.mrb[0].mxu0
      %3187 = vdwg.mxu0
      %v3188 = vld [vmem:[#allocation2] sm:$0xff]
      %v3189 = vld [vmem:[#allocation2 + $0x8] sm:$0xff]
      %v3190 = vld [vmem:[#allocation2 + $0x10] sm:$0xff]
      %v3191 = vld [vmem:[#allocation2 + $0x18] sm:$0xff]
      %v3192 = vld [vmem:[#allocation2 + $0x20] sm:$0xff]
      %v3193 = vld [vmem:[#allocation2 + $0x28] sm:$0xff]
      %v3194 = vld [vmem:[#allocation2 + $0x30] sm:$0xff]
      %v3195 = vld [vmem:[#allocation2 + $0x38] sm:$0xff]
      %v3196 = vld [vmem:[#allocation2 + $0x40] sm:$0xff]
      %v3197 = vld [vmem:[#allocation2 + $0x48] sm:$0xff]
      %v3198 = vld [vmem:[#allocation2 + $0x50] sm:$0xff]
      %v3199 = vld [vmem:[#allocation2 + $0x58] sm:$0xff]
      %v3200 = vld [vmem:[#allocation2 + $0x60] sm:$0xff]
      %v3201 = vld [vmem:[#allocation2 + $0x68] sm:$0xff]
      %v3202 = vld [vmem:[#allocation2 + $0x70] sm:$0xff]
      %v3203 = vld [vmem:[#allocation2 + $0x78] sm:$0xff]
      %v3204 = vld [vmem:[#allocation2 + $0x80] sm:$0xff]
      %v3205 = vld [vmem:[#allocation2 + $0x88] sm:$0xff]
      %v3206 = vld [vmem:[#allocation2 + $0x90] sm:$0xff]
      %v3207 = vld [vmem:[#allocation2 + $0x98] sm:$0xff]
      %v3208 = vld [vmem:[#allocation2 + $0xa0] sm:$0xff]
      %v3209 = vld [vmem:[#allocation2 + $0xa8] sm:$0xff]
      %v3210 = vld [vmem:[#allocation2 + $0xb0] sm:$0xff]
      %v3211 = vld [vmem:[#allocation2 + $0xb8] sm:$0xff]
      %v3212 = vld [vmem:[#allocation2 + $0xc0] sm:$0xff]
      %v3213 = vld [vmem:[#allocation2 + $0xc8] sm:$0xff]
      %v3214 = vld [vmem:[#allocation2 + $0xd0] sm:$0xff]
      %v3215 = vld [vmem:[#allocation2 + $0xd8] sm:$0xff]
      %v3216 = vld [vmem:[#allocation2 + $0xe0] sm:$0xff]
      %v3217 = vld [vmem:[#allocation2 + $0xe8] sm:$0xff]
      %v3218 = vld [vmem:[#allocation2 + $0xf0] sm:$0xff]
      %v3219 = vld [vmem:[#allocation2 + $0xf8] sm:$0xff]
      %v3220 = vadd.f32 %v3188, %v3030
      %v3221 = vadd.f32 %v3189, %v3035
      %v3222 = vadd.f32 %v3190, %v3040
      %v3223 = vadd.f32 %v3191, %v3045
      %v3224 = vadd.f32 %v3192, %v3050
      %v3225 = vadd.f32 %v3193, %v3055
      %v3226 = vadd.f32 %v3194, %v3060
      %v3227 = vadd.f32 %v3195, %v3065
      %v3228 = vadd.f32 %v3196, %v3070
      %v3229 = vadd.f32 %v3197, %v3075
      %v3230 = vadd.f32 %v3198, %v3080
      %v3231 = vadd.f32 %v3199, %v3085
      %v3232 = vadd.f32 %v3200, %v3090
      %v3233 = vadd.f32 %v3201, %v3095
      %v3234 = vadd.f32 %v3202, %v3100
      %v3235 = vadd.f32 %v3203, %v3105
      %v3236 = vadd.f32 %v3204, %v3110
      %v3237 = vadd.f32 %v3205, %v3115
      %v3238 = vadd.f32 %v3206, %v3120
      %v3239 = vadd.f32 %v3207, %v3125
      %v3240 = vadd.f32 %v3208, %v3130
      %v3241 = vadd.f32 %v3209, %v3135
      %v3242 = vadd.f32 %v3210, %v3140
      %v3243 = vadd.f32 %v3211, %v3145
      %v3244 = vadd.f32 %v3212, %v3150
      %v3245 = vadd.f32 %v3213, %v3155
      %v3246 = vadd.f32 %v3214, %v3160
      %v3247 = vadd.f32 %v3215, %v3165
      %v3248 = vadd.f32 %v3216, %v3170
      %v3249 = vadd.f32 %v3217, %v3175
      %v3250 = vadd.f32 %v3218, %v3180
      %v3251 = vadd.f32 %v3219, %v3185
      %3252 = vst [vmem:[#allocation2] sm:$0xff] %v3220
      %3253 = vst [vmem:[#allocation2 + $0x8] sm:$0xff] %v3221
      %3254 = vst [vmem:[#allocation2 + $0x10] sm:$0xff] %v3222
      %3255 = vst [vmem:[#allocation2 + $0x18] sm:$0xff] %v3223
      %3256 = vst [vmem:[#allocation2 + $0x20] sm:$0xff] %v3224
      %3257 = vst [vmem:[#allocation2 + $0x28] sm:$0xff] %v3225
      %3258 = vst [vmem:[#allocation2 + $0x30] sm:$0xff] %v3226
      %3259 = vst [vmem:[#allocation2 + $0x38] sm:$0xff] %v3227
      %3260 = vst [vmem:[#allocation2 + $0x40] sm:$0xff] %v3228
      %3261 = vst [vmem:[#allocation2 + $0x48] sm:$0xff] %v3229
      %3262 = vst [vmem:[#allocation2 + $0x50] sm:$0xff] %v3230
      %3263 = vst [vmem:[#allocation2 + $0x58] sm:$0xff] %v3231
      %3264 = vst [vmem:[#allocation2 + $0x60] sm:$0xff] %v3232
      %3265 = vst [vmem:[#allocation2 + $0x68] sm:$0xff] %v3233
      %3266 = vst [vmem:[#allocation2 + $0x70] sm:$0xff] %v3234
      %3267 = vst [vmem:[#allocation2 + $0x78] sm:$0xff] %v3235
      %3268 = vst [vmem:[#allocation2 + $0x80] sm:$0xff] %v3236
      %3269 = vst [vmem:[#allocation2 + $0x88] sm:$0xff] %v3237
      %3270 = vst [vmem:[#allocation2 + $0x90] sm:$0xff] %v3238
      %3271 = vst [vmem:[#allocation2 + $0x98] sm:$0xff] %v3239
      %3272 = vst [vmem:[#allocation2 + $0xa0] sm:$0xff] %v3240
      %3273 = vst [vmem:[#allocation2 + $0xa8] sm:$0xff] %v3241
      %3274 = vst [vmem:[#allocation2 + $0xb0] sm:$0xff] %v3242
      %3275 = vst [vmem:[#allocation2 + $0xb8] sm:$0xff] %v3243
      %3276 = vst [vmem:[#allocation2 + $0xc0] sm:$0xff] %v3244
      %3277 = vst [vmem:[#allocation2 + $0xc8] sm:$0xff] %v3245
      %3278 = vst [vmem:[#allocation2 + $0xd0] sm:$0xff] %v3246
      %3279 = vst [vmem:[#allocation2 + $0xd8] sm:$0xff] %v3247
      %3280 = vst [vmem:[#allocation2 + $0xe0] sm:$0xff] %v3248
      %3281 = vst [vmem:[#allocation2 + $0xe8] sm:$0xff] %v3249
      %3282 = vst [vmem:[#allocation2 + $0xf0] sm:$0xff] %v3250
      %3283 = vst [vmem:[#allocation2 + $0xf8] sm:$0xff] %v3251
      %s3284 = scalar_lea.vmem %s3, 640
      %v3285 = vld [vmem:[%s3284] sm:$0xff]
      %v3286 = vld [vmem:[%s3284 + $0x8] sm:$0xff]
      %v3287 = vld [vmem:[%s3284 + $0x10] sm:$0xff]
      %v3288 = vld [vmem:[%s3284 + $0x18] sm:$0xff]
      %v3289 = vld [vmem:[%s3284 + $0x20] sm:$0xff]
      %v3290 = vld [vmem:[%s3284 + $0x28] sm:$0xff]
      %v3291 = vld [vmem:[%s3284 + $0x30] sm:$0xff]
      %v3292 = vld [vmem:[%s3284 + $0x38] sm:$0xff]
      %v3293 = vld [vmem:[%s3284 + $0x40] sm:$0xff]
      %v3294 = vld [vmem:[%s3284 + $0x48] sm:$0xff]
      %v3295 = vld [vmem:[%s3284 + $0x50] sm:$0xff]
      %v3296 = vld [vmem:[%s3284 + $0x58] sm:$0xff]
      %v3297 = vld [vmem:[%s3284 + $0x60] sm:$0xff]
      %v3298 = vld [vmem:[%s3284 + $0x68] sm:$0xff]
      %v3299 = vld [vmem:[%s3284 + $0x70] sm:$0xff]
      %v3300 = vld [vmem:[%s3284 + $0x78] sm:$0xff]
      %3301 = vmatprep.subr.mxu0 0.0
      %3302 = vmatpush1.msra.mxu0 %v3285
      %3303 = vmatprep.subr.mxu0 0.0
      %3304 = vmatpush1.msra.mxu0 %v3286
      %3305 = vmatprep.subr.mxu0 0.0
      %3306 = vmatpush1.msra.mxu0 %v3287
      %3307 = vmatprep.subr.mxu0 0.0
      %3308 = vmatpush1.msra.mxu0 %v3288
      %3309 = vmatprep.subr.mxu0 0.0
      %3310 = vmatpush1.msra.mxu0 %v3289
      %3311 = vmatprep.subr.mxu0 0.0
      %3312 = vmatpush1.msra.mxu0 %v3290
      %3313 = vmatprep.subr.mxu0 0.0
      %3314 = vmatpush1.msra.mxu0 %v3291
      %3315 = vmatprep.subr.mxu0 0.0
      %3316 = vmatpush1.msra.mxu0 %v3292
      %3317 = vmatprep.subr.mxu0 0.0
      %3318 = vmatpush1.msra.mxu0 %v3293
      %3319 = vmatprep.subr.mxu0 0.0
      %3320 = vmatpush1.msra.mxu0 %v3294
      %3321 = vmatprep.subr.mxu0 0.0
      %3322 = vmatpush1.msra.mxu0 %v3295
      %3323 = vmatprep.subr.mxu0 0.0
      %3324 = vmatpush1.msra.mxu0 %v3296
      %3325 = vmatprep.subr.mxu0 0.0
      %3326 = vmatpush1.msra.mxu0 %v3297
      %3327 = vmatprep.subr.mxu0 0.0
      %3328 = vmatpush1.msra.mxu0 %v3298
      %3329 = vmatprep.subr.mxu0 0.0
      %3330 = vmatpush1.msra.mxu0 %v3299
      %3331 = vmatprep.subr.mxu0 0.0
      %3332 = vmatpush1.msra.mxu0 %v3300
      %3333 = vmatprep.subr.mxu0 0.0
      %3334 = vmatpush1.msra.mxu0 0.0
      %3335 = vmatprep.subr.mxu0 0.0
      %3336 = vmatpush1.msra.mxu0 0.0
      %3337 = vmatprep.subr.mxu0 0.0
      %3338 = vmatpush1.msra.mxu0 0.0
      %3339 = vmatprep.subr.mxu0 0.0
      %3340 = vmatpush1.msra.mxu0 0.0
      %3341 = vmatprep.subr.mxu0 0.0
      %3342 = vmatpush1.msra.mxu0 0.0
      %3343 = vmatprep.subr.mxu0 0.0
      %3344 = vmatpush1.msra.mxu0 0.0
      %3345 = vmatprep.subr.mxu0 0.0
      %3346 = vmatpush1.msra.mxu0 0.0
      %3347 = vmatprep.subr.mxu0 0.0
      %3348 = vmatpush1.msra.mxu0 0.0
      %3349 = vmatprep.subr.mxu0 0.0
      %3350 = vmatpush1.msra.mxu0 0.0
      %3351 = vmatprep.subr.mxu0 0.0
      %3352 = vmatpush1.msra.mxu0 0.0
      %3353 = vmatprep.subr.mxu0 0.0
      %3354 = vmatpush1.msra.mxu0 0.0
      %3355 = vmatprep.subr.mxu0 0.0
      %3356 = vmatpush1.msra.mxu0 0.0
      %3357 = vmatprep.subr.mxu0 0.0
      %3358 = vmatpush1.msra.mxu0 0.0
      %3359 = vmatprep.subr.mxu0 0.0
      %3360 = vmatpush1.msra.mxu0 0.0
      %3361 = vmatprep.subr.mxu0 0.0
      %3362 = vmatpush1.msra.mxu0 0.0
      %3363 = vmatprep.subr.mxu0 0.0
      %3364 = vmatpush1.msra.mxu0 0.0
      %3365 = vmatprep.mubr.f32.mxu0 0.0
      %3366 = vmatmul.mubr.f32.gmra.mrb[0].mxu0 %v878
      %v3367 = vpop.f32.mrb[0].mxu0
      %v3368 = vadd.f32 0.0, %v3367
      %v3369 = vpop.f32.mrb[0].mxu0
      %3370 = vmatprep.mubr.f32.mxu0 0.0
      %3371 = vmatmul.mubr.f32.gmra.mrb[0].mxu0 %v966
      %v3372 = vpop.f32.mrb[0].mxu0
      %v3373 = vadd.f32 0.0, %v3372
      %v3374 = vpop.f32.mrb[0].mxu0
      %3375 = vmatprep.mubr.f32.mxu0 0.0
      %3376 = vmatmul.mubr.f32.gmra.mrb[0].mxu0 %v880
      %v3377 = vpop.f32.mrb[0].mxu0
      %v3378 = vadd.f32 0.0, %v3377
      %v3379 = vpop.f32.mrb[0].mxu0
      %3380 = vmatprep.mubr.f32.mxu0 0.0
      %3381 = vmatmul.mubr.f32.gmra.mrb[0].mxu0 %v967
      %v3382 = vpop.f32.mrb[0].mxu0
      %v3383 = vadd.f32 0.0, %v3382
      %v3384 = vpop.f32.mrb[0].mxu0
      %3385 = vmatprep.mubr.f32.mxu0 0.0
      %3386 = vmatmul.mubr.f32.gmra.mrb[0].mxu0 %v882
      %v3387 = vpop.f32.mrb[0].mxu0
      %v3388 = vadd.f32 0.0, %v3387
      %v3389 = vpop.f32.mrb[0].mxu0
      %3390 = vmatprep.mubr.f32.mxu0 0.0
      %3391 = vmatmul.mubr.f32.gmra.mrb[0].mxu0 %v968
      %v3392 = vpop.f32.mrb[0].mxu0
      %v3393 = vadd.f32 0.0, %v3392
      %v3394 = vpop.f32.mrb[0].mxu0
      %3395 = vmatprep.mubr.f32.mxu0 0.0
      %3396 = vmatmul.mubr.f32.gmra.mrb[0].mxu0 %v884
      %v3397 = vpop.f32.mrb[0].mxu0
      %v3398 = vadd.f32 0.0, %v3397
      %v3399 = vpop.f32.mrb[0].mxu0
      %3400 = vmatprep.mubr.f32.mxu0 0.0
      %3401 = vmatmul.mubr.f32.gmra.mrb[0].mxu0 %v969
      %v3402 = vpop.f32.mrb[0].mxu0
      %v3403 = vadd.f32 0.0, %v3402
      %v3404 = vpop.f32.mrb[0].mxu0
      %3405 = vmatprep.mubr.f32.mxu0 0.0
      %3406 = vmatmul.mubr.f32.gmra.mrb[0].mxu0 %v886
      %v3407 = vpop.f32.mrb[0].mxu0
      %v3408 = vadd.f32 0.0, %v3407
      %v3409 = vpop.f32.mrb[0].mxu0
      %3410 = vmatprep.mubr.f32.mxu0 0.0
      %3411 = vmatmul.mubr.f32.gmra.mrb[0].mxu0 %v970
      %v3412 = vpop.f32.mrb[0].mxu0
      %v3413 = vadd.f32 0.0, %v3412
      %v3414 = vpop.f32.mrb[0].mxu0
      %3415 = vmatprep.mubr.f32.mxu0 0.0
      %3416 = vmatmul.mubr.f32.gmra.mrb[0].mxu0 %v888
      %v3417 = vpop.f32.mrb[0].mxu0
      %v3418 = vadd.f32 0.0, %v3417
      %v3419 = vpop.f32.mrb[0].mxu0
      %3420 = vmatprep.mubr.f32.mxu0 0.0
      %3421 = vmatmul.mubr.f32.gmra.mrb[0].mxu0 %v971
      %v3422 = vpop.f32.mrb[0].mxu0
      %v3423 = vadd.f32 0.0, %v3422
      %v3424 = vpop.f32.mrb[0].mxu0
      %3425 = vmatprep.mubr.f32.mxu0 0.0
      %3426 = vmatmul.mubr.f32.gmra.mrb[0].mxu0 %v890
      %v3427 = vpop.f32.mrb[0].mxu0
      %v3428 = vadd.f32 0.0, %v3427
      %v3429 = vpop.f32.mrb[0].mxu0
      %3430 = vmatprep.mubr.f32.mxu0 0.0
      %3431 = vmatmul.mubr.f32.gmra.mrb[0].mxu0 %v972
      %v3432 = vpop.f32.mrb[0].mxu0
      %v3433 = vadd.f32 0.0, %v3432
      %v3434 = vpop.f32.mrb[0].mxu0
      %3435 = vmatprep.mubr.f32.mxu0 0.0
      %3436 = vmatmul.mubr.f32.gmra.mrb[0].mxu0 %v892
      %v3437 = vpop.f32.mrb[0].mxu0
      %v3438 = vadd.f32 0.0, %v3437
      %v3439 = vpop.f32.mrb[0].mxu0
      %3440 = vmatprep.mubr.f32.mxu0 0.0
      %3441 = vmatmul.mubr.f32.gmra.mrb[0].mxu0 %v973
      %v3442 = vpop.f32.mrb[0].mxu0
      %v3443 = vadd.f32 0.0, %v3442
      %v3444 = vpop.f32.mrb[0].mxu0
      %3445 = vmatprep.mubr.f32.mxu0 0.0
      %3446 = vmatmul.mubr.f32.gmra.mrb[0].mxu0 %v894
      %v3447 = vpop.f32.mrb[0].mxu0
      %v3448 = vadd.f32 0.0, %v3447
      %v3449 = vpop.f32.mrb[0].mxu0
      %3450 = vmatprep.mubr.f32.mxu0 0.0
      %3451 = vmatmul.mubr.f32.gmra.mrb[0].mxu0 %v974
      %v3452 = vpop.f32.mrb[0].mxu0
      %v3453 = vadd.f32 0.0, %v3452
      %v3454 = vpop.f32.mrb[0].mxu0
      %3455 = vmatprep.mubr.f32.mxu0 0.0
      %3456 = vmatmul.mubr.f32.gmra.mrb[0].mxu0 %v896
      %v3457 = vpop.f32.mrb[0].mxu0
      %v3458 = vadd.f32 0.0, %v3457
      %v3459 = vpop.f32.mrb[0].mxu0
      %3460 = vmatprep.mubr.f32.mxu0 0.0
      %3461 = vmatmul.mubr.f32.gmra.mrb[0].mxu0 %v975
      %v3462 = vpop.f32.mrb[0].mxu0
      %v3463 = vadd.f32 0.0, %v3462
      %v3464 = vpop.f32.mrb[0].mxu0
      %3465 = vmatprep.mubr.f32.mxu0 0.0
      %3466 = vmatmul.mubr.f32.gmra.mrb[0].mxu0 %v898
      %v3467 = vpop.f32.mrb[0].mxu0
      %v3468 = vadd.f32 0.0, %v3467
      %v3469 = vpop.f32.mrb[0].mxu0
      %3470 = vmatprep.mubr.f32.mxu0 0.0
      %3471 = vmatmul.mubr.f32.gmra.mrb[0].mxu0 %v976
      %v3472 = vpop.f32.mrb[0].mxu0
      %v3473 = vadd.f32 0.0, %v3472
      %v3474 = vpop.f32.mrb[0].mxu0
      %3475 = vmatprep.mubr.f32.mxu0 0.0
      %3476 = vmatmul.mubr.f32.gmra.mrb[0].mxu0 %v900
      %v3477 = vpop.f32.mrb[0].mxu0
      %v3478 = vadd.f32 0.0, %v3477
      %v3479 = vpop.f32.mrb[0].mxu0
      %3480 = vmatprep.mubr.f32.mxu0 0.0
      %3481 = vmatmul.mubr.f32.gmra.mrb[0].mxu0 %v977
      %v3482 = vpop.f32.mrb[0].mxu0
      %v3483 = vadd.f32 0.0, %v3482
      %v3484 = vpop.f32.mrb[0].mxu0
      %3485 = vmatprep.mubr.f32.mxu0 0.0
      %3486 = vmatmul.mubr.f32.gmra.mrb[0].mxu0 %v902
      %v3487 = vpop.f32.mrb[0].mxu0
      %v3488 = vadd.f32 0.0, %v3487
      %v3489 = vpop.f32.mrb[0].mxu0
      %3490 = vmatprep.mubr.f32.mxu0 0.0
      %3491 = vmatmul.mubr.f32.gmra.mrb[0].mxu0 %v978
      %v3492 = vpop.f32.mrb[0].mxu0
      %v3493 = vadd.f32 0.0, %v3492
      %v3494 = vpop.f32.mrb[0].mxu0
      %3495 = vmatprep.mubr.f32.mxu0 0.0
      %3496 = vmatmul.mubr.f32.gmra.mrb[0].mxu0 %v904
      %v3497 = vpop.f32.mrb[0].mxu0
      %v3498 = vadd.f32 0.0, %v3497
      %v3499 = vpop.f32.mrb[0].mxu0
      %3500 = vmatprep.mubr.f32.mxu0 0.0
      %3501 = vmatmul.mubr.f32.gmra.mrb[0].mxu0 %v979
      %v3502 = vpop.f32.mrb[0].mxu0
      %v3503 = vadd.f32 0.0, %v3502
      %v3504 = vpop.f32.mrb[0].mxu0
      %3505 = vmatprep.mubr.f32.mxu0 0.0
      %3506 = vmatmul.mubr.f32.gmra.mrb[0].mxu0 %v906
      %v3507 = vpop.f32.mrb[0].mxu0
      %v3508 = vadd.f32 0.0, %v3507
      %v3509 = vpop.f32.mrb[0].mxu0
      %3510 = vmatprep.mubr.f32.mxu0 0.0
      %3511 = vmatmul.mubr.f32.gmra.mrb[0].mxu0 %v980
      %v3512 = vpop.f32.mrb[0].mxu0
      %v3513 = vadd.f32 0.0, %v3512
      %v3514 = vpop.f32.mrb[0].mxu0
      %3515 = vmatprep.mubr.f32.mxu0 0.0
      %3516 = vmatmul.mubr.f32.gmra.mrb[0].mxu0 %v908
      %v3517 = vpop.f32.mrb[0].mxu0
      %v3518 = vadd.f32 0.0, %v3517
      %v3519 = vpop.f32.mrb[0].mxu0
      %3520 = vmatprep.mubr.f32.mxu0 0.0
      %3521 = vmatmul.mubr.f32.gmra.mrb[0].mxu0 %v981
      %v3522 = vpop.f32.mrb[0].mxu0
      %v3523 = vadd.f32 0.0, %v3522
      %v3524 = vpop.f32.mrb[0].mxu0
      %3525 = vdwg.mxu0
      %v3526 = vld [vmem:[#allocation2] sm:$0xff]
      %v3527 = vld [vmem:[#allocation2 + $0x8] sm:$0xff]
      %v3528 = vld [vmem:[#allocation2 + $0x10] sm:$0xff]
      %v3529 = vld [vmem:[#allocation2 + $0x18] sm:$0xff]
      %v3530 = vld [vmem:[#allocation2 + $0x20] sm:$0xff]
      %v3531 = vld [vmem:[#allocation2 + $0x28] sm:$0xff]
      %v3532 = vld [vmem:[#allocation2 + $0x30] sm:$0xff]
      %v3533 = vld [vmem:[#allocation2 + $0x38] sm:$0xff]
      %v3534 = vld [vmem:[#allocation2 + $0x40] sm:$0xff]
      %v3535 = vld [vmem:[#allocation2 + $0x48] sm:$0xff]
      %v3536 = vld [vmem:[#allocation2 + $0x50] sm:$0xff]
      %v3537 = vld [vmem:[#allocation2 + $0x58] sm:$0xff]
      %v3538 = vld [vmem:[#allocation2 + $0x60] sm:$0xff]
      %v3539 = vld [vmem:[#allocation2 + $0x68] sm:$0xff]
      %v3540 = vld [vmem:[#allocation2 + $0x70] sm:$0xff]
      %v3541 = vld [vmem:[#allocation2 + $0x78] sm:$0xff]
      %v3542 = vld [vmem:[#allocation2 + $0x80] sm:$0xff]
      %v3543 = vld [vmem:[#allocation2 + $0x88] sm:$0xff]
      %v3544 = vld [vmem:[#allocation2 + $0x90] sm:$0xff]
      %v3545 = vld [vmem:[#allocation2 + $0x98] sm:$0xff]
      %v3546 = vld [vmem:[#allocation2 + $0xa0] sm:$0xff]
      %v3547 = vld [vmem:[#allocation2 + $0xa8] sm:$0xff]
      %v3548 = vld [vmem:[#allocation2 + $0xb0] sm:$0xff]
      %v3549 = vld [vmem:[#allocation2 + $0xb8] sm:$0xff]
      %v3550 = vld [vmem:[#allocation2 + $0xc0] sm:$0xff]
      %v3551 = vld [vmem:[#allocation2 + $0xc8] sm:$0xff]
      %v3552 = vld [vmem:[#allocation2 + $0xd0] sm:$0xff]
      %v3553 = vld [vmem:[#allocation2 + $0xd8] sm:$0xff]
      %v3554 = vld [vmem:[#allocation2 + $0xe0] sm:$0xff]
      %v3555 = vld [vmem:[#allocation2 + $0xe8] sm:$0xff]
      %v3556 = vld [vmem:[#allocation2 + $0xf0] sm:$0xff]
      %v3557 = vld [vmem:[#allocation2 + $0xf8] sm:$0xff]
      %v3558 = vadd.f32 %v3526, %v3368
      %v3559 = vadd.f32 %v3527, %v3373
      %v3560 = vadd.f32 %v3528, %v3378
      %v3561 = vadd.f32 %v3529, %v3383
      %v3562 = vadd.f32 %v3530, %v3388
      %v3563 = vadd.f32 %v3531, %v3393
      %v3564 = vadd.f32 %v3532, %v3398
      %v3565 = vadd.f32 %v3533, %v3403
      %v3566 = vadd.f32 %v3534, %v3408
      %v3567 = vadd.f32 %v3535, %v3413
      %v3568 = vadd.f32 %v3536, %v3418
      %v3569 = vadd.f32 %v3537, %v3423
      %v3570 = vadd.f32 %v3538, %v3428
      %v3571 = vadd.f32 %v3539, %v3433
      %v3572 = vadd.f32 %v3540, %v3438
      %v3573 = vadd.f32 %v3541, %v3443
      %v3574 = vadd.f32 %v3542, %v3448
      %v3575 = vadd.f32 %v3543, %v3453
      %v3576 = vadd.f32 %v3544, %v3458
      %v3577 = vadd.f32 %v3545, %v3463
      %v3578 = vadd.f32 %v3546, %v3468
      %v3579 = vadd.f32 %v3547, %v3473
      %v3580 = vadd.f32 %v3548, %v3478
      %v3581 = vadd.f32 %v3549, %v3483
      %v3582 = vadd.f32 %v3550, %v3488
      %v3583 = vadd.f32 %v3551, %v3493
      %v3584 = vadd.f32 %v3552, %v3498
      %v3585 = vadd.f32 %v3553, %v3503
      %v3586 = vadd.f32 %v3554, %v3508
      %v3587 = vadd.f32 %v3555, %v3513
      %v3588 = vadd.f32 %v3556, %v3518
      %v3589 = vadd.f32 %v3557, %v3523
      %3590 = vst [vmem:[#allocation2] sm:$0xff] %v3558
      %3591 = vst [vmem:[#allocation2 + $0x8] sm:$0xff] %v3559
      %3592 = vst [vmem:[#allocation2 + $0x10] sm:$0xff] %v3560
      %3593 = vst [vmem:[#allocation2 + $0x18] sm:$0xff] %v3561
      %3594 = vst [vmem:[#allocation2 + $0x20] sm:$0xff] %v3562
      %3595 = vst [vmem:[#allocation2 + $0x28] sm:$0xff] %v3563
      %3596 = vst [vmem:[#allocation2 + $0x30] sm:$0xff] %v3564
      %3597 = vst [vmem:[#allocation2 + $0x38] sm:$0xff] %v3565
      %3598 = vst [vmem:[#allocation2 + $0x40] sm:$0xff] %v3566
      %3599 = vst [vmem:[#allocation2 + $0x48] sm:$0xff] %v3567
      %3600 = vst [vmem:[#allocation2 + $0x50] sm:$0xff] %v3568
      %3601 = vst [vmem:[#allocation2 + $0x58] sm:$0xff] %v3569
      %3602 = vst [vmem:[#allocation2 + $0x60] sm:$0xff] %v3570
      %3603 = vst [vmem:[#allocation2 + $0x68] sm:$0xff] %v3571
      %3604 = vst [vmem:[#allocation2 + $0x70] sm:$0xff] %v3572
      %3605 = vst [vmem:[#allocation2 + $0x78] sm:$0xff] %v3573
      %3606 = vst [vmem:[#allocation2 + $0x80] sm:$0xff] %v3574
      %3607 = vst [vmem:[#allocation2 + $0x88] sm:$0xff] %v3575
      %3608 = vst [vmem:[#allocation2 + $0x90] sm:$0xff] %v3576
      %3609 = vst [vmem:[#allocation2 + $0x98] sm:$0xff] %v3577
      %3610 = vst [vmem:[#allocation2 + $0xa0] sm:$0xff] %v3578
      %3611 = vst [vmem:[#allocation2 + $0xa8] sm:$0xff] %v3579
      %3612 = vst [vmem:[#allocation2 + $0xb0] sm:$0xff] %v3580
      %3613 = vst [vmem:[#allocation2 + $0xb8] sm:$0xff] %v3581
      %3614 = vst [vmem:[#allocation2 + $0xc0] sm:$0xff] %v3582
      %3615 = vst [vmem:[#allocation2 + $0xc8] sm:$0xff] %v3583
      %3616 = vst [vmem:[#allocation2 + $0xd0] sm:$0xff] %v3584
      %3617 = vst [vmem:[#allocation2 + $0xd8] sm:$0xff] %v3585
      %3618 = vst [vmem:[#allocation2 + $0xe0] sm:$0xff] %v3586
      %3619 = vst [vmem:[#allocation2 + $0xe8] sm:$0xff] %v3587
      %3620 = vst [vmem:[#allocation2 + $0xf0] sm:$0xff] %v3588
      %3621 = vst [vmem:[#allocation2 + $0xf8] sm:$0xff] %v3589
      %s3622 = scalar_lea.vmem %s3, 1024
      %v3623 = vld [vmem:[%s3622] sm:$0xff]
      %v3624 = vld [vmem:[%s3622 + $0x8] sm:$0xff]
      %v3625 = vld [vmem:[%s3622 + $0x10] sm:$0xff]
      %v3626 = vld [vmem:[%s3622 + $0x18] sm:$0xff]
      %v3627 = vld [vmem:[%s3622 + $0x20] sm:$0xff]
      %v3628 = vld [vmem:[%s3622 + $0x28] sm:$0xff]
      %v3629 = vld [vmem:[%s3622 + $0x30] sm:$0xff]
      %v3630 = vld [vmem:[%s3622 + $0x38] sm:$0xff]
      %v3631 = vld [vmem:[%s3622 + $0x40] sm:$0xff]
      %v3632 = vld [vmem:[%s3622 + $0x48] sm:$0xff]
      %v3633 = vld [vmem:[%s3622 + $0x50] sm:$0xff]
      %v3634 = vld [vmem:[%s3622 + $0x58] sm:$0xff]
      %v3635 = vld [vmem:[%s3622 + $0x60] sm:$0xff]
      %v3636 = vld [vmem:[%s3622 + $0x68] sm:$0xff]
      %v3637 = vld [vmem:[%s3622 + $0x70] sm:$0xff]
      %v3638 = vld [vmem:[%s3622 + $0x78] sm:$0xff]
      %3639 = vmatprep.subr.mxu0 0.0
      %3640 = vmatpush1.msra.mxu0 %v3623
      %3641 = vmatprep.subr.mxu0 0.0
      %3642 = vmatpush1.msra.mxu0 %v3624
      %3643 = vmatprep.subr.mxu0 0.0
      %3644 = vmatpush1.msra.mxu0 %v3625
      %3645 = vmatprep.subr.mxu0 0.0
      %3646 = vmatpush1.msra.mxu0 %v3626
      %3647 = vmatprep.subr.mxu0 0.0
      %3648 = vmatpush1.msra.mxu0 %v3627
      %3649 = vmatprep.subr.mxu0 0.0
      %3650 = vmatpush1.msra.mxu0 %v3628
      %3651 = vmatprep.subr.mxu0 0.0
      %3652 = vmatpush1.msra.mxu0 %v3629
      %3653 = vmatprep.subr.mxu0 0.0
      %3654 = vmatpush1.msra.mxu0 %v3630
      %3655 = vmatprep.subr.mxu0 0.0
      %3656 = vmatpush1.msra.mxu0 %v3631
      %3657 = vmatprep.subr.mxu0 0.0
      %3658 = vmatpush1.msra.mxu0 %v3632
      %3659 = vmatprep.subr.mxu0 0.0
      %3660 = vmatpush1.msra.mxu0 %v3633
      %3661 = vmatprep.subr.mxu0 0.0
      %3662 = vmatpush1.msra.mxu0 %v3634
      %3663 = vmatprep.subr.mxu0 0.0
      %3664 = vmatpush1.msra.mxu0 %v3635
      %3665 = vmatprep.subr.mxu0 0.0
      %3666 = vmatpush1.msra.mxu0 %v3636
      %3667 = vmatprep.subr.mxu0 0.0
      %3668 = vmatpush1.msra.mxu0 %v3637
      %3669 = vmatprep.subr.mxu0 0.0
      %3670 = vmatpush1.msra.mxu0 %v3638
      %3671 = vmatprep.subr.mxu0 0.0
      %3672 = vmatpush1.msra.mxu0 0.0
      %3673 = vmatprep.subr.mxu0 0.0
      %3674 = vmatpush1.msra.mxu0 0.0
      %3675 = vmatprep.subr.mxu0 0.0
      %3676 = vmatpush1.msra.mxu0 0.0
      %3677 = vmatprep.subr.mxu0 0.0
      %3678 = vmatpush1.msra.mxu0 0.0
      %3679 = vmatprep.subr.mxu0 0.0
      %3680 = vmatpush1.msra.mxu0 0.0
      %3681 = vmatprep.subr.mxu0 0.0
      %3682 = vmatpush1.msra.mxu0 0.0
      %3683 = vmatprep.subr.mxu0 0.0
      %3684 = vmatpush1.msra.mxu0 0.0
      %3685 = vmatprep.subr.mxu0 0.0
      %3686 = vmatpush1.msra.mxu0 0.0
      %3687 = vmatprep.subr.mxu0 0.0
      %3688 = vmatpush1.msra.mxu0 0.0
      %3689 = vmatprep.subr.mxu0 0.0
      %3690 = vmatpush1.msra.mxu0 0.0
      %3691 = vmatprep.subr.mxu0 0.0
      %3692 = vmatpush1.msra.mxu0 0.0
      %3693 = vmatprep.subr.mxu0 0.0
      %3694 = vmatpush1.msra.mxu0 0.0
      %3695 = vmatprep.subr.mxu0 0.0
      %3696 = vmatpush1.msra.mxu0 0.0
      %3697 = vmatprep.subr.mxu0 0.0
      %3698 = vmatpush1.msra.mxu0 0.0
      %3699 = vmatprep.subr.mxu0 0.0
      %3700 = vmatpush1.msra.mxu0 0.0
      %3701 = vmatprep.subr.mxu0 0.0
      %3702 = vmatpush1.msra.mxu0 0.0
      %3703 = vmatprep.mubr.f32.mxu0 0.0
      %3704 = vmatmul.mubr.f32.gmra.mrb[0].mxu0 %v880
      %v3705 = vpop.f32.mrb[0].mxu0
      %v3706 = vadd.f32 0.0, %v3705
      %v3707 = vpop.f32.mrb[0].mxu0
      %3708 = vmatprep.mubr.f32.mxu0 0.0
      %3709 = vmatmul.mubr.f32.gmra.mrb[0].mxu0 %v967
      %v3710 = vpop.f32.mrb[0].mxu0
      %v3711 = vadd.f32 0.0, %v3710
      %v3712 = vpop.f32.mrb[0].mxu0
      %3713 = vmatprep.mubr.f32.mxu0 0.0
      %3714 = vmatmul.mubr.f32.gmra.mrb[0].mxu0 %v882
      %v3715 = vpop.f32.mrb[0].mxu0
      %v3716 = vadd.f32 0.0, %v3715
      %v3717 = vpop.f32.mrb[0].mxu0
      %3718 = vmatprep.mubr.f32.mxu0 0.0
      %3719 = vmatmul.mubr.f32.gmra.mrb[0].mxu0 %v968
      %v3720 = vpop.f32.mrb[0].mxu0
      %v3721 = vadd.f32 0.0, %v3720
      %v3722 = vpop.f32.mrb[0].mxu0
      %3723 = vmatprep.mubr.f32.mxu0 0.0
      %3724 = vmatmul.mubr.f32.gmra.mrb[0].mxu0 %v884
      %v3725 = vpop.f32.mrb[0].mxu0
      %v3726 = vadd.f32 0.0, %v3725
      %v3727 = vpop.f32.mrb[0].mxu0
      %3728 = vmatprep.mubr.f32.mxu0 0.0
      %3729 = vmatmul.mubr.f32.gmra.mrb[0].mxu0 %v969
      %v3730 = vpop.f32.mrb[0].mxu0
      %v3731 = vadd.f32 0.0, %v3730
      %v3732 = vpop.f32.mrb[0].mxu0
      %3733 = vmatprep.mubr.f32.mxu0 0.0
      %3734 = vmatmul.mubr.f32.gmra.mrb[0].mxu0 %v886
      %v3735 = vpop.f32.mrb[0].mxu0
      %v3736 = vadd.f32 0.0, %v3735
      %v3737 = vpop.f32.mrb[0].mxu0
      %3738 = vmatprep.mubr.f32.mxu0 0.0
      %3739 = vmatmul.mubr.f32.gmra.mrb[0].mxu0 %v970
      %v3740 = vpop.f32.mrb[0].mxu0
      %v3741 = vadd.f32 0.0, %v3740
      %v3742 = vpop.f32.mrb[0].mxu0
      %3743 = vmatprep.mubr.f32.mxu0 0.0
      %3744 = vmatmul.mubr.f32.gmra.mrb[0].mxu0 %v888
      %v3745 = vpop.f32.mrb[0].mxu0
      %v3746 = vadd.f32 0.0, %v3745
      %v3747 = vpop.f32.mrb[0].mxu0
      %3748 = vmatprep.mubr.f32.mxu0 0.0
      %3749 = vmatmul.mubr.f32.gmra.mrb[0].mxu0 %v971
      %v3750 = vpop.f32.mrb[0].mxu0
      %v3751 = vadd.f32 0.0, %v3750
      %v3752 = vpop.f32.mrb[0].mxu0
      %3753 = vmatprep.mubr.f32.mxu0 0.0
      %3754 = vmatmul.mubr.f32.gmra.mrb[0].mxu0 %v890
      %v3755 = vpop.f32.mrb[0].mxu0
      %v3756 = vadd.f32 0.0, %v3755
      %v3757 = vpop.f32.mrb[0].mxu0
      %3758 = vmatprep.mubr.f32.mxu0 0.0
      %3759 = vmatmul.mubr.f32.gmra.mrb[0].mxu0 %v972
      %v3760 = vpop.f32.mrb[0].mxu0
      %v3761 = vadd.f32 0.0, %v3760
      %v3762 = vpop.f32.mrb[0].mxu0
      %3763 = vmatprep.mubr.f32.mxu0 0.0
      %3764 = vmatmul.mubr.f32.gmra.mrb[0].mxu0 %v892
      %v3765 = vpop.f32.mrb[0].mxu0
      %v3766 = vadd.f32 0.0, %v3765
      %v3767 = vpop.f32.mrb[0].mxu0
      %3768 = vmatprep.mubr.f32.mxu0 0.0
      %3769 = vmatmul.mubr.f32.gmra.mrb[0].mxu0 %v973
      %v3770 = vpop.f32.mrb[0].mxu0
      %v3771 = vadd.f32 0.0, %v3770
      %v3772 = vpop.f32.mrb[0].mxu0
      %3773 = vmatprep.mubr.f32.mxu0 0.0
      %3774 = vmatmul.mubr.f32.gmra.mrb[0].mxu0 %v894
      %v3775 = vpop.f32.mrb[0].mxu0
      %v3776 = vadd.f32 0.0, %v3775
      %v3777 = vpop.f32.mrb[0].mxu0
      %3778 = vmatprep.mubr.f32.mxu0 0.0
      %3779 = vmatmul.mubr.f32.gmra.mrb[0].mxu0 %v974
      %v3780 = vpop.f32.mrb[0].mxu0
      %v3781 = vadd.f32 0.0, %v3780
      %v3782 = vpop.f32.mrb[0].mxu0
      %3783 = vmatprep.mubr.f32.mxu0 0.0
      %3784 = vmatmul.mubr.f32.gmra.mrb[0].mxu0 %v896
      %v3785 = vpop.f32.mrb[0].mxu0
      %v3786 = vadd.f32 0.0, %v3785
      %v3787 = vpop.f32.mrb[0].mxu0
      %3788 = vmatprep.mubr.f32.mxu0 0.0
      %3789 = vmatmul.mubr.f32.gmra.mrb[0].mxu0 %v975
      %v3790 = vpop.f32.mrb[0].mxu0
      %v3791 = vadd.f32 0.0, %v3790
      %v3792 = vpop.f32.mrb[0].mxu0
      %3793 = vmatprep.mubr.f32.mxu0 0.0
      %3794 = vmatmul.mubr.f32.gmra.mrb[0].mxu0 %v898
      %v3795 = vpop.f32.mrb[0].mxu0
      %v3796 = vadd.f32 0.0, %v3795
      %v3797 = vpop.f32.mrb[0].mxu0
      %3798 = vmatprep.mubr.f32.mxu0 0.0
      %3799 = vmatmul.mubr.f32.gmra.mrb[0].mxu0 %v976
      %v3800 = vpop.f32.mrb[0].mxu0
      %v3801 = vadd.f32 0.0, %v3800
      %v3802 = vpop.f32.mrb[0].mxu0
      %3803 = vmatprep.mubr.f32.mxu0 0.0
      %3804 = vmatmul.mubr.f32.gmra.mrb[0].mxu0 %v900
      %v3805 = vpop.f32.mrb[0].mxu0
      %v3806 = vadd.f32 0.0, %v3805
      %v3807 = vpop.f32.mrb[0].mxu0
      %3808 = vmatprep.mubr.f32.mxu0 0.0
      %3809 = vmatmul.mubr.f32.gmra.mrb[0].mxu0 %v977
      %v3810 = vpop.f32.mrb[0].mxu0
      %v3811 = vadd.f32 0.0, %v3810
      %v3812 = vpop.f32.mrb[0].mxu0
      %3813 = vmatprep.mubr.f32.mxu0 0.0
      %3814 = vmatmul.mubr.f32.gmra.mrb[0].mxu0 %v902
      %v3815 = vpop.f32.mrb[0].mxu0
      %v3816 = vadd.f32 0.0, %v3815
      %v3817 = vpop.f32.mrb[0].mxu0
      %3818 = vmatprep.mubr.f32.mxu0 0.0
      %3819 = vmatmul.mubr.f32.gmra.mrb[0].mxu0 %v978
      %v3820 = vpop.f32.mrb[0].mxu0
      %v3821 = vadd.f32 0.0, %v3820
      %v3822 = vpop.f32.mrb[0].mxu0
      %3823 = vmatprep.mubr.f32.mxu0 0.0
      %3824 = vmatmul.mubr.f32.gmra.mrb[0].mxu0 %v904
      %v3825 = vpop.f32.mrb[0].mxu0
      %v3826 = vadd.f32 0.0, %v3825
      %v3827 = vpop.f32.mrb[0].mxu0
      %3828 = vmatprep.mubr.f32.mxu0 0.0
      %3829 = vmatmul.mubr.f32.gmra.mrb[0].mxu0 %v979
      %v3830 = vpop.f32.mrb[0].mxu0
      %v3831 = vadd.f32 0.0, %v3830
      %v3832 = vpop.f32.mrb[0].mxu0
      %3833 = vmatprep.mubr.f32.mxu0 0.0
      %3834 = vmatmul.mubr.f32.gmra.mrb[0].mxu0 %v906
      %v3835 = vpop.f32.mrb[0].mxu0
      %v3836 = vadd.f32 0.0, %v3835
      %v3837 = vpop.f32.mrb[0].mxu0
      %3838 = vmatprep.mubr.f32.mxu0 0.0
      %3839 = vmatmul.mubr.f32.gmra.mrb[0].mxu0 %v980
      %v3840 = vpop.f32.mrb[0].mxu0
      %v3841 = vadd.f32 0.0, %v3840
      %v3842 = vpop.f32.mrb[0].mxu0
      %3843 = vmatprep.mubr.f32.mxu0 0.0
      %3844 = vmatmul.mubr.f32.gmra.mrb[0].mxu0 %v908
      %v3845 = vpop.f32.mrb[0].mxu0
      %v3846 = vadd.f32 0.0, %v3845
      %v3847 = vpop.f32.mrb[0].mxu0
      %3848 = vmatprep.mubr.f32.mxu0 0.0
      %3849 = vmatmul.mubr.f32.gmra.mrb[0].mxu0 %v981
      %v3850 = vpop.f32.mrb[0].mxu0
      %v3851 = vadd.f32 0.0, %v3850
      %v3852 = vpop.f32.mrb[0].mxu0
      %3853 = vmatprep.mubr.f32.mxu0 0.0
      %3854 = vmatmul.mubr.f32.gmra.mrb[0].mxu0 %v910
      %v3855 = vpop.f32.mrb[0].mxu0
      %v3856 = vadd.f32 0.0, %v3855
      %v3857 = vpop.f32.mrb[0].mxu0
      %3858 = vmatprep.mubr.f32.mxu0 0.0
      %3859 = vmatmul.mubr.f32.gmra.mrb[0].mxu0 %v982
      %v3860 = vpop.f32.mrb[0].mxu0
      %v3861 = vadd.f32 0.0, %v3860
      %v3862 = vpop.f32.mrb[0].mxu0
      %3863 = vdwg.mxu0
      %v3864 = vld [vmem:[#allocation2] sm:$0xff]
      %v3865 = vld [vmem:[#allocation2 + $0x8] sm:$0xff]
      %v3866 = vld [vmem:[#allocation2 + $0x10] sm:$0xff]
      %v3867 = vld [vmem:[#allocation2 + $0x18] sm:$0xff]
      %v3868 = vld [vmem:[#allocation2 + $0x20] sm:$0xff]
      %v3869 = vld [vmem:[#allocation2 + $0x28] sm:$0xff]
      %v3870 = vld [vmem:[#allocation2 + $0x30] sm:$0xff]
      %v3871 = vld [vmem:[#allocation2 + $0x38] sm:$0xff]
      %v3872 = vld [vmem:[#allocation2 + $0x40] sm:$0xff]
      %v3873 = vld [vmem:[#allocation2 + $0x48] sm:$0xff]
      %v3874 = vld [vmem:[#allocation2 + $0x50] sm:$0xff]
      %v3875 = vld [vmem:[#allocation2 + $0x58] sm:$0xff]
      %v3876 = vld [vmem:[#allocation2 + $0x60] sm:$0xff]
      %v3877 = vld [vmem:[#allocation2 + $0x68] sm:$0xff]
      %v3878 = vld [vmem:[#allocation2 + $0x70] sm:$0xff]
      %v3879 = vld [vmem:[#allocation2 + $0x78] sm:$0xff]
      %v3880 = vld [vmem:[#allocation2 + $0x80] sm:$0xff]
      %v3881 = vld [vmem:[#allocation2 + $0x88] sm:$0xff]
      %v3882 = vld [vmem:[#allocation2 + $0x90] sm:$0xff]
      %v3883 = vld [vmem:[#allocation2 + $0x98] sm:$0xff]
      %v3884 = vld [vmem:[#allocation2 + $0xa0] sm:$0xff]
      %v3885 = vld [vmem:[#allocation2 + $0xa8] sm:$0xff]
      %v3886 = vld [vmem:[#allocation2 + $0xb0] sm:$0xff]
      %v3887 = vld [vmem:[#allocation2 + $0xb8] sm:$0xff]
      %v3888 = vld [vmem:[#allocation2 + $0xc0] sm:$0xff]
      %v3889 = vld [vmem:[#allocation2 + $0xc8] sm:$0xff]
      %v3890 = vld [vmem:[#allocation2 + $0xd0] sm:$0xff]
      %v3891 = vld [vmem:[#allocation2 + $0xd8] sm:$0xff]
      %v3892 = vld [vmem:[#allocation2 + $0xe0] sm:$0xff]
      %v3893 = vld [vmem:[#allocation2 + $0xe8] sm:$0xff]
      %v3894 = vld [vmem:[#allocation2 + $0xf0] sm:$0xff]
      %v3895 = vld [vmem:[#allocation2 + $0xf8] sm:$0xff]
      %v3896 = vadd.f32 %v3864, %v3706
      %v3897 = vadd.f32 %v3865, %v3711
      %v3898 = vadd.f32 %v3866, %v3716
      %v3899 = vadd.f32 %v3867, %v3721
      %v3900 = vadd.f32 %v3868, %v3726
      %v3901 = vadd.f32 %v3869, %v3731
      %v3902 = vadd.f32 %v3870, %v3736
      %v3903 = vadd.f32 %v3871, %v3741
      %v3904 = vadd.f32 %v3872, %v3746
      %v3905 = vadd.f32 %v3873, %v3751
      %v3906 = vadd.f32 %v3874, %v3756
      %v3907 = vadd.f32 %v3875, %v3761
      %v3908 = vadd.f32 %v3876, %v3766
      %v3909 = vadd.f32 %v3877, %v3771
      %v3910 = vadd.f32 %v3878, %v3776
      %v3911 = vadd.f32 %v3879, %v3781
      %v3912 = vadd.f32 %v3880, %v3786
      %v3913 = vadd.f32 %v3881, %v3791
      %v3914 = vadd.f32 %v3882, %v3796
      %v3915 = vadd.f32 %v3883, %v3801
      %v3916 = vadd.f32 %v3884, %v3806
      %v3917 = vadd.f32 %v3885, %v3811
      %v3918 = vadd.f32 %v3886, %v3816
      %v3919 = vadd.f32 %v3887, %v3821
      %v3920 = vadd.f32 %v3888, %v3826
      %v3921 = vadd.f32 %v3889, %v3831
      %v3922 = vadd.f32 %v3890, %v3836
      %v3923 = vadd.f32 %v3891, %v3841
      %v3924 = vadd.f32 %v3892, %v3846
      %v3925 = vadd.f32 %v3893, %v3851
      %v3926 = vadd.f32 %v3894, %v3856
      %v3927 = vadd.f32 %v3895, %v3861
      %3928 = vst [vmem:[#allocation2] sm:$0xff] %v3896
      %3929 = vst [vmem:[#allocation2 + $0x8] sm:$0xff] %v3897
      %3930 = vst [vmem:[#allocation2 + $0x10] sm:$0xff] %v3898
      %3931 = vst [vmem:[#allocation2 + $0x18] sm:$0xff] %v3899
      %3932 = vst [vmem:[#allocation2 + $0x20] sm:$0xff] %v3900
      %3933 = vst [vmem:[#allocation2 + $0x28] sm:$0xff] %v3901
      %3934 = vst [vmem:[#allocation2 + $0x30] sm:$0xff] %v3902
      %3935 = vst [vmem:[#allocation2 + $0x38] sm:$0xff] %v3903
      %3936 = vst [vmem:[#allocation2 + $0x40] sm:$0xff] %v3904
      %3937 = vst [vmem:[#allocation2 + $0x48] sm:$0xff] %v3905
      %3938 = vst [vmem:[#allocation2 + $0x50] sm:$0xff] %v3906
      %3939 = vst [vmem:[#allocation2 + $0x58] sm:$0xff] %v3907
      %3940 = vst [vmem:[#allocation2 + $0x60] sm:$0xff] %v3908
      %3941 = vst [vmem:[#allocation2 + $0x68] sm:$0xff] %v3909
      %3942 = vst [vmem:[#allocation2 + $0x70] sm:$0xff] %v3910
      %3943 = vst [vmem:[#allocation2 + $0x78] sm:$0xff] %v3911
      %3944 = vst [vmem:[#allocation2 + $0x80] sm:$0xff] %v3912
      %3945 = vst [vmem:[#allocation2 + $0x88] sm:$0xff] %v3913
      %3946 = vst [vmem:[#allocation2 + $0x90] sm:$0xff] %v3914
      %3947 = vst [vmem:[#allocation2 + $0x98] sm:$0xff] %v3915
      %3948 = vst [vmem:[#allocation2 + $0xa0] sm:$0xff] %v3916
      %3949 = vst [vmem:[#allocation2 + $0xa8] sm:$0xff] %v3917
      %3950 = vst [vmem:[#allocation2 + $0xb0] sm:$0xff] %v3918
      %3951 = vst [vmem:[#allocation2 + $0xb8] sm:$0xff] %v3919
      %3952 = vst [vmem:[#allocation2 + $0xc0] sm:$0xff] %v3920
      %3953 = vst [vmem:[#allocation2 + $0xc8] sm:$0xff] %v3921
      %3954 = vst [vmem:[#allocation2 + $0xd0] sm:$0xff] %v3922
      %3955 = vst [vmem:[#allocation2 + $0xd8] sm:$0xff] %v3923
      %3956 = vst [vmem:[#allocation2 + $0xe0] sm:$0xff] %v3924
      %3957 = vst [vmem:[#allocation2 + $0xe8] sm:$0xff] %v3925
      %3958 = vst [vmem:[#allocation2 + $0xf0] sm:$0xff] %v3926
      %3959 = vst [vmem:[#allocation2 + $0xf8] sm:$0xff] %v3927
      %v3960 = vld [vmem:[#allocation2] sm:$0xff]
      %v3961 = vld [vmem:[#allocation2 + $0x8] sm:$0xff]
      %v3962 = vld [vmem:[#allocation2 + $0x10] sm:$0xff]
      %v3963 = vld [vmem:[#allocation2 + $0x18] sm:$0xff]
      %v3964 = vld [vmem:[#allocation2 + $0x20] sm:$0xff]
      %v3965 = vld [vmem:[#allocation2 + $0x28] sm:$0xff]
      %v3966 = vld [vmem:[#allocation2 + $0x30] sm:$0xff]
      %v3967 = vld [vmem:[#allocation2 + $0x38] sm:$0xff]
      %v3968 = vld [vmem:[#allocation2 + $0x40] sm:$0xff]
      %v3969 = vld [vmem:[#allocation2 + $0x48] sm:$0xff]
      %v3970 = vld [vmem:[#allocation2 + $0x50] sm:$0xff]
      %v3971 = vld [vmem:[#allocation2 + $0x58] sm:$0xff]
      %v3972 = vld [vmem:[#allocation2 + $0x60] sm:$0xff]
      %v3973 = vld [vmem:[#allocation2 + $0x68] sm:$0xff]
      %v3974 = vld [vmem:[#allocation2 + $0x70] sm:$0xff]
      %v3975 = vld [vmem:[#allocation2 + $0x78] sm:$0xff]
      %v3976 = vld [vmem:[#allocation2 + $0x80] sm:$0xff]
      %v3977 = vld [vmem:[#allocation2 + $0x88] sm:$0xff]
      %v3978 = vld [vmem:[#allocation2 + $0x90] sm:$0xff]
      %v3979 = vld [vmem:[#allocation2 + $0x98] sm:$0xff]
      %v3980 = vld [vmem:[#allocation2 + $0xa0] sm:$0xff]
      %v3981 = vld [vmem:[#allocation2 + $0xa8] sm:$0xff]
      %v3982 = vld [vmem:[#allocation2 + $0xb0] sm:$0xff]
      %v3983 = vld [vmem:[#allocation2 + $0xb8] sm:$0xff]
      %v3984 = vld [vmem:[#allocation2 + $0xc0] sm:$0xff]
      %v3985 = vld [vmem:[#allocation2 + $0xc8] sm:$0xff]
      %v3986 = vld [vmem:[#allocation2 + $0xd0] sm:$0xff]
      %v3987 = vld [vmem:[#allocation2 + $0xd8] sm:$0xff]
      %v3988 = vld [vmem:[#allocation2 + $0xe0] sm:$0xff]
      %v3989 = vld [vmem:[#allocation2 + $0xe8] sm:$0xff]
      %v3990 = vld [vmem:[#allocation2 + $0xf0] sm:$0xff]
      %v3991 = vld [vmem:[#allocation2 + $0xf8] sm:$0xff]
      %3992 = vst [vmem:[%s521] sm:$0xff] %v3960
      %3993 = vst [vmem:[%s521 + $0x8] sm:$0xff] %v3961
      %3994 = vst [vmem:[%s521 + $0x10] sm:$0xff] %v3962
      %3995 = vst [vmem:[%s521 + $0x18] sm:$0xff] %v3963
      %3996 = vst [vmem:[%s521 + $0x20] sm:$0xff] %v3964
      %3997 = vst [vmem:[%s521 + $0x28] sm:$0xff] %v3965
      %3998 = vst [vmem:[%s521 + $0x30] sm:$0xff] %v3966
      %3999 = vst [vmem:[%s521 + $0x38] sm:$0xff] %v3967
      %4000 = vst [vmem:[%s521 + $0x40] sm:$0xff] %v3968
      %4001 = vst [vmem:[%s521 + $0x48] sm:$0xff] %v3969
      %4002 = vst [vmem:[%s521 + $0x50] sm:$0xff] %v3970
      %4003 = vst [vmem:[%s521 + $0x58] sm:$0xff] %v3971
      %4004 = vst [vmem:[%s521 + $0x60] sm:$0xff] %v3972
      %4005 = vst [vmem:[%s521 + $0x68] sm:$0xff] %v3973
      %4006 = vst [vmem:[%s521 + $0x70] sm:$0xff] %v3974
      %4007 = vst [vmem:[%s521 + $0x78] sm:$0xff] %v3975
      %4008 = vst [vmem:[%s521 + $0x80] sm:$0xff] %v3976
      %4009 = vst [vmem:[%s521 + $0x88] sm:$0xff] %v3977
      %4010 = vst [vmem:[%s521 + $0x90] sm:$0xff] %v3978
      %4011 = vst [vmem:[%s521 + $0x98] sm:$0xff] %v3979
      %4012 = vst [vmem:[%s521 + $0xa0] sm:$0xff] %v3980
      %4013 = vst [vmem:[%s521 + $0xa8] sm:$0xff] %v3981
      %4014 = vst [vmem:[%s521 + $0xb0] sm:$0xff] %v3982
      %4015 = vst [vmem:[%s521 + $0xb8] sm:$0xff] %v3983
      %4016 = vst [vmem:[%s521 + $0xc0] sm:$0xff] %v3984
      %4017 = vst [vmem:[%s521 + $0xc8] sm:$0xff] %v3985
      %4018 = vst [vmem:[%s521 + $0xd0] sm:$0xff] %v3986
      %4019 = vst [vmem:[%s521 + $0xd8] sm:$0xff] %v3987
      %4020 = vst [vmem:[%s521 + $0xe0] sm:$0xff] %v3988
      %4021 = vst [vmem:[%s521 + $0xe8] sm:$0xff] %v3989
      %4022 = vst [vmem:[%s521 + $0xf0] sm:$0xff] %v3990
      %4023 = vst [vmem:[%s521 + $0xf8] sm:$0xff] %v3991
      %v4024 = vadd.f32 %v3960, %v3961
      %v4025 = vadd.f32 %v4024, %v3962
      %v4026 = vadd.f32 %v4025, %v3963
      %v4027 = vadd.f32 %v4026, %v3964
      %v4028 = vadd.f32 %v4027, %v3965
      %v4029 = vadd.f32 %v4028, %v3966
      %v4030 = vadd.f32 %v4029, %v3967
      %v4031 = vadd.f32 %v4030, %v3968
      %v4032 = vadd.f32 %v4031, %v3969
      %v4033 = vadd.f32 %v4032, %v3970
      %v4034 = vadd.f32 %v4033, %v3971
      %v4035 = vadd.f32 %v4034, %v3972
      %v4036 = vadd.f32 %v4035, %v3973
      %v4037 = vadd.f32 %v4036, %v3974
      %v4038 = vadd.f32 %v4037, %v3975
      %v4039 = vadd.f32 %v4038, %v3976
      %v4040 = vadd.f32 %v4039, %v3977
      %v4041 = vadd.f32 %v4040, %v3978
      %v4042 = vadd.f32 %v4041, %v3979
      %v4043 = vadd.f32 %v4042, %v3980
      %v4044 = vadd.f32 %v4043, %v3981
      %v4045 = vadd.f32 %v4044, %v3982
      %v4046 = vadd.f32 %v4045, %v3983
      %v4047 = vadd.f32 %v4046, %v3984
      %v4048 = vadd.f32 %v4047, %v3985
      %v4049 = vadd.f32 %v4048, %v3986
      %v4050 = vadd.f32 %v4049, %v3987
      %v4051 = vadd.f32 %v4050, %v3988
      %v4052 = vadd.f32 %v4051, %v3989
      %v4053 = vadd.f32 %v4052, %v3990
      %v4054 = vadd.f32 %v4053, %v3991
      %v4055 = vrot.slane %v4054, 4
      %v4056 = vadd.f32 %v4054, %v4055
      %v4057 = vrot.slane %v4056, 2
      %v4058 = vadd.f32 %v4056, %v4057
      %v4059 = vrot.slane %v4058, 1
      %v4060 = vadd.f32 %v4058, %v4059
      %4061 = vst [vmem:[%s528] sm:$0x1] %v4060
      %v4062 = vmul.f32 %v3960, %v3960
      %v4063 = vmul.f32 %v3961, %v3961
      %v4064 = vmul.f32 %v3962, %v3962
      %v4065 = vmul.f32 %v3963, %v3963
      %v4066 = vmul.f32 %v3964, %v3964
      %v4067 = vmul.f32 %v3965, %v3965
      %v4068 = vmul.f32 %v3966, %v3966
      %v4069 = vmul.f32 %v3967, %v3967
      %v4070 = vmul.f32 %v3968, %v3968
      %v4071 = vmul.f32 %v3969, %v3969
      %v4072 = vmul.f32 %v3970, %v3970
      %v4073 = vmul.f32 %v3971, %v3971
      %v4074 = vmul.f32 %v3972, %v3972
      %v4075 = vmul.f32 %v3973, %v3973
      %v4076 = vmul.f32 %v3974, %v3974
      %v4077 = vmul.f32 %v3975, %v3975
      %v4078 = vmul.f32 %v3976, %v3976
      %v4079 = vmul.f32 %v3977, %v3977
      %v4080 = vmul.f32 %v3978, %v3978
      %v4081 = vmul.f32 %v3979, %v3979
      %v4082 = vmul.f32 %v3980, %v3980
      %v4083 = vmul.f32 %v3981, %v3981
      %v4084 = vmul.f32 %v3982, %v3982
      %v4085 = vmul.f32 %v3983, %v3983
      %v4086 = vmul.f32 %v3984, %v3984
      %v4087 = vmul.f32 %v3985, %v3985
      %v4088 = vmul.f32 %v3986, %v3986
      %v4089 = vmul.f32 %v3987, %v3987
      %v4090 = vmul.f32 %v3988, %v3988
      %v4091 = vmul.f32 %v3989, %v3989
      %v4092 = vmul.f32 %v3990, %v3990
      %v4093 = vmul.f32 %v3991, %v3991
      %v4094 = vadd.f32 %v4062, %v4063
      %v4095 = vadd.f32 %v4094, %v4064
      %v4096 = vadd.f32 %v4095, %v4065
      %v4097 = vadd.f32 %v4096, %v4066
      %v4098 = vadd.f32 %v4097, %v4067
      %v4099 = vadd.f32 %v4098, %v4068
      %v4100 = vadd.f32 %v4099, %v4069
      %v4101 = vadd.f32 %v4100, %v4070
      %v4102 = vadd.f32 %v4101, %v4071
      %v4103 = vadd.f32 %v4102, %v4072
      %v4104 = vadd.f32 %v4103, %v4073
      %v4105 = vadd.f32 %v4104, %v4074
      %v4106 = vadd.f32 %v4105, %v4075
      %v4107 = vadd.f32 %v4106, %v4076
      %v4108 = vadd.f32 %v4107, %v4077
      %v4109 = vadd.f32 %v4108, %v4078
      %v4110 = vadd.f32 %v4109, %v4079
      %v4111 = vadd.f32 %v4110, %v4080
      %v4112 = vadd.f32 %v4111, %v4081
      %v4113 = vadd.f32 %v4112, %v4082
      %v4114 = vadd.f32 %v4113, %v4083
      %v4115 = vadd.f32 %v4114, %v4084
      %v4116 = vadd.f32 %v4115, %v4085
      %v4117 = vadd.f32 %v4116, %v4086
      %v4118 = vadd.f32 %v4117, %v4087
      %v4119 = vadd.f32 %v4118, %v4088
      %v4120 = vadd.f32 %v4119, %v4089
      %v4121 = vadd.f32 %v4120, %v4090
      %v4122 = vadd.f32 %v4121, %v4091
      %v4123 = vadd.f32 %v4122, %v4092
      %v4124 = vadd.f32 %v4123, %v4093
      %v4125 = vrot.slane %v4124, 4
      %v4126 = vadd.f32 %v4124, %v4125
      %v4127 = vrot.slane %v4126, 2
      %v4128 = vadd.f32 %v4126, %v4127
      %v4129 = vrot.slane %v4128, 1
      %v4130 = vadd.f32 %v4128, %v4129
      %4131 = vst [vmem:[%s534] sm:$0x1] %v4130
      %s4132 = smul.u32 16, %s25
      %p4133 = scmp.lt.s32.totalorder %s24, 1
      %s4134 = scalar_select %p4133, %s24, 1
      %p4135 = scmp.lt.s32.totalorder %s4132, 15
      %s4136 = scalar_select %p4135, %s4132, 15
      %s4137 = smul.addr %s4136, 2
      %s4138 = smul.addr %s4134, 32
      %s4139 = sadd.s32 %s4137, %s4138
      %s4140 = smul.addr %s4139, 8
      %s4141 = scalar_lea.vmem %s6, %s4140
      %p4142 = scmp.lt.s32.totalorder %s24, 1
      %s4143 = scalar_select %p4142, %s24, 1
      %p4144 = scmp.lt.s32.totalorder %s25, 0
      %s4145 = scalar_select %p4144, %s25, 0
      %s4146 = sadd.s32 %s4145, %s4143
      %s4147 = scalar_lea.vmem %s7, %s4146
      %p4148 = scmp.lt.s32.totalorder %s24, 1
      %s4149 = scalar_select %p4148, %s24, 1
      %p4150 = scmp.lt.s32.totalorder %s25, 0
      %s4151 = scalar_select %p4150, %s25, 0
      %s4152 = sadd.s32 %s4151, %s4149
      %s4153 = scalar_lea.vmem %s8, %s4152
      // Predicated region
      $region45: #{resnet_block_forward.4} parent=43 // pred_check
        %p4154 = pneg %p223
      $region46: #{resnet_block_forward.4} parent=43 // pred_check_branch
        %4156 = sbr.rel (%p4154) target = $region48
      $region47: #{resnet_block_forward.4} parent=43 // pred_region
        %s4157 = smul.u32 16, %s25
      $region48: #{resnet_block_forward.4} parent=43 // pred_fallthru
        _
      // Predicated region
      $region49: #{resnet_block_forward.4} parent=43 // pred_check
        %p4158 = pneg %p251
      $region50: #{resnet_block_forward.4} parent=43 // pred_check_branch
        %4160 = sbr.rel (%p4158) target = $region52
      $region51: #{resnet_block_forward.4} parent=43 // pred_region
        _
      $region52: #{resnet_block_forward.4} parent=43 // pred_fallthru
        _
      // Predicated region
      $region53: #{resnet_block_forward.4} parent=43 // pred_check
        %p4161 = pneg %p279
      $region54: #{resnet_block_forward.4} parent=43 // pred_check_branch
        %4163 = sbr.rel (%p4161) target = $region56
      $region55: #{resnet_block_forward.4} parent=43 // pred_region
        _
      $region56: #{resnet_block_forward.4} parent=43 // pred_fallthru
        _
    $region44: #{resnet_block_forward.4} parent=5 // pred_fallthru
      _
    %p4164 = scmp.le.s32.totalorder 2, %s15
    // Predicated region
    $region57: #{resnet_block_forward.4} parent=5 // pred_check
      %p4165 = pneg %p4164
    $region58: #{resnet_block_forward.4} parent=5 // pred_check_branch
      %4167 = sbr.rel (%p4165) target = $region60
    $region59: #{resnet_block_forward.4} parent=5 // pred_region
      %s4168 = ssub.s32 %s15, 2
      // Predicated region
      $region61: #{resnet_block_forward.4} parent=59 // pred_check
        %p4169 = pneg %p229
      $region62: #{resnet_block_forward.4} parent=59 // pred_check_branch
        %4171 = sbr.rel (%p4169) target = $region64
      $region63: #{resnet_block_forward.4} parent=59 // pred_region
        %s4172 = smul.u32 16, %s27
        %p4173 = scmp.lt.s32.totalorder %s26, 1
        %s4174 = scalar_select %p4173, %s26, 1
        %p4175 = scmp.lt.s32.totalorder %s4172, 15
        %s4176 = scalar_select %p4175, %s4172, 15
        %s4177 = smul.addr %s4176, 2
        %s4178 = smul.addr %s4174, 32
        %s4179 = sadd.s32 %s4177, %s4178
        %s4180 = smul.addr %s4179, 8
        %s4181 = scalar_lea.vmem %s6, %s4180
      $region64: #{resnet_block_forward.4} parent=59 // pred_fallthru
        _
      // Predicated region
      $region65: #{resnet_block_forward.4} parent=59 // pred_check
        %p4182 = pneg %p257
      $region66: #{resnet_block_forward.4} parent=59 // pred_check_branch
        %4184 = sbr.rel (%p4182) target = $region68
      $region67: #{resnet_block_forward.4} parent=59 // pred_region
        %p4185 = scmp.lt.s32.totalorder %s26, 1
        %s4186 = scalar_select %p4185, %s26, 1
        %p4187 = scmp.lt.s32.totalorder %s27, 0
        %s4188 = scalar_select %p4187, %s27, 0
        %s4189 = sadd.s32 %s4188, %s4186
        %s4190 = scalar_lea.vmem %s7, %s4189
      $region68: #{resnet_block_forward.4} parent=59 // pred_fallthru
        _
      // Predicated region
      $region69: #{resnet_block_forward.4} parent=59 // pred_check
        %p4191 = pneg %p285
      $region70: #{resnet_block_forward.4} parent=59 // pred_check_branch
        %4193 = sbr.rel (%p4191) target = $region72
      $region71: #{resnet_block_forward.4} parent=59 // pred_region
        %p4194 = scmp.lt.s32.totalorder %s26, 1
        %s4195 = scalar_select %p4194, %s26, 1
        %p4196 = scmp.lt.s32.totalorder %s27, 0
        %s4197 = scalar_select %p4196, %s27, 0
        %s4198 = sadd.s32 %s4197, %s4195
        %s4199 = scalar_lea.vmem %s8, %s4198
      $region72: #{resnet_block_forward.4} parent=59 // pred_fallthru
        _
    $region60: #{resnet_block_forward.4} parent=5 // pred_fallthru
      _
  $region6: #{resnet_block_forward.4} parent=0 // loop_footer
    %s19 = sadd.s32 1, %s15
  $region7: #{resnet_block_forward.4} parent=0 // loop_footer_branch
    %14 = sbr.rel target = $region3
  $region8: #{resnet_block_forward.4} parent=0 // loop_exit
    _

</llo_original>
